<compile_context>
chip_gen: v5e
topology: v5e:2x2
jax: 0.10.0
libtpu: 0.0.40
codegen_flags: <defaults>
</compile_context>

<pallas_src>
import functools

import jax
import jax.numpy as jnp
from jax import lax
from jax.experimental import pallas as pl
from jax.experimental.pallas import tpu as pltpu

F32 = jnp.float32
BF16 = jnp.bfloat16


# ----------------------------- in-kernel helpers -----------------------------

def _softmax_lastdim(s):
    m = jnp.max(s, axis=-1, keepdims=True)
    e = jnp.exp(s - m)
    return e * pl.reciprocal(jnp.sum(e, axis=-1, keepdims=True), approx=True)


def _gelu_tanh(x):
    # tanh-approx GELU (transcendental on the EUP slot).  |err| vs exact erf-GELU < ~1e-3.
    # TODO(synk): swap back to exact erf GELU if bit-level parity with nn.GELU is required.
    c = 0.7978845608028654  # sqrt(2/pi)
    return 0.5 * x * (1.0 + jnp.tanh(c * (x + 0.044715 * x * x * x)))


def _layer_norm(x, g, b, eps=1e-5):
    mu = jnp.mean(x, axis=-1, keepdims=True)
    var = jnp.mean((x - mu) ** 2, axis=-1, keepdims=True)
    return (x - mu) * lax.rsqrt(var + eps) * g + b


# ------------------------------ fused kernel ----------------------------------

def _encoder_block_kernel(x_ref, coor_ref,
                          ln1g, ln1b, wq, wk, wv, wproj, bproj,
                          ln2g, ln2b, wfc1, bfc1, wfc2, bfc2,
                          gw1, gb1, gw2, gb2, gw3, gb3,
                          f1wx, f1wf, f1b1, f1w2, f1b2, f1w3, f1b3,
                          f2wx, f2wf, f2b1, f2w2, f2b2, f2w3, f2b3,
                          xcat_ref, coorcat_ref, *, num_heads):
    """Processes a block of Bt batch elements: LN1 -> MHSA(+proj fold) -> res ->
    LN2 -> MLP -> res -> global max -> generate_feature -> GeoCrossAttention ->
    SubFold, writing the concatenated (N+P) outputs directly."""
    x = x_ref[...]                                     # (Bt, N, D) f32
    Bt, N, D = x.shape
    hd = D // num_heads
    scale = hd ** (-0.5)

    # ---- dense section, batch-flattened to M = Bt*N ---------------------------
    xf = x.reshape(Bt * N, D)

    # LN1 -> q/k/v projections (bf16 MXU operands, f32 accumulation)
    nx = _layer_norm(xf, ln1g[...], ln1b[...]).astype(BF16)
    q = jnp.dot(nx, wq[...], preferred_element_type=F32).astype(BF16)
    k = jnp.dot(nx, wk[...], preferred_element_type=F32).astype(BF16)
    v = jnp.dot(nx, wv[...], preferred_element_type=F32).astype(BF16)

    # Fold w_proj into the PV step: precompute V_h @ Wproj[h] over the flat batch.
    vw = []
    for h in range(num_heads):
        sl = slice(h * hd, (h + 1) * hd)
        vw.append(jnp.dot(v[:, sl], wproj[sl, :],
                          preferred_element_type=F32).astype(BF16))   # (Bt*N, D)

    # Per-batch, per-head attention; heads accumulate directly into a D-wide register.
    attn_rows = []
    for b in range(Bt):
        rows = slice(b * N, (b + 1) * N)
        acc = jnp.zeros((N, D), F32)
        for h in range(num_heads):
            sl = slice(h * hd, (h + 1) * hd)
            s = lax.dot_general(q[rows, sl], k[rows, sl],
                                (((1,), (1,)), ((), ())),
                                preferred_element_type=F32) * scale   # (N, N)
            p = _softmax_lastdim(s).astype(BF16)
            acc = acc + jnp.dot(p, vw[h][rows], preferred_element_type=F32)
        attn_rows.append(acc)
    attn = attn_rows[0] if Bt == 1 else jnp.concatenate(attn_rows, axis=0)
    xf = xf + attn + bproj[...]                         # residual 1 (+ proj bias)

    # LN2 -> MLP (tanh-GELU) -> residual
    nx2 = _layer_norm(xf, ln2g[...], ln2b[...]).astype(BF16)
    h1 = _gelu_tanh(jnp.dot(nx2, wfc1[...], preferred_element_type=F32) + bfc1[...])
    xf = xf + jnp.dot(h1.astype(BF16), wfc2[...], preferred_element_type=F32) + bfc2[...]

    # ---- per-batch tail: global max / generate_feature / cross-attn / SubFold --
    for b in range(Bt):
        rows = slice(b * N, (b + 1) * N)
        xb = xf[rows]                                   # (N, D) f32
        g = jnp.max(xb, axis=0, keepdims=True)          # (1, D)
        diff = (g - xb).astype(BF16)                    # (N, D)

        gh = jnp.dot(gw1[...], diff, preferred_element_type=F32) + gb1[...]   # (256, D)
        gh = jnp.maximum(gh, 0.2 * gh)                  # LeakyReLU(0.2)
        gh = jnp.dot(gw2[...], gh.astype(BF16), preferred_element_type=F32) + gb2[...]
        gh = jnp.maximum(gh, 0.2 * gh)
        x2 = jnp.dot(gw3[...], gh.astype(BF16), preferred_element_type=F32) + gb3[...]  # (P, D)

        # GeoCrossAttention: q = x2, k = x_new, v = coor (1 head, identity maps)
        s = lax.dot_general(x2.astype(BF16), xb.astype(BF16),
                            (((1,), (1,)), ((), ())),
                            preferred_element_type=F32) * (float(D) ** -0.5)  # (P, N)
        p = _softmax_lastdim(s)
        coor_b = coor_ref[b]                            # (N, 3)
        coor_att = jnp.dot(p, coor_b, preferred_element_type=F32)             # (P, 3)

        # SubFold (row layout; broadcast feature term folded into a per-fold bias)
        bias1 = jnp.dot(g, f1wf[...], preferred_element_type=F32) + f1b1[...]  # (1, hid)
        t = jnp.maximum(jnp.dot(coor_att, f1wx[...], preferred_element_type=F32) + bias1, 0.0)
        t = jnp.maximum(jnp.dot(t, f1w2[...], preferred_element_type=F32) + f1b2[...], 0.0)
        fd1 = jnp.dot(t, f1w3[...], preferred_element_type=F32) + f1b3[...]    # (P, 3)

        bias2 = jnp.dot(g, f2wf[...], preferred_element_type=F32) + f2b1[...]
        t = jnp.maximum(jnp.dot(fd1, f2wx[...], preferred_element_type=F32) + bias2, 0.0)
        t = jnp.maximum(jnp.dot(t, f2w2[...], preferred_element_type=F32) + f2b2[...], 0.0)
        coor2 = jnp.dot(t, f2w3[...], preferred_element_type=F32) + f2b3[...]  # (P, 3)

        # Direct writes of the concatenated outputs
        xcat_ref[b, :N, :] = xb
        xcat_ref[b, N:, :] = x2
        coorcat_ref[b, :N, :] = coor_b
        coorcat_ref[b, N:, :] = coor2


# --------------------------------- wrapper ------------------------------------

_WEIGHT_ORDER = ('ln1_g', 'ln1_b', 'w_q', 'w_k', 'w_v', 'w_proj', 'b_proj',
                 'ln2_g', 'ln2_b', 'w_fc1', 'b_fc1', 'w_fc2', 'b_fc2',
                 'gf_w1', 'gf_b1', 'gf_w2', 'gf_b2', 'gf_w3', 'gf_b3',
                 'f1_wx', 'f1_wf', 'f1_b1', 'f1_w2', 'f1_b2', 'f1_w3', 'f1_b3',
                 'f2_wx', 'f2_wf', 'f2_b1', 'f2_w2', 'f2_b2', 'f2_w3', 'f2_b3')

# Weights cast to bf16 for the MXU (biases / LN params / SubFold stay f32).
_BF16_KEYS = frozenset({'w_q', 'w_k', 'w_v', 'w_proj', 'w_fc1', 'w_fc2',
                        'gf_w1', 'gf_w2', 'gf_w3'})


def _default_batch_block(B):
    """Single-TC parts (v5e/v6e): flatten the whole batch into one grid step so the
    dense matmuls run with M = B*N and fixed grid overhead is paid once.
    Megacore / multi-TC parts (v4/v5p/v7x): keep one element per step so the
    'parallel' batch axis is sharded across TensorCores."""
    try:
        kind = jax.devices()[0].device_kind.lower()
    except Exception:
        return 1
    if any(t in kind for t in ("lite", "v5e", "v6e", "v2", "v3")):
        return B
    return 1


def encoder_block_forward(params, x, coor, *, num_heads, batch_block=None):
    B, N, D = x.shape
    P = params['gf_w3'].shape[0]
    Bt = _default_batch_block(B) if batch_block is None else batch_block
    if B % Bt != 0:
        Bt = 1

    ws = [params[k].astype(BF16) if k in _BF16_KEYS else params[k]
          for k in _WEIGHT_ORDER]

    def data_spec(trailing):
        nd = 1 + len(trailing)
        return pl.BlockSpec((Bt,) + tuple(trailing),
                            lambda i, _nd=nd: (i,) + (0,) * (_nd - 1))

    def rep_spec(w):
        nd = w.ndim
        return pl.BlockSpec(w.shape, lambda i, _nd=nd: (0,) * _nd)

    x_out, coor_out = pl.pallas_call(
        functools.partial(_encoder_block_kernel, num_heads=num_heads),
        grid=(B // Bt,),
        in_specs=[data_spec((N, D)), data_spec((N, 3))] + [rep_spec(w) for w in ws],
        out_specs=[data_spec((N + P, D)), data_spec((N + P, 3))],
        out_shape=[jax.ShapeDtypeStruct((B, N + P, D), F32),
                   jax.ShapeDtypeStruct((B, N + P, 3), F32)],
        compiler_params=pltpu.CompilerParams(
            dimension_semantics=("parallel",)),
    )(x, coor, *ws)
    return x_out, coor_out


# ------------------------------ deterministic init -----------------------------

def init_params(key, D, N, num_pred, mlp_ratio=4.0):
    Hm = int(D * mlp_ratio)
    hid = D // 2          # SubFold hidden_dim = dim // 2
    hid2 = hid // 2
    keys = iter(jax.random.split(key, 64))

    def nrm(shape, s=0.05):
        return jax.random.normal(next(keys), shape, F32) * s

    p = {}
    p['ln1_g'] = 1.0 + nrm((1, D), 0.02)
    p['ln1_b'] = nrm((1, D), 0.02)
    p['w_q'] = nrm((D, D))                             # qkv_bias=False
    p['w_k'] = nrm((D, D))
    p['w_v'] = nrm((D, D))
    p['w_proj'] = nrm((D, D))
    p['b_proj'] = nrm((1, D), 0.02)
    p['ln2_g'] = 1.0 + nrm((1, D), 0.02)
    p['ln2_b'] = nrm((1, D), 0.02)
    p['w_fc1'] = nrm((D, Hm))
    p['b_fc1'] = nrm((1, Hm), 0.02)
    p['w_fc2'] = nrm((Hm, D))
    p['b_fc2'] = nrm((1, D), 0.02)
    # generate_feature: Conv1d(num_point -> 256 -> 64 -> num_pred, kernel=1)
    p['gf_w1'] = nrm((256, N));       p['gf_b1'] = nrm((256, 1), 0.02)
    p['gf_w2'] = nrm((64, 256));      p['gf_b2'] = nrm((64, 1), 0.02)
    p['gf_w3'] = nrm((num_pred, 64)); p['gf_b3'] = nrm((num_pred, 1), 0.02)

    # SubFold foldings: Conv1d + BatchNorm1d (eval, running stats 0/1) folded; weights
    # stored in the kernel's row (channels-last) layout.
    def folding(prefix):
        dims = [(3 + D, hid), (hid, hid2), (hid2, 3)]
        mats = []
        for i, (cin, cout) in enumerate(dims):
            w = nrm((cout, cin))
            b = nrm((cout, 1), 0.02)
            if i < 2:  # conv followed by BN + ReLU -> fold BN
                gamma = 1.0 + nrm((cout, 1), 0.02)
                beta = nrm((cout, 1), 0.02)
                scale = gamma * lax.rsqrt(jnp.asarray(1.0 + 1e-5, F32))
                w = w * scale
                b = b * scale + beta
            mats.append((w, b))
        (w1, b1), (w2, b2), (w3, b3) = mats
        p[f'{prefix}_wx'] = jnp.transpose(w1[:, :3])      # (3,   hid)
        p[f'{prefix}_wf'] = jnp.transpose(w1[:, 3:])      # (D,   hid)
        p[f'{prefix}_b1'] = jnp.transpose(b1)             # (1,   hid)
        p[f'{prefix}_w2'] = jnp.transpose(w2)             # (hid, hid2)
        p[f'{prefix}_b2'] = jnp.transpose(b2)             # (1,   hid2)
        p[f'{prefix}_w3'] = jnp.transpose(w3)             # (hid2, 3)
        p[f'{prefix}_b3'] = jnp.transpose(b3)             # (1,   3)

    folding('f1')
    folding('f2')
    return p


# ------------------------------------ main -------------------------------------

if __name__ == "__main__":
    B, N, D, NUM_HEADS, NUM_PRED = 2, 128, 64, 4, 16   # num_point=128, dim=64, num_pred=16
    root = jax.random.PRNGKey(0)
    k_param, k_x, k_c = jax.random.split(root, 3)

    params = init_params(k_param, D, N, NUM_PRED)
    x = jax.random.normal(k_x, (B, N, D), F32)
    coor = jax.random.normal(k_c, (B, N, 3), F32)

    fwd = jax.jit(functools.partial(encoder_block_forward, num_heads=NUM_HEADS))
    x_out, coor_out = fwd(params, x, coor)
    jax.block_until_ready((x_out, coor_out))

    assert x_out.shape == (B, N + NUM_PRED, D) and x_out.dtype == F32
    assert coor_out.shape == (B, N + NUM_PRED, 3) and coor_out.dtype == F32
    assert bool(jnp.all(jnp.isfinite(x_out))) and bool(jnp.all(jnp.isfinite(coor_out)))
    print("KERNEL_OK")
</pallas_src>

<mosaic_0001>
module attributes {stable_mosaic.version = 11 : i64} {
  func.func @_encoder_block_kernel(%arg0: i32, %arg1: memref<1x128x64xf32, #tpu.memory_space<vmem>>, %arg2: memref<1x128x3xf32, #tpu.memory_space<vmem>>, %arg3: memref<1x64xf32, #tpu.memory_space<vmem>>, %arg4: memref<1x64xf32, #tpu.memory_space<vmem>>, %arg5: memref<64x64xbf16, #tpu.memory_space<vmem>>, %arg6: memref<64x64xbf16, #tpu.memory_space<vmem>>, %arg7: memref<64x64xbf16, #tpu.memory_space<vmem>>, %arg8: memref<64x64xbf16, #tpu.memory_space<vmem>>, %arg9: memref<1x64xf32, #tpu.memory_space<vmem>>, %arg10: memref<1x64xf32, #tpu.memory_space<vmem>>, %arg11: memref<1x64xf32, #tpu.memory_space<vmem>>, %arg12: memref<64x256xbf16, #tpu.memory_space<vmem>>, %arg13: memref<1x256xf32, #tpu.memory_space<vmem>>, %arg14: memref<256x64xbf16, #tpu.memory_space<vmem>>, %arg15: memref<1x64xf32, #tpu.memory_space<vmem>>, %arg16: memref<256x128xbf16, #tpu.memory_space<vmem>>, %arg17: memref<256x1xf32, #tpu.memory_space<vmem>>, %arg18: memref<64x256xbf16, #tpu.memory_space<vmem>>, %arg19: memref<64x1xf32, #tpu.memory_space<vmem>>, %arg20: memref<16x64xbf16, #tpu.memory_space<vmem>>, %arg21: memref<16x1xf32, #tpu.memory_space<vmem>>, %arg22: memref<3x32xf32, #tpu.memory_space<vmem>>, %arg23: memref<64x32xf32, #tpu.memory_space<vmem>>, %arg24: memref<1x32xf32, #tpu.memory_space<vmem>>, %arg25: memref<32x16xf32, #tpu.memory_space<vmem>>, %arg26: memref<1x16xf32, #tpu.memory_space<vmem>>, %arg27: memref<16x3xf32, #tpu.memory_space<vmem>>, %arg28: memref<1x3xf32, #tpu.memory_space<vmem>>, %arg29: memref<3x32xf32, #tpu.memory_space<vmem>>, %arg30: memref<64x32xf32, #tpu.memory_space<vmem>>, %arg31: memref<1x32xf32, #tpu.memory_space<vmem>>, %arg32: memref<32x16xf32, #tpu.memory_space<vmem>>, %arg33: memref<1x16xf32, #tpu.memory_space<vmem>>, %arg34: memref<16x3xf32, #tpu.memory_space<vmem>>, %arg35: memref<1x3xf32, #tpu.memory_space<vmem>>, %arg36: memref<1x144x64xf32, #tpu.memory_space<vmem>>, %arg37: memref<1x144x3xf32, #tpu.memory_space<vmem>>) attributes {dimension_semantics = [#tpu.dimension_semantics<parallel>], iteration_bounds = array<i64: 2>, scalar_prefetch = 0 : i64, scratch_operands = 0 : i64, tpu.core_type = #tpu.core_type<tc>, window_params = [{transform_indices = @transform_0, window_bounds = array<i64: 1, 128, 64>}, {transform_indices = @transform_1, window_bounds = array<i64: 1, 128, 3>}, {pipeline_mode = #tpu.pipeline_mode<synchronous>, transform_indices = @transform_2, window_bounds = array<i64: 1, 64>}, {pipeline_mode = #tpu.pipeline_mode<synchronous>, transform_indices = @transform_3, window_bounds = array<i64: 1, 64>}, {pipeline_mode = #tpu.pipeline_mode<synchronous>, transform_indices = @transform_4, window_bounds = array<i64: 64, 64>}, {pipeline_mode = #tpu.pipeline_mode<synchronous>, transform_indices = @transform_5, window_bounds = array<i64: 64, 64>}, {pipeline_mode = #tpu.pipeline_mode<synchronous>, transform_indices = @transform_6, window_bounds = array<i64: 64, 64>}, {pipeline_mode = #tpu.pipeline_mode<synchronous>, transform_indices = @transform_7, window_bounds = array<i64: 64, 64>}, {pipeline_mode = #tpu.pipeline_mode<synchronous>, transform_indices = @transform_8, window_bounds = array<i64: 1, 64>}, {pipeline_mode = #tpu.pipeline_mode<synchronous>, transform_indices = @transform_9, window_bounds = array<i64: 1, 64>}, {pipeline_mode = #tpu.pipeline_mode<synchronous>, transform_indices = @transform_10, window_bounds = array<i64: 1, 64>}, {pipeline_mode = #tpu.pipeline_mode<synchronous>, transform_indices = @transform_11, window_bounds = array<i64: 64, 256>}, {pipeline_mode = #tpu.pipeline_mode<synchronous>, transform_indices = @transform_12, window_bounds = array<i64: 1, 256>}, {pipeline_mode = #tpu.pipeline_mode<synchronous>, transform_indices = @transform_13, window_bounds = array<i64: 256, 64>}, {pipeline_mode = #tpu.pipeline_mode<synchronous>, transform_indices = @transform_14, window_bounds = array<i64: 1, 64>}, {pipeline_mode = #tpu.pipeline_mode<synchronous>, transform_indices = @transform_15, window_bounds = array<i64: 256, 128>}, {pipeline_mode = #tpu.pipeline_mode<synchronous>, transform_indices = @transform_16, window_bounds = array<i64: 256, 1>}, {pipeline_mode = #tpu.pipeline_mode<synchronous>, transform_indices = @transform_17, window_bounds = array<i64: 64, 256>}, {pipeline_mode = #tpu.pipeline_mode<synchronous>, transform_indices = @transform_18, window_bounds = array<i64: 64, 1>}, {pipeline_mode = #tpu.pipeline_mode<synchronous>, transform_indices = @transform_19, window_bounds = array<i64: 16, 64>}, {pipeline_mode = #tpu.pipeline_mode<synchronous>, transform_indices = @transform_20, window_bounds = array<i64: 16, 1>}, {pipeline_mode = #tpu.pipeline_mode<synchronous>, transform_indices = @transform_21, window_bounds = array<i64: 3, 32>}, {pipeline_mode = #tpu.pipeline_mode<synchronous>, transform_indices = @transform_22, window_bounds = array<i64: 64, 32>}, {pipeline_mode = #tpu.pipeline_mode<synchronous>, transform_indices = @transform_23, window_bounds = array<i64: 1, 32>}, {pipeline_mode = #tpu.pipeline_mode<synchronous>, transform_indices = @transform_24, window_bounds = array<i64: 32, 16>}, {pipeline_mode = #tpu.pipeline_mode<synchronous>, transform_indices = @transform_25, window_bounds = array<i64: 1, 16>}, {pipeline_mode = #tpu.pipeline_mode<synchronous>, transform_indices = @transform_26, window_bounds = array<i64: 16, 3>}, {pipeline_mode = #tpu.pipeline_mode<synchronous>, transform_indices = @transform_27, window_bounds = array<i64: 1, 3>}, {pipeline_mode = #tpu.pipeline_mode<synchronous>, transform_indices = @transform_28, window_bounds = array<i64: 3, 32>}, {pipeline_mode = #tpu.pipeline_mode<synchronous>, transform_indices = @transform_29, window_bounds = array<i64: 64, 32>}, {pipeline_mode = #tpu.pipeline_mode<synchronous>, transform_indices = @transform_30, window_bounds = array<i64: 1, 32>}, {pipeline_mode = #tpu.pipeline_mode<synchronous>, transform_indices = @transform_31, window_bounds = array<i64: 32, 16>}, {pipeline_mode = #tpu.pipeline_mode<synchronous>, transform_indices = @transform_32, window_bounds = array<i64: 1, 16>}, {pipeline_mode = #tpu.pipeline_mode<synchronous>, transform_indices = @transform_33, window_bounds = array<i64: 16, 3>}, {pipeline_mode = #tpu.pipeline_mode<synchronous>, transform_indices = @transform_34, window_bounds = array<i64: 1, 3>}, {transform_indices = @transform_35, window_bounds = array<i64: 1, 144, 64>}, {transform_indices = @transform_36, window_bounds = array<i64: 1, 144, 3>}]} {
    %c0 = arith.constant 0 : index
    %c0_0 = arith.constant 0 : index
    %c0_1 = arith.constant 0 : index
    %0 = vector.load %arg1[%c0, %c0_0, %c0_1] : memref<1x128x64xf32, #tpu.memory_space<vmem>>, vector<1x128x64xf32>
    %1 = vector.shape_cast %0 : vector<1x128x64xf32> to vector<128x64xf32>
    %c0_2 = arith.constant 0 : index
    %c0_3 = arith.constant 0 : index
    %2 = vector.load %arg3[%c0_2, %c0_3] : memref<1x64xf32, #tpu.memory_space<vmem>>, vector<1x64xf32>
    %c0_4 = arith.constant 0 : index
    %c0_5 = arith.constant 0 : index
    %3 = vector.load %arg4[%c0_4, %c0_5] : memref<1x64xf32, #tpu.memory_space<vmem>>, vector<1x64xf32>
    %cst = arith.constant dense<0.000000e+00> : vector<128xf32>
    %4 = vector.multi_reduction <add>, %1, %cst [1] : vector<128x64xf32> to vector<128xf32>
    %5 = vector.shape_cast %4 : vector<128xf32> to vector<128x1xf32>
    %cst_6 = arith.constant 6.400000e+01 : f32
    %6 = vector.broadcast %cst_6 : f32 to vector<128x1xf32>
    %7 = arith.divf %5, %6 : vector<128x1xf32>
    %8 = vector.broadcast %7 : vector<128x1xf32> to vector<128x64xf32>
    %9 = arith.subf %1, %8 : vector<128x64xf32>
    %10 = arith.mulf %9, %9 : vector<128x64xf32>
    %cst_7 = arith.constant dense<0.000000e+00> : vector<128xf32>
    %11 = vector.multi_reduction <add>, %10, %cst_7 [1] : vector<128x64xf32> to vector<128xf32>
    %12 = vector.shape_cast %11 : vector<128xf32> to vector<128x1xf32>
    %cst_8 = arith.constant 6.400000e+01 : f32
    %13 = vector.broadcast %cst_8 : f32 to vector<128x1xf32>
    %14 = arith.divf %12, %13 : vector<128x1xf32>
    %15 = vector.broadcast %7 : vector<128x1xf32> to vector<128x64xf32>
    %16 = arith.subf %1, %15 : vector<128x64xf32>
    %cst_9 = arith.constant 9.99999974E-6 : f32
    %17 = vector.broadcast %cst_9 : f32 to vector<128x1xf32>
    %18 = arith.addf %14, %17 : vector<128x1xf32>
    %19 = math.rsqrt %18 : vector<128x1xf32>
    %20 = vector.broadcast %19 : vector<128x1xf32> to vector<128x64xf32>
    %21 = arith.mulf %16, %20 : vector<128x64xf32>
    %22 = vector.broadcast %2 : vector<1x64xf32> to vector<128x64xf32>
    %23 = arith.mulf %21, %22 : vector<128x64xf32>
    %24 = vector.broadcast %3 : vector<1x64xf32> to vector<128x64xf32>
    %25 = arith.addf %23, %24 : vector<128x64xf32>
    %26 = arith.truncf %25 : vector<128x64xf32> to vector<128x64xbf16>
    %c0_10 = arith.constant 0 : index
    %c0_11 = arith.constant 0 : index
    %27 = vector.load %arg5[%c0_10, %c0_11] : memref<64x64xbf16, #tpu.memory_space<vmem>>, vector<64x64xbf16>
    %cst_12 = arith.constant dense<0.000000e+00> : vector<128x64xf32>
    %28 = tpu.matmul %26, %27, %cst_12 {dimension_numbers = #tpu.dot_dimension_numbers<[1], [0], [0], [1], [0, 0, 1, 1], [], []>} : vector<128x64xbf16>, vector<64x64xbf16>, vector<128x64xf32> -> vector<128x64xf32>
    %29 = arith.truncf %28 : vector<128x64xf32> to vector<128x64xbf16>
    %c0_13 = arith.constant 0 : index
    %c0_14 = arith.constant 0 : index
    %30 = vector.load %arg6[%c0_13, %c0_14] : memref<64x64xbf16, #tpu.memory_space<vmem>>, vector<64x64xbf16>
    %cst_15 = arith.constant dense<0.000000e+00> : vector<128x64xf32>
    %31 = tpu.matmul %26, %30, %cst_15 {dimension_numbers = #tpu.dot_dimension_numbers<[1], [0], [0], [1], [0, 0, 1, 1], [], []>} : vector<128x64xbf16>, vector<64x64xbf16>, vector<128x64xf32> -> vector<128x64xf32>
    %32 = arith.truncf %31 : vector<128x64xf32> to vector<128x64xbf16>
    %c0_16 = arith.constant 0 : index
    %c0_17 = arith.constant 0 : index
    %33 = vector.load %arg7[%c0_16, %c0_17] : memref<64x64xbf16, #tpu.memory_space<vmem>>, vector<64x64xbf16>
    %cst_18 = arith.constant dense<0.000000e+00> : vector<128x64xf32>
    %34 = tpu.matmul %26, %33, %cst_18 {dimension_numbers = #tpu.dot_dimension_numbers<[1], [0], [0], [1], [0, 0, 1, 1], [], []>} : vector<128x64xbf16>, vector<64x64xbf16>, vector<128x64xf32> -> vector<128x64xf32>
    %35 = arith.truncf %34 : vector<128x64xf32> to vector<128x64xbf16>
    %36 = vector.extract_strided_slice %35 {offsets = [0, 0], sizes = [128, 16], strides = [1, 1]} : vector<128x64xbf16> to vector<128x16xbf16>
    %c0_19 = arith.constant 0 : index
    %c0_20 = arith.constant 0 : index
    %37 = vector.load %arg8[%c0_19, %c0_20] : memref<64x64xbf16, #tpu.memory_space<vmem>>, vector<16x64xbf16>
    %cst_21 = arith.constant dense<0.000000e+00> : vector<128x64xf32>
    %38 = tpu.matmul %36, %37, %cst_21 {dimension_numbers = #tpu.dot_dimension_numbers<[1], [0], [0], [1], [0, 0, 1, 1], [], []>} : vector<128x16xbf16>, vector<16x64xbf16>, vector<128x64xf32> -> vector<128x64xf32>
    %39 = arith.truncf %38 : vector<128x64xf32> to vector<128x64xbf16>
    %40 = vector.extract_strided_slice %35 {offsets = [0, 16], sizes = [128, 16], strides = [1, 1]} : vector<128x64xbf16> to vector<128x16xbf16>
    %c16 = arith.constant 16 : index
    %c0_22 = arith.constant 0 : index
    %41 = vector.load %arg8[%c16, %c0_22] : memref<64x64xbf16, #tpu.memory_space<vmem>>, vector<16x64xbf16>
    %cst_23 = arith.constant dense<0.000000e+00> : vector<128x64xf32>
    %42 = tpu.matmul %40, %41, %cst_23 {dimension_numbers = #tpu.dot_dimension_numbers<[1], [0], [0], [1], [0, 0, 1, 1], [], []>} : vector<128x16xbf16>, vector<16x64xbf16>, vector<128x64xf32> -> vector<128x64xf32>
    %43 = arith.truncf %42 : vector<128x64xf32> to vector<128x64xbf16>
    %44 = vector.extract_strided_slice %35 {offsets = [0, 32], sizes = [128, 16], strides = [1, 1]} : vector<128x64xbf16> to vector<128x16xbf16>
    %c32 = arith.constant 32 : index
    %c0_24 = arith.constant 0 : index
    %45 = vector.load %arg8[%c32, %c0_24] : memref<64x64xbf16, #tpu.memory_space<vmem>>, vector<16x64xbf16>
    %cst_25 = arith.constant dense<0.000000e+00> : vector<128x64xf32>
    %46 = tpu.matmul %44, %45, %cst_25 {dimension_numbers = #tpu.dot_dimension_numbers<[1], [0], [0], [1], [0, 0, 1, 1], [], []>} : vector<128x16xbf16>, vector<16x64xbf16>, vector<128x64xf32> -> vector<128x64xf32>
    %47 = arith.truncf %46 : vector<128x64xf32> to vector<128x64xbf16>
    %48 = vector.extract_strided_slice %35 {offsets = [0, 48], sizes = [128, 16], strides = [1, 1]} : vector<128x64xbf16> to vector<128x16xbf16>
    %c48 = arith.constant 48 : index
    %c0_26 = arith.constant 0 : index
    %49 = vector.load %arg8[%c48, %c0_26] : memref<64x64xbf16, #tpu.memory_space<vmem>>, vector<16x64xbf16>
    %cst_27 = arith.constant dense<0.000000e+00> : vector<128x64xf32>
    %50 = tpu.matmul %48, %49, %cst_27 {dimension_numbers = #tpu.dot_dimension_numbers<[1], [0], [0], [1], [0, 0, 1, 1], [], []>} : vector<128x16xbf16>, vector<16x64xbf16>, vector<128x64xf32> -> vector<128x64xf32>
    %51 = arith.truncf %50 : vector<128x64xf32> to vector<128x64xbf16>
    %cst_28 = arith.constant 0.000000e+00 : f32
    %52 = vector.broadcast %cst_28 : f32 to vector<128x64xf32>
    %53 = vector.extract_strided_slice %29 {offsets = [0, 0], sizes = [128, 16], strides = [1, 1]} : vector<128x64xbf16> to vector<128x16xbf16>
    %54 = vector.extract_strided_slice %32 {offsets = [0, 0], sizes = [128, 16], strides = [1, 1]} : vector<128x64xbf16> to vector<128x16xbf16>
    %cst_29 = arith.constant dense<0.000000e+00> : vector<128x128xf32>
    %55 = tpu.matmul %53, %54, %cst_29 {dimension_numbers = #tpu.dot_dimension_numbers<[1], [1], [0], [0], [0, 0, 1, 0], [], []>} : vector<128x16xbf16>, vector<128x16xbf16>, vector<128x128xf32> -> vector<128x128xf32>
    %cst_30 = arith.constant 2.500000e-01 : f32
    %56 = vector.broadcast %cst_30 : f32 to vector<128x128xf32>
    %57 = arith.mulf %55, %56 : vector<128x128xf32>
    %cst_31 = arith.constant dense<0xFF800000> : vector<128xf32>
    %58 = vector.multi_reduction <maximumf>, %57, %cst_31 [1] : vector<128x128xf32> to vector<128xf32>
    %59 = vector.shape_cast %58 : vector<128xf32> to vector<128x1xf32>
    %60 = vector.broadcast %59 : vector<128x1xf32> to vector<128x128xf32>
    %61 = arith.subf %57, %60 : vector<128x128xf32>
    %62 = math.exp %61 : vector<128x128xf32>
    %cst_32 = arith.constant dense<0.000000e+00> : vector<128xf32>
    %63 = vector.multi_reduction <add>, %62, %cst_32 [1] : vector<128x128xf32> to vector<128xf32>
    %64 = vector.shape_cast %63 : vector<128xf32> to vector<128x1xf32>
    %65 = tpu.reciprocal %64 {approx = true} : vector<128x1xf32> -> vector<128x1xf32>
    %66 = vector.broadcast %65 : vector<128x1xf32> to vector<128x128xf32>
    %67 = arith.mulf %62, %66 : vector<128x128xf32>
    %68 = arith.truncf %67 : vector<128x128xf32> to vector<128x128xbf16>
    %cst_33 = arith.constant dense<0.000000e+00> : vector<128x64xf32>
    %69 = tpu.matmul %68, %39, %cst_33 {dimension_numbers = #tpu.dot_dimension_numbers<[1], [0], [0], [1], [0, 0, 1, 1], [], []>} : vector<128x128xbf16>, vector<128x64xbf16>, vector<128x64xf32> -> vector<128x64xf32>
    %70 = arith.addf %52, %69 : vector<128x64xf32>
    %71 = vector.extract_strided_slice %29 {offsets = [0, 16], sizes = [128, 16], strides = [1, 1]} : vector<128x64xbf16> to vector<128x16xbf16>
    %72 = vector.extract_strided_slice %32 {offsets = [0, 16], sizes = [128, 16], strides = [1, 1]} : vector<128x64xbf16> to vector<128x16xbf16>
    %cst_34 = arith.constant dense<0.000000e+00> : vector<128x128xf32>
    %73 = tpu.matmul %71, %72, %cst_34 {dimension_numbers = #tpu.dot_dimension_numbers<[1], [1], [0], [0], [0, 0, 1, 0], [], []>} : vector<128x16xbf16>, vector<128x16xbf16>, vector<128x128xf32> -> vector<128x128xf32>
    %cst_35 = arith.constant 2.500000e-01 : f32
    %74 = vector.broadcast %cst_35 : f32 to vector<128x128xf32>
    %75 = arith.mulf %73, %74 : vector<128x128xf32>
    %cst_36 = arith.constant dense<0xFF800000> : vector<128xf32>
    %76 = vector.multi_reduction <maximumf>, %75, %cst_36 [1] : vector<128x128xf32> to vector<128xf32>
    %77 = vector.shape_cast %76 : vector<128xf32> to vector<128x1xf32>
    %78 = vector.broadcast %77 : vector<128x1xf32> to vector<128x128xf32>
    %79 = arith.subf %75, %78 : vector<128x128xf32>
    %80 = math.exp %79 : vector<128x128xf32>
    %cst_37 = arith.constant dense<0.000000e+00> : vector<128xf32>
    %81 = vector.multi_reduction <add>, %80, %cst_37 [1] : vector<128x128xf32> to vector<128xf32>
    %82 = vector.shape_cast %81 : vector<128xf32> to vector<128x1xf32>
    %83 = tpu.reciprocal %82 {approx = true} : vector<128x1xf32> -> vector<128x1xf32>
    %84 = vector.broadcast %83 : vector<128x1xf32> to vector<128x128xf32>
    %85 = arith.mulf %80, %84 : vector<128x128xf32>
    %86 = arith.truncf %85 : vector<128x128xf32> to vector<128x128xbf16>
    %cst_38 = arith.constant dense<0.000000e+00> : vector<128x64xf32>
    %87 = tpu.matmul %86, %43, %cst_38 {dimension_numbers = #tpu.dot_dimension_numbers<[1], [0], [0], [1], [0, 0, 1, 1], [], []>} : vector<128x128xbf16>, vector<128x64xbf16>, vector<128x64xf32> -> vector<128x64xf32>
    %88 = arith.addf %70, %87 : vector<128x64xf32>
    %89 = vector.extract_strided_slice %29 {offsets = [0, 32], sizes = [128, 16], strides = [1, 1]} : vector<128x64xbf16> to vector<128x16xbf16>
    %90 = vector.extract_strided_slice %32 {offsets = [0, 32], sizes = [128, 16], strides = [1, 1]} : vector<128x64xbf16> to vector<128x16xbf16>
    %cst_39 = arith.constant dense<0.000000e+00> : vector<128x128xf32>
    %91 = tpu.matmul %89, %90, %cst_39 {dimension_numbers = #tpu.dot_dimension_numbers<[1], [1], [0], [0], [0, 0, 1, 0], [], []>} : vector<128x16xbf16>, vector<128x16xbf16>, vector<128x128xf32> -> vector<128x128xf32>
    %cst_40 = arith.constant 2.500000e-01 : f32
    %92 = vector.broadcast %cst_40 : f32 to vector<128x128xf32>
    %93 = arith.mulf %91, %92 : vector<128x128xf32>
    %cst_41 = arith.constant dense<0xFF800000> : vector<128xf32>
    %94 = vector.multi_reduction <maximumf>, %93, %cst_41 [1] : vector<128x128xf32> to vector<128xf32>
    %95 = vector.shape_cast %94 : vector<128xf32> to vector<128x1xf32>
    %96 = vector.broadcast %95 : vector<128x1xf32> to vector<128x128xf32>
    %97 = arith.subf %93, %96 : vector<128x128xf32>
    %98 = math.exp %97 : vector<128x128xf32>
    %cst_42 = arith.constant dense<0.000000e+00> : vector<128xf32>
    %99 = vector.multi_reduction <add>, %98, %cst_42 [1] : vector<128x128xf32> to vector<128xf32>
    %100 = vector.shape_cast %99 : vector<128xf32> to vector<128x1xf32>
    %101 = tpu.reciprocal %100 {approx = true} : vector<128x1xf32> -> vector<128x1xf32>
    %102 = vector.broadcast %101 : vector<128x1xf32> to vector<128x128xf32>
    %103 = arith.mulf %98, %102 : vector<128x128xf32>
    %104 = arith.truncf %103 : vector<128x128xf32> to vector<128x128xbf16>
    %cst_43 = arith.constant dense<0.000000e+00> : vector<128x64xf32>
    %105 = tpu.matmul %104, %47, %cst_43 {dimension_numbers = #tpu.dot_dimension_numbers<[1], [0], [0], [1], [0, 0, 1, 1], [], []>} : vector<128x128xbf16>, vector<128x64xbf16>, vector<128x64xf32> -> vector<128x64xf32>
    %106 = arith.addf %88, %105 : vector<128x64xf32>
    %107 = vector.extract_strided_slice %29 {offsets = [0, 48], sizes = [128, 16], strides = [1, 1]} : vector<128x64xbf16> to vector<128x16xbf16>
    %108 = vector.extract_strided_slice %32 {offsets = [0, 48], sizes = [128, 16], strides = [1, 1]} : vector<128x64xbf16> to vector<128x16xbf16>
    %cst_44 = arith.constant dense<0.000000e+00> : vector<128x128xf32>
    %109 = tpu.matmul %107, %108, %cst_44 {dimension_numbers = #tpu.dot_dimension_numbers<[1], [1], [0], [0], [0, 0, 1, 0], [], []>} : vector<128x16xbf16>, vector<128x16xbf16>, vector<128x128xf32> -> vector<128x128xf32>
    %cst_45 = arith.constant 2.500000e-01 : f32
    %110 = vector.broadcast %cst_45 : f32 to vector<128x128xf32>
    %111 = arith.mulf %109, %110 : vector<128x128xf32>
    %cst_46 = arith.constant dense<0xFF800000> : vector<128xf32>
    %112 = vector.multi_reduction <maximumf>, %111, %cst_46 [1] : vector<128x128xf32> to vector<128xf32>
    %113 = vector.shape_cast %112 : vector<128xf32> to vector<128x1xf32>
    %114 = vector.broadcast %113 : vector<128x1xf32> to vector<128x128xf32>
    %115 = arith.subf %111, %114 : vector<128x128xf32>
    %116 = math.exp %115 : vector<128x128xf32>
    %cst_47 = arith.constant dense<0.000000e+00> : vector<128xf32>
    %117 = vector.multi_reduction <add>, %116, %cst_47 [1] : vector<128x128xf32> to vector<128xf32>
    %118 = vector.shape_cast %117 : vector<128xf32> to vector<128x1xf32>
    %119 = tpu.reciprocal %118 {approx = true} : vector<128x1xf32> -> vector<128x1xf32>
    %120 = vector.broadcast %119 : vector<128x1xf32> to vector<128x128xf32>
    %121 = arith.mulf %116, %120 : vector<128x128xf32>
    %122 = arith.truncf %121 : vector<128x128xf32> to vector<128x128xbf16>
    %cst_48 = arith.constant dense<0.000000e+00> : vector<128x64xf32>
    %123 = tpu.matmul %122, %51, %cst_48 {dimension_numbers = #tpu.dot_dimension_numbers<[1], [0], [0], [1], [0, 0, 1, 1], [], []>} : vector<128x128xbf16>, vector<128x64xbf16>, vector<128x64xf32> -> vector<128x64xf32>
    %124 = arith.addf %106, %123 : vector<128x64xf32>
    %125 = arith.addf %1, %124 : vector<128x64xf32>
    %c0_49 = arith.constant 0 : index
    %c0_50 = arith.constant 0 : index
    %126 = vector.load %arg9[%c0_49, %c0_50] : memref<1x64xf32, #tpu.memory_space<vmem>>, vector<1x64xf32>
    %127 = vector.broadcast %126 : vector<1x64xf32> to vector<128x64xf32>
    %128 = arith.addf %125, %127 : vector<128x64xf32>
    %c0_51 = arith.constant 0 : index
    %c0_52 = arith.constant 0 : index
    %129 = vector.load %arg10[%c0_51, %c0_52] : memref<1x64xf32, #tpu.memory_space<vmem>>, vector<1x64xf32>
    %c0_53 = arith.constant 0 : index
    %c0_54 = arith.constant 0 : index
    %130 = vector.load %arg11[%c0_53, %c0_54] : memref<1x64xf32, #tpu.memory_space<vmem>>, vector<1x64xf32>
    %cst_55 = arith.constant dense<0.000000e+00> : vector<128xf32>
    %131 = vector.multi_reduction <add>, %128, %cst_55 [1] : vector<128x64xf32> to vector<128xf32>
    %132 = vector.shape_cast %131 : vector<128xf32> to vector<128x1xf32>
    %cst_56 = arith.constant 6.400000e+01 : f32
    %133 = vector.broadcast %cst_56 : f32 to vector<128x1xf32>
    %134 = arith.divf %132, %133 : vector<128x1xf32>
    %135 = vector.broadcast %134 : vector<128x1xf32> to vector<128x64xf32>
    %136 = arith.subf %128, %135 : vector<128x64xf32>
    %137 = arith.mulf %136, %136 : vector<128x64xf32>
    %cst_57 = arith.constant dense<0.000000e+00> : vector<128xf32>
    %138 = vector.multi_reduction <add>, %137, %cst_57 [1] : vector<128x64xf32> to vector<128xf32>
    %139 = vector.shape_cast %138 : vector<128xf32> to vector<128x1xf32>
    %cst_58 = arith.constant 6.400000e+01 : f32
    %140 = vector.broadcast %cst_58 : f32 to vector<128x1xf32>
    %141 = arith.divf %139, %140 : vector<128x1xf32>
    %142 = vector.broadcast %134 : vector<128x1xf32> to vector<128x64xf32>
    %143 = arith.subf %128, %142 : vector<128x64xf32>
    %cst_59 = arith.constant 9.99999974E-6 : f32
    %144 = vector.broadcast %cst_59 : f32 to vector<128x1xf32>
    %145 = arith.addf %141, %144 : vector<128x1xf32>
    %146 = math.rsqrt %145 : vector<128x1xf32>
    %147 = vector.broadcast %146 : vector<128x1xf32> to vector<128x64xf32>
    %148 = arith.mulf %143, %147 : vector<128x64xf32>
    %149 = vector.broadcast %129 : vector<1x64xf32> to vector<128x64xf32>
    %150 = arith.mulf %148, %149 : vector<128x64xf32>
    %151 = vector.broadcast %130 : vector<1x64xf32> to vector<128x64xf32>
    %152 = arith.addf %150, %151 : vector<128x64xf32>
    %153 = arith.truncf %152 : vector<128x64xf32> to vector<128x64xbf16>
    %c0_60 = arith.constant 0 : index
    %c0_61 = arith.constant 0 : index
    %154 = vector.load %arg12[%c0_60, %c0_61] : memref<64x256xbf16, #tpu.memory_space<vmem>>, vector<64x256xbf16>
    %cst_62 = arith.constant dense<0.000000e+00> : vector<128x256xf32>
    %155 = tpu.matmul %153, %154, %cst_62 {dimension_numbers = #tpu.dot_dimension_numbers<[1], [0], [0], [1], [0, 0, 1, 1], [], []>} : vector<128x64xbf16>, vector<64x256xbf16>, vector<128x256xf32> -> vector<128x256xf32>
    %c0_63 = arith.constant 0 : index
    %c0_64 = arith.constant 0 : index
    %156 = vector.load %arg13[%c0_63, %c0_64] : memref<1x256xf32, #tpu.memory_space<vmem>>, vector<1x256xf32>
    %157 = vector.broadcast %156 : vector<1x256xf32> to vector<128x256xf32>
    %158 = arith.addf %155, %157 : vector<128x256xf32>
    %cst_65 = arith.constant 5.000000e-01 : f32
    %159 = vector.broadcast %cst_65 : f32 to vector<128x256xf32>
    %160 = arith.mulf %159, %158 : vector<128x256xf32>
    %cst_66 = arith.constant 4.471500e-02 : f32
    %161 = vector.broadcast %cst_66 : f32 to vector<128x256xf32>
    %162 = arith.mulf %161, %158 : vector<128x256xf32>
    %163 = arith.mulf %162, %158 : vector<128x256xf32>
    %164 = arith.mulf %163, %158 : vector<128x256xf32>
    %165 = arith.addf %158, %164 : vector<128x256xf32>
    %cst_67 = arith.constant 0.797884583 : f32
    %166 = vector.broadcast %cst_67 : f32 to vector<128x256xf32>
    %167 = arith.mulf %166, %165 : vector<128x256xf32>
    %168 = math.tanh %167 : vector<128x256xf32>
    %cst_68 = arith.constant 1.000000e+00 : f32
    %169 = vector.broadcast %cst_68 : f32 to vector<128x256xf32>
    %170 = arith.addf %169, %168 : vector<128x256xf32>
    %171 = arith.mulf %160, %170 : vector<128x256xf32>
    %172 = arith.truncf %171 : vector<128x256xf32> to vector<128x256xbf16>
    %c0_69 = arith.constant 0 : index
    %c0_70 = arith.constant 0 : index
    %173 = vector.load %arg14[%c0_69, %c0_70] : memref<256x64xbf16, #tpu.memory_space<vmem>>, vector<256x64xbf16>
    %cst_71 = arith.constant dense<0.000000e+00> : vector<128x64xf32>
    %174 = tpu.matmul %172, %173, %cst_71 {dimension_numbers = #tpu.dot_dimension_numbers<[1], [0], [0], [1], [0, 0, 1, 1], [], []>} : vector<128x256xbf16>, vector<256x64xbf16>, vector<128x64xf32> -> vector<128x64xf32>
    %175 = arith.addf %128, %174 : vector<128x64xf32>
    %c0_72 = arith.constant 0 : index
    %c0_73 = arith.constant 0 : index
    %176 = vector.load %arg15[%c0_72, %c0_73] : memref<1x64xf32, #tpu.memory_space<vmem>>, vector<1x64xf32>
    %177 = vector.broadcast %176 : vector<1x64xf32> to vector<128x64xf32>
    %178 = arith.addf %175, %177 : vector<128x64xf32>
    %cst_74 = arith.constant dense<0xFF800000> : vector<64xf32>
    %179 = vector.multi_reduction <maximumf>, %178, %cst_74 [0] : vector<128x64xf32> to vector<64xf32>
    %180 = vector.shape_cast %179 : vector<64xf32> to vector<1x64xf32>
    %181 = vector.broadcast %180 : vector<1x64xf32> to vector<128x64xf32>
    %182 = arith.subf %181, %178 : vector<128x64xf32>
    %183 = arith.truncf %182 : vector<128x64xf32> to vector<128x64xbf16>
    %c0_75 = arith.constant 0 : index
    %c0_76 = arith.constant 0 : index
    %184 = vector.load %arg16[%c0_75, %c0_76] : memref<256x128xbf16, #tpu.memory_space<vmem>>, vector<256x128xbf16>
    %cst_77 = arith.constant dense<0.000000e+00> : vector<256x64xf32>
    %185 = tpu.matmul %184, %183, %cst_77 {dimension_numbers = #tpu.dot_dimension_numbers<[1], [0], [0], [1], [0, 0, 1, 1], [], []>} : vector<256x128xbf16>, vector<128x64xbf16>, vector<256x64xf32> -> vector<256x64xf32>
    %c0_78 = arith.constant 0 : index
    %c0_79 = arith.constant 0 : index
    %186 = vector.load %arg17[%c0_78, %c0_79] : memref<256x1xf32, #tpu.memory_space<vmem>>, vector<256x1xf32>
    %187 = vector.broadcast %186 : vector<256x1xf32> to vector<256x64xf32>
    %188 = arith.addf %185, %187 : vector<256x64xf32>
    %cst_80 = arith.constant 2.000000e-01 : f32
    %189 = vector.broadcast %cst_80 : f32 to vector<256x64xf32>
    %190 = arith.mulf %189, %188 : vector<256x64xf32>
    %191 = arith.maximumf %188, %190 : vector<256x64xf32>
    %c0_81 = arith.constant 0 : index
    %c0_82 = arith.constant 0 : index
    %192 = vector.load %arg18[%c0_81, %c0_82] : memref<64x256xbf16, #tpu.memory_space<vmem>>, vector<64x256xbf16>
    %193 = arith.truncf %191 : vector<256x64xf32> to vector<256x64xbf16>
    %cst_83 = arith.constant dense<0.000000e+00> : vector<64x64xf32>
    %194 = tpu.matmul %192, %193, %cst_83 {dimension_numbers = #tpu.dot_dimension_numbers<[1], [0], [0], [1], [0, 0, 1, 1], [], []>} : vector<64x256xbf16>, vector<256x64xbf16>, vector<64x64xf32> -> vector<64x64xf32>
    %c0_84 = arith.constant 0 : index
    %c0_85 = arith.constant 0 : index
    %195 = vector.load %arg19[%c0_84, %c0_85] : memref<64x1xf32, #tpu.memory_space<vmem>>, vector<64x1xf32>
    %196 = vector.broadcast %195 : vector<64x1xf32> to vector<64x64xf32>
    %197 = arith.addf %194, %196 : vector<64x64xf32>
    %cst_86 = arith.constant 2.000000e-01 : f32
    %198 = vector.broadcast %cst_86 : f32 to vector<64x64xf32>
    %199 = arith.mulf %198, %197 : vector<64x64xf32>
    %200 = arith.maximumf %197, %199 : vector<64x64xf32>
    %c0_87 = arith.constant 0 : index
    %c0_88 = arith.constant 0 : index
    %201 = vector.load %arg20[%c0_87, %c0_88] : memref<16x64xbf16, #tpu.memory_space<vmem>>, vector<16x64xbf16>
    %202 = arith.truncf %200 : vector<64x64xf32> to vector<64x64xbf16>
    %cst_89 = arith.constant dense<0.000000e+00> : vector<16x64xf32>
    %203 = tpu.matmul %201, %202, %cst_89 {dimension_numbers = #tpu.dot_dimension_numbers<[1], [0], [0], [1], [0, 0, 1, 1], [], []>} : vector<16x64xbf16>, vector<64x64xbf16>, vector<16x64xf32> -> vector<16x64xf32>
    %c0_90 = arith.constant 0 : index
    %c0_91 = arith.constant 0 : index
    %204 = vector.load %arg21[%c0_90, %c0_91] : memref<16x1xf32, #tpu.memory_space<vmem>>, vector<16x1xf32>
    %205 = vector.broadcast %204 : vector<16x1xf32> to vector<16x64xf32>
    %206 = arith.addf %203, %205 : vector<16x64xf32>
    %207 = arith.truncf %206 : vector<16x64xf32> to vector<16x64xbf16>
    %208 = arith.truncf %178 : vector<128x64xf32> to vector<128x64xbf16>
    %cst_92 = arith.constant dense<0.000000e+00> : vector<16x128xf32>
    %209 = tpu.matmul %207, %208, %cst_92 {dimension_numbers = #tpu.dot_dimension_numbers<[1], [1], [0], [0], [0, 0, 1, 0], [], []>} : vector<16x64xbf16>, vector<128x64xbf16>, vector<16x128xf32> -> vector<16x128xf32>
    %cst_93 = arith.constant 1.250000e-01 : f32
    %210 = vector.broadcast %cst_93 : f32 to vector<16x128xf32>
    %211 = arith.mulf %209, %210 : vector<16x128xf32>
    %cst_94 = arith.constant dense<0xFF800000> : vector<16xf32>
    %212 = vector.multi_reduction <maximumf>, %211, %cst_94 [1] : vector<16x128xf32> to vector<16xf32>
    %213 = vector.shape_cast %212 : vector<16xf32> to vector<16x1xf32>
    %214 = vector.broadcast %213 : vector<16x1xf32> to vector<16x128xf32>
    %215 = arith.subf %211, %214 : vector<16x128xf32>
    %216 = math.exp %215 : vector<16x128xf32>
    %cst_95 = arith.constant dense<0.000000e+00> : vector<16xf32>
    %217 = vector.multi_reduction <add>, %216, %cst_95 [1] : vector<16x128xf32> to vector<16xf32>
    %218 = vector.shape_cast %217 : vector<16xf32> to vector<16x1xf32>
    %219 = tpu.reciprocal %218 {approx = true} : vector<16x1xf32> -> vector<16x1xf32>
    %220 = vector.broadcast %219 : vector<16x1xf32> to vector<16x128xf32>
    %221 = arith.mulf %216, %220 : vector<16x128xf32>
    %c0_96 = arith.constant 0 : index
    %c0_97 = arith.constant 0 : index
    %c0_98 = arith.constant 0 : index
    %222 = vector.load %arg2[%c0_96, %c0_97, %c0_98] : memref<1x128x3xf32, #tpu.memory_space<vmem>>, vector<1x128x3xf32>
    %223 = vector.shape_cast %222 : vector<1x128x3xf32> to vector<128x3xf32>
    %cst_99 = arith.constant dense<0.000000e+00> : vector<16x3xf32>
    %224 = tpu.matmul %221, %223, %cst_99 {dimension_numbers = #tpu.dot_dimension_numbers<[1], [0], [0], [1], [0, 0, 1, 1], [], []>} : vector<16x128xf32>, vector<128x3xf32>, vector<16x3xf32> -> vector<16x3xf32>
    %c0_100 = arith.constant 0 : index
    %c0_101 = arith.constant 0 : index
    %225 = vector.load %arg23[%c0_100, %c0_101] : memref<64x32xf32, #tpu.memory_space<vmem>>, vector<64x32xf32>
    %cst_102 = arith.constant dense<0.000000e+00> : vector<1x32xf32>
    %226 = tpu.matmul %180, %225, %cst_102 {dimension_numbers = #tpu.dot_dimension_numbers<[1], [0], [0], [1], [0, 0, 1, 1], [], []>} : vector<1x64xf32>, vector<64x32xf32>, vector<1x32xf32> -> vector<1x32xf32>
    %c0_103 = arith.constant 0 : index
    %c0_104 = arith.constant 0 : index
    %227 = vector.load %arg24[%c0_103, %c0_104] : memref<1x32xf32, #tpu.memory_space<vmem>>, vector<1x32xf32>
    %228 = arith.addf %226, %227 : vector<1x32xf32>
    %c0_105 = arith.constant 0 : index
    %c0_106 = arith.constant 0 : index
    %229 = vector.load %arg22[%c0_105, %c0_106] : memref<3x32xf32, #tpu.memory_space<vmem>>, vector<3x32xf32>
    %cst_107 = arith.constant dense<0.000000e+00> : vector<16x32xf32>
    %230 = tpu.matmul %224, %229, %cst_107 {dimension_numbers = #tpu.dot_dimension_numbers<[1], [0], [0], [1], [0, 0, 1, 1], [], []>} : vector<16x3xf32>, vector<3x32xf32>, vector<16x32xf32> -> vector<16x32xf32>
    %231 = vector.broadcast %228 : vector<1x32xf32> to vector<16x32xf32>
    %232 = arith.addf %230, %231 : vector<16x32xf32>
    %cst_108 = arith.constant 0.000000e+00 : f32
    %233 = vector.broadcast %cst_108 : f32 to vector<16x32xf32>
    %234 = arith.maximumf %232, %233 : vector<16x32xf32>
    %c0_109 = arith.constant 0 : index
    %c0_110 = arith.constant 0 : index
    %235 = vector.load %arg25[%c0_109, %c0_110] : memref<32x16xf32, #tpu.memory_space<vmem>>, vector<32x16xf32>
    %cst_111 = arith.constant dense<0.000000e+00> : vector<16x16xf32>
    %236 = tpu.matmul %234, %235, %cst_111 {dimension_numbers = #tpu.dot_dimension_numbers<[1], [0], [0], [1], [0, 0, 1, 1], [], []>} : vector<16x32xf32>, vector<32x16xf32>, vector<16x16xf32> -> vector<16x16xf32>
    %c0_112 = arith.constant 0 : index
    %c0_113 = arith.constant 0 : index
    %237 = vector.load %arg26[%c0_112, %c0_113] : memref<1x16xf32, #tpu.memory_space<vmem>>, vector<1x16xf32>
    %238 = vector.broadcast %237 : vector<1x16xf32> to vector<16x16xf32>
    %239 = arith.addf %236, %238 : vector<16x16xf32>
    %cst_114 = arith.constant 0.000000e+00 : f32
    %240 = vector.broadcast %cst_114 : f32 to vector<16x16xf32>
    %241 = arith.maximumf %239, %240 : vector<16x16xf32>
    %c0_115 = arith.constant 0 : index
    %c0_116 = arith.constant 0 : index
    %242 = vector.load %arg27[%c0_115, %c0_116] : memref<16x3xf32, #tpu.memory_space<vmem>>, vector<16x3xf32>
    %cst_117 = arith.constant dense<0.000000e+00> : vector<16x3xf32>
    %243 = tpu.matmul %241, %242, %cst_117 {dimension_numbers = #tpu.dot_dimension_numbers<[1], [0], [0], [1], [0, 0, 1, 1], [], []>} : vector<16x16xf32>, vector<16x3xf32>, vector<16x3xf32> -> vector<16x3xf32>
    %c0_118 = arith.constant 0 : index
    %c0_119 = arith.constant 0 : index
    %244 = vector.load %arg28[%c0_118, %c0_119] : memref<1x3xf32, #tpu.memory_space<vmem>>, vector<1x3xf32>
    %245 = vector.broadcast %244 : vector<1x3xf32> to vector<16x3xf32>
    %246 = arith.addf %243, %245 : vector<16x3xf32>
    %c0_120 = arith.constant 0 : index
    %c0_121 = arith.constant 0 : index
    %247 = vector.load %arg30[%c0_120, %c0_121] : memref<64x32xf32, #tpu.memory_space<vmem>>, vector<64x32xf32>
    %cst_122 = arith.constant dense<0.000000e+00> : vector<1x32xf32>
    %248 = tpu.matmul %180, %247, %cst_122 {dimension_numbers = #tpu.dot_dimension_numbers<[1], [0], [0], [1], [0, 0, 1, 1], [], []>} : vector<1x64xf32>, vector<64x32xf32>, vector<1x32xf32> -> vector<1x32xf32>
    %c0_123 = arith.constant 0 : index
    %c0_124 = arith.constant 0 : index
    %249 = vector.load %arg31[%c0_123, %c0_124] : memref<1x32xf32, #tpu.memory_space<vmem>>, vector<1x32xf32>
    %250 = arith.addf %248, %249 : vector<1x32xf32>
    %c0_125 = arith.constant 0 : index
    %c0_126 = arith.constant 0 : index
    %251 = vector.load %arg29[%c0_125, %c0_126] : memref<3x32xf32, #tpu.memory_space<vmem>>, vector<3x32xf32>
    %cst_127 = arith.constant dense<0.000000e+00> : vector<16x32xf32>
    %252 = tpu.matmul %246, %251, %cst_127 {dimension_numbers = #tpu.dot_dimension_numbers<[1], [0], [0], [1], [0, 0, 1, 1], [], []>} : vector<16x3xf32>, vector<3x32xf32>, vector<16x32xf32> -> vector<16x32xf32>
    %253 = vector.broadcast %250 : vector<1x32xf32> to vector<16x32xf32>
    %254 = arith.addf %252, %253 : vector<16x32xf32>
    %cst_128 = arith.constant 0.000000e+00 : f32
    %255 = vector.broadcast %cst_128 : f32 to vector<16x32xf32>
    %256 = arith.maximumf %254, %255 : vector<16x32xf32>
    %c0_129 = arith.constant 0 : index
    %c0_130 = arith.constant 0 : index
    %257 = vector.load %arg32[%c0_129, %c0_130] : memref<32x16xf32, #tpu.memory_space<vmem>>, vector<32x16xf32>
    %cst_131 = arith.constant dense<0.000000e+00> : vector<16x16xf32>
    %258 = tpu.matmul %256, %257, %cst_131 {dimension_numbers = #tpu.dot_dimension_numbers<[1], [0], [0], [1], [0, 0, 1, 1], [], []>} : vector<16x32xf32>, vector<32x16xf32>, vector<16x16xf32> -> vector<16x16xf32>
    %c0_132 = arith.constant 0 : index
    %c0_133 = arith.constant 0 : index
    %259 = vector.load %arg33[%c0_132, %c0_133] : memref<1x16xf32, #tpu.memory_space<vmem>>, vector<1x16xf32>
    %260 = vector.broadcast %259 : vector<1x16xf32> to vector<16x16xf32>
    %261 = arith.addf %258, %260 : vector<16x16xf32>
    %cst_134 = arith.constant 0.000000e+00 : f32
    %262 = vector.broadcast %cst_134 : f32 to vector<16x16xf32>
    %263 = arith.maximumf %261, %262 : vector<16x16xf32>
    %c0_135 = arith.constant 0 : index
    %c0_136 = arith.constant 0 : index
    %264 = vector.load %arg34[%c0_135, %c0_136] : memref<16x3xf32, #tpu.memory_space<vmem>>, vector<16x3xf32>
    %cst_137 = arith.constant dense<0.000000e+00> : vector<16x3xf32>
    %265 = tpu.matmul %263, %264, %cst_137 {dimension_numbers = #tpu.dot_dimension_numbers<[1], [0], [0], [1], [0, 0, 1, 1], [], []>} : vector<16x16xf32>, vector<16x3xf32>, vector<16x3xf32> -> vector<16x3xf32>
    %c0_138 = arith.constant 0 : index
    %c0_139 = arith.constant 0 : index
    %266 = vector.load %arg35[%c0_138, %c0_139] : memref<1x3xf32, #tpu.memory_space<vmem>>, vector<1x3xf32>
    %267 = vector.broadcast %266 : vector<1x3xf32> to vector<16x3xf32>
    %268 = arith.addf %265, %267 : vector<16x3xf32>
    %c0_140 = arith.constant 0 : index
    %c0_141 = arith.constant 0 : index
    %c0_142 = arith.constant 0 : index
    %269 = vector.load %arg36[%c0_140, %c0_141, %c0_142] : memref<1x144x64xf32, #tpu.memory_space<vmem>>, vector<1x128x64xf32>
    %270 = vector.shape_cast %269 : vector<1x128x64xf32> to vector<128x64xf32>
    %271 = vector.shape_cast %178 : vector<128x64xf32> to vector<1x128x64xf32>
    tpu.vector_store %arg36[%c0_140, %c0_141, %c0_142], %271 {strides = array<i32>} : memref<1x144x64xf32, #tpu.memory_space<vmem>>, vector<1x128x64xf32>,
    %c0_143 = arith.constant 0 : index
    %c128 = arith.constant 128 : index
    %c0_144 = arith.constant 0 : index
    %272 = vector.load %arg36[%c0_143, %c128, %c0_144] : memref<1x144x64xf32, #tpu.memory_space<vmem>>, vector<1x16x64xf32>
    %273 = vector.shape_cast %272 : vector<1x16x64xf32> to vector<16x64xf32>
    %274 = vector.shape_cast %206 : vector<16x64xf32> to vector<1x16x64xf32>
    tpu.vector_store %arg36[%c0_143, %c128, %c0_144], %274 {strides = array<i32>} : memref<1x144x64xf32, #tpu.memory_space<vmem>>, vector<1x16x64xf32>,
    %c0_145 = arith.constant 0 : index
    %c0_146 = arith.constant 0 : index
    %c0_147 = arith.constant 0 : index
    %275 = vector.load %arg37[%c0_145, %c0_146, %c0_147] : memref<1x144x3xf32, #tpu.memory_space<vmem>>, vector<1x128x3xf32>
    %276 = vector.shape_cast %275 : vector<1x128x3xf32> to vector<128x3xf32>
    %277 = vector.shape_cast %223 : vector<128x3xf32> to vector<1x128x3xf32>
    tpu.vector_store %arg37[%c0_145, %c0_146, %c0_147], %277 {strides = array<i32>} : memref<1x144x3xf32, #tpu.memory_space<vmem>>, vector<1x128x3xf32>,
    %c0_148 = arith.constant 0 : index
    %c128_149 = arith.constant 128 : index
    %c0_150 = arith.constant 0 : index
    %278 = vector.load %arg37[%c0_148, %c128_149, %c0_150] : memref<1x144x3xf32, #tpu.memory_space<vmem>>, vector<1x16x3xf32>
    %279 = vector.shape_cast %278 : vector<1x16x3xf32> to vector<16x3xf32>
    %280 = vector.shape_cast %268 : vector<16x3xf32> to vector<1x16x3xf32>
    tpu.vector_store %arg37[%c0_148, %c128_149, %c0_150], %280 {strides = array<i32>} : memref<1x144x3xf32, #tpu.memory_space<vmem>>, vector<1x16x3xf32>,
    return
  }
  func.func @transform_0(%arg0: i32) -> (i32, i32, i32) {
    %c0_i32 = arith.constant 0 : i32
    %c0_i32_0 = arith.constant 0 : i32
    %c0_i32_1 = arith.constant 0 : i32
    return %arg0, %c0_i32, %c0_i32_0 : i32, i32, i32
  }
  func.func @transform_1(%arg0: i32) -> (i32, i32, i32) {
    %c0_i32 = arith.constant 0 : i32
    %c0_i32_0 = arith.constant 0 : i32
    %c0_i32_1 = arith.constant 0 : i32
    return %arg0, %c0_i32, %c0_i32_0 : i32, i32, i32
  }
  func.func @transform_2(%arg0: i32) -> (i32, i32) {
    %c0_i32 = arith.constant 0 : i32
    %c0_i32_0 = arith.constant 0 : i32
    %c0_i32_1 = arith.constant 0 : i32
    return %c0_i32, %c0_i32_0 : i32, i32
  }
  func.func @transform_3(%arg0: i32) -> (i32, i32) {
    %c0_i32 = arith.constant 0 : i32
    %c0_i32_0 = arith.constant 0 : i32
    %c0_i32_1 = arith.constant 0 : i32
    return %c0_i32, %c0_i32_0 : i32, i32
  }
  func.func @transform_4(%arg0: i32) -> (i32, i32) {
    %c0_i32 = arith.constant 0 : i32
    %c0_i32_0 = arith.constant 0 : i32
    %c0_i32_1 = arith.constant 0 : i32
    return %c0_i32, %c0_i32_0 : i32, i32
  }
  func.func @transform_5(%arg0: i32) -> (i32, i32) {
    %c0_i32 = arith.constant 0 : i32
    %c0_i32_0 = arith.constant 0 : i32
    %c0_i32_1 = arith.constant 0 : i32
    return %c0_i32, %c0_i32_0 : i32, i32
  }
  func.func @transform_6(%arg0: i32) -> (i32, i32) {
    %c0_i32 = arith.constant 0 : i32
    %c0_i32_0 = arith.constant 0 : i32
    %c0_i32_1 = arith.constant 0 : i32
    return %c0_i32, %c0_i32_0 : i32, i32
  }
  func.func @transform_7(%arg0: i32) -> (i32, i32) {
    %c0_i32 = arith.constant 0 : i32
    %c0_i32_0 = arith.constant 0 : i32
    %c0_i32_1 = arith.constant 0 : i32
    return %c0_i32, %c0_i32_0 : i32, i32
  }
  func.func @transform_8(%arg0: i32) -> (i32, i32) {
    %c0_i32 = arith.constant 0 : i32
    %c0_i32_0 = arith.constant 0 : i32
    %c0_i32_1 = arith.constant 0 : i32
    return %c0_i32, %c0_i32_0 : i32, i32
  }
  func.func @transform_9(%arg0: i32) -> (i32, i32) {
    %c0_i32 = arith.constant 0 : i32
    %c0_i32_0 = arith.constant 0 : i32
    %c0_i32_1 = arith.constant 0 : i32
    return %c0_i32, %c0_i32_0 : i32, i32
  }
  func.func @transform_10(%arg0: i32) -> (i32, i32) {
    %c0_i32 = arith.constant 0 : i32
    %c0_i32_0 = arith.constant 0 : i32
    %c0_i32_1 = arith.constant 0 : i32
    return %c0_i32, %c0_i32_0 : i32, i32
  }
  func.func @transform_11(%arg0: i32) -> (i32, i32) {
    %c0_i32 = arith.constant 0 : i32
    %c0_i32_0 = arith.constant 0 : i32
    %c0_i32_1 = arith.constant 0 : i32
    return %c0_i32, %c0_i32_0 : i32, i32
  }
  func.func @transform_12(%arg0: i32) -> (i32, i32) {
    %c0_i32 = arith.constant 0 : i32
    %c0_i32_0 = arith.constant 0 : i32
    %c0_i32_1 = arith.constant 0 : i32
    return %c0_i32, %c0_i32_0 : i32, i32
  }
  func.func @transform_13(%arg0: i32) -> (i32, i32) {
    %c0_i32 = arith.constant 0 : i32
    %c0_i32_0 = arith.constant 0 : i32
    %c0_i32_1 = arith.constant 0 : i32
    return %c0_i32, %c0_i32_0 : i32, i32
  }
  func.func @transform_14(%arg0: i32) -> (i32, i32) {
    %c0_i32 = arith.constant 0 : i32
    %c0_i32_0 = arith.constant 0 : i32
    %c0_i32_1 = arith.constant 0 : i32
    return %c0_i32, %c0_i32_0 : i32, i32
  }
  func.func @transform_15(%arg0: i32) -> (i32, i32) {
    %c0_i32 = arith.constant 0 : i32
    %c0_i32_0 = arith.constant 0 : i32
    %c0_i32_1 = arith.constant 0 : i32
    return %c0_i32, %c0_i32_0 : i32, i32
  }
  func.func @transform_16(%arg0: i32) -> (i32, i32) {
    %c0_i32 = arith.constant 0 : i32
    %c0_i32_0 = arith.constant 0 : i32
    %c0_i32_1 = arith.constant 0 : i32
    return %c0_i32, %c0_i32_0 : i32, i32
  }
  func.func @transform_17(%arg0: i32) -> (i32, i32) {
    %c0_i32 = arith.constant 0 : i32
    %c0_i32_0 = arith.constant 0 : i32
    %c0_i32_1 = arith.constant 0 : i32
    return %c0_i32, %c0_i32_0 : i32, i32
  }
  func.func @transform_18(%arg0: i32) -> (i32, i32) {
    %c0_i32 = arith.constant 0 : i32
    %c0_i32_0 = arith.constant 0 : i32
    %c0_i32_1 = arith.constant 0 : i32
    return %c0_i32, %c0_i32_0 : i32, i32
  }
  func.func @transform_19(%arg0: i32) -> (i32, i32) {
    %c0_i32 = arith.constant 0 : i32
    %c0_i32_0 = arith.constant 0 : i32
    %c0_i32_1 = arith.constant 0 : i32
    return %c0_i32, %c0_i32_0 : i32, i32
  }
  func.func @transform_20(%arg0: i32) -> (i32, i32) {
    %c0_i32 = arith.constant 0 : i32
    %c0_i32_0 = arith.constant 0 : i32
    %c0_i32_1 = arith.constant 0 : i32
    return %c0_i32, %c0_i32_0 : i32, i32
  }
  func.func @transform_21(%arg0: i32) -> (i32, i32) {
    %c0_i32 = arith.constant 0 : i32
    %c0_i32_0 = arith.constant 0 : i32
    %c0_i32_1 = arith.constant 0 : i32
    return %c0_i32, %c0_i32_0 : i32, i32
  }
  func.func @transform_22(%arg0: i32) -> (i32, i32) {
    %c0_i32 = arith.constant 0 : i32
    %c0_i32_0 = arith.constant 0 : i32
    %c0_i32_1 = arith.constant 0 : i32
    return %c0_i32, %c0_i32_0 : i32, i32
  }
  func.func @transform_23(%arg0: i32) -> (i32, i32) {
    %c0_i32 = arith.constant 0 : i32
    %c0_i32_0 = arith.constant 0 : i32
    %c0_i32_1 = arith.constant 0 : i32
    return %c0_i32, %c0_i32_0 : i32, i32
  }
  func.func @transform_24(%arg0: i32) -> (i32, i32) {
    %c0_i32 = arith.constant 0 : i32
    %c0_i32_0 = arith.constant 0 : i32
    %c0_i32_1 = arith.constant 0 : i32
    return %c0_i32, %c0_i32_0 : i32, i32
  }
  func.func @transform_25(%arg0: i32) -> (i32, i32) {
    %c0_i32 = arith.constant 0 : i32
    %c0_i32_0 = arith.constant 0 : i32
    %c0_i32_1 = arith.constant 0 : i32
    return %c0_i32, %c0_i32_0 : i32, i32
  }
  func.func @transform_26(%arg0: i32) -> (i32, i32) {
    %c0_i32 = arith.constant 0 : i32
    %c0_i32_0 = arith.constant 0 : i32
    %c0_i32_1 = arith.constant 0 : i32
    return %c0_i32, %c0_i32_0 : i32, i32
  }
  func.func @transform_27(%arg0: i32) -> (i32, i32) {
    %c0_i32 = arith.constant 0 : i32
    %c0_i32_0 = arith.constant 0 : i32
    %c0_i32_1 = arith.constant 0 : i32
    return %c0_i32, %c0_i32_0 : i32, i32
  }
  func.func @transform_28(%arg0: i32) -> (i32, i32) {
    %c0_i32 = arith.constant 0 : i32
    %c0_i32_0 = arith.constant 0 : i32
    %c0_i32_1 = arith.constant 0 : i32
    return %c0_i32, %c0_i32_0 : i32, i32
  }
  func.func @transform_29(%arg0: i32) -> (i32, i32) {
    %c0_i32 = arith.constant 0 : i32
    %c0_i32_0 = arith.constant 0 : i32
    %c0_i32_1 = arith.constant 0 : i32
    return %c0_i32, %c0_i32_0 : i32, i32
  }
  func.func @transform_30(%arg0: i32) -> (i32, i32) {
    %c0_i32 = arith.constant 0 : i32
    %c0_i32_0 = arith.constant 0 : i32
    %c0_i32_1 = arith.constant 0 : i32
    return %c0_i32, %c0_i32_0 : i32, i32
  }
  func.func @transform_31(%arg0: i32) -> (i32, i32) {
    %c0_i32 = arith.constant 0 : i32
    %c0_i32_0 = arith.constant 0 : i32
    %c0_i32_1 = arith.constant 0 : i32
    return %c0_i32, %c0_i32_0 : i32, i32
  }
  func.func @transform_32(%arg0: i32) -> (i32, i32) {
    %c0_i32 = arith.constant 0 : i32
    %c0_i32_0 = arith.constant 0 : i32
    %c0_i32_1 = arith.constant 0 : i32
    return %c0_i32, %c0_i32_0 : i32, i32
  }
  func.func @transform_33(%arg0: i32) -> (i32, i32) {
    %c0_i32 = arith.constant 0 : i32
    %c0_i32_0 = arith.constant 0 : i32
    %c0_i32_1 = arith.constant 0 : i32
    return %c0_i32, %c0_i32_0 : i32, i32
  }
  func.func @transform_34(%arg0: i32) -> (i32, i32) {
    %c0_i32 = arith.constant 0 : i32
    %c0_i32_0 = arith.constant 0 : i32
    %c0_i32_1 = arith.constant 0 : i32
    return %c0_i32, %c0_i32_0 : i32, i32
  }
  func.func @transform_35(%arg0: i32) -> (i32, i32, i32) {
    %c0_i32 = arith.constant 0 : i32
    %c0_i32_0 = arith.constant 0 : i32
    %c0_i32_1 = arith.constant 0 : i32
    return %arg0, %c0_i32, %c0_i32_0 : i32, i32, i32
  }
  func.func @transform_36(%arg0: i32) -> (i32, i32, i32) {
    %c0_i32 = arith.constant 0 : i32
    %c0_i32_0 = arith.constant 0 : i32
    %c0_i32_1 = arith.constant 0 : i32
    return %arg0, %c0_i32, %c0_i32_0 : i32, i32, i32
  }
}

</mosaic_0001>

<llo_original>
// kernel: encoder_block_forward.1
$region0: #{encoder_block_forward.1}
  #allocation0 [shape = 'u32[]', space=smem, size = 0x4, offset = 0x4, fixed_abs, tag = 'smem constant byte address 0x4 - core index']
  #allocation1 [shape = 'u32[72,128]{1,0:T(1,128)}', space=vmem, size = 0x9000, scoped, tag = 'internal scratch']
  %s0 = inlined_call_operand.smem [shape: u32[37], index: -1, kind: input, shape index: {}]
  %s1 = sld [smem:[%s0]]
  %s2 = scalar_lea.smem %s0, 1
  %s3 = sld [smem:[%s2]]
  %s4 = scalar_lea.smem %s0, 2
  %s5 = sld [smem:[%s4]]
  %s6 = scalar_lea.smem %s0, 3
  %s7 = sld [smem:[%s6]]
  %s8 = scalar_lea.smem %s0, 4
  %s9 = sld [smem:[%s8]]
  %s10 = scalar_lea.smem %s0, 5
  %s11 = sld [smem:[%s10]]
  %s12 = scalar_lea.smem %s0, 6
  %s13 = sld [smem:[%s12]]
  %s14 = scalar_lea.smem %s0, 7
  %s15 = sld [smem:[%s14]]
  %s16 = scalar_lea.smem %s0, 8
  %s17 = sld [smem:[%s16]]
  %s18 = scalar_lea.smem %s0, 9
  %s19 = sld [smem:[%s18]]
  %s20 = scalar_lea.smem %s0, 10
  %s21 = sld [smem:[%s20]]
  %s22 = scalar_lea.smem %s0, 11
  %s23 = sld [smem:[%s22]]
  %s24 = scalar_lea.smem %s0, 12
  %s25 = sld [smem:[%s24]]
  %s26 = scalar_lea.smem %s0, 13
  %s27 = sld [smem:[%s26]]
  %s28 = scalar_lea.smem %s0, 14
  %s29 = sld [smem:[%s28]]
  %s30 = scalar_lea.smem %s0, 15
  %s31 = sld [smem:[%s30]]
  %s32 = scalar_lea.smem %s0, 16
  %s33 = sld [smem:[%s32]]
  %s34 = scalar_lea.smem %s0, 17
  %s35 = sld [smem:[%s34]]
  %s36 = scalar_lea.smem %s0, 18
  %s37 = sld [smem:[%s36]]
  %s38 = scalar_lea.smem %s0, 19
  %s39 = sld [smem:[%s38]]
  %s40 = scalar_lea.smem %s0, 20
  %s41 = sld [smem:[%s40]]
  %s42 = scalar_lea.smem %s0, 21
  %s43 = sld [smem:[%s42]]
  %s44 = scalar_lea.smem %s0, 22
  %s45 = sld [smem:[%s44]]
  %s46 = scalar_lea.smem %s0, 23
  %s47 = sld [smem:[%s46]]
  %s48 = scalar_lea.smem %s0, 24
  %s49 = sld [smem:[%s48]]
  %s50 = scalar_lea.smem %s0, 25
  %s51 = sld [smem:[%s50]]
  %s52 = scalar_lea.smem %s0, 26
  %s53 = sld [smem:[%s52]]
  %s54 = scalar_lea.smem %s0, 27
  %s55 = sld [smem:[%s54]]
  %s56 = scalar_lea.smem %s0, 28
  %s57 = sld [smem:[%s56]]
  %s58 = scalar_lea.smem %s0, 29
  %s59 = sld [smem:[%s58]]
  %s60 = scalar_lea.smem %s0, 30
  %s61 = sld [smem:[%s60]]
  %s62 = scalar_lea.smem %s0, 31
  %s63 = sld [smem:[%s62]]
  %s64 = scalar_lea.smem %s0, 32
  %s65 = sld [smem:[%s64]]
  %s66 = scalar_lea.smem %s0, 33
  %s67 = sld [smem:[%s66]]
  %s68 = scalar_lea.smem %s0, 34
  %s69 = sld [smem:[%s68]]
  %s70 = scalar_lea.smem %s0, 35
  %s71 = sld [smem:[%s70]]
  %s72 = scalar_lea.smem %s0, 36
  %s73 = sld [smem:[%s72]]
  %74 = xla_tuple %s71, %s73
  %s75 = sld [smem:[#allocation0]]
  $region181: #{encoder_block_forward.1} parent=0
    _
  %s77 = ssub.s32 1, %s75
  %s78 = scalar_select 0, %s77, %s75
  loop: start=0, step=1, limit=4
  $region2: #{encoder_block_forward.1} parent=0 // loop_pre_header
    _
  $region3: #{encoder_block_forward.1} parent=0 // loop_header
    %s80 = sphi 0, %s84
    %p81 = scmp.ge.s32.totalorder %s80, 4
    %s90 = sphi 0, %s92
    %s93 = sphi 0, %s90
    %s94 = sphi 0, %s93
    %s110 = sphi 0, %s94
    %s116 = sphi 0, %s118
    %s119 = sphi 0, %s116
    %s120 = sphi 0, %s119
    %s136 = sphi 0, %s120
    %s140 = sphi 0, %s140
    %s142 = sphi 0, %s140
    %s143 = sphi 0, %s142
    %s157 = sphi 0, %s143
    %s161 = sphi 0, %s161
    %s163 = sphi 0, %s161
    %s164 = sphi 0, %s163
    %s178 = sphi 0, %s164
    %s182 = sphi 0, %s182
    %s184 = sphi 0, %s182
    %s185 = sphi 0, %s184
    %s199 = sphi 0, %s185
    %s203 = sphi 0, %s203
    %s205 = sphi 0, %s203
    %s206 = sphi 0, %s205
    %s220 = sphi 0, %s206
    %s224 = sphi 0, %s224
    %s226 = sphi 0, %s224
    %s227 = sphi 0, %s226
    %s241 = sphi 0, %s227
    %s245 = sphi 0, %s245
    %s247 = sphi 0, %s245
    %s248 = sphi 0, %s247
    %s262 = sphi 0, %s248
    %s266 = sphi 0, %s266
    %s268 = sphi 0, %s266
    %s269 = sphi 0, %s268
    %s283 = sphi 0, %s269
    %s287 = sphi 0, %s287
    %s289 = sphi 0, %s287
    %s290 = sphi 0, %s289
    %s304 = sphi 0, %s290
    %s308 = sphi 0, %s308
    %s310 = sphi 0, %s308
    %s311 = sphi 0, %s310
    %s325 = sphi 0, %s311
    %s329 = sphi 0, %s329
    %s331 = sphi 0, %s329
    %s332 = sphi 0, %s331
    %s346 = sphi 0, %s332
    %s350 = sphi 0, %s350
    %s352 = sphi 0, %s350
    %s353 = sphi 0, %s352
    %s367 = sphi 0, %s353
    %s371 = sphi 0, %s371
    %s373 = sphi 0, %s371
    %s374 = sphi 0, %s373
    %s388 = sphi 0, %s374
    %s392 = sphi 0, %s392
    %s394 = sphi 0, %s392
    %s395 = sphi 0, %s394
    %s409 = sphi 0, %s395
    %s413 = sphi 0, %s413
    %s415 = sphi 0, %s413
    %s416 = sphi 0, %s415
    %s430 = sphi 0, %s416
    %s434 = sphi 0, %s434
    %s436 = sphi 0, %s434
    %s437 = sphi 0, %s436
    %s451 = sphi 0, %s437
    %s455 = sphi 0, %s455
    %s457 = sphi 0, %s455
    %s458 = sphi 0, %s457
    %s472 = sphi 0, %s458
    %s476 = sphi 0, %s476
    %s478 = sphi 0, %s476
    %s479 = sphi 0, %s478
    %s493 = sphi 0, %s479
    %s497 = sphi 0, %s497
    %s499 = sphi 0, %s497
    %s500 = sphi 0, %s499
    %s514 = sphi 0, %s500
    %s518 = sphi 0, %s518
    %s520 = sphi 0, %s518
    %s521 = sphi 0, %s520
    %s535 = sphi 0, %s521
    %s539 = sphi 0, %s539
    %s541 = sphi 0, %s539
    %s542 = sphi 0, %s541
    %s556 = sphi 0, %s542
    %s560 = sphi 0, %s560
    %s562 = sphi 0, %s560
    %s563 = sphi 0, %s562
    %s577 = sphi 0, %s563
    %s581 = sphi 0, %s581
    %s583 = sphi 0, %s581
    %s584 = sphi 0, %s583
    %s598 = sphi 0, %s584
    %s602 = sphi 0, %s602
    %s604 = sphi 0, %s602
    %s605 = sphi 0, %s604
    %s619 = sphi 0, %s605
    %s623 = sphi 0, %s623
    %s625 = sphi 0, %s623
    %s626 = sphi 0, %s625
    %s640 = sphi 0, %s626
    %s644 = sphi 0, %s644
    %s646 = sphi 0, %s644
    %s647 = sphi 0, %s646
    %s661 = sphi 0, %s647
    %s665 = sphi 0, %s665
    %s667 = sphi 0, %s665
    %s668 = sphi 0, %s667
    %s682 = sphi 0, %s668
    %s686 = sphi 0, %s686
    %s688 = sphi 0, %s686
    %s689 = sphi 0, %s688
    %s703 = sphi 0, %s689
    %s707 = sphi 0, %s707
    %s709 = sphi 0, %s707
    %s710 = sphi 0, %s709
    %s724 = sphi 0, %s710
    %s728 = sphi 0, %s728
    %s730 = sphi 0, %s728
    %s731 = sphi 0, %s730
    %s745 = sphi 0, %s731
    %s749 = sphi 0, %s749
    %s751 = sphi 0, %s749
    %s752 = sphi 0, %s751
    %s766 = sphi 0, %s752
    %s770 = sphi 0, %s770
    %s772 = sphi 0, %s770
    %s773 = sphi 0, %s772
    %s787 = sphi 0, %s773
    %s791 = sphi 0, %s791
    %s793 = sphi 0, %s791
    %s794 = sphi 0, %s793
    %s808 = sphi 0, %s794
    %s812 = sphi 0, %s812
    %s814 = sphi 0, %s812
    %s815 = sphi 0, %s814
    %s829 = sphi 0, %s815
    %s835 = sphi 0, %s837
    %s838 = sphi 0, %s835
    %s839 = sphi 0, %s838
    %s855 = sphi 0, %s839
    %s861 = sphi 0, %s863
    %s864 = sphi 0, %s861
    %s865 = sphi 0, %s864
    %s881 = sphi 0, %s865
  $region4: #{encoder_block_forward.1} parent=0 // loop_header_branch
    %83 = sbr.rel (%p81) target = $region8
  $region5: #{encoder_block_forward.1} parent=0 // loop_body
    %s85 = ssub.s32 %s80, 1
    %s86 = ssub.s32 %s80, 2
    %s87 = sadd.s32 %s80, 1
    %s88 = ssub.s32 %s80, %s87
    %p89 = scmp.eq.s32.totalorder %s88, 0
    %s91 = sadd.s32 %s90, 1
    %s92 = scalar_select %p89, %s90, %s91
    %p95 = pneg %p89
    %p96 = scmp.eq.s32.totalorder %s80, 1
    %p97 = por %p95, %p96
    %p98 = scmp.ne.s32.totalorder %s90, %s93
    %p99 = scmp.eq.s32.totalorder %s80, 0
    %p100 = por %p98, %p99
    %p101 = scmp.ne.s32.totalorder %s90, %s93
    %p102 = scmp.eq.s32.totalorder %s85, 1
    %p103 = por %p101, %p102
    %p104 = scmp.ne.s32.totalorder %s93, %s94
    %p105 = scmp.eq.s32.totalorder %s85, 0
    %p106 = por %p104, %p105
    %p107 = scmp.ne.s32.totalorder %s93, %s94
    %p108 = scmp.eq.s32.totalorder %s86, 1
    %p109 = por %p107, %p108
    %p111 = scmp.ne.s32.totalorder %s94, %s110
    %p112 = scmp.eq.s32.totalorder %s86, 0
    %p113 = por %p111, %p112
    %s114 = ssub.s32 %s80, %s87
    %p115 = scmp.eq.s32.totalorder %s114, 0
    %s117 = sadd.s32 %s116, 1
    %s118 = scalar_select %p115, %s116, %s117
    %p121 = pneg %p115
    %p122 = scmp.eq.s32.totalorder %s80, 1
    %p123 = por %p121, %p122
    %p124 = scmp.ne.s32.totalorder %s116, %s119
    %p125 = scmp.eq.s32.totalorder %s80, 0
    %p126 = por %p124, %p125
    %p127 = scmp.ne.s32.totalorder %s116, %s119
    %p128 = scmp.eq.s32.totalorder %s85, 1
    %p129 = por %p127, %p128
    %p130 = scmp.ne.s32.totalorder %s119, %s120
    %p131 = scmp.eq.s32.totalorder %s85, 0
    %p132 = por %p130, %p131
    %p133 = scmp.ne.s32.totalorder %s119, %s120
    %p134 = scmp.eq.s32.totalorder %s86, 1
    %p135 = por %p133, %p134
    %p137 = scmp.ne.s32.totalorder %s120, %s136
    %p138 = scmp.eq.s32.totalorder %s86, 0
    %p139 = por %p137, %p138
    %s141 = sadd.s32 %s140, 1
    %p144 = scmp.eq.s32.totalorder %s80, 1
    %p145 = scmp.ne.s32.totalorder %s140, %s142
    %p146 = scmp.eq.s32.totalorder %s80, 0
    %p147 = por %p145, %p146
    %p148 = scmp.ne.s32.totalorder %s140, %s142
    %p149 = scmp.eq.s32.totalorder %s85, 1
    %p150 = por %p148, %p149
    %p151 = scmp.ne.s32.totalorder %s142, %s143
    %p152 = scmp.eq.s32.totalorder %s85, 0
    %p153 = por %p151, %p152
    %p154 = scmp.ne.s32.totalorder %s142, %s143
    %p155 = scmp.eq.s32.totalorder %s86, 1
    %p156 = por %p154, %p155
    %p158 = scmp.ne.s32.totalorder %s143, %s157
    %p159 = scmp.eq.s32.totalorder %s86, 0
    %p160 = por %p158, %p159
    %s162 = sadd.s32 %s161, 1
    %p165 = scmp.eq.s32.totalorder %s80, 1
    %p166 = scmp.ne.s32.totalorder %s161, %s163
    %p167 = scmp.eq.s32.totalorder %s80, 0
    %p168 = por %p166, %p167
    %p169 = scmp.ne.s32.totalorder %s161, %s163
    %p170 = scmp.eq.s32.totalorder %s85, 1
    %p171 = por %p169, %p170
    %p172 = scmp.ne.s32.totalorder %s163, %s164
    %p173 = scmp.eq.s32.totalorder %s85, 0
    %p174 = por %p172, %p173
    %p175 = scmp.ne.s32.totalorder %s163, %s164
    %p176 = scmp.eq.s32.totalorder %s86, 1
    %p177 = por %p175, %p176
    %p179 = scmp.ne.s32.totalorder %s164, %s178
    %p180 = scmp.eq.s32.totalorder %s86, 0
    %p181 = por %p179, %p180
    %s183 = sadd.s32 %s182, 1
    %p186 = scmp.eq.s32.totalorder %s80, 1
    %p187 = scmp.ne.s32.totalorder %s182, %s184
    %p188 = scmp.eq.s32.totalorder %s80, 0
    %p189 = por %p187, %p188
    %p190 = scmp.ne.s32.totalorder %s182, %s184
    %p191 = scmp.eq.s32.totalorder %s85, 1
    %p192 = por %p190, %p191
    %p193 = scmp.ne.s32.totalorder %s184, %s185
    %p194 = scmp.eq.s32.totalorder %s85, 0
    %p195 = por %p193, %p194
    %p196 = scmp.ne.s32.totalorder %s184, %s185
    %p197 = scmp.eq.s32.totalorder %s86, 1
    %p198 = por %p196, %p197
    %p200 = scmp.ne.s32.totalorder %s185, %s199
    %p201 = scmp.eq.s32.totalorder %s86, 0
    %p202 = por %p200, %p201
    %s204 = sadd.s32 %s203, 1
    %p207 = scmp.eq.s32.totalorder %s80, 1
    %p208 = scmp.ne.s32.totalorder %s203, %s205
    %p209 = scmp.eq.s32.totalorder %s80, 0
    %p210 = por %p208, %p209
    %p211 = scmp.ne.s32.totalorder %s203, %s205
    %p212 = scmp.eq.s32.totalorder %s85, 1
    %p213 = por %p211, %p212
    %p214 = scmp.ne.s32.totalorder %s205, %s206
    %p215 = scmp.eq.s32.totalorder %s85, 0
    %p216 = por %p214, %p215
    %p217 = scmp.ne.s32.totalorder %s205, %s206
    %p218 = scmp.eq.s32.totalorder %s86, 1
    %p219 = por %p217, %p218
    %p221 = scmp.ne.s32.totalorder %s206, %s220
    %p222 = scmp.eq.s32.totalorder %s86, 0
    %p223 = por %p221, %p222
    %s225 = sadd.s32 %s224, 1
    %p228 = scmp.eq.s32.totalorder %s80, 1
    %p229 = scmp.ne.s32.totalorder %s224, %s226
    %p230 = scmp.eq.s32.totalorder %s80, 0
    %p231 = por %p229, %p230
    %p232 = scmp.ne.s32.totalorder %s224, %s226
    %p233 = scmp.eq.s32.totalorder %s85, 1
    %p234 = por %p232, %p233
    %p235 = scmp.ne.s32.totalorder %s226, %s227
    %p236 = scmp.eq.s32.totalorder %s85, 0
    %p237 = por %p235, %p236
    %p238 = scmp.ne.s32.totalorder %s226, %s227
    %p239 = scmp.eq.s32.totalorder %s86, 1
    %p240 = por %p238, %p239
    %p242 = scmp.ne.s32.totalorder %s227, %s241
    %p243 = scmp.eq.s32.totalorder %s86, 0
    %p244 = por %p242, %p243
    %s246 = sadd.s32 %s245, 1
    %p249 = scmp.eq.s32.totalorder %s80, 1
    %p250 = scmp.ne.s32.totalorder %s245, %s247
    %p251 = scmp.eq.s32.totalorder %s80, 0
    %p252 = por %p250, %p251
    %p253 = scmp.ne.s32.totalorder %s245, %s247
    %p254 = scmp.eq.s32.totalorder %s85, 1
    %p255 = por %p253, %p254
    %p256 = scmp.ne.s32.totalorder %s247, %s248
    %p257 = scmp.eq.s32.totalorder %s85, 0
    %p258 = por %p256, %p257
    %p259 = scmp.ne.s32.totalorder %s247, %s248
    %p260 = scmp.eq.s32.totalorder %s86, 1
    %p261 = por %p259, %p260
    %p263 = scmp.ne.s32.totalorder %s248, %s262
    %p264 = scmp.eq.s32.totalorder %s86, 0
    %p265 = por %p263, %p264
    %s267 = sadd.s32 %s266, 1
    %p270 = scmp.eq.s32.totalorder %s80, 1
    %p271 = scmp.ne.s32.totalorder %s266, %s268
    %p272 = scmp.eq.s32.totalorder %s80, 0
    %p273 = por %p271, %p272
    %p274 = scmp.ne.s32.totalorder %s266, %s268
    %p275 = scmp.eq.s32.totalorder %s85, 1
    %p276 = por %p274, %p275
    %p277 = scmp.ne.s32.totalorder %s268, %s269
    %p278 = scmp.eq.s32.totalorder %s85, 0
    %p279 = por %p277, %p278
    %p280 = scmp.ne.s32.totalorder %s268, %s269
    %p281 = scmp.eq.s32.totalorder %s86, 1
    %p282 = por %p280, %p281
    %p284 = scmp.ne.s32.totalorder %s269, %s283
    %p285 = scmp.eq.s32.totalorder %s86, 0
    %p286 = por %p284, %p285
    %s288 = sadd.s32 %s287, 1
    %p291 = scmp.eq.s32.totalorder %s80, 1
    %p292 = scmp.ne.s32.totalorder %s287, %s289
    %p293 = scmp.eq.s32.totalorder %s80, 0
    %p294 = por %p292, %p293
    %p295 = scmp.ne.s32.totalorder %s287, %s289
    %p296 = scmp.eq.s32.totalorder %s85, 1
    %p297 = por %p295, %p296
    %p298 = scmp.ne.s32.totalorder %s289, %s290
    %p299 = scmp.eq.s32.totalorder %s85, 0
    %p300 = por %p298, %p299
    %p301 = scmp.ne.s32.totalorder %s289, %s290
    %p302 = scmp.eq.s32.totalorder %s86, 1
    %p303 = por %p301, %p302
    %p305 = scmp.ne.s32.totalorder %s290, %s304
    %p306 = scmp.eq.s32.totalorder %s86, 0
    %p307 = por %p305, %p306
    %s309 = sadd.s32 %s308, 1
    %p312 = scmp.eq.s32.totalorder %s80, 1
    %p313 = scmp.ne.s32.totalorder %s308, %s310
    %p314 = scmp.eq.s32.totalorder %s80, 0
    %p315 = por %p313, %p314
    %p316 = scmp.ne.s32.totalorder %s308, %s310
    %p317 = scmp.eq.s32.totalorder %s85, 1
    %p318 = por %p316, %p317
    %p319 = scmp.ne.s32.totalorder %s310, %s311
    %p320 = scmp.eq.s32.totalorder %s85, 0
    %p321 = por %p319, %p320
    %p322 = scmp.ne.s32.totalorder %s310, %s311
    %p323 = scmp.eq.s32.totalorder %s86, 1
    %p324 = por %p322, %p323
    %p326 = scmp.ne.s32.totalorder %s311, %s325
    %p327 = scmp.eq.s32.totalorder %s86, 0
    %p328 = por %p326, %p327
    %s330 = sadd.s32 %s329, 1
    %p333 = scmp.eq.s32.totalorder %s80, 1
    %p334 = scmp.ne.s32.totalorder %s329, %s331
    %p335 = scmp.eq.s32.totalorder %s80, 0
    %p336 = por %p334, %p335
    %p337 = scmp.ne.s32.totalorder %s329, %s331
    %p338 = scmp.eq.s32.totalorder %s85, 1
    %p339 = por %p337, %p338
    %p340 = scmp.ne.s32.totalorder %s331, %s332
    %p341 = scmp.eq.s32.totalorder %s85, 0
    %p342 = por %p340, %p341
    %p343 = scmp.ne.s32.totalorder %s331, %s332
    %p344 = scmp.eq.s32.totalorder %s86, 1
    %p345 = por %p343, %p344
    %p347 = scmp.ne.s32.totalorder %s332, %s346
    %p348 = scmp.eq.s32.totalorder %s86, 0
    %p349 = por %p347, %p348
    %s351 = sadd.s32 %s350, 1
    %p354 = scmp.eq.s32.totalorder %s80, 1
    %p355 = scmp.ne.s32.totalorder %s350, %s352
    %p356 = scmp.eq.s32.totalorder %s80, 0
    %p357 = por %p355, %p356
    %p358 = scmp.ne.s32.totalorder %s350, %s352
    %p359 = scmp.eq.s32.totalorder %s85, 1
    %p360 = por %p358, %p359
    %p361 = scmp.ne.s32.totalorder %s352, %s353
    %p362 = scmp.eq.s32.totalorder %s85, 0
    %p363 = por %p361, %p362
    %p364 = scmp.ne.s32.totalorder %s352, %s353
    %p365 = scmp.eq.s32.totalorder %s86, 1
    %p366 = por %p364, %p365
    %p368 = scmp.ne.s32.totalorder %s353, %s367
    %p369 = scmp.eq.s32.totalorder %s86, 0
    %p370 = por %p368, %p369
    %s372 = sadd.s32 %s371, 1
    %p375 = scmp.eq.s32.totalorder %s80, 1
    %p376 = scmp.ne.s32.totalorder %s371, %s373
    %p377 = scmp.eq.s32.totalorder %s80, 0
    %p378 = por %p376, %p377
    %p379 = scmp.ne.s32.totalorder %s371, %s373
    %p380 = scmp.eq.s32.totalorder %s85, 1
    %p381 = por %p379, %p380
    %p382 = scmp.ne.s32.totalorder %s373, %s374
    %p383 = scmp.eq.s32.totalorder %s85, 0
    %p384 = por %p382, %p383
    %p385 = scmp.ne.s32.totalorder %s373, %s374
    %p386 = scmp.eq.s32.totalorder %s86, 1
    %p387 = por %p385, %p386
    %p389 = scmp.ne.s32.totalorder %s374, %s388
    %p390 = scmp.eq.s32.totalorder %s86, 0
    %p391 = por %p389, %p390
    %s393 = sadd.s32 %s392, 1
    %p396 = scmp.eq.s32.totalorder %s80, 1
    %p397 = scmp.ne.s32.totalorder %s392, %s394
    %p398 = scmp.eq.s32.totalorder %s80, 0
    %p399 = por %p397, %p398
    %p400 = scmp.ne.s32.totalorder %s392, %s394
    %p401 = scmp.eq.s32.totalorder %s85, 1
    %p402 = por %p400, %p401
    %p403 = scmp.ne.s32.totalorder %s394, %s395
    %p404 = scmp.eq.s32.totalorder %s85, 0
    %p405 = por %p403, %p404
    %p406 = scmp.ne.s32.totalorder %s394, %s395
    %p407 = scmp.eq.s32.totalorder %s86, 1
    %p408 = por %p406, %p407
    %p410 = scmp.ne.s32.totalorder %s395, %s409
    %p411 = scmp.eq.s32.totalorder %s86, 0
    %p412 = por %p410, %p411
    %s414 = sadd.s32 %s413, 1
    %p417 = scmp.eq.s32.totalorder %s80, 1
    %p418 = scmp.ne.s32.totalorder %s413, %s415
    %p419 = scmp.eq.s32.totalorder %s80, 0
    %p420 = por %p418, %p419
    %p421 = scmp.ne.s32.totalorder %s413, %s415
    %p422 = scmp.eq.s32.totalorder %s85, 1
    %p423 = por %p421, %p422
    %p424 = scmp.ne.s32.totalorder %s415, %s416
    %p425 = scmp.eq.s32.totalorder %s85, 0
    %p426 = por %p424, %p425
    %p427 = scmp.ne.s32.totalorder %s415, %s416
    %p428 = scmp.eq.s32.totalorder %s86, 1
    %p429 = por %p427, %p428
    %p431 = scmp.ne.s32.totalorder %s416, %s430
    %p432 = scmp.eq.s32.totalorder %s86, 0
    %p433 = por %p431, %p432
    %s435 = sadd.s32 %s434, 1
    %p438 = scmp.eq.s32.totalorder %s80, 1
    %p439 = scmp.ne.s32.totalorder %s434, %s436
    %p440 = scmp.eq.s32.totalorder %s80, 0
    %p441 = por %p439, %p440
    %p442 = scmp.ne.s32.totalorder %s434, %s436
    %p443 = scmp.eq.s32.totalorder %s85, 1
    %p444 = por %p442, %p443
    %p445 = scmp.ne.s32.totalorder %s436, %s437
    %p446 = scmp.eq.s32.totalorder %s85, 0
    %p447 = por %p445, %p446
    %p448 = scmp.ne.s32.totalorder %s436, %s437
    %p449 = scmp.eq.s32.totalorder %s86, 1
    %p450 = por %p448, %p449
    %p452 = scmp.ne.s32.totalorder %s437, %s451
    %p453 = scmp.eq.s32.totalorder %s86, 0
    %p454 = por %p452, %p453
    %s456 = sadd.s32 %s455, 1
    %p459 = scmp.eq.s32.totalorder %s80, 1
    %p460 = scmp.ne.s32.totalorder %s455, %s457
    %p461 = scmp.eq.s32.totalorder %s80, 0
    %p462 = por %p460, %p461
    %p463 = scmp.ne.s32.totalorder %s455, %s457
    %p464 = scmp.eq.s32.totalorder %s85, 1
    %p465 = por %p463, %p464
    %p466 = scmp.ne.s32.totalorder %s457, %s458
    %p467 = scmp.eq.s32.totalorder %s85, 0
    %p468 = por %p466, %p467
    %p469 = scmp.ne.s32.totalorder %s457, %s458
    %p470 = scmp.eq.s32.totalorder %s86, 1
    %p471 = por %p469, %p470
    %p473 = scmp.ne.s32.totalorder %s458, %s472
    %p474 = scmp.eq.s32.totalorder %s86, 0
    %p475 = por %p473, %p474
    %s477 = sadd.s32 %s476, 1
    %p480 = scmp.eq.s32.totalorder %s80, 1
    %p481 = scmp.ne.s32.totalorder %s476, %s478
    %p482 = scmp.eq.s32.totalorder %s80, 0
    %p483 = por %p481, %p482
    %p484 = scmp.ne.s32.totalorder %s476, %s478
    %p485 = scmp.eq.s32.totalorder %s85, 1
    %p486 = por %p484, %p485
    %p487 = scmp.ne.s32.totalorder %s478, %s479
    %p488 = scmp.eq.s32.totalorder %s85, 0
    %p489 = por %p487, %p488
    %p490 = scmp.ne.s32.totalorder %s478, %s479
    %p491 = scmp.eq.s32.totalorder %s86, 1
    %p492 = por %p490, %p491
    %p494 = scmp.ne.s32.totalorder %s479, %s493
    %p495 = scmp.eq.s32.totalorder %s86, 0
    %p496 = por %p494, %p495
    %s498 = sadd.s32 %s497, 1
    %p501 = scmp.eq.s32.totalorder %s80, 1
    %p502 = scmp.ne.s32.totalorder %s497, %s499
    %p503 = scmp.eq.s32.totalorder %s80, 0
    %p504 = por %p502, %p503
    %p505 = scmp.ne.s32.totalorder %s497, %s499
    %p506 = scmp.eq.s32.totalorder %s85, 1
    %p507 = por %p505, %p506
    %p508 = scmp.ne.s32.totalorder %s499, %s500
    %p509 = scmp.eq.s32.totalorder %s85, 0
    %p510 = por %p508, %p509
    %p511 = scmp.ne.s32.totalorder %s499, %s500
    %p512 = scmp.eq.s32.totalorder %s86, 1
    %p513 = por %p511, %p512
    %p515 = scmp.ne.s32.totalorder %s500, %s514
    %p516 = scmp.eq.s32.totalorder %s86, 0
    %p517 = por %p515, %p516
    %s519 = sadd.s32 %s518, 1
    %p522 = scmp.eq.s32.totalorder %s80, 1
    %p523 = scmp.ne.s32.totalorder %s518, %s520
    %p524 = scmp.eq.s32.totalorder %s80, 0
    %p525 = por %p523, %p524
    %p526 = scmp.ne.s32.totalorder %s518, %s520
    %p527 = scmp.eq.s32.totalorder %s85, 1
    %p528 = por %p526, %p527
    %p529 = scmp.ne.s32.totalorder %s520, %s521
    %p530 = scmp.eq.s32.totalorder %s85, 0
    %p531 = por %p529, %p530
    %p532 = scmp.ne.s32.totalorder %s520, %s521
    %p533 = scmp.eq.s32.totalorder %s86, 1
    %p534 = por %p532, %p533
    %p536 = scmp.ne.s32.totalorder %s521, %s535
    %p537 = scmp.eq.s32.totalorder %s86, 0
    %p538 = por %p536, %p537
    %s540 = sadd.s32 %s539, 1
    %p543 = scmp.eq.s32.totalorder %s80, 1
    %p544 = scmp.ne.s32.totalorder %s539, %s541
    %p545 = scmp.eq.s32.totalorder %s80, 0
    %p546 = por %p544, %p545
    %p547 = scmp.ne.s32.totalorder %s539, %s541
    %p548 = scmp.eq.s32.totalorder %s85, 1
    %p549 = por %p547, %p548
    %p550 = scmp.ne.s32.totalorder %s541, %s542
    %p551 = scmp.eq.s32.totalorder %s85, 0
    %p552 = por %p550, %p551
    %p553 = scmp.ne.s32.totalorder %s541, %s542
    %p554 = scmp.eq.s32.totalorder %s86, 1
    %p555 = por %p553, %p554
    %p557 = scmp.ne.s32.totalorder %s542, %s556
    %p558 = scmp.eq.s32.totalorder %s86, 0
    %p559 = por %p557, %p558
    %s561 = sadd.s32 %s560, 1
    %p564 = scmp.eq.s32.totalorder %s80, 1
    %p565 = scmp.ne.s32.totalorder %s560, %s562
    %p566 = scmp.eq.s32.totalorder %s80, 0
    %p567 = por %p565, %p566
    %p568 = scmp.ne.s32.totalorder %s560, %s562
    %p569 = scmp.eq.s32.totalorder %s85, 1
    %p570 = por %p568, %p569
    %p571 = scmp.ne.s32.totalorder %s562, %s563
    %p572 = scmp.eq.s32.totalorder %s85, 0
    %p573 = por %p571, %p572
    %p574 = scmp.ne.s32.totalorder %s562, %s563
    %p575 = scmp.eq.s32.totalorder %s86, 1
    %p576 = por %p574, %p575
    %p578 = scmp.ne.s32.totalorder %s563, %s577
    %p579 = scmp.eq.s32.totalorder %s86, 0
    %p580 = por %p578, %p579
    %s582 = sadd.s32 %s581, 1
    %p585 = scmp.eq.s32.totalorder %s80, 1
    %p586 = scmp.ne.s32.totalorder %s581, %s583
    %p587 = scmp.eq.s32.totalorder %s80, 0
    %p588 = por %p586, %p587
    %p589 = scmp.ne.s32.totalorder %s581, %s583
    %p590 = scmp.eq.s32.totalorder %s85, 1
    %p591 = por %p589, %p590
    %p592 = scmp.ne.s32.totalorder %s583, %s584
    %p593 = scmp.eq.s32.totalorder %s85, 0
    %p594 = por %p592, %p593
    %p595 = scmp.ne.s32.totalorder %s583, %s584
    %p596 = scmp.eq.s32.totalorder %s86, 1
    %p597 = por %p595, %p596
    %p599 = scmp.ne.s32.totalorder %s584, %s598
    %p600 = scmp.eq.s32.totalorder %s86, 0
    %p601 = por %p599, %p600
    %s603 = sadd.s32 %s602, 1
    %p606 = scmp.eq.s32.totalorder %s80, 1
    %p607 = scmp.ne.s32.totalorder %s602, %s604
    %p608 = scmp.eq.s32.totalorder %s80, 0
    %p609 = por %p607, %p608
    %p610 = scmp.ne.s32.totalorder %s602, %s604
    %p611 = scmp.eq.s32.totalorder %s85, 1
    %p612 = por %p610, %p611
    %p613 = scmp.ne.s32.totalorder %s604, %s605
    %p614 = scmp.eq.s32.totalorder %s85, 0
    %p615 = por %p613, %p614
    %p616 = scmp.ne.s32.totalorder %s604, %s605
    %p617 = scmp.eq.s32.totalorder %s86, 1
    %p618 = por %p616, %p617
    %p620 = scmp.ne.s32.totalorder %s605, %s619
    %p621 = scmp.eq.s32.totalorder %s86, 0
    %p622 = por %p620, %p621
    %s624 = sadd.s32 %s623, 1
    %p627 = scmp.eq.s32.totalorder %s80, 1
    %p628 = scmp.ne.s32.totalorder %s623, %s625
    %p629 = scmp.eq.s32.totalorder %s80, 0
    %p630 = por %p628, %p629
    %p631 = scmp.ne.s32.totalorder %s623, %s625
    %p632 = scmp.eq.s32.totalorder %s85, 1
    %p633 = por %p631, %p632
    %p634 = scmp.ne.s32.totalorder %s625, %s626
    %p635 = scmp.eq.s32.totalorder %s85, 0
    %p636 = por %p634, %p635
    %p637 = scmp.ne.s32.totalorder %s625, %s626
    %p638 = scmp.eq.s32.totalorder %s86, 1
    %p639 = por %p637, %p638
    %p641 = scmp.ne.s32.totalorder %s626, %s640
    %p642 = scmp.eq.s32.totalorder %s86, 0
    %p643 = por %p641, %p642
    %s645 = sadd.s32 %s644, 1
    %p648 = scmp.eq.s32.totalorder %s80, 1
    %p649 = scmp.ne.s32.totalorder %s644, %s646
    %p650 = scmp.eq.s32.totalorder %s80, 0
    %p651 = por %p649, %p650
    %p652 = scmp.ne.s32.totalorder %s644, %s646
    %p653 = scmp.eq.s32.totalorder %s85, 1
    %p654 = por %p652, %p653
    %p655 = scmp.ne.s32.totalorder %s646, %s647
    %p656 = scmp.eq.s32.totalorder %s85, 0
    %p657 = por %p655, %p656
    %p658 = scmp.ne.s32.totalorder %s646, %s647
    %p659 = scmp.eq.s32.totalorder %s86, 1
    %p660 = por %p658, %p659
    %p662 = scmp.ne.s32.totalorder %s647, %s661
    %p663 = scmp.eq.s32.totalorder %s86, 0
    %p664 = por %p662, %p663
    %s666 = sadd.s32 %s665, 1
    %p669 = scmp.eq.s32.totalorder %s80, 1
    %p670 = scmp.ne.s32.totalorder %s665, %s667
    %p671 = scmp.eq.s32.totalorder %s80, 0
    %p672 = por %p670, %p671
    %p673 = scmp.ne.s32.totalorder %s665, %s667
    %p674 = scmp.eq.s32.totalorder %s85, 1
    %p675 = por %p673, %p674
    %p676 = scmp.ne.s32.totalorder %s667, %s668
    %p677 = scmp.eq.s32.totalorder %s85, 0
    %p678 = por %p676, %p677
    %p679 = scmp.ne.s32.totalorder %s667, %s668
    %p680 = scmp.eq.s32.totalorder %s86, 1
    %p681 = por %p679, %p680
    %p683 = scmp.ne.s32.totalorder %s668, %s682
    %p684 = scmp.eq.s32.totalorder %s86, 0
    %p685 = por %p683, %p684
    %s687 = sadd.s32 %s686, 1
    %p690 = scmp.eq.s32.totalorder %s80, 1
    %p691 = scmp.ne.s32.totalorder %s686, %s688
    %p692 = scmp.eq.s32.totalorder %s80, 0
    %p693 = por %p691, %p692
    %p694 = scmp.ne.s32.totalorder %s686, %s688
    %p695 = scmp.eq.s32.totalorder %s85, 1
    %p696 = por %p694, %p695
    %p697 = scmp.ne.s32.totalorder %s688, %s689
    %p698 = scmp.eq.s32.totalorder %s85, 0
    %p699 = por %p697, %p698
    %p700 = scmp.ne.s32.totalorder %s688, %s689
    %p701 = scmp.eq.s32.totalorder %s86, 1
    %p702 = por %p700, %p701
    %p704 = scmp.ne.s32.totalorder %s689, %s703
    %p705 = scmp.eq.s32.totalorder %s86, 0
    %p706 = por %p704, %p705
    %s708 = sadd.s32 %s707, 1
    %p711 = scmp.eq.s32.totalorder %s80, 1
    %p712 = scmp.ne.s32.totalorder %s707, %s709
    %p713 = scmp.eq.s32.totalorder %s80, 0
    %p714 = por %p712, %p713
    %p715 = scmp.ne.s32.totalorder %s707, %s709
    %p716 = scmp.eq.s32.totalorder %s85, 1
    %p717 = por %p715, %p716
    %p718 = scmp.ne.s32.totalorder %s709, %s710
    %p719 = scmp.eq.s32.totalorder %s85, 0
    %p720 = por %p718, %p719
    %p721 = scmp.ne.s32.totalorder %s709, %s710
    %p722 = scmp.eq.s32.totalorder %s86, 1
    %p723 = por %p721, %p722
    %p725 = scmp.ne.s32.totalorder %s710, %s724
    %p726 = scmp.eq.s32.totalorder %s86, 0
    %p727 = por %p725, %p726
    %s729 = sadd.s32 %s728, 1
    %p732 = scmp.eq.s32.totalorder %s80, 1
    %p733 = scmp.ne.s32.totalorder %s728, %s730
    %p734 = scmp.eq.s32.totalorder %s80, 0
    %p735 = por %p733, %p734
    %p736 = scmp.ne.s32.totalorder %s728, %s730
    %p737 = scmp.eq.s32.totalorder %s85, 1
    %p738 = por %p736, %p737
    %p739 = scmp.ne.s32.totalorder %s730, %s731
    %p740 = scmp.eq.s32.totalorder %s85, 0
    %p741 = por %p739, %p740
    %p742 = scmp.ne.s32.totalorder %s730, %s731
    %p743 = scmp.eq.s32.totalorder %s86, 1
    %p744 = por %p742, %p743
    %p746 = scmp.ne.s32.totalorder %s731, %s745
    %p747 = scmp.eq.s32.totalorder %s86, 0
    %p748 = por %p746, %p747
    %s750 = sadd.s32 %s749, 1
    %p753 = scmp.eq.s32.totalorder %s80, 1
    %p754 = scmp.ne.s32.totalorder %s749, %s751
    %p755 = scmp.eq.s32.totalorder %s80, 0
    %p756 = por %p754, %p755
    %p757 = scmp.ne.s32.totalorder %s749, %s751
    %p758 = scmp.eq.s32.totalorder %s85, 1
    %p759 = por %p757, %p758
    %p760 = scmp.ne.s32.totalorder %s751, %s752
    %p761 = scmp.eq.s32.totalorder %s85, 0
    %p762 = por %p760, %p761
    %p763 = scmp.ne.s32.totalorder %s751, %s752
    %p764 = scmp.eq.s32.totalorder %s86, 1
    %p765 = por %p763, %p764
    %p767 = scmp.ne.s32.totalorder %s752, %s766
    %p768 = scmp.eq.s32.totalorder %s86, 0
    %p769 = por %p767, %p768
    %s771 = sadd.s32 %s770, 1
    %p774 = scmp.eq.s32.totalorder %s80, 1
    %p775 = scmp.ne.s32.totalorder %s770, %s772
    %p776 = scmp.eq.s32.totalorder %s80, 0
    %p777 = por %p775, %p776
    %p778 = scmp.ne.s32.totalorder %s770, %s772
    %p779 = scmp.eq.s32.totalorder %s85, 1
    %p780 = por %p778, %p779
    %p781 = scmp.ne.s32.totalorder %s772, %s773
    %p782 = scmp.eq.s32.totalorder %s85, 0
    %p783 = por %p781, %p782
    %p784 = scmp.ne.s32.totalorder %s772, %s773
    %p785 = scmp.eq.s32.totalorder %s86, 1
    %p786 = por %p784, %p785
    %p788 = scmp.ne.s32.totalorder %s773, %s787
    %p789 = scmp.eq.s32.totalorder %s86, 0
    %p790 = por %p788, %p789
    %s792 = sadd.s32 %s791, 1
    %p795 = scmp.eq.s32.totalorder %s80, 1
    %p796 = scmp.ne.s32.totalorder %s791, %s793
    %p797 = scmp.eq.s32.totalorder %s80, 0
    %p798 = por %p796, %p797
    %p799 = scmp.ne.s32.totalorder %s791, %s793
    %p800 = scmp.eq.s32.totalorder %s85, 1
    %p801 = por %p799, %p800
    %p802 = scmp.ne.s32.totalorder %s793, %s794
    %p803 = scmp.eq.s32.totalorder %s85, 0
    %p804 = por %p802, %p803
    %p805 = scmp.ne.s32.totalorder %s793, %s794
    %p806 = scmp.eq.s32.totalorder %s86, 1
    %p807 = por %p805, %p806
    %p809 = scmp.ne.s32.totalorder %s794, %s808
    %p810 = scmp.eq.s32.totalorder %s86, 0
    %p811 = por %p809, %p810
    %s813 = sadd.s32 %s812, 1
    %p816 = scmp.eq.s32.totalorder %s80, 1
    %p817 = scmp.ne.s32.totalorder %s812, %s814
    %p818 = scmp.eq.s32.totalorder %s80, 0
    %p819 = por %p817, %p818
    %p820 = scmp.ne.s32.totalorder %s812, %s814
    %p821 = scmp.eq.s32.totalorder %s85, 1
    %p822 = por %p820, %p821
    %p823 = scmp.ne.s32.totalorder %s814, %s815
    %p824 = scmp.eq.s32.totalorder %s85, 0
    %p825 = por %p823, %p824
    %p826 = scmp.ne.s32.totalorder %s814, %s815
    %p827 = scmp.eq.s32.totalorder %s86, 1
    %p828 = por %p826, %p827
    %p830 = scmp.ne.s32.totalorder %s815, %s829
    %p831 = scmp.eq.s32.totalorder %s86, 0
    %p832 = por %p830, %p831
    %s833 = ssub.s32 %s80, %s87
    %p834 = scmp.eq.s32.totalorder %s833, 0
    %s836 = sadd.s32 %s835, 1
    %s837 = scalar_select %p834, %s835, %s836
    %p840 = pneg %p834
    %p841 = scmp.eq.s32.totalorder %s80, 1
    %p842 = por %p840, %p841
    %p843 = scmp.ne.s32.totalorder %s835, %s838
    %p844 = scmp.eq.s32.totalorder %s80, 0
    %p845 = por %p843, %p844
    %p846 = scmp.ne.s32.totalorder %s835, %s838
    %p847 = scmp.eq.s32.totalorder %s85, 1
    %p848 = por %p846, %p847
    %p849 = scmp.ne.s32.totalorder %s838, %s839
    %p850 = scmp.eq.s32.totalorder %s85, 0
    %p851 = por %p849, %p850
    %p852 = scmp.ne.s32.totalorder %s838, %s839
    %p853 = scmp.eq.s32.totalorder %s86, 1
    %p854 = por %p852, %p853
    %p856 = scmp.ne.s32.totalorder %s839, %s855
    %p857 = scmp.eq.s32.totalorder %s86, 0
    %p858 = por %p856, %p857
    %s859 = ssub.s32 %s80, %s87
    %p860 = scmp.eq.s32.totalorder %s859, 0
    %s862 = sadd.s32 %s861, 1
    %s863 = scalar_select %p860, %s861, %s862
    %p866 = pneg %p860
    %p867 = scmp.eq.s32.totalorder %s80, 1
    %p868 = por %p866, %p867
    %p869 = scmp.ne.s32.totalorder %s861, %s864
    %p870 = scmp.eq.s32.totalorder %s80, 0
    %p871 = por %p869, %p870
    %p872 = scmp.ne.s32.totalorder %s861, %s864
    %p873 = scmp.eq.s32.totalorder %s85, 1
    %p874 = por %p872, %p873
    %p875 = scmp.ne.s32.totalorder %s864, %s865
    %p876 = scmp.eq.s32.totalorder %s85, 0
    %p877 = por %p875, %p876
    %p878 = scmp.ne.s32.totalorder %s864, %s865
    %p879 = scmp.eq.s32.totalorder %s86, 1
    %p880 = por %p878, %p879
    %p882 = scmp.ne.s32.totalorder %s865, %s881
    %p883 = scmp.eq.s32.totalorder %s86, 0
    %p884 = por %p882, %p883
    %p885 = scmp.le.s32.totalorder 1, %s80
    %p886 = scmp.lt.s32.totalorder %s80, 3
    %p887 = pnand %p885, %p886
    %p888 = pneg %p887
    // Predicated region
    $region9: #{encoder_block_forward.1} parent=5 // pred_check
      _
    $region10: #{encoder_block_forward.1} parent=5 // pred_check_branch
      %890 = sbr.rel (%p887) target = $region12
    $region11: #{encoder_block_forward.1} parent=5 // pred_region
      %s891 = ssub.s32 %s80, 1
      // Predicated region
      $region13: #{encoder_block_forward.1} parent=11 // pred_check
        %p892 = pneg %p153
      $region14: #{encoder_block_forward.1} parent=11 // pred_check_branch
        %894 = sbr.rel (%p892) target = $region16
      $region15: #{encoder_block_forward.1} parent=11 // pred_region
        _
      $region16: #{encoder_block_forward.1} parent=11 // pred_fallthru
        _
      // Predicated region
      $region17: #{encoder_block_forward.1} parent=11 // pred_check
        %p895 = pneg %p174
      $region18: #{encoder_block_forward.1} parent=11 // pred_check_branch
        %897 = sbr.rel (%p895) target = $region20
      $region19: #{encoder_block_forward.1} parent=11 // pred_region
        _
      $region20: #{encoder_block_forward.1} parent=11 // pred_fallthru
        _
      // Predicated region
      $region21: #{encoder_block_forward.1} parent=11 // pred_check
        %p898 = pneg %p195
      $region22: #{encoder_block_forward.1} parent=11 // pred_check_branch
        %900 = sbr.rel (%p898) target = $region24
      $region23: #{encoder_block_forward.1} parent=11 // pred_region
        _
      $region24: #{encoder_block_forward.1} parent=11 // pred_fallthru
        _
      // Predicated region
      $region25: #{encoder_block_forward.1} parent=11 // pred_check
        %p901 = pneg %p216
      $region26: #{encoder_block_forward.1} parent=11 // pred_check_branch
        %903 = sbr.rel (%p901) target = $region28
      $region27: #{encoder_block_forward.1} parent=11 // pred_region
        _
      $region28: #{encoder_block_forward.1} parent=11 // pred_fallthru
        _
      // Predicated region
      $region29: #{encoder_block_forward.1} parent=11 // pred_check
        %p904 = pneg %p237
      $region30: #{encoder_block_forward.1} parent=11 // pred_check_branch
        %906 = sbr.rel (%p904) target = $region32
      $region31: #{encoder_block_forward.1} parent=11 // pred_region
        _
      $region32: #{encoder_block_forward.1} parent=11 // pred_fallthru
        _
      // Predicated region
      $region33: #{encoder_block_forward.1} parent=11 // pred_check
        %p907 = pneg %p258
      $region34: #{encoder_block_forward.1} parent=11 // pred_check_branch
        %909 = sbr.rel (%p907) target = $region36
      $region35: #{encoder_block_forward.1} parent=11 // pred_region
        _
      $region36: #{encoder_block_forward.1} parent=11 // pred_fallthru
        _
      // Predicated region
      $region37: #{encoder_block_forward.1} parent=11 // pred_check
        %p910 = pneg %p279
      $region38: #{encoder_block_forward.1} parent=11 // pred_check_branch
        %912 = sbr.rel (%p910) target = $region40
      $region39: #{encoder_block_forward.1} parent=11 // pred_region
        _
      $region40: #{encoder_block_forward.1} parent=11 // pred_fallthru
        _
      // Predicated region
      $region41: #{encoder_block_forward.1} parent=11 // pred_check
        %p913 = pneg %p300
      $region42: #{encoder_block_forward.1} parent=11 // pred_check_branch
        %915 = sbr.rel (%p913) target = $region44
      $region43: #{encoder_block_forward.1} parent=11 // pred_region
        _
      $region44: #{encoder_block_forward.1} parent=11 // pred_fallthru
        _
      // Predicated region
      $region45: #{encoder_block_forward.1} parent=11 // pred_check
        %p916 = pneg %p321
      $region46: #{encoder_block_forward.1} parent=11 // pred_check_branch
        %918 = sbr.rel (%p916) target = $region48
      $region47: #{encoder_block_forward.1} parent=11 // pred_region
        _
      $region48: #{encoder_block_forward.1} parent=11 // pred_fallthru
        _
      // Predicated region
      $region49: #{encoder_block_forward.1} parent=11 // pred_check
        %p919 = pneg %p342
      $region50: #{encoder_block_forward.1} parent=11 // pred_check_branch
        %921 = sbr.rel (%p919) target = $region52
      $region51: #{encoder_block_forward.1} parent=11 // pred_region
        _
      $region52: #{encoder_block_forward.1} parent=11 // pred_fallthru
        _
      // Predicated region
      $region53: #{encoder_block_forward.1} parent=11 // pred_check
        %p922 = pneg %p363
      $region54: #{encoder_block_forward.1} parent=11 // pred_check_branch
        %924 = sbr.rel (%p922) target = $region56
      $region55: #{encoder_block_forward.1} parent=11 // pred_region
        _
      $region56: #{encoder_block_forward.1} parent=11 // pred_fallthru
        _
      // Predicated region
      $region57: #{encoder_block_forward.1} parent=11 // pred_check
        %p925 = pneg %p384
      $region58: #{encoder_block_forward.1} parent=11 // pred_check_branch
        %927 = sbr.rel (%p925) target = $region60
      $region59: #{encoder_block_forward.1} parent=11 // pred_region
        _
      $region60: #{encoder_block_forward.1} parent=11 // pred_fallthru
        _
      // Predicated region
      $region61: #{encoder_block_forward.1} parent=11 // pred_check
        %p928 = pneg %p405
      $region62: #{encoder_block_forward.1} parent=11 // pred_check_branch
        %930 = sbr.rel (%p928) target = $region64
      $region63: #{encoder_block_forward.1} parent=11 // pred_region
        _
      $region64: #{encoder_block_forward.1} parent=11 // pred_fallthru
        _
      // Predicated region
      $region65: #{encoder_block_forward.1} parent=11 // pred_check
        %p931 = pneg %p426
      $region66: #{encoder_block_forward.1} parent=11 // pred_check_branch
        %933 = sbr.rel (%p931) target = $region68
      $region67: #{encoder_block_forward.1} parent=11 // pred_region
        _
      $region68: #{encoder_block_forward.1} parent=11 // pred_fallthru
        _
      // Predicated region
      $region69: #{encoder_block_forward.1} parent=11 // pred_check
        %p934 = pneg %p447
      $region70: #{encoder_block_forward.1} parent=11 // pred_check_branch
        %936 = sbr.rel (%p934) target = $region72
      $region71: #{encoder_block_forward.1} parent=11 // pred_region
        _
      $region72: #{encoder_block_forward.1} parent=11 // pred_fallthru
        _
      // Predicated region
      $region73: #{encoder_block_forward.1} parent=11 // pred_check
        %p937 = pneg %p468
      $region74: #{encoder_block_forward.1} parent=11 // pred_check_branch
        %939 = sbr.rel (%p937) target = $region76
      $region75: #{encoder_block_forward.1} parent=11 // pred_region
        _
      $region76: #{encoder_block_forward.1} parent=11 // pred_fallthru
        _
      // Predicated region
      $region77: #{encoder_block_forward.1} parent=11 // pred_check
        %p940 = pneg %p489
      $region78: #{encoder_block_forward.1} parent=11 // pred_check_branch
        %942 = sbr.rel (%p940) target = $region80
      $region79: #{encoder_block_forward.1} parent=11 // pred_region
        _
      $region80: #{encoder_block_forward.1} parent=11 // pred_fallthru
        _
      // Predicated region
      $region81: #{encoder_block_forward.1} parent=11 // pred_check
        %p943 = pneg %p510
      $region82: #{encoder_block_forward.1} parent=11 // pred_check_branch
        %945 = sbr.rel (%p943) target = $region84
      $region83: #{encoder_block_forward.1} parent=11 // pred_region
        _
      $region84: #{encoder_block_forward.1} parent=11 // pred_fallthru
        _
      // Predicated region
      $region85: #{encoder_block_forward.1} parent=11 // pred_check
        %p946 = pneg %p531
      $region86: #{encoder_block_forward.1} parent=11 // pred_check_branch
        %948 = sbr.rel (%p946) target = $region88
      $region87: #{encoder_block_forward.1} parent=11 // pred_region
        _
      $region88: #{encoder_block_forward.1} parent=11 // pred_fallthru
        _
      // Predicated region
      $region89: #{encoder_block_forward.1} parent=11 // pred_check
        %p949 = pneg %p552
      $region90: #{encoder_block_forward.1} parent=11 // pred_check_branch
        %951 = sbr.rel (%p949) target = $region92
      $region91: #{encoder_block_forward.1} parent=11 // pred_region
        _
      $region92: #{encoder_block_forward.1} parent=11 // pred_fallthru
        _
      // Predicated region
      $region93: #{encoder_block_forward.1} parent=11 // pred_check
        %p952 = pneg %p573
      $region94: #{encoder_block_forward.1} parent=11 // pred_check_branch
        %954 = sbr.rel (%p952) target = $region96
      $region95: #{encoder_block_forward.1} parent=11 // pred_region
        _
      $region96: #{encoder_block_forward.1} parent=11 // pred_fallthru
        _
      // Predicated region
      $region97: #{encoder_block_forward.1} parent=11 // pred_check
        %p955 = pneg %p594
      $region98: #{encoder_block_forward.1} parent=11 // pred_check_branch
        %957 = sbr.rel (%p955) target = $region100
      $region99: #{encoder_block_forward.1} parent=11 // pred_region
        _
      $region100: #{encoder_block_forward.1} parent=11 // pred_fallthru
        _
      // Predicated region
      $region101: #{encoder_block_forward.1} parent=11 // pred_check
        %p958 = pneg %p615
      $region102: #{encoder_block_forward.1} parent=11 // pred_check_branch
        %960 = sbr.rel (%p958) target = $region104
      $region103: #{encoder_block_forward.1} parent=11 // pred_region
        _
      $region104: #{encoder_block_forward.1} parent=11 // pred_fallthru
        _
      // Predicated region
      $region105: #{encoder_block_forward.1} parent=11 // pred_check
        %p961 = pneg %p636
      $region106: #{encoder_block_forward.1} parent=11 // pred_check_branch
        %963 = sbr.rel (%p961) target = $region108
      $region107: #{encoder_block_forward.1} parent=11 // pred_region
        _
      $region108: #{encoder_block_forward.1} parent=11 // pred_fallthru
        _
      // Predicated region
      $region109: #{encoder_block_forward.1} parent=11 // pred_check
        %p964 = pneg %p657
      $region110: #{encoder_block_forward.1} parent=11 // pred_check_branch
        %966 = sbr.rel (%p964) target = $region112
      $region111: #{encoder_block_forward.1} parent=11 // pred_region
        _
      $region112: #{encoder_block_forward.1} parent=11 // pred_fallthru
        _
      // Predicated region
      $region113: #{encoder_block_forward.1} parent=11 // pred_check
        %p967 = pneg %p678
      $region114: #{encoder_block_forward.1} parent=11 // pred_check_branch
        %969 = sbr.rel (%p967) target = $region116
      $region115: #{encoder_block_forward.1} parent=11 // pred_region
        _
      $region116: #{encoder_block_forward.1} parent=11 // pred_fallthru
        _
      // Predicated region
      $region117: #{encoder_block_forward.1} parent=11 // pred_check
        %p970 = pneg %p699
      $region118: #{encoder_block_forward.1} parent=11 // pred_check_branch
        %972 = sbr.rel (%p970) target = $region120
      $region119: #{encoder_block_forward.1} parent=11 // pred_region
        _
      $region120: #{encoder_block_forward.1} parent=11 // pred_fallthru
        _
      // Predicated region
      $region121: #{encoder_block_forward.1} parent=11 // pred_check
        %p973 = pneg %p720
      $region122: #{encoder_block_forward.1} parent=11 // pred_check_branch
        %975 = sbr.rel (%p973) target = $region124
      $region123: #{encoder_block_forward.1} parent=11 // pred_region
        _
      $region124: #{encoder_block_forward.1} parent=11 // pred_fallthru
        _
      // Predicated region
      $region125: #{encoder_block_forward.1} parent=11 // pred_check
        %p976 = pneg %p741
      $region126: #{encoder_block_forward.1} parent=11 // pred_check_branch
        %978 = sbr.rel (%p976) target = $region128
      $region127: #{encoder_block_forward.1} parent=11 // pred_region
        _
      $region128: #{encoder_block_forward.1} parent=11 // pred_fallthru
        _
      // Predicated region
      $region129: #{encoder_block_forward.1} parent=11 // pred_check
        %p979 = pneg %p762
      $region130: #{encoder_block_forward.1} parent=11 // pred_check_branch
        %981 = sbr.rel (%p979) target = $region132
      $region131: #{encoder_block_forward.1} parent=11 // pred_region
        _
      $region132: #{encoder_block_forward.1} parent=11 // pred_fallthru
        _
      // Predicated region
      $region133: #{encoder_block_forward.1} parent=11 // pred_check
        %p982 = pneg %p783
      $region134: #{encoder_block_forward.1} parent=11 // pred_check_branch
        %984 = sbr.rel (%p982) target = $region136
      $region135: #{encoder_block_forward.1} parent=11 // pred_region
        _
      $region136: #{encoder_block_forward.1} parent=11 // pred_fallthru
        _
      // Predicated region
      $region137: #{encoder_block_forward.1} parent=11 // pred_check
        %p985 = pneg %p804
      $region138: #{encoder_block_forward.1} parent=11 // pred_check_branch
        %987 = sbr.rel (%p985) target = $region140
      $region139: #{encoder_block_forward.1} parent=11 // pred_region
        _
      $region140: #{encoder_block_forward.1} parent=11 // pred_fallthru
        _
      // Predicated region
      $region141: #{encoder_block_forward.1} parent=11 // pred_check
        %p988 = pneg %p825
      $region142: #{encoder_block_forward.1} parent=11 // pred_check_branch
        %990 = sbr.rel (%p988) target = $region144
      $region143: #{encoder_block_forward.1} parent=11 // pred_region
        _
      $region144: #{encoder_block_forward.1} parent=11 // pred_fallthru
        _
    $region12: #{encoder_block_forward.1} parent=5 // pred_fallthru
      _
    %p991 = scmp.lt.s32.totalorder %s80, 2
    // Predicated region
    $region145: #{encoder_block_forward.1} parent=5 // pred_check
      %p992 = pneg %p991
    $region146: #{encoder_block_forward.1} parent=5 // pred_check_branch
      %994 = sbr.rel (%p992) target = $region148
    $region147: #{encoder_block_forward.1} parent=5 // pred_region
      // Predicated region
      $region149: #{encoder_block_forward.1} parent=147 // pred_check
        %p995 = pneg %p100
      $region150: #{encoder_block_forward.1} parent=147 // pred_check_branch
        %997 = sbr.rel (%p995) target = $region152
      $region151: #{encoder_block_forward.1} parent=147 // pred_region
        %p998 = scmp.lt.s32.totalorder %s80, 1
        %s999 = scalar_select %p998, %s80, 1
        %s1000 = smul.addr %s999, 16
        %s1001 = smul.addr %s1000, 8
        %s1002 = scalar_lea.vmem %s1, %s1001
      $region152: #{encoder_block_forward.1} parent=147 // pred_fallthru
        _
      // Predicated region
      $region153: #{encoder_block_forward.1} parent=147 // pred_check
        %p1003 = pneg %p126
      $region154: #{encoder_block_forward.1} parent=147 // pred_check_branch
        %1005 = sbr.rel (%p1003) target = $region156
      $region155: #{encoder_block_forward.1} parent=147 // pred_region
        %p1006 = scmp.lt.s32.totalorder %s80, 1
        %s1007 = scalar_select %p1006, %s80, 1
        %s1008 = smul.addr %s1007, 16
        %s1009 = smul.addr %s1008, 8
        %s1010 = scalar_lea.vmem %s3, %s1009
      $region156: #{encoder_block_forward.1} parent=147 // pred_fallthru
        _
    $region148: #{encoder_block_forward.1} parent=5 // pred_fallthru
      _
    %p1011 = scmp.le.s32.totalorder 1, %s80
    %p1012 = scmp.lt.s32.totalorder %s80, 3
    %p1013 = pnand %p1011, %p1012
    %p1014 = pneg %p1013
    // Predicated region
    $region157: #{encoder_block_forward.1} parent=5 // pred_check
      _
    $region158: #{encoder_block_forward.1} parent=5 // pred_check_branch
      %1016 = sbr.rel (%p1013) target = $region160
    $region159: #{encoder_block_forward.1} parent=5 // pred_region
      %s1017 = ssub.s32 %s80, 1
      %p1018 = scmp.lt.s32.totalorder %s85, 1
      %s1019 = scalar_select %p1018, %s85, 1
      %s1020 = smul.addr %s1019, 16
      %s1021 = smul.addr %s1020, 8
      %s1022 = scalar_lea.vmem %s1, %s1021
      %p1023 = pneg %p106
      %p1024 = pneg %p103
      %p1025 = scmp.lt.s32.totalorder %s85, 1
      %s1026 = scalar_select %p1025, %s85, 1
      %s1027 = smul.addr %s1026, 16
      %s1028 = smul.addr %s1027, 8
      %s1029 = scalar_lea.vmem %s3, %s1028
      %p1030 = pneg %p132
      %p1031 = pneg %p129
      %p1032 = pneg %p153
      %p1033 = pneg %p150
      %p1034 = pneg %p174
      %p1035 = pneg %p171
      %p1036 = pneg %p195
      %p1037 = pneg %p192
      %p1038 = pneg %p216
      %p1039 = pneg %p213
      %p1040 = pneg %p237
      %p1041 = pneg %p234
      %p1042 = pneg %p258
      %p1043 = pneg %p255
      %p1044 = pneg %p279
      %p1045 = pneg %p276
      %p1046 = pneg %p300
      %p1047 = pneg %p297
      %p1048 = pneg %p321
      %p1049 = pneg %p318
      %p1050 = pneg %p342
      %p1051 = pneg %p339
      %p1052 = pneg %p363
      %p1053 = pneg %p360
      %p1054 = pneg %p384
      %p1055 = pneg %p381
      %p1056 = pneg %p405
      %p1057 = pneg %p402
      %p1058 = pneg %p426
      %p1059 = pneg %p423
      %p1060 = pneg %p447
      %p1061 = pneg %p444
      %p1062 = pneg %p468
      %p1063 = pneg %p465
      %p1064 = pneg %p489
      %p1065 = pneg %p486
      %p1066 = pneg %p510
      %p1067 = pneg %p507
      %p1068 = pneg %p531
      %p1069 = pneg %p528
      %p1070 = pneg %p552
      %p1071 = pneg %p549
      %p1072 = pneg %p573
      %p1073 = pneg %p570
      %p1074 = pneg %p594
      %p1075 = pneg %p591
      %p1076 = pneg %p615
      %p1077 = pneg %p612
      %p1078 = pneg %p636
      %p1079 = pneg %p633
      %p1080 = pneg %p657
      %p1081 = pneg %p654
      %p1082 = pneg %p678
      %p1083 = pneg %p675
      %p1084 = pneg %p699
      %p1085 = pneg %p696
      %p1086 = pneg %p720
      %p1087 = pneg %p717
      %p1088 = pneg %p741
      %p1089 = pneg %p738
      %p1090 = pneg %p762
      %p1091 = pneg %p759
      %p1092 = pneg %p783
      %p1093 = pneg %p780
      %p1094 = pneg %p804
      %p1095 = pneg %p801
      %p1096 = pneg %p825
      %p1097 = pneg %p822
      %p1098 = pneg %p851
      %p1099 = pneg %p848
      %p1100 = scmp.lt.s32.totalorder %s85, 1
      %s1101 = scalar_select %p1100, %s85, 1
      %s1102 = smul.addr %s1101, 18
      %s1103 = smul.addr %s1102, 8
      %s1104 = scalar_lea.vmem %s71, %s1103
      %p1105 = pneg %p877
      %p1106 = pneg %p874
      %p1107 = scmp.lt.s32.totalorder %s85, 1
      %s1108 = scalar_select %p1107, %s85, 1
      %s1109 = smul.addr %s1108, 18
      %s1110 = smul.addr %s1109, 8
      %s1111 = scalar_lea.vmem %s73, %s1110
      %p1112 = scmp.lt.s32.totalorder %s85, 1
      %s1113 = scalar_select %p1112, %s85, 1
      %s1114 = smul.addr %s1113, 16
      %s1115 = smul.addr %s1114, 8
      %s1116 = scalar_lea.vmem %s1, %s1115
      %p1117 = scmp.lt.s32.totalorder %s85, 1
      %s1118 = scalar_select %p1117, %s85, 1
      %s1119 = smul.addr %s1118, 16
      %s1120 = smul.addr %s1119, 8
      %s1121 = scalar_lea.vmem %s3, %s1120
      %p1122 = scmp.lt.s32.totalorder %s85, 1
      %s1123 = scalar_select %p1122, %s85, 1
      %s1124 = smul.addr %s1123, 18
      %s1125 = smul.addr %s1124, 8
      %s1126 = scalar_lea.vmem %s71, %s1125
      %p1127 = scmp.lt.s32.totalorder %s85, 1
      %s1128 = scalar_select %p1127, %s85, 1
      %s1129 = smul.addr %s1128, 18
      %s1130 = smul.addr %s1129, 8
      %s1131 = scalar_lea.vmem %s73, %s1130
      %v1133 = vld [vmem:[%s1116] sm:$0xff]
      %v1134 = vld [vmem:[%s1116 + $0x8] sm:$0xff]
      %v1135 = vld [vmem:[%s1116 + $0x10] sm:$0xff]
      %v1136 = vld [vmem:[%s1116 + $0x18] sm:$0xff]
      %v1137 = vld [vmem:[%s1116 + $0x20] sm:$0xff]
      %v1138 = vld [vmem:[%s1116 + $0x28] sm:$0xff]
      %v1139 = vld [vmem:[%s1116 + $0x30] sm:$0xff]
      %v1140 = vld [vmem:[%s1116 + $0x38] sm:$0xff]
      %v1141 = vld [vmem:[%s1116 + $0x40] sm:$0xff]
      %v1142 = vld [vmem:[%s1116 + $0x48] sm:$0xff]
      %v1143 = vld [vmem:[%s1116 + $0x50] sm:$0xff]
      %v1144 = vld [vmem:[%s1116 + $0x58] sm:$0xff]
      %v1145 = vld [vmem:[%s1116 + $0x60] sm:$0xff]
      %v1146 = vld [vmem:[%s1116 + $0x68] sm:$0xff]
      %v1147 = vld [vmem:[%s1116 + $0x70] sm:$0xff]
      %v1148 = vld [vmem:[%s1116 + $0x78] sm:$0xff]
      %v1149 = vld [vmem:[%s5] sm:$0x1]
      %v1150 = vld [vmem:[%s7] sm:$0x1]
      %vm1151 = vcmask 523264
      %v1152 = vsel %vm1151, %v1133, 0.0
      %1153 = vadd.xlane.f32.xlu0 %v1152
      %v1154 = vpop.xlane.xlu0 %1153
      %v1155 = vsel %vm1151, %v1134, 0.0
      %1156 = vadd.xlane.f32.xlu0 %v1155
      %v1157 = vpop.xlane.xlu0 %1156
      %v1158 = vsel %vm1151, %v1135, 0.0
      %1159 = vadd.xlane.f32.xlu0 %v1158
      %v1160 = vpop.xlane.xlu0 %1159
      %v1161 = vsel %vm1151, %v1136, 0.0
      %1162 = vadd.xlane.f32.xlu0 %v1161
      %v1163 = vpop.xlane.xlu0 %1162
      %v1164 = vsel %vm1151, %v1137, 0.0
      %1165 = vadd.xlane.f32.xlu0 %v1164
      %v1166 = vpop.xlane.xlu0 %1165
      %v1167 = vsel %vm1151, %v1138, 0.0
      %1168 = vadd.xlane.f32.xlu0 %v1167
      %v1169 = vpop.xlane.xlu0 %1168
      %v1170 = vsel %vm1151, %v1139, 0.0
      %1171 = vadd.xlane.f32.xlu0 %v1170
      %v1172 = vpop.xlane.xlu0 %1171
      %v1173 = vsel %vm1151, %v1140, 0.0
      %1174 = vadd.xlane.f32.xlu0 %v1173
      %v1175 = vpop.xlane.xlu0 %1174
      %v1176 = vsel %vm1151, %v1141, 0.0
      %1177 = vadd.xlane.f32.xlu0 %v1176
      %v1178 = vpop.xlane.xlu0 %1177
      %v1179 = vsel %vm1151, %v1142, 0.0
      %1180 = vadd.xlane.f32.xlu0 %v1179
      %v1181 = vpop.xlane.xlu0 %1180
      %v1182 = vsel %vm1151, %v1143, 0.0
      %1183 = vadd.xlane.f32.xlu0 %v1182
      %v1184 = vpop.xlane.xlu0 %1183
      %v1185 = vsel %vm1151, %v1144, 0.0
      %1186 = vadd.xlane.f32.xlu0 %v1185
      %v1187 = vpop.xlane.xlu0 %1186
      %v1188 = vsel %vm1151, %v1145, 0.0
      %1189 = vadd.xlane.f32.xlu0 %v1188
      %v1190 = vpop.xlane.xlu0 %1189
      %v1191 = vsel %vm1151, %v1146, 0.0
      %1192 = vadd.xlane.f32.xlu0 %v1191
      %v1193 = vpop.xlane.xlu0 %1192
      %v1194 = vsel %vm1151, %v1147, 0.0
      %1195 = vadd.xlane.f32.xlu0 %v1194
      %v1196 = vpop.xlane.xlu0 %1195
      %v1197 = vsel %vm1151, %v1148, 0.0
      %1198 = vadd.xlane.f32.xlu0 %v1197
      %v1199 = vpop.xlane.xlu0 %1198
      %v1200 = vrcp.pop 64.0
      %v1201 = vmul.f32 64.0, %v1200
      %v1202 = vsub.f32 1.0, %v1201
      %v1203 = vmul.f32 %v1200, %v1202
      %v1204 = vadd.f32 %v1200, %v1203
      %vm1205 = vweird.f32 %v1200
      %v1206 = vsel %vm1205, %v1200, %v1204
      %v1207 = vmul.f32 %v1154, %v1206
      %v1208 = vmul.f32 %v1157, %v1206
      %v1209 = vmul.f32 %v1160, %v1206
      %v1210 = vmul.f32 %v1163, %v1206
      %v1211 = vmul.f32 %v1166, %v1206
      %v1212 = vmul.f32 %v1169, %v1206
      %v1213 = vmul.f32 %v1172, %v1206
      %v1214 = vmul.f32 %v1175, %v1206
      %v1215 = vmul.f32 %v1178, %v1206
      %v1216 = vmul.f32 %v1181, %v1206
      %v1217 = vmul.f32 %v1184, %v1206
      %v1218 = vmul.f32 %v1187, %v1206
      %v1219 = vmul.f32 %v1190, %v1206
      %v1220 = vmul.f32 %v1193, %v1206
      %v1221 = vmul.f32 %v1196, %v1206
      %v1222 = vmul.f32 %v1199, %v1206
      %v1223 = vsub.f32 %v1133, %v1207
      %v1224 = vsub.f32 %v1134, %v1208
      %v1225 = vsub.f32 %v1135, %v1209
      %v1226 = vsub.f32 %v1136, %v1210
      %v1227 = vsub.f32 %v1137, %v1211
      %v1228 = vsub.f32 %v1138, %v1212
      %v1229 = vsub.f32 %v1139, %v1213
      %v1230 = vsub.f32 %v1140, %v1214
      %v1231 = vsub.f32 %v1141, %v1215
      %v1232 = vsub.f32 %v1142, %v1216
      %v1233 = vsub.f32 %v1143, %v1217
      %v1234 = vsub.f32 %v1144, %v1218
      %v1235 = vsub.f32 %v1145, %v1219
      %v1236 = vsub.f32 %v1146, %v1220
      %v1237 = vsub.f32 %v1147, %v1221
      %v1238 = vsub.f32 %v1148, %v1222
      %v1239 = vmul.f32 %v1223, %v1223
      %v1240 = vmul.f32 %v1224, %v1224
      %v1241 = vmul.f32 %v1225, %v1225
      %v1242 = vmul.f32 %v1226, %v1226
      %v1243 = vmul.f32 %v1227, %v1227
      %v1244 = vmul.f32 %v1228, %v1228
      %v1245 = vmul.f32 %v1229, %v1229
      %v1246 = vmul.f32 %v1230, %v1230
      %v1247 = vmul.f32 %v1231, %v1231
      %v1248 = vmul.f32 %v1232, %v1232
      %v1249 = vmul.f32 %v1233, %v1233
      %v1250 = vmul.f32 %v1234, %v1234
      %v1251 = vmul.f32 %v1235, %v1235
      %v1252 = vmul.f32 %v1236, %v1236
      %v1253 = vmul.f32 %v1237, %v1237
      %v1254 = vmul.f32 %v1238, %v1238
      %v1255 = vsel %vm1151, %v1239, 0.0
      %1256 = vadd.xlane.f32.xlu0 %v1255
      %v1257 = vpop.xlane.xlu0 %1256
      %v1258 = vsel %vm1151, %v1240, 0.0
      %1259 = vadd.xlane.f32.xlu0 %v1258
      %v1260 = vpop.xlane.xlu0 %1259
      %v1261 = vsel %vm1151, %v1241, 0.0
      %1262 = vadd.xlane.f32.xlu0 %v1261
      %v1263 = vpop.xlane.xlu0 %1262
      %v1264 = vsel %vm1151, %v1242, 0.0
      %1265 = vadd.xlane.f32.xlu0 %v1264
      %v1266 = vpop.xlane.xlu0 %1265
      %v1267 = vsel %vm1151, %v1243, 0.0
      %1268 = vadd.xlane.f32.xlu0 %v1267
      %v1269 = vpop.xlane.xlu0 %1268
      %v1270 = vsel %vm1151, %v1244, 0.0
      %1271 = vadd.xlane.f32.xlu0 %v1270
      %v1272 = vpop.xlane.xlu0 %1271
      %v1273 = vsel %vm1151, %v1245, 0.0
      %1274 = vadd.xlane.f32.xlu0 %v1273
      %v1275 = vpop.xlane.xlu0 %1274
      %v1276 = vsel %vm1151, %v1246, 0.0
      %1277 = vadd.xlane.f32.xlu0 %v1276
      %v1278 = vpop.xlane.xlu0 %1277
      %v1279 = vsel %vm1151, %v1247, 0.0
      %1280 = vadd.xlane.f32.xlu0 %v1279
      %v1281 = vpop.xlane.xlu0 %1280
      %v1282 = vsel %vm1151, %v1248, 0.0
      %1283 = vadd.xlane.f32.xlu0 %v1282
      %v1284 = vpop.xlane.xlu0 %1283
      %v1285 = vsel %vm1151, %v1249, 0.0
      %1286 = vadd.xlane.f32.xlu0 %v1285
      %v1287 = vpop.xlane.xlu0 %1286
      %v1288 = vsel %vm1151, %v1250, 0.0
      %1289 = vadd.xlane.f32.xlu0 %v1288
      %v1290 = vpop.xlane.xlu0 %1289
      %v1291 = vsel %vm1151, %v1251, 0.0
      %1292 = vadd.xlane.f32.xlu0 %v1291
      %v1293 = vpop.xlane.xlu0 %1292
      %v1294 = vsel %vm1151, %v1252, 0.0
      %1295 = vadd.xlane.f32.xlu0 %v1294
      %v1296 = vpop.xlane.xlu0 %1295
      %v1297 = vsel %vm1151, %v1253, 0.0
      %1298 = vadd.xlane.f32.xlu0 %v1297
      %v1299 = vpop.xlane.xlu0 %1298
      %v1300 = vsel %vm1151, %v1254, 0.0
      %1301 = vadd.xlane.f32.xlu0 %v1300
      %v1302 = vpop.xlane.xlu0 %1301
      %v1303 = vmul.f32 %v1257, %v1206
      %v1304 = vmul.f32 %v1260, %v1206
      %v1305 = vmul.f32 %v1263, %v1206
      %v1306 = vmul.f32 %v1266, %v1206
      %v1307 = vmul.f32 %v1269, %v1206
      %v1308 = vmul.f32 %v1272, %v1206
      %v1309 = vmul.f32 %v1275, %v1206
      %v1310 = vmul.f32 %v1278, %v1206
      %v1311 = vmul.f32 %v1281, %v1206
      %v1312 = vmul.f32 %v1284, %v1206
      %v1313 = vmul.f32 %v1287, %v1206
      %v1314 = vmul.f32 %v1290, %v1206
      %v1315 = vmul.f32 %v1293, %v1206
      %v1316 = vmul.f32 %v1296, %v1206
      %v1317 = vmul.f32 %v1299, %v1206
      %v1318 = vmul.f32 %v1302, %v1206
      %v1319 = vadd.f32 %v1303, 1e-05
      %v1320 = vadd.f32 %v1304, 1e-05
      %v1321 = vadd.f32 %v1305, 1e-05
      %v1322 = vadd.f32 %v1306, 1e-05
      %v1323 = vadd.f32 %v1307, 1e-05
      %v1324 = vadd.f32 %v1308, 1e-05
      %v1325 = vadd.f32 %v1309, 1e-05
      %v1326 = vadd.f32 %v1310, 1e-05
      %v1327 = vadd.f32 %v1311, 1e-05
      %v1328 = vadd.f32 %v1312, 1e-05
      %v1329 = vadd.f32 %v1313, 1e-05
      %v1330 = vadd.f32 %v1314, 1e-05
      %v1331 = vadd.f32 %v1315, 1e-05
      %v1332 = vadd.f32 %v1316, 1e-05
      %v1333 = vadd.f32 %v1317, 1e-05
      %v1334 = vadd.f32 %v1318, 1e-05
      %v1335 = vrsqrt.pop %v1319
      %v1336 = vmul.f32 %v1335, %v1319
      %v1337 = vmul.f32 %v1336, %v1335
      %v1338 = vmul.f32 0.5, %v1337
      %v1339 = vsub.f32 1.5, %v1338
      %v1340 = vmul.f32 %v1335, %v1339
      %vm1341 = vweird.f32 %v1319
      %vm1342 = vweird.f32 %v1335
      %vm1343 = vmor %vm1341, %vm1342
      %v1344 = vsel %vm1343, %v1335, %v1340
      %v1345 = vrsqrt.pop %v1320
      %v1346 = vmul.f32 %v1345, %v1320
      %v1347 = vmul.f32 %v1346, %v1345
      %v1348 = vmul.f32 0.5, %v1347
      %v1349 = vsub.f32 1.5, %v1348
      %v1350 = vmul.f32 %v1345, %v1349
      %vm1351 = vweird.f32 %v1320
      %vm1352 = vweird.f32 %v1345
      %vm1353 = vmor %vm1351, %vm1352
      %v1354 = vsel %vm1353, %v1345, %v1350
      %v1355 = vrsqrt.pop %v1321
      %v1356 = vmul.f32 %v1355, %v1321
      %v1357 = vmul.f32 %v1356, %v1355
      %v1358 = vmul.f32 0.5, %v1357
      %v1359 = vsub.f32 1.5, %v1358
      %v1360 = vmul.f32 %v1355, %v1359
      %vm1361 = vweird.f32 %v1321
      %vm1362 = vweird.f32 %v1355
      %vm1363 = vmor %vm1361, %vm1362
      %v1364 = vsel %vm1363, %v1355, %v1360
      %v1365 = vrsqrt.pop %v1322
      %v1366 = vmul.f32 %v1365, %v1322
      %v1367 = vmul.f32 %v1366, %v1365
      %v1368 = vmul.f32 0.5, %v1367
      %v1369 = vsub.f32 1.5, %v1368
      %v1370 = vmul.f32 %v1365, %v1369
      %vm1371 = vweird.f32 %v1322
      %vm1372 = vweird.f32 %v1365
      %vm1373 = vmor %vm1371, %vm1372
      %v1374 = vsel %vm1373, %v1365, %v1370
      %v1375 = vrsqrt.pop %v1323
      %v1376 = vmul.f32 %v1375, %v1323
      %v1377 = vmul.f32 %v1376, %v1375
      %v1378 = vmul.f32 0.5, %v1377
      %v1379 = vsub.f32 1.5, %v1378
      %v1380 = vmul.f32 %v1375, %v1379
      %vm1381 = vweird.f32 %v1323
      %vm1382 = vweird.f32 %v1375
      %vm1383 = vmor %vm1381, %vm1382
      %v1384 = vsel %vm1383, %v1375, %v1380
      %v1385 = vrsqrt.pop %v1324
      %v1386 = vmul.f32 %v1385, %v1324
      %v1387 = vmul.f32 %v1386, %v1385
      %v1388 = vmul.f32 0.5, %v1387
      %v1389 = vsub.f32 1.5, %v1388
      %v1390 = vmul.f32 %v1385, %v1389
      %vm1391 = vweird.f32 %v1324
      %vm1392 = vweird.f32 %v1385
      %vm1393 = vmor %vm1391, %vm1392
      %v1394 = vsel %vm1393, %v1385, %v1390
      %v1395 = vrsqrt.pop %v1325
      %v1396 = vmul.f32 %v1395, %v1325
      %v1397 = vmul.f32 %v1396, %v1395
      %v1398 = vmul.f32 0.5, %v1397
      %v1399 = vsub.f32 1.5, %v1398
      %v1400 = vmul.f32 %v1395, %v1399
      %vm1401 = vweird.f32 %v1325
      %vm1402 = vweird.f32 %v1395
      %vm1403 = vmor %vm1401, %vm1402
      %v1404 = vsel %vm1403, %v1395, %v1400
      %v1405 = vrsqrt.pop %v1326
      %v1406 = vmul.f32 %v1405, %v1326
      %v1407 = vmul.f32 %v1406, %v1405
      %v1408 = vmul.f32 0.5, %v1407
      %v1409 = vsub.f32 1.5, %v1408
      %v1410 = vmul.f32 %v1405, %v1409
      %vm1411 = vweird.f32 %v1326
      %vm1412 = vweird.f32 %v1405
      %vm1413 = vmor %vm1411, %vm1412
      %v1414 = vsel %vm1413, %v1405, %v1410
      %v1415 = vrsqrt.pop %v1327
      %v1416 = vmul.f32 %v1415, %v1327
      %v1417 = vmul.f32 %v1416, %v1415
      %v1418 = vmul.f32 0.5, %v1417
      %v1419 = vsub.f32 1.5, %v1418
      %v1420 = vmul.f32 %v1415, %v1419
      %vm1421 = vweird.f32 %v1327
      %vm1422 = vweird.f32 %v1415
      %vm1423 = vmor %vm1421, %vm1422
      %v1424 = vsel %vm1423, %v1415, %v1420
      %v1425 = vrsqrt.pop %v1328
      %v1426 = vmul.f32 %v1425, %v1328
      %v1427 = vmul.f32 %v1426, %v1425
      %v1428 = vmul.f32 0.5, %v1427
      %v1429 = vsub.f32 1.5, %v1428
      %v1430 = vmul.f32 %v1425, %v1429
      %vm1431 = vweird.f32 %v1328
      %vm1432 = vweird.f32 %v1425
      %vm1433 = vmor %vm1431, %vm1432
      %v1434 = vsel %vm1433, %v1425, %v1430
      %v1435 = vrsqrt.pop %v1329
      %v1436 = vmul.f32 %v1435, %v1329
      %v1437 = vmul.f32 %v1436, %v1435
      %v1438 = vmul.f32 0.5, %v1437
      %v1439 = vsub.f32 1.5, %v1438
      %v1440 = vmul.f32 %v1435, %v1439
      %vm1441 = vweird.f32 %v1329
      %vm1442 = vweird.f32 %v1435
      %vm1443 = vmor %vm1441, %vm1442
      %v1444 = vsel %vm1443, %v1435, %v1440
      %v1445 = vrsqrt.pop %v1330
      %v1446 = vmul.f32 %v1445, %v1330
      %v1447 = vmul.f32 %v1446, %v1445
      %v1448 = vmul.f32 0.5, %v1447
      %v1449 = vsub.f32 1.5, %v1448
      %v1450 = vmul.f32 %v1445, %v1449
      %vm1451 = vweird.f32 %v1330
      %vm1452 = vweird.f32 %v1445
      %vm1453 = vmor %vm1451, %vm1452
      %v1454 = vsel %vm1453, %v1445, %v1450
      %v1455 = vrsqrt.pop %v1331
      %v1456 = vmul.f32 %v1455, %v1331
      %v1457 = vmul.f32 %v1456, %v1455
      %v1458 = vmul.f32 0.5, %v1457
      %v1459 = vsub.f32 1.5, %v1458
      %v1460 = vmul.f32 %v1455, %v1459
      %vm1461 = vweird.f32 %v1331
      %vm1462 = vweird.f32 %v1455
      %vm1463 = vmor %vm1461, %vm1462
      %v1464 = vsel %vm1463, %v1455, %v1460
      %v1465 = vrsqrt.pop %v1332
      %v1466 = vmul.f32 %v1465, %v1332
      %v1467 = vmul.f32 %v1466, %v1465
      %v1468 = vmul.f32 0.5, %v1467
      %v1469 = vsub.f32 1.5, %v1468
      %v1470 = vmul.f32 %v1465, %v1469
      %vm1471 = vweird.f32 %v1332
      %vm1472 = vweird.f32 %v1465
      %vm1473 = vmor %vm1471, %vm1472
      %v1474 = vsel %vm1473, %v1465, %v1470
      %v1475 = vrsqrt.pop %v1333
      %v1476 = vmul.f32 %v1475, %v1333
      %v1477 = vmul.f32 %v1476, %v1475
      %v1478 = vmul.f32 0.5, %v1477
      %v1479 = vsub.f32 1.5, %v1478
      %v1480 = vmul.f32 %v1475, %v1479
      %vm1481 = vweird.f32 %v1333
      %vm1482 = vweird.f32 %v1475
      %vm1483 = vmor %vm1481, %vm1482
      %v1484 = vsel %vm1483, %v1475, %v1480
      %v1485 = vrsqrt.pop %v1334
      %v1486 = vmul.f32 %v1485, %v1334
      %v1487 = vmul.f32 %v1486, %v1485
      %v1488 = vmul.f32 0.5, %v1487
      %v1489 = vsub.f32 1.5, %v1488
      %v1490 = vmul.f32 %v1485, %v1489
      %vm1491 = vweird.f32 %v1334
      %vm1492 = vweird.f32 %v1485
      %vm1493 = vmor %vm1491, %vm1492
      %v1494 = vsel %vm1493, %v1485, %v1490
      %v1495 = vmul.f32 %v1223, %v1344
      %v1496 = vmul.f32 %v1224, %v1354
      %v1497 = vmul.f32 %v1225, %v1364
      %v1498 = vmul.f32 %v1226, %v1374
      %v1499 = vmul.f32 %v1227, %v1384
      %v1500 = vmul.f32 %v1228, %v1394
      %v1501 = vmul.f32 %v1229, %v1404
      %v1502 = vmul.f32 %v1230, %v1414
      %v1503 = vmul.f32 %v1231, %v1424
      %v1504 = vmul.f32 %v1232, %v1434
      %v1505 = vmul.f32 %v1233, %v1444
      %v1506 = vmul.f32 %v1234, %v1454
      %v1507 = vmul.f32 %v1235, %v1464
      %v1508 = vmul.f32 %v1236, %v1474
      %v1509 = vmul.f32 %v1237, %v1484
      %v1510 = vmul.f32 %v1238, %v1494
      %v1512 = vperm.slane %v1149, 0
      %v1514 = vmul.f32 %v1495, %v1512
      %v1515 = vmul.f32 %v1496, %v1512
      %v1516 = vmul.f32 %v1497, %v1512
      %v1517 = vmul.f32 %v1498, %v1512
      %v1518 = vmul.f32 %v1499, %v1512
      %v1519 = vmul.f32 %v1500, %v1512
      %v1520 = vmul.f32 %v1501, %v1512
      %v1521 = vmul.f32 %v1502, %v1512
      %v1522 = vmul.f32 %v1503, %v1512
      %v1523 = vmul.f32 %v1504, %v1512
      %v1524 = vmul.f32 %v1505, %v1512
      %v1525 = vmul.f32 %v1506, %v1512
      %v1526 = vmul.f32 %v1507, %v1512
      %v1527 = vmul.f32 %v1508, %v1512
      %v1528 = vmul.f32 %v1509, %v1512
      %v1529 = vmul.f32 %v1510, %v1512
      %v1531 = vperm.slane %v1150, 0
      %v1533 = vadd.f32 %v1514, %v1531
      %v1534 = vadd.f32 %v1515, %v1531
      %v1535 = vadd.f32 %v1516, %v1531
      %v1536 = vadd.f32 %v1517, %v1531
      %v1537 = vadd.f32 %v1518, %v1531
      %v1538 = vadd.f32 %v1519, %v1531
      %v1539 = vadd.f32 %v1520, %v1531
      %v1540 = vadd.f32 %v1521, %v1531
      %v1541 = vadd.f32 %v1522, %v1531
      %v1542 = vadd.f32 %v1523, %v1531
      %v1543 = vadd.f32 %v1524, %v1531
      %v1544 = vadd.f32 %v1525, %v1531
      %v1545 = vadd.f32 %v1526, %v1531
      %v1546 = vadd.f32 %v1527, %v1531
      %v1547 = vadd.f32 %v1528, %v1531
      %v1548 = vadd.f32 %v1529, %v1531
      %v1549 = vpack.c.bf16 %v1534, %v1533
      %v1550 = vpack.c.bf16 %v1536, %v1535
      %v1551 = vpack.c.bf16 %v1538, %v1537
      %v1552 = vpack.c.bf16 %v1540, %v1539
      %v1553 = vpack.c.bf16 %v1542, %v1541
      %v1554 = vpack.c.bf16 %v1544, %v1543
      %v1555 = vpack.c.bf16 %v1546, %v1545
      %v1556 = vpack.c.bf16 %v1548, %v1547
      %v1557 = vld [vmem:[%s9] sm:$0xf]
      %v1558 = vld [vmem:[%s9 + $0x4] sm:$0xf]
      %v1559 = vld [vmem:[%s9 + $0x8] sm:$0xf]
      %v1560 = vld [vmem:[%s9 + $0xc] sm:$0xf]
      %v1561 = vld [vmem:[%s9 + $0x10] sm:$0xf]
      %v1562 = vld [vmem:[%s9 + $0x14] sm:$0xf]
      %v1563 = vld [vmem:[%s9 + $0x18] sm:$0xf]
      %v1564 = vld [vmem:[%s9 + $0x1c] sm:$0xf]
      %v1573 = vunpack.c.l.b16 %v1557
      %v1574 = vunpack.c.l.b16 %v1558
      %v1575 = vunpack.c.l.b16 %v1559
      %v1576 = vunpack.c.l.b16 %v1560
      %v1577 = vunpack.c.l.b16 %v1561
      %v1578 = vunpack.c.l.b16 %v1562
      %v1579 = vunpack.c.l.b16 %v1563
      %v1580 = vunpack.c.l.b16 %v1564
      %v1581 = vpack.c.b16 %v1574, %v1573
      %v1582 = vpack.c.b16 %v1576, %v1575
      %v1583 = vpack.c.b16 %v1578, %v1577
      %v1584 = vpack.c.b16 %v1580, %v1579
      %v1590 = vsel %vm1151, %v1549, 0
      %v1593 = vsel %vm1151, %v1550, 0
      %v1596 = vsel %vm1151, %v1551, 0
      %v1599 = vsel %vm1151, %v1552, 0
      %v1602 = vsel %vm1151, %v1553, 0
      %v1605 = vsel %vm1151, %v1554, 0
      %v1608 = vsel %vm1151, %v1555, 0
      %v1611 = vsel %vm1151, %v1556, 0
      %1613 = vmatpush.bf16.msra.mxu0 0
      %1614 = vmatpush.bf16.msra.mxu0 0
      %1615 = vmatpush.bf16.msra.mxu0 0
      %1616 = vmatpush.bf16.msra.mxu0 0
      %1617 = vmatpush.bf16.msra.mxu0 %v1584
      %1618 = vmatpush.bf16.msra.mxu0 %v1583
      %1619 = vmatpush.bf16.msra.mxu0 %v1582
      %1620 = vmatpush.bf16.msra.mxu0 %v1581
      %1621 = vmatmul.bf16.gmra.mxu0 %v1590
      %v1622 = vpop.f32.mrf.mxu0
      %v1623 = vadd.f32 0.0, %v1622
      %v1624 = vpop.f32.mrf.mxu0
      %v1625 = vadd.f32 0.0, %v1624
      %1626 = vmatmul.bf16.gmra.mxu0 %v1593
      %v1627 = vpop.f32.mrf.mxu0
      %v1628 = vadd.f32 0.0, %v1627
      %v1629 = vpop.f32.mrf.mxu0
      %v1630 = vadd.f32 0.0, %v1629
      %1631 = vmatmul.bf16.gmra.mxu0 %v1596
      %v1632 = vpop.f32.mrf.mxu0
      %v1633 = vadd.f32 0.0, %v1632
      %v1634 = vpop.f32.mrf.mxu0
      %v1635 = vadd.f32 0.0, %v1634
      %1636 = vmatmul.bf16.gmra.mxu0 %v1599
      %v1637 = vpop.f32.mrf.mxu0
      %v1638 = vadd.f32 0.0, %v1637
      %v1639 = vpop.f32.mrf.mxu0
      %v1640 = vadd.f32 0.0, %v1639
      %1641 = vmatmul.bf16.gmra.mxu0 %v1602
      %v1642 = vpop.f32.mrf.mxu0
      %v1643 = vadd.f32 0.0, %v1642
      %v1644 = vpop.f32.mrf.mxu0
      %v1645 = vadd.f32 0.0, %v1644
      %1646 = vmatmul.bf16.gmra.mxu0 %v1605
      %v1647 = vpop.f32.mrf.mxu0
      %v1648 = vadd.f32 0.0, %v1647
      %v1649 = vpop.f32.mrf.mxu0
      %v1650 = vadd.f32 0.0, %v1649
      %1651 = vmatmul.bf16.gmra.mxu0 %v1608
      %v1652 = vpop.f32.mrf.mxu0
      %v1653 = vadd.f32 0.0, %v1652
      %v1654 = vpop.f32.mrf.mxu0
      %v1655 = vadd.f32 0.0, %v1654
      %1656 = vmatmul.bf16.gmra.mxu0 %v1611
      %v1657 = vpop.f32.mrf.mxu0
      %v1658 = vadd.f32 0.0, %v1657
      %v1659 = vpop.f32.mrf.mxu0
      %v1660 = vadd.f32 0.0, %v1659
      %1661 = vdwg.mxu0
      %v1662 = vpack.c.bf16 %v1623, %v1623
      %v1663 = vpack.c.bf16 %v1625, %v1625
      %v1664 = vpack.c.bf16 %v1628, %v1628
      %v1665 = vpack.c.bf16 %v1630, %v1630
      %v1666 = vpack.c.bf16 %v1633, %v1633
      %v1667 = vpack.c.bf16 %v1635, %v1635
      %v1668 = vpack.c.bf16 %v1638, %v1638
      %v1669 = vpack.c.bf16 %v1640, %v1640
      %v1670 = vpack.c.bf16 %v1643, %v1643
      %v1671 = vpack.c.bf16 %v1645, %v1645
      %v1672 = vpack.c.bf16 %v1648, %v1648
      %v1673 = vpack.c.bf16 %v1650, %v1650
      %v1674 = vpack.c.bf16 %v1653, %v1653
      %v1675 = vpack.c.bf16 %v1655, %v1655
      %v1676 = vpack.c.bf16 %v1658, %v1658
      %v1677 = vpack.c.bf16 %v1660, %v1660
      %v1678 = vld [vmem:[%s11] sm:$0xf]
      %v1679 = vld [vmem:[%s11 + $0x4] sm:$0xf]
      %v1680 = vld [vmem:[%s11 + $0x8] sm:$0xf]
      %v1681 = vld [vmem:[%s11 + $0xc] sm:$0xf]
      %v1682 = vld [vmem:[%s11 + $0x10] sm:$0xf]
      %v1683 = vld [vmem:[%s11 + $0x14] sm:$0xf]
      %v1684 = vld [vmem:[%s11 + $0x18] sm:$0xf]
      %v1685 = vld [vmem:[%s11 + $0x1c] sm:$0xf]
      %v1694 = vunpack.c.l.b16 %v1678
      %v1695 = vunpack.c.l.b16 %v1679
      %v1696 = vunpack.c.l.b16 %v1680
      %v1697 = vunpack.c.l.b16 %v1681
      %v1698 = vunpack.c.l.b16 %v1682
      %v1699 = vunpack.c.l.b16 %v1683
      %v1700 = vunpack.c.l.b16 %v1684
      %v1701 = vunpack.c.l.b16 %v1685
      %v1702 = vpack.c.b16 %v1695, %v1694
      %v1703 = vpack.c.b16 %v1697, %v1696
      %v1704 = vpack.c.b16 %v1699, %v1698
      %v1705 = vpack.c.b16 %v1701, %v1700
      %1710 = vmatpush.bf16.msra.mxu0 0
      %1711 = vmatpush.bf16.msra.mxu0 0
      %1712 = vmatpush.bf16.msra.mxu0 0
      %1713 = vmatpush.bf16.msra.mxu0 0
      %1714 = vmatpush.bf16.msra.mxu0 %v1705
      %1715 = vmatpush.bf16.msra.mxu0 %v1704
      %1716 = vmatpush.bf16.msra.mxu0 %v1703
      %1717 = vmatpush.bf16.msra.mxu0 %v1702
      %1718 = vmatmul.bf16.gmra.mxu0 %v1590
      %v1719 = vpop.f32.mrf.mxu0
      %v1720 = vadd.f32 0.0, %v1719
      %v1721 = vpop.f32.mrf.mxu0
      %v1722 = vadd.f32 0.0, %v1721
      %1723 = vmatmul.bf16.gmra.mxu0 %v1593
      %v1724 = vpop.f32.mrf.mxu0
      %v1725 = vadd.f32 0.0, %v1724
      %v1726 = vpop.f32.mrf.mxu0
      %v1727 = vadd.f32 0.0, %v1726
      %1728 = vmatmul.bf16.gmra.mxu0 %v1596
      %v1729 = vpop.f32.mrf.mxu0
      %v1730 = vadd.f32 0.0, %v1729
      %v1731 = vpop.f32.mrf.mxu0
      %v1732 = vadd.f32 0.0, %v1731
      %1733 = vmatmul.bf16.gmra.mxu0 %v1599
      %v1734 = vpop.f32.mrf.mxu0
      %v1735 = vadd.f32 0.0, %v1734
      %v1736 = vpop.f32.mrf.mxu0
      %v1737 = vadd.f32 0.0, %v1736
      %1738 = vmatmul.bf16.gmra.mxu0 %v1602
      %v1739 = vpop.f32.mrf.mxu0
      %v1740 = vadd.f32 0.0, %v1739
      %v1741 = vpop.f32.mrf.mxu0
      %v1742 = vadd.f32 0.0, %v1741
      %1743 = vmatmul.bf16.gmra.mxu0 %v1605
      %v1744 = vpop.f32.mrf.mxu0
      %v1745 = vadd.f32 0.0, %v1744
      %v1746 = vpop.f32.mrf.mxu0
      %v1747 = vadd.f32 0.0, %v1746
      %1748 = vmatmul.bf16.gmra.mxu0 %v1608
      %v1749 = vpop.f32.mrf.mxu0
      %v1750 = vadd.f32 0.0, %v1749
      %v1751 = vpop.f32.mrf.mxu0
      %v1752 = vadd.f32 0.0, %v1751
      %1753 = vmatmul.bf16.gmra.mxu0 %v1611
      %v1754 = vpop.f32.mrf.mxu0
      %v1755 = vadd.f32 0.0, %v1754
      %v1756 = vpop.f32.mrf.mxu0
      %v1757 = vadd.f32 0.0, %v1756
      %1758 = vdwg.mxu0
      %v1759 = vpack.c.bf16 %v1720, %v1720
      %v1760 = vpack.c.bf16 %v1722, %v1722
      %v1761 = vpack.c.bf16 %v1725, %v1725
      %v1762 = vpack.c.bf16 %v1727, %v1727
      %v1763 = vpack.c.bf16 %v1730, %v1730
      %v1764 = vpack.c.bf16 %v1732, %v1732
      %v1765 = vpack.c.bf16 %v1735, %v1735
      %v1766 = vpack.c.bf16 %v1737, %v1737
      %v1767 = vpack.c.bf16 %v1740, %v1740
      %v1768 = vpack.c.bf16 %v1742, %v1742
      %v1769 = vpack.c.bf16 %v1745, %v1745
      %v1770 = vpack.c.bf16 %v1747, %v1747
      %v1771 = vpack.c.bf16 %v1750, %v1750
      %v1772 = vpack.c.bf16 %v1752, %v1752
      %v1773 = vpack.c.bf16 %v1755, %v1755
      %v1774 = vpack.c.bf16 %v1757, %v1757
      %v1775 = vld [vmem:[%s13] sm:$0xf]
      %v1776 = vld [vmem:[%s13 + $0x4] sm:$0xf]
      %v1777 = vld [vmem:[%s13 + $0x8] sm:$0xf]
      %v1778 = vld [vmem:[%s13 + $0xc] sm:$0xf]
      %v1779 = vld [vmem:[%s13 + $0x10] sm:$0xf]
      %v1780 = vld [vmem:[%s13 + $0x14] sm:$0xf]
      %v1781 = vld [vmem:[%s13 + $0x18] sm:$0xf]
      %v1782 = vld [vmem:[%s13 + $0x1c] sm:$0xf]
      %v1791 = vunpack.c.l.b16 %v1775
      %v1792 = vunpack.c.l.b16 %v1776
      %v1793 = vunpack.c.l.b16 %v1777
      %v1794 = vunpack.c.l.b16 %v1778
      %v1795 = vunpack.c.l.b16 %v1779
      %v1796 = vunpack.c.l.b16 %v1780
      %v1797 = vunpack.c.l.b16 %v1781
      %v1798 = vunpack.c.l.b16 %v1782
      %v1799 = vpack.c.b16 %v1792, %v1791
      %v1800 = vpack.c.b16 %v1794, %v1793
      %v1801 = vpack.c.b16 %v1796, %v1795
      %v1802 = vpack.c.b16 %v1798, %v1797
      %1807 = vmatpush.bf16.msra.mxu0 0
      %1808 = vmatpush.bf16.msra.mxu0 0
      %1809 = vmatpush.bf16.msra.mxu0 0
      %1810 = vmatpush.bf16.msra.mxu0 0
      %1811 = vmatpush.bf16.msra.mxu0 %v1802
      %1812 = vmatpush.bf16.msra.mxu0 %v1801
      %1813 = vmatpush.bf16.msra.mxu0 %v1800
      %1814 = vmatpush.bf16.msra.mxu0 %v1799
      %1815 = vmatmul.bf16.gmra.mxu0 %v1590
      %v1816 = vpop.f32.mrf.mxu0
      %v1817 = vadd.f32 0.0, %v1816
      %v1818 = vpop.f32.mrf.mxu0
      %v1819 = vadd.f32 0.0, %v1818
      %1820 = vmatmul.bf16.gmra.mxu0 %v1593
      %v1821 = vpop.f32.mrf.mxu0
      %v1822 = vadd.f32 0.0, %v1821
      %v1823 = vpop.f32.mrf.mxu0
      %v1824 = vadd.f32 0.0, %v1823
      %1825 = vmatmul.bf16.gmra.mxu0 %v1596
      %v1826 = vpop.f32.mrf.mxu0
      %v1827 = vadd.f32 0.0, %v1826
      %v1828 = vpop.f32.mrf.mxu0
      %v1829 = vadd.f32 0.0, %v1828
      %1830 = vmatmul.bf16.gmra.mxu0 %v1599
      %v1831 = vpop.f32.mrf.mxu0
      %v1832 = vadd.f32 0.0, %v1831
      %v1833 = vpop.f32.mrf.mxu0
      %v1834 = vadd.f32 0.0, %v1833
      %1835 = vmatmul.bf16.gmra.mxu0 %v1602
      %v1836 = vpop.f32.mrf.mxu0
      %v1837 = vadd.f32 0.0, %v1836
      %v1838 = vpop.f32.mrf.mxu0
      %v1839 = vadd.f32 0.0, %v1838
      %1840 = vmatmul.bf16.gmra.mxu0 %v1605
      %v1841 = vpop.f32.mrf.mxu0
      %v1842 = vadd.f32 0.0, %v1841
      %v1843 = vpop.f32.mrf.mxu0
      %v1844 = vadd.f32 0.0, %v1843
      %1845 = vmatmul.bf16.gmra.mxu0 %v1608
      %v1846 = vpop.f32.mrf.mxu0
      %v1847 = vadd.f32 0.0, %v1846
      %v1848 = vpop.f32.mrf.mxu0
      %v1849 = vadd.f32 0.0, %v1848
      %1850 = vmatmul.bf16.gmra.mxu0 %v1611
      %v1851 = vpop.f32.mrf.mxu0
      %v1852 = vadd.f32 0.0, %v1851
      %v1853 = vpop.f32.mrf.mxu0
      %v1854 = vadd.f32 0.0, %v1853
      %1855 = vdwg.mxu0
      %v1856 = vpack.c.bf16 %v1817, %v1817
      %v1857 = vpack.c.bf16 %v1819, %v1819
      %v1858 = vpack.c.bf16 %v1822, %v1822
      %v1859 = vpack.c.bf16 %v1824, %v1824
      %v1860 = vpack.c.bf16 %v1827, %v1827
      %v1861 = vpack.c.bf16 %v1829, %v1829
      %v1862 = vpack.c.bf16 %v1832, %v1832
      %v1863 = vpack.c.bf16 %v1834, %v1834
      %v1864 = vpack.c.bf16 %v1837, %v1837
      %v1865 = vpack.c.bf16 %v1839, %v1839
      %v1866 = vpack.c.bf16 %v1842, %v1842
      %v1867 = vpack.c.bf16 %v1844, %v1844
      %v1868 = vpack.c.bf16 %v1847, %v1847
      %v1869 = vpack.c.bf16 %v1849, %v1849
      %v1870 = vpack.c.bf16 %v1852, %v1852
      %v1871 = vpack.c.bf16 %v1854, %v1854
      %v1872 = vld [vmem:[%s15] sm:$0xf]
      %v1873 = vld [vmem:[%s15 + $0x4] sm:$0xf]
      %v1890 = vunpack.c.l.b16 %v1856
      %v1891 = vunpack.c.l.b16 %v1857
      %v1892 = vunpack.c.l.b16 %v1858
      %v1893 = vunpack.c.l.b16 %v1859
      %v1894 = vunpack.c.l.b16 %v1860
      %v1895 = vunpack.c.l.b16 %v1861
      %v1896 = vunpack.c.l.b16 %v1862
      %v1897 = vunpack.c.l.b16 %v1863
      %v1898 = vunpack.c.l.b16 %v1864
      %v1899 = vunpack.c.l.b16 %v1865
      %v1900 = vunpack.c.l.b16 %v1866
      %v1901 = vunpack.c.l.b16 %v1867
      %v1902 = vunpack.c.l.b16 %v1868
      %v1903 = vunpack.c.l.b16 %v1869
      %v1904 = vunpack.c.l.b16 %v1870
      %v1905 = vunpack.c.l.b16 %v1871
      %v1906 = vpack.c.b16 %v1891, %v1890
      %v1907 = vpack.c.b16 %v1893, %v1892
      %v1908 = vpack.c.b16 %v1895, %v1894
      %v1909 = vpack.c.b16 %v1897, %v1896
      %v1910 = vpack.c.b16 %v1899, %v1898
      %v1911 = vpack.c.b16 %v1901, %v1900
      %v1912 = vpack.c.b16 %v1903, %v1902
      %v1913 = vpack.c.b16 %v1905, %v1904
      %v1916 = vunpack.c.l.b16 %v1872
      %v1917 = vunpack.c.l.b16 %v1873
      %v1918 = vpack.c.b16 %v1917, %v1916
      %vm1920 = vcmask 130048
      %v1922 = vsel %vm1920, %v1906, 0
      %v1925 = vsel %vm1920, %v1907, 0
      %v1928 = vsel %vm1920, %v1908, 0
      %v1931 = vsel %vm1920, %v1909, 0
      %v1934 = vsel %vm1920, %v1910, 0
      %v1937 = vsel %vm1920, %v1911, 0
      %v1940 = vsel %vm1920, %v1912, 0
      %v1943 = vsel %vm1920, %v1913, 0
      %1945 = vmatpush.bf16.msra.mxu0 0
      %1946 = vmatpush.bf16.msra.mxu0 0
      %1947 = vmatpush.bf16.msra.mxu0 0
      %1948 = vmatpush.bf16.msra.mxu0 0
      %1949 = vmatpush.bf16.msra.mxu0 0
      %1950 = vmatpush.bf16.msra.mxu0 0
      %1951 = vmatpush.bf16.msra.mxu0 0
      %1952 = vmatpush.bf16.msra.mxu0 %v1918
      %1953 = vmatmul.bf16.gmra.mxu0 %v1922
      %v1954 = vpop.f32.mrf.mxu0
      %v1955 = vadd.f32 0.0, %v1954
      %v1956 = vpop.f32.mrf.mxu0
      %v1957 = vadd.f32 0.0, %v1956
      %1958 = vmatmul.bf16.gmra.mxu0 %v1925
      %v1959 = vpop.f32.mrf.mxu0
      %v1960 = vadd.f32 0.0, %v1959
      %v1961 = vpop.f32.mrf.mxu0
      %v1962 = vadd.f32 0.0, %v1961
      %1963 = vmatmul.bf16.gmra.mxu0 %v1928
      %v1964 = vpop.f32.mrf.mxu0
      %v1965 = vadd.f32 0.0, %v1964
      %v1966 = vpop.f32.mrf.mxu0
      %v1967 = vadd.f32 0.0, %v1966
      %1968 = vmatmul.bf16.gmra.mxu0 %v1931
      %v1969 = vpop.f32.mrf.mxu0
      %v1970 = vadd.f32 0.0, %v1969
      %v1971 = vpop.f32.mrf.mxu0
      %v1972 = vadd.f32 0.0, %v1971
      %1973 = vmatmul.bf16.gmra.mxu0 %v1934
      %v1974 = vpop.f32.mrf.mxu0
      %v1975 = vadd.f32 0.0, %v1974
      %v1976 = vpop.f32.mrf.mxu0
      %v1977 = vadd.f32 0.0, %v1976
      %1978 = vmatmul.bf16.gmra.mxu0 %v1937
      %v1979 = vpop.f32.mrf.mxu0
      %v1980 = vadd.f32 0.0, %v1979
      %v1981 = vpop.f32.mrf.mxu0
      %v1982 = vadd.f32 0.0, %v1981
      %1983 = vmatmul.bf16.gmra.mxu0 %v1940
      %v1984 = vpop.f32.mrf.mxu0
      %v1985 = vadd.f32 0.0, %v1984
      %v1986 = vpop.f32.mrf.mxu0
      %v1987 = vadd.f32 0.0, %v1986
      %1988 = vmatmul.bf16.gmra.mxu0 %v1943
      %v1989 = vpop.f32.mrf.mxu0
      %v1990 = vadd.f32 0.0, %v1989
      %v1991 = vpop.f32.mrf.mxu0
      %v1992 = vadd.f32 0.0, %v1991
      %1993 = vdwg.mxu0
      %v1994 = vpack.c.bf16 %v1957, %v1955
      %v1995 = vpack.c.bf16 %v1962, %v1960
      %v1996 = vpack.c.bf16 %v1967, %v1965
      %v1997 = vpack.c.bf16 %v1972, %v1970
      %v1998 = vpack.c.bf16 %v1977, %v1975
      %v1999 = vpack.c.bf16 %v1982, %v1980
      %v2000 = vpack.c.bf16 %v1987, %v1985
      %v2001 = vpack.c.bf16 %v1992, %v1990
      %v2002 = vld [vmem:[%s15 + $0x8] sm:$0xf]
      %v2003 = vld [vmem:[%s15 + $0xc] sm:$0xf]
      %2004 = vrot.lane.b32.xlu0 %v1906, 112
      %v2005 = vpop.permute.xlu0 %2004
      %2006 = vrot.lane.b32.xlu0 %v1907, 112
      %v2007 = vpop.permute.xlu0 %2006
      %2008 = vrot.lane.b32.xlu0 %v1908, 112
      %v2009 = vpop.permute.xlu0 %2008
      %2010 = vrot.lane.b32.xlu0 %v1909, 112
      %v2011 = vpop.permute.xlu0 %2010
      %2012 = vrot.lane.b32.xlu0 %v1910, 112
      %v2013 = vpop.permute.xlu0 %2012
      %2014 = vrot.lane.b32.xlu0 %v1911, 112
      %v2015 = vpop.permute.xlu0 %2014
      %2016 = vrot.lane.b32.xlu0 %v1912, 112
      %v2017 = vpop.permute.xlu0 %2016
      %2018 = vrot.lane.b32.xlu0 %v1913, 112
      %v2019 = vpop.permute.xlu0 %2018
      %v2022 = vunpack.c.l.b16 %v2002
      %v2023 = vunpack.c.l.b16 %v2003
      %v2024 = vpack.c.b16 %v2023, %v2022
      %v2027 = vsel %vm1920, %v2005, 0
      %v2030 = vsel %vm1920, %v2007, 0
      %v2033 = vsel %vm1920, %v2009, 0
      %v2036 = vsel %vm1920, %v2011, 0
      %v2039 = vsel %vm1920, %v2013, 0
      %v2042 = vsel %vm1920, %v2015, 0
      %v2045 = vsel %vm1920, %v2017, 0
      %v2048 = vsel %vm1920, %v2019, 0
      %2050 = vmatpush.bf16.msra.mxu0 0
      %2051 = vmatpush.bf16.msra.mxu0 0
      %2052 = vmatpush.bf16.msra.mxu0 0
      %2053 = vmatpush.bf16.msra.mxu0 0
      %2054 = vmatpush.bf16.msra.mxu0 0
      %2055 = vmatpush.bf16.msra.mxu0 0
      %2056 = vmatpush.bf16.msra.mxu0 0
      %2057 = vmatpush.bf16.msra.mxu0 %v2024
      %2058 = vmatmul.bf16.gmra.mxu0 %v2027
      %v2059 = vpop.f32.mrf.mxu0
      %v2060 = vadd.f32 0.0, %v2059
      %v2061 = vpop.f32.mrf.mxu0
      %v2062 = vadd.f32 0.0, %v2061
      %2063 = vmatmul.bf16.gmra.mxu0 %v2030
      %v2064 = vpop.f32.mrf.mxu0
      %v2065 = vadd.f32 0.0, %v2064
      %v2066 = vpop.f32.mrf.mxu0
      %v2067 = vadd.f32 0.0, %v2066
      %2068 = vmatmul.bf16.gmra.mxu0 %v2033
      %v2069 = vpop.f32.mrf.mxu0
      %v2070 = vadd.f32 0.0, %v2069
      %v2071 = vpop.f32.mrf.mxu0
      %v2072 = vadd.f32 0.0, %v2071
      %2073 = vmatmul.bf16.gmra.mxu0 %v2036
      %v2074 = vpop.f32.mrf.mxu0
      %v2075 = vadd.f32 0.0, %v2074
      %v2076 = vpop.f32.mrf.mxu0
      %v2077 = vadd.f32 0.0, %v2076
      %2078 = vmatmul.bf16.gmra.mxu0 %v2039
      %v2079 = vpop.f32.mrf.mxu0
      %v2080 = vadd.f32 0.0, %v2079
      %v2081 = vpop.f32.mrf.mxu0
      %v2082 = vadd.f32 0.0, %v2081
      %2083 = vmatmul.bf16.gmra.mxu0 %v2042
      %v2084 = vpop.f32.mrf.mxu0
      %v2085 = vadd.f32 0.0, %v2084
      %v2086 = vpop.f32.mrf.mxu0
      %v2087 = vadd.f32 0.0, %v2086
      %2088 = vmatmul.bf16.gmra.mxu0 %v2045
      %v2089 = vpop.f32.mrf.mxu0
      %v2090 = vadd.f32 0.0, %v2089
      %v2091 = vpop.f32.mrf.mxu0
      %v2092 = vadd.f32 0.0, %v2091
      %2093 = vmatmul.bf16.gmra.mxu0 %v2048
      %v2094 = vpop.f32.mrf.mxu0
      %v2095 = vadd.f32 0.0, %v2094
      %v2096 = vpop.f32.mrf.mxu0
      %v2097 = vadd.f32 0.0, %v2096
      %2098 = vdwg.mxu0
      %v2099 = vpack.c.bf16 %v2062, %v2060
      %v2100 = vpack.c.bf16 %v2067, %v2065
      %v2101 = vpack.c.bf16 %v2072, %v2070
      %v2102 = vpack.c.bf16 %v2077, %v2075
      %v2103 = vpack.c.bf16 %v2082, %v2080
      %v2104 = vpack.c.bf16 %v2087, %v2085
      %v2105 = vpack.c.bf16 %v2092, %v2090
      %v2106 = vpack.c.bf16 %v2097, %v2095
      %v2107 = vld [vmem:[%s15 + $0x10] sm:$0xf]
      %v2108 = vld [vmem:[%s15 + $0x14] sm:$0xf]
      %2109 = vrot.lane.b32.xlu0 %v1906, 96
      %v2110 = vpop.permute.xlu0 %2109
      %2111 = vrot.lane.b32.xlu0 %v1907, 96
      %v2112 = vpop.permute.xlu0 %2111
      %2113 = vrot.lane.b32.xlu0 %v1908, 96
      %v2114 = vpop.permute.xlu0 %2113
      %2115 = vrot.lane.b32.xlu0 %v1909, 96
      %v2116 = vpop.permute.xlu0 %2115
      %2117 = vrot.lane.b32.xlu0 %v1910, 96
      %v2118 = vpop.permute.xlu0 %2117
      %2119 = vrot.lane.b32.xlu0 %v1911, 96
      %v2120 = vpop.permute.xlu0 %2119
      %2121 = vrot.lane.b32.xlu0 %v1912, 96
      %v2122 = vpop.permute.xlu0 %2121
      %2123 = vrot.lane.b32.xlu0 %v1913, 96
      %v2124 = vpop.permute.xlu0 %2123
      %v2127 = vunpack.c.l.b16 %v2107
      %v2128 = vunpack.c.l.b16 %v2108
      %v2129 = vpack.c.b16 %v2128, %v2127
      %v2132 = vsel %vm1920, %v2110, 0
      %v2135 = vsel %vm1920, %v2112, 0
      %v2138 = vsel %vm1920, %v2114, 0
      %v2141 = vsel %vm1920, %v2116, 0
      %v2144 = vsel %vm1920, %v2118, 0
      %v2147 = vsel %vm1920, %v2120, 0
      %v2150 = vsel %vm1920, %v2122, 0
      %v2153 = vsel %vm1920, %v2124, 0
      %2155 = vmatpush.bf16.msra.mxu0 0
      %2156 = vmatpush.bf16.msra.mxu0 0
      %2157 = vmatpush.bf16.msra.mxu0 0
      %2158 = vmatpush.bf16.msra.mxu0 0
      %2159 = vmatpush.bf16.msra.mxu0 0
      %2160 = vmatpush.bf16.msra.mxu0 0
      %2161 = vmatpush.bf16.msra.mxu0 0
      %2162 = vmatpush.bf16.msra.mxu0 %v2129
      %2163 = vmatmul.bf16.gmra.mxu0 %v2132
      %v2164 = vpop.f32.mrf.mxu0
      %v2165 = vadd.f32 0.0, %v2164
      %v2166 = vpop.f32.mrf.mxu0
      %v2167 = vadd.f32 0.0, %v2166
      %2168 = vmatmul.bf16.gmra.mxu0 %v2135
      %v2169 = vpop.f32.mrf.mxu0
      %v2170 = vadd.f32 0.0, %v2169
      %v2171 = vpop.f32.mrf.mxu0
      %v2172 = vadd.f32 0.0, %v2171
      %2173 = vmatmul.bf16.gmra.mxu0 %v2138
      %v2174 = vpop.f32.mrf.mxu0
      %v2175 = vadd.f32 0.0, %v2174
      %v2176 = vpop.f32.mrf.mxu0
      %v2177 = vadd.f32 0.0, %v2176
      %2178 = vmatmul.bf16.gmra.mxu0 %v2141
      %v2179 = vpop.f32.mrf.mxu0
      %v2180 = vadd.f32 0.0, %v2179
      %v2181 = vpop.f32.mrf.mxu0
      %v2182 = vadd.f32 0.0, %v2181
      %2183 = vmatmul.bf16.gmra.mxu0 %v2144
      %v2184 = vpop.f32.mrf.mxu0
      %v2185 = vadd.f32 0.0, %v2184
      %v2186 = vpop.f32.mrf.mxu0
      %v2187 = vadd.f32 0.0, %v2186
      %2188 = vmatmul.bf16.gmra.mxu0 %v2147
      %v2189 = vpop.f32.mrf.mxu0
      %v2190 = vadd.f32 0.0, %v2189
      %v2191 = vpop.f32.mrf.mxu0
      %v2192 = vadd.f32 0.0, %v2191
      %2193 = vmatmul.bf16.gmra.mxu0 %v2150
      %v2194 = vpop.f32.mrf.mxu0
      %v2195 = vadd.f32 0.0, %v2194
      %v2196 = vpop.f32.mrf.mxu0
      %v2197 = vadd.f32 0.0, %v2196
      %2198 = vmatmul.bf16.gmra.mxu0 %v2153
      %v2199 = vpop.f32.mrf.mxu0
      %v2200 = vadd.f32 0.0, %v2199
      %v2201 = vpop.f32.mrf.mxu0
      %v2202 = vadd.f32 0.0, %v2201
      %2203 = vdwg.mxu0
      %v2204 = vpack.c.bf16 %v2167, %v2165
      %v2205 = vpack.c.bf16 %v2172, %v2170
      %v2206 = vpack.c.bf16 %v2177, %v2175
      %v2207 = vpack.c.bf16 %v2182, %v2180
      %v2208 = vpack.c.bf16 %v2187, %v2185
      %v2209 = vpack.c.bf16 %v2192, %v2190
      %v2210 = vpack.c.bf16 %v2197, %v2195
      %v2211 = vpack.c.bf16 %v2202, %v2200
      %v2212 = vld [vmem:[%s15 + $0x18] sm:$0xf]
      %v2213 = vld [vmem:[%s15 + $0x1c] sm:$0xf]
      %2214 = vrot.lane.b32.xlu0 %v1906, 80
      %v2215 = vpop.permute.xlu0 %2214
      %2216 = vrot.lane.b32.xlu0 %v1907, 80
      %v2217 = vpop.permute.xlu0 %2216
      %2218 = vrot.lane.b32.xlu0 %v1908, 80
      %v2219 = vpop.permute.xlu0 %2218
      %2220 = vrot.lane.b32.xlu0 %v1909, 80
      %v2221 = vpop.permute.xlu0 %2220
      %2222 = vrot.lane.b32.xlu0 %v1910, 80
      %v2223 = vpop.permute.xlu0 %2222
      %2224 = vrot.lane.b32.xlu0 %v1911, 80
      %v2225 = vpop.permute.xlu0 %2224
      %2226 = vrot.lane.b32.xlu0 %v1912, 80
      %v2227 = vpop.permute.xlu0 %2226
      %2228 = vrot.lane.b32.xlu0 %v1913, 80
      %v2229 = vpop.permute.xlu0 %2228
      %v2232 = vunpack.c.l.b16 %v2212
      %v2233 = vunpack.c.l.b16 %v2213
      %v2234 = vpack.c.b16 %v2233, %v2232
      %v2237 = vsel %vm1920, %v2215, 0
      %v2240 = vsel %vm1920, %v2217, 0
      %v2243 = vsel %vm1920, %v2219, 0
      %v2246 = vsel %vm1920, %v2221, 0
      %v2249 = vsel %vm1920, %v2223, 0
      %v2252 = vsel %vm1920, %v2225, 0
      %v2255 = vsel %vm1920, %v2227, 0
      %v2258 = vsel %vm1920, %v2229, 0
      %2260 = vmatpush.bf16.msra.mxu0 0
      %2261 = vmatpush.bf16.msra.mxu0 0
      %2262 = vmatpush.bf16.msra.mxu0 0
      %2263 = vmatpush.bf16.msra.mxu0 0
      %2264 = vmatpush.bf16.msra.mxu0 0
      %2265 = vmatpush.bf16.msra.mxu0 0
      %2266 = vmatpush.bf16.msra.mxu0 0
      %2267 = vmatpush.bf16.msra.mxu0 %v2234
      %2268 = vmatmul.bf16.gmra.mxu0 %v2237
      %v2269 = vpop.f32.mrf.mxu0
      %v2270 = vadd.f32 0.0, %v2269
      %v2271 = vpop.f32.mrf.mxu0
      %v2272 = vadd.f32 0.0, %v2271
      %2273 = vmatmul.bf16.gmra.mxu0 %v2240
      %v2274 = vpop.f32.mrf.mxu0
      %v2275 = vadd.f32 0.0, %v2274
      %v2276 = vpop.f32.mrf.mxu0
      %v2277 = vadd.f32 0.0, %v2276
      %2278 = vmatmul.bf16.gmra.mxu0 %v2243
      %v2279 = vpop.f32.mrf.mxu0
      %v2280 = vadd.f32 0.0, %v2279
      %v2281 = vpop.f32.mrf.mxu0
      %v2282 = vadd.f32 0.0, %v2281
      %2283 = vmatmul.bf16.gmra.mxu0 %v2246
      %v2284 = vpop.f32.mrf.mxu0
      %v2285 = vadd.f32 0.0, %v2284
      %v2286 = vpop.f32.mrf.mxu0
      %v2287 = vadd.f32 0.0, %v2286
      %2288 = vmatmul.bf16.gmra.mxu0 %v2249
      %v2289 = vpop.f32.mrf.mxu0
      %v2290 = vadd.f32 0.0, %v2289
      %v2291 = vpop.f32.mrf.mxu0
      %v2292 = vadd.f32 0.0, %v2291
      %2293 = vmatmul.bf16.gmra.mxu0 %v2252
      %v2294 = vpop.f32.mrf.mxu0
      %v2295 = vadd.f32 0.0, %v2294
      %v2296 = vpop.f32.mrf.mxu0
      %v2297 = vadd.f32 0.0, %v2296
      %2298 = vmatmul.bf16.gmra.mxu0 %v2255
      %v2299 = vpop.f32.mrf.mxu0
      %v2300 = vadd.f32 0.0, %v2299
      %v2301 = vpop.f32.mrf.mxu0
      %v2302 = vadd.f32 0.0, %v2301
      %2303 = vmatmul.bf16.gmra.mxu0 %v2258
      %v2304 = vpop.f32.mrf.mxu0
      %v2305 = vadd.f32 0.0, %v2304
      %v2306 = vpop.f32.mrf.mxu0
      %v2307 = vadd.f32 0.0, %v2306
      %2308 = vdwg.mxu0
      %v2309 = vpack.c.bf16 %v2272, %v2270
      %v2310 = vpack.c.bf16 %v2277, %v2275
      %v2311 = vpack.c.bf16 %v2282, %v2280
      %v2312 = vpack.c.bf16 %v2287, %v2285
      %v2313 = vpack.c.bf16 %v2292, %v2290
      %v2314 = vpack.c.bf16 %v2297, %v2295
      %v2315 = vpack.c.bf16 %v2302, %v2300
      %v2316 = vpack.c.bf16 %v2307, %v2305
      %v2333 = vunpack.c.l.b16 %v1662
      %v2334 = vunpack.c.l.b16 %v1663
      %v2335 = vunpack.c.l.b16 %v1664
      %v2336 = vunpack.c.l.b16 %v1665
      %v2337 = vunpack.c.l.b16 %v1666
      %v2338 = vunpack.c.l.b16 %v1667
      %v2339 = vunpack.c.l.b16 %v1668
      %v2340 = vunpack.c.l.b16 %v1669
      %v2341 = vunpack.c.l.b16 %v1670
      %v2342 = vunpack.c.l.b16 %v1671
      %v2343 = vunpack.c.l.b16 %v1672
      %v2344 = vunpack.c.l.b16 %v1673
      %v2345 = vunpack.c.l.b16 %v1674
      %v2346 = vunpack.c.l.b16 %v1675
      %v2347 = vunpack.c.l.b16 %v1676
      %v2348 = vunpack.c.l.b16 %v1677
      %v2349 = vpack.c.b16 %v2334, %v2333
      %v2350 = vpack.c.b16 %v2336, %v2335
      %v2351 = vpack.c.b16 %v2338, %v2337
      %v2352 = vpack.c.b16 %v2340, %v2339
      %v2353 = vpack.c.b16 %v2342, %v2341
      %v2354 = vpack.c.b16 %v2344, %v2343
      %v2355 = vpack.c.b16 %v2346, %v2345
      %v2356 = vpack.c.b16 %v2348, %v2347
      %v2373 = vunpack.c.l.b16 %v1759
      %v2374 = vunpack.c.l.b16 %v1760
      %v2375 = vunpack.c.l.b16 %v1761
      %v2376 = vunpack.c.l.b16 %v1762
      %v2377 = vunpack.c.l.b16 %v1763
      %v2378 = vunpack.c.l.b16 %v1764
      %v2379 = vunpack.c.l.b16 %v1765
      %v2380 = vunpack.c.l.b16 %v1766
      %v2381 = vunpack.c.l.b16 %v1767
      %v2382 = vunpack.c.l.b16 %v1768
      %v2383 = vunpack.c.l.b16 %v1769
      %v2384 = vunpack.c.l.b16 %v1770
      %v2385 = vunpack.c.l.b16 %v1771
      %v2386 = vunpack.c.l.b16 %v1772
      %v2387 = vunpack.c.l.b16 %v1773
      %v2388 = vunpack.c.l.b16 %v1774
      %v2389 = vpack.c.b16 %v2374, %v2373
      %v2390 = vpack.c.b16 %v2376, %v2375
      %v2391 = vpack.c.b16 %v2378, %v2377
      %v2392 = vpack.c.b16 %v2380, %v2379
      %v2393 = vpack.c.b16 %v2382, %v2381
      %v2394 = vpack.c.b16 %v2384, %v2383
      %v2395 = vpack.c.b16 %v2386, %v2385
      %v2396 = vpack.c.b16 %v2388, %v2387
      %v2398 = vsel %vm1920, %v2349, 0
      %v2401 = vsel %vm1920, %v2350, 0
      %v2404 = vsel %vm1920, %v2351, 0
      %v2407 = vsel %vm1920, %v2352, 0
      %v2410 = vsel %vm1920, %v2353, 0
      %v2413 = vsel %vm1920, %v2354, 0
      %v2416 = vsel %vm1920, %v2355, 0
      %v2419 = vsel %vm1920, %v2356, 0
      %v2422 = vsel %vm1920, %v2389, 0
      %v2425 = vsel %vm1920, %v2390, 0
      %v2428 = vsel %vm1920, %v2391, 0
      %v2431 = vsel %vm1920, %v2392, 0
      %v2434 = vsel %vm1920, %v2393, 0
      %v2437 = vsel %vm1920, %v2394, 0
      %v2440 = vsel %vm1920, %v2395, 0
      %v2443 = vsel %vm1920, %v2396, 0
      %2445 = vmatpush.bf16.xpose.msra.mxu0 %v2443
      %2446 = vmatpush.bf16.xpose.msra.mxu0 %v2440
      %2447 = vmatpush.bf16.xpose.msra.mxu0 %v2437
      %2448 = vmatpush.bf16.xpose.msra.mxu0 %v2434
      %2449 = vmatpush.bf16.xpose.msra.mxu0 %v2431
      %2450 = vmatpush.bf16.xpose.msra.mxu0 %v2428
      %2451 = vmatpush.bf16.xpose.msra.mxu0 %v2425
      %2452 = vmatpush.bf16.xpose.msra.mxu0 %v2422
      %2453 = vmatmul.bf16.gmra.mxu0 %v2398
      %v2454 = vpop.f32.mrf.mxu0
      %v2455 = vadd.f32 0.0, %v2454
      %v2456 = vpop.f32.mrf.mxu0
      %v2457 = vadd.f32 0.0, %v2456
      %2458 = vmatmul.bf16.gmra.mxu0 %v2401
      %v2459 = vpop.f32.mrf.mxu0
      %v2460 = vadd.f32 0.0, %v2459
      %v2461 = vpop.f32.mrf.mxu0
      %v2462 = vadd.f32 0.0, %v2461
      %2463 = vmatmul.bf16.gmra.mxu0 %v2404
      %v2464 = vpop.f32.mrf.mxu0
      %v2465 = vadd.f32 0.0, %v2464
      %v2466 = vpop.f32.mrf.mxu0
      %v2467 = vadd.f32 0.0, %v2466
      %2468 = vmatmul.bf16.gmra.mxu0 %v2407
      %v2469 = vpop.f32.mrf.mxu0
      %v2470 = vadd.f32 0.0, %v2469
      %v2471 = vpop.f32.mrf.mxu0
      %v2472 = vadd.f32 0.0, %v2471
      %2473 = vmatmul.bf16.gmra.mxu0 %v2410
      %v2474 = vpop.f32.mrf.mxu0
      %v2475 = vadd.f32 0.0, %v2474
      %v2476 = vpop.f32.mrf.mxu0
      %v2477 = vadd.f32 0.0, %v2476
      %2478 = vmatmul.bf16.gmra.mxu0 %v2413
      %v2479 = vpop.f32.mrf.mxu0
      %v2480 = vadd.f32 0.0, %v2479
      %v2481 = vpop.f32.mrf.mxu0
      %v2482 = vadd.f32 0.0, %v2481
      %2483 = vmatmul.bf16.gmra.mxu0 %v2416
      %v2484 = vpop.f32.mrf.mxu0
      %v2485 = vadd.f32 0.0, %v2484
      %v2486 = vpop.f32.mrf.mxu0
      %v2487 = vadd.f32 0.0, %v2486
      %2488 = vmatmul.bf16.gmra.mxu0 %v2419
      %v2489 = vpop.f32.mrf.mxu0
      %v2490 = vadd.f32 0.0, %v2489
      %v2491 = vpop.f32.mrf.mxu0
      %v2492 = vadd.f32 0.0, %v2491
      %2493 = vdwg.mxu0
      %v2494 = vmul.f32 %v2455, 0.25
      %v2495 = vmul.f32 %v2457, 0.25
      %v2496 = vmul.f32 %v2460, 0.25
      %v2497 = vmul.f32 %v2462, 0.25
      %v2498 = vmul.f32 %v2465, 0.25
      %v2499 = vmul.f32 %v2467, 0.25
      %v2500 = vmul.f32 %v2470, 0.25
      %v2501 = vmul.f32 %v2472, 0.25
      %v2502 = vmul.f32 %v2475, 0.25
      %v2503 = vmul.f32 %v2477, 0.25
      %v2504 = vmul.f32 %v2480, 0.25
      %v2505 = vmul.f32 %v2482, 0.25
      %v2506 = vmul.f32 %v2485, 0.25
      %v2507 = vmul.f32 %v2487, 0.25
      %v2508 = vmul.f32 %v2490, 0.25
      %v2509 = vmul.f32 %v2492, 0.25
      %2510 = vmax.xlane.f32.xlu0 %v2494
      %v2511 = vpop.xlane.xlu0 %2510
      %2512 = vmax.xlane.f32.xlu0 %v2495
      %v2513 = vpop.xlane.xlu0 %2512
      %2514 = vmax.xlane.f32.xlu0 %v2496
      %v2515 = vpop.xlane.xlu0 %2514
      %2516 = vmax.xlane.f32.xlu0 %v2497
      %v2517 = vpop.xlane.xlu0 %2516
      %2518 = vmax.xlane.f32.xlu0 %v2498
      %v2519 = vpop.xlane.xlu0 %2518
      %2520 = vmax.xlane.f32.xlu0 %v2499
      %v2521 = vpop.xlane.xlu0 %2520
      %2522 = vmax.xlane.f32.xlu0 %v2500
      %v2523 = vpop.xlane.xlu0 %2522
      %2524 = vmax.xlane.f32.xlu0 %v2501
      %v2525 = vpop.xlane.xlu0 %2524
      %2526 = vmax.xlane.f32.xlu0 %v2502
      %v2527 = vpop.xlane.xlu0 %2526
      %2528 = vmax.xlane.f32.xlu0 %v2503
      %v2529 = vpop.xlane.xlu0 %2528
      %2530 = vmax.xlane.f32.xlu0 %v2504
      %v2531 = vpop.xlane.xlu0 %2530
      %2532 = vmax.xlane.f32.xlu0 %v2505
      %v2533 = vpop.xlane.xlu0 %2532
      %2534 = vmax.xlane.f32.xlu0 %v2506
      %v2535 = vpop.xlane.xlu0 %2534
      %2536 = vmax.xlane.f32.xlu0 %v2507
      %v2537 = vpop.xlane.xlu0 %2536
      %2538 = vmax.xlane.f32.xlu0 %v2508
      %v2539 = vpop.xlane.xlu0 %2538
      %2540 = vmax.xlane.f32.xlu0 %v2509
      %v2541 = vpop.xlane.xlu0 %2540
      %v2542 = vsub.f32 %v2494, %v2511
      %v2543 = vsub.f32 %v2495, %v2513
      %v2544 = vsub.f32 %v2496, %v2515
      %v2545 = vsub.f32 %v2497, %v2517
      %v2546 = vsub.f32 %v2498, %v2519
      %v2547 = vsub.f32 %v2499, %v2521
      %v2548 = vsub.f32 %v2500, %v2523
      %v2549 = vsub.f32 %v2501, %v2525
      %v2550 = vsub.f32 %v2502, %v2527
      %v2551 = vsub.f32 %v2503, %v2529
      %v2552 = vsub.f32 %v2504, %v2531
      %v2553 = vsub.f32 %v2505, %v2533
      %v2554 = vsub.f32 %v2506, %v2535
      %v2555 = vsub.f32 %v2507, %v2537
      %v2556 = vsub.f32 %v2508, %v2539
      %v2557 = vsub.f32 %v2509, %v2541
      %v2558 = vmul.f32 %v2542, 1.442695
      %v2559 = vpow.pop %v2558
      %v2560 = vmul.f32 %v2543, 1.442695
      %v2561 = vpow.pop %v2560
      %v2562 = vmul.f32 %v2544, 1.442695
      %v2563 = vpow.pop %v2562
      %v2564 = vmul.f32 %v2545, 1.442695
      %v2565 = vpow.pop %v2564
      %v2566 = vmul.f32 %v2546, 1.442695
      %v2567 = vpow.pop %v2566
      %v2568 = vmul.f32 %v2547, 1.442695
      %v2569 = vpow.pop %v2568
      %v2570 = vmul.f32 %v2548, 1.442695
      %v2571 = vpow.pop %v2570
      %v2572 = vmul.f32 %v2549, 1.442695
      %v2573 = vpow.pop %v2572
      %v2574 = vmul.f32 %v2550, 1.442695
      %v2575 = vpow.pop %v2574
      %v2576 = vmul.f32 %v2551, 1.442695
      %v2577 = vpow.pop %v2576
      %v2578 = vmul.f32 %v2552, 1.442695
      %v2579 = vpow.pop %v2578
      %v2580 = vmul.f32 %v2553, 1.442695
      %v2581 = vpow.pop %v2580
      %v2582 = vmul.f32 %v2554, 1.442695
      %v2583 = vpow.pop %v2582
      %v2584 = vmul.f32 %v2555, 1.442695
      %v2585 = vpow.pop %v2584
      %v2586 = vmul.f32 %v2556, 1.442695
      %v2587 = vpow.pop %v2586
      %v2588 = vmul.f32 %v2557, 1.442695
      %v2589 = vpow.pop %v2588
      %2590 = vadd.xlane.f32.xlu0 %v2559
      %v2591 = vpop.xlane.xlu0 %2590
      %2592 = vadd.xlane.f32.xlu0 %v2561
      %v2593 = vpop.xlane.xlu0 %2592
      %2594 = vadd.xlane.f32.xlu0 %v2563
      %v2595 = vpop.xlane.xlu0 %2594
      %2596 = vadd.xlane.f32.xlu0 %v2565
      %v2597 = vpop.xlane.xlu0 %2596
      %2598 = vadd.xlane.f32.xlu0 %v2567
      %v2599 = vpop.xlane.xlu0 %2598
      %2600 = vadd.xlane.f32.xlu0 %v2569
      %v2601 = vpop.xlane.xlu0 %2600
      %2602 = vadd.xlane.f32.xlu0 %v2571
      %v2603 = vpop.xlane.xlu0 %2602
      %2604 = vadd.xlane.f32.xlu0 %v2573
      %v2605 = vpop.xlane.xlu0 %2604
      %2606 = vadd.xlane.f32.xlu0 %v2575
      %v2607 = vpop.xlane.xlu0 %2606
      %2608 = vadd.xlane.f32.xlu0 %v2577
      %v2609 = vpop.xlane.xlu0 %2608
      %2610 = vadd.xlane.f32.xlu0 %v2579
      %v2611 = vpop.xlane.xlu0 %2610
      %2612 = vadd.xlane.f32.xlu0 %v2581
      %v2613 = vpop.xlane.xlu0 %2612
      %2614 = vadd.xlane.f32.xlu0 %v2583
      %v2615 = vpop.xlane.xlu0 %2614
      %2616 = vadd.xlane.f32.xlu0 %v2585
      %v2617 = vpop.xlane.xlu0 %2616
      %2618 = vadd.xlane.f32.xlu0 %v2587
      %v2619 = vpop.xlane.xlu0 %2618
      %2620 = vadd.xlane.f32.xlu0 %v2589
      %v2621 = vpop.xlane.xlu0 %2620
      %v2622 = vrcp.pop %v2591
      %v2623 = vrcp.pop %v2593
      %v2624 = vrcp.pop %v2595
      %v2625 = vrcp.pop %v2597
      %v2626 = vrcp.pop %v2599
      %v2627 = vrcp.pop %v2601
      %v2628 = vrcp.pop %v2603
      %v2629 = vrcp.pop %v2605
      %v2630 = vrcp.pop %v2607
      %v2631 = vrcp.pop %v2609
      %v2632 = vrcp.pop %v2611
      %v2633 = vrcp.pop %v2613
      %v2634 = vrcp.pop %v2615
      %v2635 = vrcp.pop %v2617
      %v2636 = vrcp.pop %v2619
      %v2637 = vrcp.pop %v2621
      %v2638 = vmul.f32 %v2559, %v2622
      %v2639 = vmul.f32 %v2561, %v2623
      %v2640 = vmul.f32 %v2563, %v2624
      %v2641 = vmul.f32 %v2565, %v2625
      %v2642 = vmul.f32 %v2567, %v2626
      %v2643 = vmul.f32 %v2569, %v2627
      %v2644 = vmul.f32 %v2571, %v2628
      %v2645 = vmul.f32 %v2573, %v2629
      %v2646 = vmul.f32 %v2575, %v2630
      %v2647 = vmul.f32 %v2577, %v2631
      %v2648 = vmul.f32 %v2579, %v2632
      %v2649 = vmul.f32 %v2581, %v2633
      %v2650 = vmul.f32 %v2583, %v2634
      %v2651 = vmul.f32 %v2585, %v2635
      %v2652 = vmul.f32 %v2587, %v2636
      %v2653 = vmul.f32 %v2589, %v2637
      %v2654 = vpack.c.bf16 %v2639, %v2638
      %v2655 = vpack.c.bf16 %v2641, %v2640
      %v2656 = vpack.c.bf16 %v2643, %v2642
      %v2657 = vpack.c.bf16 %v2645, %v2644
      %v2658 = vpack.c.bf16 %v2647, %v2646
      %v2659 = vpack.c.bf16 %v2649, %v2648
      %v2660 = vpack.c.bf16 %v2651, %v2650
      %v2661 = vpack.c.bf16 %v2653, %v2652
      %2662 = vrot.lane.b32.xlu0 %v2349, 112
      %v2663 = vpop.permute.xlu0 %2662
      %2664 = vrot.lane.b32.xlu0 %v2350, 112
      %v2665 = vpop.permute.xlu0 %2664
      %2666 = vrot.lane.b32.xlu0 %v2351, 112
      %v2667 = vpop.permute.xlu0 %2666
      %2668 = vrot.lane.b32.xlu0 %v2352, 112
      %v2669 = vpop.permute.xlu0 %2668
      %2670 = vrot.lane.b32.xlu0 %v2353, 112
      %v2671 = vpop.permute.xlu0 %2670
      %2672 = vrot.lane.b32.xlu0 %v2354, 112
      %v2673 = vpop.permute.xlu0 %2672
      %2674 = vrot.lane.b32.xlu0 %v2355, 112
      %v2675 = vpop.permute.xlu0 %2674
      %2676 = vrot.lane.b32.xlu0 %v2356, 112
      %v2677 = vpop.permute.xlu0 %2676
      %2678 = vrot.lane.b32.xlu0 %v2389, 112
      %v2679 = vpop.permute.xlu0 %2678
      %2680 = vrot.lane.b32.xlu0 %v2390, 112
      %v2681 = vpop.permute.xlu0 %2680
      %2682 = vrot.lane.b32.xlu0 %v2391, 112
      %v2683 = vpop.permute.xlu0 %2682
      %2684 = vrot.lane.b32.xlu0 %v2392, 112
      %v2685 = vpop.permute.xlu0 %2684
      %2686 = vrot.lane.b32.xlu0 %v2393, 112
      %v2687 = vpop.permute.xlu0 %2686
      %2688 = vrot.lane.b32.xlu0 %v2394, 112
      %v2689 = vpop.permute.xlu0 %2688
      %2690 = vrot.lane.b32.xlu0 %v2395, 112
      %v2691 = vpop.permute.xlu0 %2690
      %2692 = vrot.lane.b32.xlu0 %v2396, 112
      %v2693 = vpop.permute.xlu0 %2692
      %v2695 = vsel %vm1920, %v2663, 0
      %v2698 = vsel %vm1920, %v2665, 0
      %v2701 = vsel %vm1920, %v2667, 0
      %v2704 = vsel %vm1920, %v2669, 0
      %v2707 = vsel %vm1920, %v2671, 0
      %v2710 = vsel %vm1920, %v2673, 0
      %v2713 = vsel %vm1920, %v2675, 0
      %v2716 = vsel %vm1920, %v2677, 0
      %v2719 = vsel %vm1920, %v2679, 0
      %v2722 = vsel %vm1920, %v2681, 0
      %v2725 = vsel %vm1920, %v2683, 0
      %v2728 = vsel %vm1920, %v2685, 0
      %v2731 = vsel %vm1920, %v2687, 0
      %v2734 = vsel %vm1920, %v2689, 0
      %v2737 = vsel %vm1920, %v2691, 0
      %v2740 = vsel %vm1920, %v2693, 0
      %2742 = vmatpush.bf16.xpose.msra.mxu0 %v2740
      %2743 = vmatpush.bf16.xpose.msra.mxu0 %v2737
      %2744 = vmatpush.bf16.xpose.msra.mxu0 %v2734
      %2745 = vmatpush.bf16.xpose.msra.mxu0 %v2731
      %2746 = vmatpush.bf16.xpose.msra.mxu0 %v2728
      %2747 = vmatpush.bf16.xpose.msra.mxu0 %v2725
      %2748 = vmatpush.bf16.xpose.msra.mxu0 %v2722
      %2749 = vmatpush.bf16.xpose.msra.mxu0 %v2719
      %2750 = vmatmul.bf16.gmra.mxu0 %v2695
      %v2751 = vpop.f32.mrf.mxu0
      %v2752 = vadd.f32 0.0, %v2751
      %v2753 = vpop.f32.mrf.mxu0
      %v2754 = vadd.f32 0.0, %v2753
      %2755 = vmatmul.bf16.gmra.mxu0 %v2698
      %v2756 = vpop.f32.mrf.mxu0
      %v2757 = vadd.f32 0.0, %v2756
      %v2758 = vpop.f32.mrf.mxu0
      %v2759 = vadd.f32 0.0, %v2758
      %2760 = vmatmul.bf16.gmra.mxu0 %v2701
      %v2761 = vpop.f32.mrf.mxu0
      %v2762 = vadd.f32 0.0, %v2761
      %v2763 = vpop.f32.mrf.mxu0
      %v2764 = vadd.f32 0.0, %v2763
      %2765 = vmatmul.bf16.gmra.mxu0 %v2704
      %v2766 = vpop.f32.mrf.mxu0
      %v2767 = vadd.f32 0.0, %v2766
      %v2768 = vpop.f32.mrf.mxu0
      %v2769 = vadd.f32 0.0, %v2768
      %2770 = vmatmul.bf16.gmra.mxu0 %v2707
      %v2771 = vpop.f32.mrf.mxu0
      %v2772 = vadd.f32 0.0, %v2771
      %v2773 = vpop.f32.mrf.mxu0
      %v2774 = vadd.f32 0.0, %v2773
      %2775 = vmatmul.bf16.gmra.mxu0 %v2710
      %v2776 = vpop.f32.mrf.mxu0
      %v2777 = vadd.f32 0.0, %v2776
      %v2778 = vpop.f32.mrf.mxu0
      %v2779 = vadd.f32 0.0, %v2778
      %2780 = vmatmul.bf16.gmra.mxu0 %v2713
      %v2781 = vpop.f32.mrf.mxu0
      %v2782 = vadd.f32 0.0, %v2781
      %v2783 = vpop.f32.mrf.mxu0
      %v2784 = vadd.f32 0.0, %v2783
      %2785 = vmatmul.bf16.gmra.mxu0 %v2716
      %v2786 = vpop.f32.mrf.mxu0
      %v2787 = vadd.f32 0.0, %v2786
      %v2788 = vpop.f32.mrf.mxu0
      %v2789 = vadd.f32 0.0, %v2788
      %2790 = vdwg.mxu0
      %v2791 = vmul.f32 %v2752, 0.25
      %v2792 = vmul.f32 %v2754, 0.25
      %v2793 = vmul.f32 %v2757, 0.25
      %v2794 = vmul.f32 %v2759, 0.25
      %v2795 = vmul.f32 %v2762, 0.25
      %v2796 = vmul.f32 %v2764, 0.25
      %v2797 = vmul.f32 %v2767, 0.25
      %v2798 = vmul.f32 %v2769, 0.25
      %v2799 = vmul.f32 %v2772, 0.25
      %v2800 = vmul.f32 %v2774, 0.25
      %v2801 = vmul.f32 %v2777, 0.25
      %v2802 = vmul.f32 %v2779, 0.25
      %v2803 = vmul.f32 %v2782, 0.25
      %v2804 = vmul.f32 %v2784, 0.25
      %v2805 = vmul.f32 %v2787, 0.25
      %v2806 = vmul.f32 %v2789, 0.25
      %2807 = vmax.xlane.f32.xlu0 %v2791
      %v2808 = vpop.xlane.xlu0 %2807
      %2809 = vmax.xlane.f32.xlu0 %v2792
      %v2810 = vpop.xlane.xlu0 %2809
      %2811 = vmax.xlane.f32.xlu0 %v2793
      %v2812 = vpop.xlane.xlu0 %2811
      %2813 = vmax.xlane.f32.xlu0 %v2794
      %v2814 = vpop.xlane.xlu0 %2813
      %2815 = vmax.xlane.f32.xlu0 %v2795
      %v2816 = vpop.xlane.xlu0 %2815
      %2817 = vmax.xlane.f32.xlu0 %v2796
      %v2818 = vpop.xlane.xlu0 %2817
      %2819 = vmax.xlane.f32.xlu0 %v2797
      %v2820 = vpop.xlane.xlu0 %2819
      %2821 = vmax.xlane.f32.xlu0 %v2798
      %v2822 = vpop.xlane.xlu0 %2821
      %2823 = vmax.xlane.f32.xlu0 %v2799
      %v2824 = vpop.xlane.xlu0 %2823
      %2825 = vmax.xlane.f32.xlu0 %v2800
      %v2826 = vpop.xlane.xlu0 %2825
      %2827 = vmax.xlane.f32.xlu0 %v2801
      %v2828 = vpop.xlane.xlu0 %2827
      %2829 = vmax.xlane.f32.xlu0 %v2802
      %v2830 = vpop.xlane.xlu0 %2829
      %2831 = vmax.xlane.f32.xlu0 %v2803
      %v2832 = vpop.xlane.xlu0 %2831
      %2833 = vmax.xlane.f32.xlu0 %v2804
      %v2834 = vpop.xlane.xlu0 %2833
      %2835 = vmax.xlane.f32.xlu0 %v2805
      %v2836 = vpop.xlane.xlu0 %2835
      %2837 = vmax.xlane.f32.xlu0 %v2806
      %v2838 = vpop.xlane.xlu0 %2837
      %v2839 = vsub.f32 %v2791, %v2808
      %v2840 = vsub.f32 %v2792, %v2810
      %v2841 = vsub.f32 %v2793, %v2812
      %v2842 = vsub.f32 %v2794, %v2814
      %v2843 = vsub.f32 %v2795, %v2816
      %v2844 = vsub.f32 %v2796, %v2818
      %v2845 = vsub.f32 %v2797, %v2820
      %v2846 = vsub.f32 %v2798, %v2822
      %v2847 = vsub.f32 %v2799, %v2824
      %v2848 = vsub.f32 %v2800, %v2826
      %v2849 = vsub.f32 %v2801, %v2828
      %v2850 = vsub.f32 %v2802, %v2830
      %v2851 = vsub.f32 %v2803, %v2832
      %v2852 = vsub.f32 %v2804, %v2834
      %v2853 = vsub.f32 %v2805, %v2836
      %v2854 = vsub.f32 %v2806, %v2838
      %v2855 = vmul.f32 %v2839, 1.442695
      %v2856 = vpow.pop %v2855
      %v2857 = vmul.f32 %v2840, 1.442695
      %v2858 = vpow.pop %v2857
      %v2859 = vmul.f32 %v2841, 1.442695
      %v2860 = vpow.pop %v2859
      %v2861 = vmul.f32 %v2842, 1.442695
      %v2862 = vpow.pop %v2861
      %v2863 = vmul.f32 %v2843, 1.442695
      %v2864 = vpow.pop %v2863
      %v2865 = vmul.f32 %v2844, 1.442695
      %v2866 = vpow.pop %v2865
      %v2867 = vmul.f32 %v2845, 1.442695
      %v2868 = vpow.pop %v2867
      %v2869 = vmul.f32 %v2846, 1.442695
      %v2870 = vpow.pop %v2869
      %v2871 = vmul.f32 %v2847, 1.442695
      %v2872 = vpow.pop %v2871
      %v2873 = vmul.f32 %v2848, 1.442695
      %v2874 = vpow.pop %v2873
      %v2875 = vmul.f32 %v2849, 1.442695
      %v2876 = vpow.pop %v2875
      %v2877 = vmul.f32 %v2850, 1.442695
      %v2878 = vpow.pop %v2877
      %v2879 = vmul.f32 %v2851, 1.442695
      %v2880 = vpow.pop %v2879
      %v2881 = vmul.f32 %v2852, 1.442695
      %v2882 = vpow.pop %v2881
      %v2883 = vmul.f32 %v2853, 1.442695
      %v2884 = vpow.pop %v2883
      %v2885 = vmul.f32 %v2854, 1.442695
      %v2886 = vpow.pop %v2885
      %2887 = vadd.xlane.f32.xlu0 %v2856
      %v2888 = vpop.xlane.xlu0 %2887
      %2889 = vadd.xlane.f32.xlu0 %v2858
      %v2890 = vpop.xlane.xlu0 %2889
      %2891 = vadd.xlane.f32.xlu0 %v2860
      %v2892 = vpop.xlane.xlu0 %2891
      %2893 = vadd.xlane.f32.xlu0 %v2862
      %v2894 = vpop.xlane.xlu0 %2893
      %2895 = vadd.xlane.f32.xlu0 %v2864
      %v2896 = vpop.xlane.xlu0 %2895
      %2897 = vadd.xlane.f32.xlu0 %v2866
      %v2898 = vpop.xlane.xlu0 %2897
      %2899 = vadd.xlane.f32.xlu0 %v2868
      %v2900 = vpop.xlane.xlu0 %2899
      %2901 = vadd.xlane.f32.xlu0 %v2870
      %v2902 = vpop.xlane.xlu0 %2901
      %2903 = vadd.xlane.f32.xlu0 %v2872
      %v2904 = vpop.xlane.xlu0 %2903
      %2905 = vadd.xlane.f32.xlu0 %v2874
      %v2906 = vpop.xlane.xlu0 %2905
      %2907 = vadd.xlane.f32.xlu0 %v2876
      %v2908 = vpop.xlane.xlu0 %2907
      %2909 = vadd.xlane.f32.xlu0 %v2878
      %v2910 = vpop.xlane.xlu0 %2909
      %2911 = vadd.xlane.f32.xlu0 %v2880
      %v2912 = vpop.xlane.xlu0 %2911
      %2913 = vadd.xlane.f32.xlu0 %v2882
      %v2914 = vpop.xlane.xlu0 %2913
      %2915 = vadd.xlane.f32.xlu0 %v2884
      %v2916 = vpop.xlane.xlu0 %2915
      %2917 = vadd.xlane.f32.xlu0 %v2886
      %v2918 = vpop.xlane.xlu0 %2917
      %v2919 = vrcp.pop %v2888
      %v2920 = vrcp.pop %v2890
      %v2921 = vrcp.pop %v2892
      %v2922 = vrcp.pop %v2894
      %v2923 = vrcp.pop %v2896
      %v2924 = vrcp.pop %v2898
      %v2925 = vrcp.pop %v2900
      %v2926 = vrcp.pop %v2902
      %v2927 = vrcp.pop %v2904
      %v2928 = vrcp.pop %v2906
      %v2929 = vrcp.pop %v2908
      %v2930 = vrcp.pop %v2910
      %v2931 = vrcp.pop %v2912
      %v2932 = vrcp.pop %v2914
      %v2933 = vrcp.pop %v2916
      %v2934 = vrcp.pop %v2918
      %v2935 = vmul.f32 %v2856, %v2919
      %v2936 = vmul.f32 %v2858, %v2920
      %v2937 = vmul.f32 %v2860, %v2921
      %v2938 = vmul.f32 %v2862, %v2922
      %v2939 = vmul.f32 %v2864, %v2923
      %v2940 = vmul.f32 %v2866, %v2924
      %v2941 = vmul.f32 %v2868, %v2925
      %v2942 = vmul.f32 %v2870, %v2926
      %v2943 = vmul.f32 %v2872, %v2927
      %v2944 = vmul.f32 %v2874, %v2928
      %v2945 = vmul.f32 %v2876, %v2929
      %v2946 = vmul.f32 %v2878, %v2930
      %v2947 = vmul.f32 %v2880, %v2931
      %v2948 = vmul.f32 %v2882, %v2932
      %v2949 = vmul.f32 %v2884, %v2933
      %v2950 = vmul.f32 %v2886, %v2934
      %v2951 = vpack.c.bf16 %v2936, %v2935
      %v2952 = vpack.c.bf16 %v2938, %v2937
      %v2953 = vpack.c.bf16 %v2940, %v2939
      %v2954 = vpack.c.bf16 %v2942, %v2941
      %v2955 = vpack.c.bf16 %v2944, %v2943
      %v2956 = vpack.c.bf16 %v2946, %v2945
      %v2957 = vpack.c.bf16 %v2948, %v2947
      %v2958 = vpack.c.bf16 %v2950, %v2949
      %2959 = vmatpush.bf16.msra.mxu0 %v2106
      %2960 = vmatpush.bf16.msra.mxu0 %v2105
      %2961 = vmatpush.bf16.msra.mxu0 %v2104
      %2962 = vmatpush.bf16.msra.mxu0 %v2103
      %2963 = vmatpush.bf16.msra.mxu0 %v2102
      %2964 = vmatpush.bf16.msra.mxu0 %v2101
      %2965 = vmatpush.bf16.msra.mxu0 %v2100
      %2966 = vmatpush.bf16.msra.mxu0 %v2099
      %2967 = vmatmul.bf16.gmra.mxu0 %v2951
      %v2968 = vpop.f32.mrf.mxu0
      %v2969 = vadd.f32 0.0, %v2968
      %v2970 = vpop.f32.mrf.mxu0
      %v2971 = vadd.f32 0.0, %v2970
      %2972 = vmatmul.bf16.gmra.mxu0 %v2952
      %v2973 = vpop.f32.mrf.mxu0
      %v2974 = vadd.f32 0.0, %v2973
      %v2975 = vpop.f32.mrf.mxu0
      %v2976 = vadd.f32 0.0, %v2975
      %2977 = vmatmul.bf16.gmra.mxu0 %v2953
      %v2978 = vpop.f32.mrf.mxu0
      %v2979 = vadd.f32 0.0, %v2978
      %v2980 = vpop.f32.mrf.mxu0
      %v2981 = vadd.f32 0.0, %v2980
      %2982 = vmatmul.bf16.gmra.mxu0 %v2954
      %v2983 = vpop.f32.mrf.mxu0
      %v2984 = vadd.f32 0.0, %v2983
      %v2985 = vpop.f32.mrf.mxu0
      %v2986 = vadd.f32 0.0, %v2985
      %2987 = vmatmul.bf16.gmra.mxu0 %v2955
      %v2988 = vpop.f32.mrf.mxu0
      %v2989 = vadd.f32 0.0, %v2988
      %v2990 = vpop.f32.mrf.mxu0
      %v2991 = vadd.f32 0.0, %v2990
      %2992 = vmatmul.bf16.gmra.mxu0 %v2956
      %v2993 = vpop.f32.mrf.mxu0
      %v2994 = vadd.f32 0.0, %v2993
      %v2995 = vpop.f32.mrf.mxu0
      %v2996 = vadd.f32 0.0, %v2995
      %2997 = vmatmul.bf16.gmra.mxu0 %v2957
      %v2998 = vpop.f32.mrf.mxu0
      %v2999 = vadd.f32 0.0, %v2998
      %v3000 = vpop.f32.mrf.mxu0
      %v3001 = vadd.f32 0.0, %v3000
      %3002 = vmatmul.bf16.gmra.mxu0 %v2958
      %v3003 = vpop.f32.mrf.mxu0
      %v3004 = vadd.f32 0.0, %v3003
      %v3005 = vpop.f32.mrf.mxu0
      %v3006 = vadd.f32 0.0, %v3005
      %3007 = vdwg.mxu0
      %3008 = vmatpush.bf16.msra.mxu0 %v2001
      %3009 = vmatpush.bf16.msra.mxu0 %v2000
      %3010 = vmatpush.bf16.msra.mxu0 %v1999
      %3011 = vmatpush.bf16.msra.mxu0 %v1998
      %3012 = vmatpush.bf16.msra.mxu0 %v1997
      %3013 = vmatpush.bf16.msra.mxu0 %v1996
      %3014 = vmatpush.bf16.msra.mxu0 %v1995
      %3015 = vmatpush.bf16.msra.mxu0 %v1994
      %3016 = vmatmul.bf16.gmra.mxu0 %v2654
      %v3017 = vpop.f32.mrf.mxu0
      %v3018 = vadd.f32 %v2969, %v3017
      %v3019 = vpop.f32.mrf.mxu0
      %v3020 = vadd.f32 %v2971, %v3019
      %3021 = vmatmul.bf16.gmra.mxu0 %v2655
      %v3022 = vpop.f32.mrf.mxu0
      %v3023 = vadd.f32 %v2974, %v3022
      %v3024 = vpop.f32.mrf.mxu0
      %v3025 = vadd.f32 %v2976, %v3024
      %3026 = vmatmul.bf16.gmra.mxu0 %v2656
      %v3027 = vpop.f32.mrf.mxu0
      %v3028 = vadd.f32 %v2979, %v3027
      %v3029 = vpop.f32.mrf.mxu0
      %v3030 = vadd.f32 %v2981, %v3029
      %3031 = vmatmul.bf16.gmra.mxu0 %v2657
      %v3032 = vpop.f32.mrf.mxu0
      %v3033 = vadd.f32 %v2984, %v3032
      %v3034 = vpop.f32.mrf.mxu0
      %v3035 = vadd.f32 %v2986, %v3034
      %3036 = vmatmul.bf16.gmra.mxu0 %v2658
      %v3037 = vpop.f32.mrf.mxu0
      %v3038 = vadd.f32 %v2989, %v3037
      %v3039 = vpop.f32.mrf.mxu0
      %v3040 = vadd.f32 %v2991, %v3039
      %3041 = vmatmul.bf16.gmra.mxu0 %v2659
      %v3042 = vpop.f32.mrf.mxu0
      %v3043 = vadd.f32 %v2994, %v3042
      %v3044 = vpop.f32.mrf.mxu0
      %v3045 = vadd.f32 %v2996, %v3044
      %3046 = vmatmul.bf16.gmra.mxu0 %v2660
      %v3047 = vpop.f32.mrf.mxu0
      %v3048 = vadd.f32 %v2999, %v3047
      %v3049 = vpop.f32.mrf.mxu0
      %v3050 = vadd.f32 %v3001, %v3049
      %3051 = vmatmul.bf16.gmra.mxu0 %v2661
      %v3052 = vpop.f32.mrf.mxu0
      %v3053 = vadd.f32 %v3004, %v3052
      %v3054 = vpop.f32.mrf.mxu0
      %v3055 = vadd.f32 %v3006, %v3054
      %3056 = vdwg.mxu0
      %3057 = vrot.lane.b32.xlu0 %v2349, 96
      %v3058 = vpop.permute.xlu0 %3057
      %3059 = vrot.lane.b32.xlu0 %v2350, 96
      %v3060 = vpop.permute.xlu0 %3059
      %3061 = vrot.lane.b32.xlu0 %v2351, 96
      %v3062 = vpop.permute.xlu0 %3061
      %3063 = vrot.lane.b32.xlu0 %v2352, 96
      %v3064 = vpop.permute.xlu0 %3063
      %3065 = vrot.lane.b32.xlu0 %v2353, 96
      %v3066 = vpop.permute.xlu0 %3065
      %3067 = vrot.lane.b32.xlu0 %v2354, 96
      %v3068 = vpop.permute.xlu0 %3067
      %3069 = vrot.lane.b32.xlu0 %v2355, 96
      %v3070 = vpop.permute.xlu0 %3069
      %3071 = vrot.lane.b32.xlu0 %v2356, 96
      %v3072 = vpop.permute.xlu0 %3071
      %3073 = vrot.lane.b32.xlu0 %v2389, 96
      %v3074 = vpop.permute.xlu0 %3073
      %3075 = vrot.lane.b32.xlu0 %v2390, 96
      %v3076 = vpop.permute.xlu0 %3075
      %3077 = vrot.lane.b32.xlu0 %v2391, 96
      %v3078 = vpop.permute.xlu0 %3077
      %3079 = vrot.lane.b32.xlu0 %v2392, 96
      %v3080 = vpop.permute.xlu0 %3079
      %3081 = vrot.lane.b32.xlu0 %v2393, 96
      %v3082 = vpop.permute.xlu0 %3081
      %3083 = vrot.lane.b32.xlu0 %v2394, 96
      %v3084 = vpop.permute.xlu0 %3083
      %3085 = vrot.lane.b32.xlu0 %v2395, 96
      %v3086 = vpop.permute.xlu0 %3085
      %3087 = vrot.lane.b32.xlu0 %v2396, 96
      %v3088 = vpop.permute.xlu0 %3087
      %v3090 = vsel %vm1920, %v3058, 0
      %v3093 = vsel %vm1920, %v3060, 0
      %v3096 = vsel %vm1920, %v3062, 0
      %v3099 = vsel %vm1920, %v3064, 0
      %v3102 = vsel %vm1920, %v3066, 0
      %v3105 = vsel %vm1920, %v3068, 0
      %v3108 = vsel %vm1920, %v3070, 0
      %v3111 = vsel %vm1920, %v3072, 0
      %v3114 = vsel %vm1920, %v3074, 0
      %v3117 = vsel %vm1920, %v3076, 0
      %v3120 = vsel %vm1920, %v3078, 0
      %v3123 = vsel %vm1920, %v3080, 0
      %v3126 = vsel %vm1920, %v3082, 0
      %v3129 = vsel %vm1920, %v3084, 0
      %v3132 = vsel %vm1920, %v3086, 0
      %v3135 = vsel %vm1920, %v3088, 0
      %3137 = vmatpush.bf16.xpose.msra.mxu0 %v3135
      %3138 = vmatpush.bf16.xpose.msra.mxu0 %v3132
      %3139 = vmatpush.bf16.xpose.msra.mxu0 %v3129
      %3140 = vmatpush.bf16.xpose.msra.mxu0 %v3126
      %3141 = vmatpush.bf16.xpose.msra.mxu0 %v3123
      %3142 = vmatpush.bf16.xpose.msra.mxu0 %v3120
      %3143 = vmatpush.bf16.xpose.msra.mxu0 %v3117
      %3144 = vmatpush.bf16.xpose.msra.mxu0 %v3114
      %3145 = vmatmul.bf16.gmra.mxu0 %v3090
      %v3146 = vpop.f32.mrf.mxu0
      %v3147 = vadd.f32 0.0, %v3146
      %v3148 = vpop.f32.mrf.mxu0
      %v3149 = vadd.f32 0.0, %v3148
      %3150 = vmatmul.bf16.gmra.mxu0 %v3093
      %v3151 = vpop.f32.mrf.mxu0
      %v3152 = vadd.f32 0.0, %v3151
      %v3153 = vpop.f32.mrf.mxu0
      %v3154 = vadd.f32 0.0, %v3153
      %3155 = vmatmul.bf16.gmra.mxu0 %v3096
      %v3156 = vpop.f32.mrf.mxu0
      %v3157 = vadd.f32 0.0, %v3156
      %v3158 = vpop.f32.mrf.mxu0
      %v3159 = vadd.f32 0.0, %v3158
      %3160 = vmatmul.bf16.gmra.mxu0 %v3099
      %v3161 = vpop.f32.mrf.mxu0
      %v3162 = vadd.f32 0.0, %v3161
      %v3163 = vpop.f32.mrf.mxu0
      %v3164 = vadd.f32 0.0, %v3163
      %3165 = vmatmul.bf16.gmra.mxu0 %v3102
      %v3166 = vpop.f32.mrf.mxu0
      %v3167 = vadd.f32 0.0, %v3166
      %v3168 = vpop.f32.mrf.mxu0
      %v3169 = vadd.f32 0.0, %v3168
      %3170 = vmatmul.bf16.gmra.mxu0 %v3105
      %v3171 = vpop.f32.mrf.mxu0
      %v3172 = vadd.f32 0.0, %v3171
      %v3173 = vpop.f32.mrf.mxu0
      %v3174 = vadd.f32 0.0, %v3173
      %3175 = vmatmul.bf16.gmra.mxu0 %v3108
      %v3176 = vpop.f32.mrf.mxu0
      %v3177 = vadd.f32 0.0, %v3176
      %v3178 = vpop.f32.mrf.mxu0
      %v3179 = vadd.f32 0.0, %v3178
      %3180 = vmatmul.bf16.gmra.mxu0 %v3111
      %v3181 = vpop.f32.mrf.mxu0
      %v3182 = vadd.f32 0.0, %v3181
      %v3183 = vpop.f32.mrf.mxu0
      %v3184 = vadd.f32 0.0, %v3183
      %3185 = vdwg.mxu0
      %v3186 = vmul.f32 %v3147, 0.25
      %v3187 = vmul.f32 %v3149, 0.25
      %v3188 = vmul.f32 %v3152, 0.25
      %v3189 = vmul.f32 %v3154, 0.25
      %v3190 = vmul.f32 %v3157, 0.25
      %v3191 = vmul.f32 %v3159, 0.25
      %v3192 = vmul.f32 %v3162, 0.25
      %v3193 = vmul.f32 %v3164, 0.25
      %v3194 = vmul.f32 %v3167, 0.25
      %v3195 = vmul.f32 %v3169, 0.25
      %v3196 = vmul.f32 %v3172, 0.25
      %v3197 = vmul.f32 %v3174, 0.25
      %v3198 = vmul.f32 %v3177, 0.25
      %v3199 = vmul.f32 %v3179, 0.25
      %v3200 = vmul.f32 %v3182, 0.25
      %v3201 = vmul.f32 %v3184, 0.25
      %3202 = vmax.xlane.f32.xlu0 %v3186
      %v3203 = vpop.xlane.xlu0 %3202
      %3204 = vmax.xlane.f32.xlu0 %v3187
      %v3205 = vpop.xlane.xlu0 %3204
      %3206 = vmax.xlane.f32.xlu0 %v3188
      %v3207 = vpop.xlane.xlu0 %3206
      %3208 = vmax.xlane.f32.xlu0 %v3189
      %v3209 = vpop.xlane.xlu0 %3208
      %3210 = vmax.xlane.f32.xlu0 %v3190
      %v3211 = vpop.xlane.xlu0 %3210
      %3212 = vmax.xlane.f32.xlu0 %v3191
      %v3213 = vpop.xlane.xlu0 %3212
      %3214 = vmax.xlane.f32.xlu0 %v3192
      %v3215 = vpop.xlane.xlu0 %3214
      %3216 = vmax.xlane.f32.xlu0 %v3193
      %v3217 = vpop.xlane.xlu0 %3216
      %3218 = vmax.xlane.f32.xlu0 %v3194
      %v3219 = vpop.xlane.xlu0 %3218
      %3220 = vmax.xlane.f32.xlu0 %v3195
      %v3221 = vpop.xlane.xlu0 %3220
      %3222 = vmax.xlane.f32.xlu0 %v3196
      %v3223 = vpop.xlane.xlu0 %3222
      %3224 = vmax.xlane.f32.xlu0 %v3197
      %v3225 = vpop.xlane.xlu0 %3224
      %3226 = vmax.xlane.f32.xlu0 %v3198
      %v3227 = vpop.xlane.xlu0 %3226
      %3228 = vmax.xlane.f32.xlu0 %v3199
      %v3229 = vpop.xlane.xlu0 %3228
      %3230 = vmax.xlane.f32.xlu0 %v3200
      %v3231 = vpop.xlane.xlu0 %3230
      %3232 = vmax.xlane.f32.xlu0 %v3201
      %v3233 = vpop.xlane.xlu0 %3232
      %v3234 = vsub.f32 %v3186, %v3203
      %v3235 = vsub.f32 %v3187, %v3205
      %v3236 = vsub.f32 %v3188, %v3207
      %v3237 = vsub.f32 %v3189, %v3209
      %v3238 = vsub.f32 %v3190, %v3211
      %v3239 = vsub.f32 %v3191, %v3213
      %v3240 = vsub.f32 %v3192, %v3215
      %v3241 = vsub.f32 %v3193, %v3217
      %v3242 = vsub.f32 %v3194, %v3219
      %v3243 = vsub.f32 %v3195, %v3221
      %v3244 = vsub.f32 %v3196, %v3223
      %v3245 = vsub.f32 %v3197, %v3225
      %v3246 = vsub.f32 %v3198, %v3227
      %v3247 = vsub.f32 %v3199, %v3229
      %v3248 = vsub.f32 %v3200, %v3231
      %v3249 = vsub.f32 %v3201, %v3233
      %v3250 = vmul.f32 %v3234, 1.442695
      %v3251 = vpow.pop %v3250
      %v3252 = vmul.f32 %v3235, 1.442695
      %v3253 = vpow.pop %v3252
      %v3254 = vmul.f32 %v3236, 1.442695
      %v3255 = vpow.pop %v3254
      %v3256 = vmul.f32 %v3237, 1.442695
      %v3257 = vpow.pop %v3256
      %v3258 = vmul.f32 %v3238, 1.442695
      %v3259 = vpow.pop %v3258
      %v3260 = vmul.f32 %v3239, 1.442695
      %v3261 = vpow.pop %v3260
      %v3262 = vmul.f32 %v3240, 1.442695
      %v3263 = vpow.pop %v3262
      %v3264 = vmul.f32 %v3241, 1.442695
      %v3265 = vpow.pop %v3264
      %v3266 = vmul.f32 %v3242, 1.442695
      %v3267 = vpow.pop %v3266
      %v3268 = vmul.f32 %v3243, 1.442695
      %v3269 = vpow.pop %v3268
      %v3270 = vmul.f32 %v3244, 1.442695
      %v3271 = vpow.pop %v3270
      %v3272 = vmul.f32 %v3245, 1.442695
      %v3273 = vpow.pop %v3272
      %v3274 = vmul.f32 %v3246, 1.442695
      %v3275 = vpow.pop %v3274
      %v3276 = vmul.f32 %v3247, 1.442695
      %v3277 = vpow.pop %v3276
      %v3278 = vmul.f32 %v3248, 1.442695
      %v3279 = vpow.pop %v3278
      %v3280 = vmul.f32 %v3249, 1.442695
      %v3281 = vpow.pop %v3280
      %3282 = vadd.xlane.f32.xlu0 %v3251
      %v3283 = vpop.xlane.xlu0 %3282
      %3284 = vadd.xlane.f32.xlu0 %v3253
      %v3285 = vpop.xlane.xlu0 %3284
      %3286 = vadd.xlane.f32.xlu0 %v3255
      %v3287 = vpop.xlane.xlu0 %3286
      %3288 = vadd.xlane.f32.xlu0 %v3257
      %v3289 = vpop.xlane.xlu0 %3288
      %3290 = vadd.xlane.f32.xlu0 %v3259
      %v3291 = vpop.xlane.xlu0 %3290
      %3292 = vadd.xlane.f32.xlu0 %v3261
      %v3293 = vpop.xlane.xlu0 %3292
      %3294 = vadd.xlane.f32.xlu0 %v3263
      %v3295 = vpop.xlane.xlu0 %3294
      %3296 = vadd.xlane.f32.xlu0 %v3265
      %v3297 = vpop.xlane.xlu0 %3296
      %3298 = vadd.xlane.f32.xlu0 %v3267
      %v3299 = vpop.xlane.xlu0 %3298
      %3300 = vadd.xlane.f32.xlu0 %v3269
      %v3301 = vpop.xlane.xlu0 %3300
      %3302 = vadd.xlane.f32.xlu0 %v3271
      %v3303 = vpop.xlane.xlu0 %3302
      %3304 = vadd.xlane.f32.xlu0 %v3273
      %v3305 = vpop.xlane.xlu0 %3304
      %3306 = vadd.xlane.f32.xlu0 %v3275
      %v3307 = vpop.xlane.xlu0 %3306
      %3308 = vadd.xlane.f32.xlu0 %v3277
      %v3309 = vpop.xlane.xlu0 %3308
      %3310 = vadd.xlane.f32.xlu0 %v3279
      %v3311 = vpop.xlane.xlu0 %3310
      %3312 = vadd.xlane.f32.xlu0 %v3281
      %v3313 = vpop.xlane.xlu0 %3312
      %v3314 = vrcp.pop %v3283
      %v3315 = vrcp.pop %v3285
      %v3316 = vrcp.pop %v3287
      %v3317 = vrcp.pop %v3289
      %v3318 = vrcp.pop %v3291
      %v3319 = vrcp.pop %v3293
      %v3320 = vrcp.pop %v3295
      %v3321 = vrcp.pop %v3297
      %v3322 = vrcp.pop %v3299
      %v3323 = vrcp.pop %v3301
      %v3324 = vrcp.pop %v3303
      %v3325 = vrcp.pop %v3305
      %v3326 = vrcp.pop %v3307
      %v3327 = vrcp.pop %v3309
      %v3328 = vrcp.pop %v3311
      %v3329 = vrcp.pop %v3313
      %v3330 = vmul.f32 %v3251, %v3314
      %v3331 = vmul.f32 %v3253, %v3315
      %v3332 = vmul.f32 %v3255, %v3316
      %v3333 = vmul.f32 %v3257, %v3317
      %v3334 = vmul.f32 %v3259, %v3318
      %v3335 = vmul.f32 %v3261, %v3319
      %v3336 = vmul.f32 %v3263, %v3320
      %v3337 = vmul.f32 %v3265, %v3321
      %v3338 = vmul.f32 %v3267, %v3322
      %v3339 = vmul.f32 %v3269, %v3323
      %v3340 = vmul.f32 %v3271, %v3324
      %v3341 = vmul.f32 %v3273, %v3325
      %v3342 = vmul.f32 %v3275, %v3326
      %v3343 = vmul.f32 %v3277, %v3327
      %v3344 = vmul.f32 %v3279, %v3328
      %v3345 = vmul.f32 %v3281, %v3329
      %v3346 = vpack.c.bf16 %v3331, %v3330
      %v3347 = vpack.c.bf16 %v3333, %v3332
      %v3348 = vpack.c.bf16 %v3335, %v3334
      %v3349 = vpack.c.bf16 %v3337, %v3336
      %v3350 = vpack.c.bf16 %v3339, %v3338
      %v3351 = vpack.c.bf16 %v3341, %v3340
      %v3352 = vpack.c.bf16 %v3343, %v3342
      %v3353 = vpack.c.bf16 %v3345, %v3344
      %3354 = vmatpush.bf16.msra.mxu0 %v2211
      %3355 = vmatpush.bf16.msra.mxu0 %v2210
      %3356 = vmatpush.bf16.msra.mxu0 %v2209
      %3357 = vmatpush.bf16.msra.mxu0 %v2208
      %3358 = vmatpush.bf16.msra.mxu0 %v2207
      %3359 = vmatpush.bf16.msra.mxu0 %v2206
      %3360 = vmatpush.bf16.msra.mxu0 %v2205
      %3361 = vmatpush.bf16.msra.mxu0 %v2204
      %3362 = vmatmul.bf16.gmra.mxu0 %v3346
      %v3363 = vpop.f32.mrf.mxu0
      %v3364 = vadd.f32 0.0, %v3363
      %v3365 = vpop.f32.mrf.mxu0
      %v3366 = vadd.f32 0.0, %v3365
      %3367 = vmatmul.bf16.gmra.mxu0 %v3347
      %v3368 = vpop.f32.mrf.mxu0
      %v3369 = vadd.f32 0.0, %v3368
      %v3370 = vpop.f32.mrf.mxu0
      %v3371 = vadd.f32 0.0, %v3370
      %3372 = vmatmul.bf16.gmra.mxu0 %v3348
      %v3373 = vpop.f32.mrf.mxu0
      %v3374 = vadd.f32 0.0, %v3373
      %v3375 = vpop.f32.mrf.mxu0
      %v3376 = vadd.f32 0.0, %v3375
      %3377 = vmatmul.bf16.gmra.mxu0 %v3349
      %v3378 = vpop.f32.mrf.mxu0
      %v3379 = vadd.f32 0.0, %v3378
      %v3380 = vpop.f32.mrf.mxu0
      %v3381 = vadd.f32 0.0, %v3380
      %3382 = vmatmul.bf16.gmra.mxu0 %v3350
      %v3383 = vpop.f32.mrf.mxu0
      %v3384 = vadd.f32 0.0, %v3383
      %v3385 = vpop.f32.mrf.mxu0
      %v3386 = vadd.f32 0.0, %v3385
      %3387 = vmatmul.bf16.gmra.mxu0 %v3351
      %v3388 = vpop.f32.mrf.mxu0
      %v3389 = vadd.f32 0.0, %v3388
      %v3390 = vpop.f32.mrf.mxu0
      %v3391 = vadd.f32 0.0, %v3390
      %3392 = vmatmul.bf16.gmra.mxu0 %v3352
      %v3393 = vpop.f32.mrf.mxu0
      %v3394 = vadd.f32 0.0, %v3393
      %v3395 = vpop.f32.mrf.mxu0
      %v3396 = vadd.f32 0.0, %v3395
      %3397 = vmatmul.bf16.gmra.mxu0 %v3353
      %v3398 = vpop.f32.mrf.mxu0
      %v3399 = vadd.f32 0.0, %v3398
      %v3400 = vpop.f32.mrf.mxu0
      %v3401 = vadd.f32 0.0, %v3400
      %3402 = vdwg.mxu0
      %v3403 = vadd.f32 %v3018, %v3364
      %v3404 = vadd.f32 %v3020, %v3366
      %v3405 = vadd.f32 %v3023, %v3369
      %v3406 = vadd.f32 %v3025, %v3371
      %v3407 = vadd.f32 %v3028, %v3374
      %v3408 = vadd.f32 %v3030, %v3376
      %v3409 = vadd.f32 %v3033, %v3379
      %v3410 = vadd.f32 %v3035, %v3381
      %v3411 = vadd.f32 %v3038, %v3384
      %v3412 = vadd.f32 %v3040, %v3386
      %v3413 = vadd.f32 %v3043, %v3389
      %v3414 = vadd.f32 %v3045, %v3391
      %v3415 = vadd.f32 %v3048, %v3394
      %v3416 = vadd.f32 %v3050, %v3396
      %v3417 = vadd.f32 %v3053, %v3399
      %v3418 = vadd.f32 %v3055, %v3401
      %3419 = vrot.lane.b32.xlu0 %v2349, 80
      %v3420 = vpop.permute.xlu0 %3419
      %3421 = vrot.lane.b32.xlu0 %v2350, 80
      %v3422 = vpop.permute.xlu0 %3421
      %3423 = vrot.lane.b32.xlu0 %v2351, 80
      %v3424 = vpop.permute.xlu0 %3423
      %3425 = vrot.lane.b32.xlu0 %v2352, 80
      %v3426 = vpop.permute.xlu0 %3425
      %3427 = vrot.lane.b32.xlu0 %v2353, 80
      %v3428 = vpop.permute.xlu0 %3427
      %3429 = vrot.lane.b32.xlu0 %v2354, 80
      %v3430 = vpop.permute.xlu0 %3429
      %3431 = vrot.lane.b32.xlu0 %v2355, 80
      %v3432 = vpop.permute.xlu0 %3431
      %3433 = vrot.lane.b32.xlu0 %v2356, 80
      %v3434 = vpop.permute.xlu0 %3433
      %3435 = vrot.lane.b32.xlu0 %v2389, 80
      %v3436 = vpop.permute.xlu0 %3435
      %3437 = vrot.lane.b32.xlu0 %v2390, 80
      %v3438 = vpop.permute.xlu0 %3437
      %3439 = vrot.lane.b32.xlu0 %v2391, 80
      %v3440 = vpop.permute.xlu0 %3439
      %3441 = vrot.lane.b32.xlu0 %v2392, 80
      %v3442 = vpop.permute.xlu0 %3441
      %3443 = vrot.lane.b32.xlu0 %v2393, 80
      %v3444 = vpop.permute.xlu0 %3443
      %3445 = vrot.lane.b32.xlu0 %v2394, 80
      %v3446 = vpop.permute.xlu0 %3445
      %3447 = vrot.lane.b32.xlu0 %v2395, 80
      %v3448 = vpop.permute.xlu0 %3447
      %3449 = vrot.lane.b32.xlu0 %v2396, 80
      %v3450 = vpop.permute.xlu0 %3449
      %v3452 = vsel %vm1920, %v3420, 0
      %v3455 = vsel %vm1920, %v3422, 0
      %v3458 = vsel %vm1920, %v3424, 0
      %v3461 = vsel %vm1920, %v3426, 0
      %v3464 = vsel %vm1920, %v3428, 0
      %v3467 = vsel %vm1920, %v3430, 0
      %v3470 = vsel %vm1920, %v3432, 0
      %v3473 = vsel %vm1920, %v3434, 0
      %v3476 = vsel %vm1920, %v3436, 0
      %v3479 = vsel %vm1920, %v3438, 0
      %v3482 = vsel %vm1920, %v3440, 0
      %v3485 = vsel %vm1920, %v3442, 0
      %v3488 = vsel %vm1920, %v3444, 0
      %v3491 = vsel %vm1920, %v3446, 0
      %v3494 = vsel %vm1920, %v3448, 0
      %v3497 = vsel %vm1920, %v3450, 0
      %3499 = vmatpush.bf16.xpose.msra.mxu0 %v3497
      %3500 = vmatpush.bf16.xpose.msra.mxu0 %v3494
      %3501 = vmatpush.bf16.xpose.msra.mxu0 %v3491
      %3502 = vmatpush.bf16.xpose.msra.mxu0 %v3488
      %3503 = vmatpush.bf16.xpose.msra.mxu0 %v3485
      %3504 = vmatpush.bf16.xpose.msra.mxu0 %v3482
      %3505 = vmatpush.bf16.xpose.msra.mxu0 %v3479
      %3506 = vmatpush.bf16.xpose.msra.mxu0 %v3476
      %3507 = vmatmul.bf16.gmra.mxu0 %v3452
      %v3508 = vpop.f32.mrf.mxu0
      %v3509 = vadd.f32 0.0, %v3508
      %v3510 = vpop.f32.mrf.mxu0
      %v3511 = vadd.f32 0.0, %v3510
      %3512 = vmatmul.bf16.gmra.mxu0 %v3455
      %v3513 = vpop.f32.mrf.mxu0
      %v3514 = vadd.f32 0.0, %v3513
      %v3515 = vpop.f32.mrf.mxu0
      %v3516 = vadd.f32 0.0, %v3515
      %3517 = vmatmul.bf16.gmra.mxu0 %v3458
      %v3518 = vpop.f32.mrf.mxu0
      %v3519 = vadd.f32 0.0, %v3518
      %v3520 = vpop.f32.mrf.mxu0
      %v3521 = vadd.f32 0.0, %v3520
      %3522 = vmatmul.bf16.gmra.mxu0 %v3461
      %v3523 = vpop.f32.mrf.mxu0
      %v3524 = vadd.f32 0.0, %v3523
      %v3525 = vpop.f32.mrf.mxu0
      %v3526 = vadd.f32 0.0, %v3525
      %3527 = vmatmul.bf16.gmra.mxu0 %v3464
      %v3528 = vpop.f32.mrf.mxu0
      %v3529 = vadd.f32 0.0, %v3528
      %v3530 = vpop.f32.mrf.mxu0
      %v3531 = vadd.f32 0.0, %v3530
      %3532 = vmatmul.bf16.gmra.mxu0 %v3467
      %v3533 = vpop.f32.mrf.mxu0
      %v3534 = vadd.f32 0.0, %v3533
      %v3535 = vpop.f32.mrf.mxu0
      %v3536 = vadd.f32 0.0, %v3535
      %3537 = vmatmul.bf16.gmra.mxu0 %v3470
      %v3538 = vpop.f32.mrf.mxu0
      %v3539 = vadd.f32 0.0, %v3538
      %v3540 = vpop.f32.mrf.mxu0
      %v3541 = vadd.f32 0.0, %v3540
      %3542 = vmatmul.bf16.gmra.mxu0 %v3473
      %v3543 = vpop.f32.mrf.mxu0
      %v3544 = vadd.f32 0.0, %v3543
      %v3545 = vpop.f32.mrf.mxu0
      %v3546 = vadd.f32 0.0, %v3545
      %3547 = vdwg.mxu0
      %v3548 = vmul.f32 %v3509, 0.25
      %v3549 = vmul.f32 %v3511, 0.25
      %v3550 = vmul.f32 %v3514, 0.25
      %v3551 = vmul.f32 %v3516, 0.25
      %v3552 = vmul.f32 %v3519, 0.25
      %v3553 = vmul.f32 %v3521, 0.25
      %v3554 = vmul.f32 %v3524, 0.25
      %v3555 = vmul.f32 %v3526, 0.25
      %v3556 = vmul.f32 %v3529, 0.25
      %v3557 = vmul.f32 %v3531, 0.25
      %v3558 = vmul.f32 %v3534, 0.25
      %v3559 = vmul.f32 %v3536, 0.25
      %v3560 = vmul.f32 %v3539, 0.25
      %v3561 = vmul.f32 %v3541, 0.25
      %v3562 = vmul.f32 %v3544, 0.25
      %v3563 = vmul.f32 %v3546, 0.25
      %3564 = vmax.xlane.f32.xlu0 %v3548
      %v3565 = vpop.xlane.xlu0 %3564
      %3566 = vmax.xlane.f32.xlu0 %v3549
      %v3567 = vpop.xlane.xlu0 %3566
      %3568 = vmax.xlane.f32.xlu0 %v3550
      %v3569 = vpop.xlane.xlu0 %3568
      %3570 = vmax.xlane.f32.xlu0 %v3551
      %v3571 = vpop.xlane.xlu0 %3570
      %3572 = vmax.xlane.f32.xlu0 %v3552
      %v3573 = vpop.xlane.xlu0 %3572
      %3574 = vmax.xlane.f32.xlu0 %v3553
      %v3575 = vpop.xlane.xlu0 %3574
      %3576 = vmax.xlane.f32.xlu0 %v3554
      %v3577 = vpop.xlane.xlu0 %3576
      %3578 = vmax.xlane.f32.xlu0 %v3555
      %v3579 = vpop.xlane.xlu0 %3578
      %3580 = vmax.xlane.f32.xlu0 %v3556
      %v3581 = vpop.xlane.xlu0 %3580
      %3582 = vmax.xlane.f32.xlu0 %v3557
      %v3583 = vpop.xlane.xlu0 %3582
      %3584 = vmax.xlane.f32.xlu0 %v3558
      %v3585 = vpop.xlane.xlu0 %3584
      %3586 = vmax.xlane.f32.xlu0 %v3559
      %v3587 = vpop.xlane.xlu0 %3586
      %3588 = vmax.xlane.f32.xlu0 %v3560
      %v3589 = vpop.xlane.xlu0 %3588
      %3590 = vmax.xlane.f32.xlu0 %v3561
      %v3591 = vpop.xlane.xlu0 %3590
      %3592 = vmax.xlane.f32.xlu0 %v3562
      %v3593 = vpop.xlane.xlu0 %3592
      %3594 = vmax.xlane.f32.xlu0 %v3563
      %v3595 = vpop.xlane.xlu0 %3594
      %v3596 = vsub.f32 %v3548, %v3565
      %v3597 = vsub.f32 %v3549, %v3567
      %v3598 = vsub.f32 %v3550, %v3569
      %v3599 = vsub.f32 %v3551, %v3571
      %v3600 = vsub.f32 %v3552, %v3573
      %v3601 = vsub.f32 %v3553, %v3575
      %v3602 = vsub.f32 %v3554, %v3577
      %v3603 = vsub.f32 %v3555, %v3579
      %v3604 = vsub.f32 %v3556, %v3581
      %v3605 = vsub.f32 %v3557, %v3583
      %v3606 = vsub.f32 %v3558, %v3585
      %v3607 = vsub.f32 %v3559, %v3587
      %v3608 = vsub.f32 %v3560, %v3589
      %v3609 = vsub.f32 %v3561, %v3591
      %v3610 = vsub.f32 %v3562, %v3593
      %v3611 = vsub.f32 %v3563, %v3595
      %v3612 = vmul.f32 %v3596, 1.442695
      %v3613 = vpow.pop %v3612
      %v3614 = vmul.f32 %v3597, 1.442695
      %v3615 = vpow.pop %v3614
      %v3616 = vmul.f32 %v3598, 1.442695
      %v3617 = vpow.pop %v3616
      %v3618 = vmul.f32 %v3599, 1.442695
      %v3619 = vpow.pop %v3618
      %v3620 = vmul.f32 %v3600, 1.442695
      %v3621 = vpow.pop %v3620
      %v3622 = vmul.f32 %v3601, 1.442695
      %v3623 = vpow.pop %v3622
      %v3624 = vmul.f32 %v3602, 1.442695
      %v3625 = vpow.pop %v3624
      %v3626 = vmul.f32 %v3603, 1.442695
      %v3627 = vpow.pop %v3626
      %v3628 = vmul.f32 %v3604, 1.442695
      %v3629 = vpow.pop %v3628
      %v3630 = vmul.f32 %v3605, 1.442695
      %v3631 = vpow.pop %v3630
      %v3632 = vmul.f32 %v3606, 1.442695
      %v3633 = vpow.pop %v3632
      %v3634 = vmul.f32 %v3607, 1.442695
      %v3635 = vpow.pop %v3634
      %v3636 = vmul.f32 %v3608, 1.442695
      %v3637 = vpow.pop %v3636
      %v3638 = vmul.f32 %v3609, 1.442695
      %v3639 = vpow.pop %v3638
      %v3640 = vmul.f32 %v3610, 1.442695
      %v3641 = vpow.pop %v3640
      %v3642 = vmul.f32 %v3611, 1.442695
      %v3643 = vpow.pop %v3642
      %3644 = vadd.xlane.f32.xlu0 %v3613
      %v3645 = vpop.xlane.xlu0 %3644
      %3646 = vadd.xlane.f32.xlu0 %v3615
      %v3647 = vpop.xlane.xlu0 %3646
      %3648 = vadd.xlane.f32.xlu0 %v3617
      %v3649 = vpop.xlane.xlu0 %3648
      %3650 = vadd.xlane.f32.xlu0 %v3619
      %v3651 = vpop.xlane.xlu0 %3650
      %3652 = vadd.xlane.f32.xlu0 %v3621
      %v3653 = vpop.xlane.xlu0 %3652
      %3654 = vadd.xlane.f32.xlu0 %v3623
      %v3655 = vpop.xlane.xlu0 %3654
      %3656 = vadd.xlane.f32.xlu0 %v3625
      %v3657 = vpop.xlane.xlu0 %3656
      %3658 = vadd.xlane.f32.xlu0 %v3627
      %v3659 = vpop.xlane.xlu0 %3658
      %3660 = vadd.xlane.f32.xlu0 %v3629
      %v3661 = vpop.xlane.xlu0 %3660
      %3662 = vadd.xlane.f32.xlu0 %v3631
      %v3663 = vpop.xlane.xlu0 %3662
      %3664 = vadd.xlane.f32.xlu0 %v3633
      %v3665 = vpop.xlane.xlu0 %3664
      %3666 = vadd.xlane.f32.xlu0 %v3635
      %v3667 = vpop.xlane.xlu0 %3666
      %3668 = vadd.xlane.f32.xlu0 %v3637
      %v3669 = vpop.xlane.xlu0 %3668
      %3670 = vadd.xlane.f32.xlu0 %v3639
      %v3671 = vpop.xlane.xlu0 %3670
      %3672 = vadd.xlane.f32.xlu0 %v3641
      %v3673 = vpop.xlane.xlu0 %3672
      %3674 = vadd.xlane.f32.xlu0 %v3643
      %v3675 = vpop.xlane.xlu0 %3674
      %v3676 = vrcp.pop %v3645
      %v3677 = vrcp.pop %v3647
      %v3678 = vrcp.pop %v3649
      %v3679 = vrcp.pop %v3651
      %v3680 = vrcp.pop %v3653
      %v3681 = vrcp.pop %v3655
      %v3682 = vrcp.pop %v3657
      %v3683 = vrcp.pop %v3659
      %v3684 = vrcp.pop %v3661
      %v3685 = vrcp.pop %v3663
      %v3686 = vrcp.pop %v3665
      %v3687 = vrcp.pop %v3667
      %v3688 = vrcp.pop %v3669
      %v3689 = vrcp.pop %v3671
      %v3690 = vrcp.pop %v3673
      %v3691 = vrcp.pop %v3675
      %v3692 = vmul.f32 %v3613, %v3676
      %v3693 = vmul.f32 %v3615, %v3677
      %v3694 = vmul.f32 %v3617, %v3678
      %v3695 = vmul.f32 %v3619, %v3679
      %v3696 = vmul.f32 %v3621, %v3680
      %v3697 = vmul.f32 %v3623, %v3681
      %v3698 = vmul.f32 %v3625, %v3682
      %v3699 = vmul.f32 %v3627, %v3683
      %v3700 = vmul.f32 %v3629, %v3684
      %v3701 = vmul.f32 %v3631, %v3685
      %v3702 = vmul.f32 %v3633, %v3686
      %v3703 = vmul.f32 %v3635, %v3687
      %v3704 = vmul.f32 %v3637, %v3688
      %v3705 = vmul.f32 %v3639, %v3689
      %v3706 = vmul.f32 %v3641, %v3690
      %v3707 = vmul.f32 %v3643, %v3691
      %v3708 = vpack.c.bf16 %v3693, %v3692
      %v3709 = vpack.c.bf16 %v3695, %v3694
      %v3710 = vpack.c.bf16 %v3697, %v3696
      %v3711 = vpack.c.bf16 %v3699, %v3698
      %v3712 = vpack.c.bf16 %v3701, %v3700
      %v3713 = vpack.c.bf16 %v3703, %v3702
      %v3714 = vpack.c.bf16 %v3705, %v3704
      %v3715 = vpack.c.bf16 %v3707, %v3706
      %3716 = vmatpush.bf16.msra.mxu0 %v2316
      %3717 = vmatpush.bf16.msra.mxu0 %v2315
      %3718 = vmatpush.bf16.msra.mxu0 %v2314
      %3719 = vmatpush.bf16.msra.mxu0 %v2313
      %3720 = vmatpush.bf16.msra.mxu0 %v2312
      %3721 = vmatpush.bf16.msra.mxu0 %v2311
      %3722 = vmatpush.bf16.msra.mxu0 %v2310
      %3723 = vmatpush.bf16.msra.mxu0 %v2309
      %3724 = vmatmul.bf16.gmra.mxu0 %v3708
      %v3725 = vpop.f32.mrf.mxu0
      %v3726 = vadd.f32 0.0, %v3725
      %v3727 = vpop.f32.mrf.mxu0
      %v3728 = vadd.f32 0.0, %v3727
      %3729 = vmatmul.bf16.gmra.mxu0 %v3709
      %v3730 = vpop.f32.mrf.mxu0
      %v3731 = vadd.f32 0.0, %v3730
      %v3732 = vpop.f32.mrf.mxu0
      %v3733 = vadd.f32 0.0, %v3732
      %3734 = vmatmul.bf16.gmra.mxu0 %v3710
      %v3735 = vpop.f32.mrf.mxu0
      %v3736 = vadd.f32 0.0, %v3735
      %v3737 = vpop.f32.mrf.mxu0
      %v3738 = vadd.f32 0.0, %v3737
      %3739 = vmatmul.bf16.gmra.mxu0 %v3711
      %v3740 = vpop.f32.mrf.mxu0
      %v3741 = vadd.f32 0.0, %v3740
      %v3742 = vpop.f32.mrf.mxu0
      %v3743 = vadd.f32 0.0, %v3742
      %3744 = vmatmul.bf16.gmra.mxu0 %v3712
      %v3745 = vpop.f32.mrf.mxu0
      %v3746 = vadd.f32 0.0, %v3745
      %v3747 = vpop.f32.mrf.mxu0
      %v3748 = vadd.f32 0.0, %v3747
      %3749 = vmatmul.bf16.gmra.mxu0 %v3713
      %v3750 = vpop.f32.mrf.mxu0
      %v3751 = vadd.f32 0.0, %v3750
      %v3752 = vpop.f32.mrf.mxu0
      %v3753 = vadd.f32 0.0, %v3752
      %3754 = vmatmul.bf16.gmra.mxu0 %v3714
      %v3755 = vpop.f32.mrf.mxu0
      %v3756 = vadd.f32 0.0, %v3755
      %v3757 = vpop.f32.mrf.mxu0
      %v3758 = vadd.f32 0.0, %v3757
      %3759 = vmatmul.bf16.gmra.mxu0 %v3715
      %v3760 = vpop.f32.mrf.mxu0
      %v3761 = vadd.f32 0.0, %v3760
      %v3762 = vpop.f32.mrf.mxu0
      %v3763 = vadd.f32 0.0, %v3762
      %3764 = vdwg.mxu0
      %v3765 = vadd.f32 %v3403, %v3726
      %v3766 = vadd.f32 %v3404, %v3728
      %v3767 = vadd.f32 %v3405, %v3731
      %v3768 = vadd.f32 %v3406, %v3733
      %v3769 = vadd.f32 %v3407, %v3736
      %v3770 = vadd.f32 %v3408, %v3738
      %v3771 = vadd.f32 %v3409, %v3741
      %v3772 = vadd.f32 %v3410, %v3743
      %v3773 = vadd.f32 %v3411, %v3746
      %v3774 = vadd.f32 %v3412, %v3748
      %v3775 = vadd.f32 %v3413, %v3751
      %v3776 = vadd.f32 %v3414, %v3753
      %v3777 = vadd.f32 %v3415, %v3756
      %v3778 = vadd.f32 %v3416, %v3758
      %v3779 = vadd.f32 %v3417, %v3761
      %v3780 = vadd.f32 %v3418, %v3763
      %v3781 = vadd.f32 %v1133, %v3765
      %v3782 = vadd.f32 %v1134, %v3766
      %v3783 = vadd.f32 %v1135, %v3767
      %v3784 = vadd.f32 %v1136, %v3768
      %v3785 = vadd.f32 %v1137, %v3769
      %v3786 = vadd.f32 %v1138, %v3770
      %v3787 = vadd.f32 %v1139, %v3771
      %v3788 = vadd.f32 %v1140, %v3772
      %v3789 = vadd.f32 %v1141, %v3773
      %v3790 = vadd.f32 %v1142, %v3774
      %v3791 = vadd.f32 %v1143, %v3775
      %v3792 = vadd.f32 %v1144, %v3776
      %v3793 = vadd.f32 %v1145, %v3777
      %v3794 = vadd.f32 %v1146, %v3778
      %v3795 = vadd.f32 %v1147, %v3779
      %v3796 = vadd.f32 %v1148, %v3780
      %v3797 = vld [vmem:[%s17] sm:$0x1]
      %v3799 = vperm.slane %v3797, 0
      %v3801 = vadd.f32 %v3781, %v3799
      %v3802 = vadd.f32 %v3782, %v3799
      %v3803 = vadd.f32 %v3783, %v3799
      %v3804 = vadd.f32 %v3784, %v3799
      %v3805 = vadd.f32 %v3785, %v3799
      %v3806 = vadd.f32 %v3786, %v3799
      %v3807 = vadd.f32 %v3787, %v3799
      %v3808 = vadd.f32 %v3788, %v3799
      %v3809 = vadd.f32 %v3789, %v3799
      %v3810 = vadd.f32 %v3790, %v3799
      %v3811 = vadd.f32 %v3791, %v3799
      %v3812 = vadd.f32 %v3792, %v3799
      %v3813 = vadd.f32 %v3793, %v3799
      %v3814 = vadd.f32 %v3794, %v3799
      %v3815 = vadd.f32 %v3795, %v3799
      %v3816 = vadd.f32 %v3796, %v3799
      %v3817 = vld [vmem:[%s19] sm:$0x1]
      %v3818 = vld [vmem:[%s21] sm:$0x1]
      %v3819 = vsel %vm1151, %v3801, 0.0
      %3820 = vadd.xlane.f32.xlu0 %v3819
      %v3821 = vpop.xlane.xlu0 %3820
      %v3822 = vsel %vm1151, %v3802, 0.0
      %3823 = vadd.xlane.f32.xlu0 %v3822
      %v3824 = vpop.xlane.xlu0 %3823
      %v3825 = vsel %vm1151, %v3803, 0.0
      %3826 = vadd.xlane.f32.xlu0 %v3825
      %v3827 = vpop.xlane.xlu0 %3826
      %v3828 = vsel %vm1151, %v3804, 0.0
      %3829 = vadd.xlane.f32.xlu0 %v3828
      %v3830 = vpop.xlane.xlu0 %3829
      %v3831 = vsel %vm1151, %v3805, 0.0
      %3832 = vadd.xlane.f32.xlu0 %v3831
      %v3833 = vpop.xlane.xlu0 %3832
      %v3834 = vsel %vm1151, %v3806, 0.0
      %3835 = vadd.xlane.f32.xlu0 %v3834
      %v3836 = vpop.xlane.xlu0 %3835
      %v3837 = vsel %vm1151, %v3807, 0.0
      %3838 = vadd.xlane.f32.xlu0 %v3837
      %v3839 = vpop.xlane.xlu0 %3838
      %v3840 = vsel %vm1151, %v3808, 0.0
      %3841 = vadd.xlane.f32.xlu0 %v3840
      %v3842 = vpop.xlane.xlu0 %3841
      %v3843 = vsel %vm1151, %v3809, 0.0
      %3844 = vadd.xlane.f32.xlu0 %v3843
      %v3845 = vpop.xlane.xlu0 %3844
      %v3846 = vsel %vm1151, %v3810, 0.0
      %3847 = vadd.xlane.f32.xlu0 %v3846
      %v3848 = vpop.xlane.xlu0 %3847
      %v3849 = vsel %vm1151, %v3811, 0.0
      %3850 = vadd.xlane.f32.xlu0 %v3849
      %v3851 = vpop.xlane.xlu0 %3850
      %v3852 = vsel %vm1151, %v3812, 0.0
      %3853 = vadd.xlane.f32.xlu0 %v3852
      %v3854 = vpop.xlane.xlu0 %3853
      %v3855 = vsel %vm1151, %v3813, 0.0
      %3856 = vadd.xlane.f32.xlu0 %v3855
      %v3857 = vpop.xlane.xlu0 %3856
      %v3858 = vsel %vm1151, %v3814, 0.0
      %3859 = vadd.xlane.f32.xlu0 %v3858
      %v3860 = vpop.xlane.xlu0 %3859
      %v3861 = vsel %vm1151, %v3815, 0.0
      %3862 = vadd.xlane.f32.xlu0 %v3861
      %v3863 = vpop.xlane.xlu0 %3862
      %v3864 = vsel %vm1151, %v3816, 0.0
      %3865 = vadd.xlane.f32.xlu0 %v3864
      %v3866 = vpop.xlane.xlu0 %3865
      %v3867 = vmul.f32 %v3821, %v1206
      %v3868 = vmul.f32 %v3824, %v1206
      %v3869 = vmul.f32 %v3827, %v1206
      %v3870 = vmul.f32 %v3830, %v1206
      %v3871 = vmul.f32 %v3833, %v1206
      %v3872 = vmul.f32 %v3836, %v1206
      %v3873 = vmul.f32 %v3839, %v1206
      %v3874 = vmul.f32 %v3842, %v1206
      %v3875 = vmul.f32 %v3845, %v1206
      %v3876 = vmul.f32 %v3848, %v1206
      %v3877 = vmul.f32 %v3851, %v1206
      %v3878 = vmul.f32 %v3854, %v1206
      %v3879 = vmul.f32 %v3857, %v1206
      %v3880 = vmul.f32 %v3860, %v1206
      %v3881 = vmul.f32 %v3863, %v1206
      %v3882 = vmul.f32 %v3866, %v1206
      %v3883 = vsub.f32 %v3801, %v3867
      %v3884 = vsub.f32 %v3802, %v3868
      %v3885 = vsub.f32 %v3803, %v3869
      %v3886 = vsub.f32 %v3804, %v3870
      %v3887 = vsub.f32 %v3805, %v3871
      %v3888 = vsub.f32 %v3806, %v3872
      %v3889 = vsub.f32 %v3807, %v3873
      %v3890 = vsub.f32 %v3808, %v3874
      %v3891 = vsub.f32 %v3809, %v3875
      %v3892 = vsub.f32 %v3810, %v3876
      %v3893 = vsub.f32 %v3811, %v3877
      %v3894 = vsub.f32 %v3812, %v3878
      %v3895 = vsub.f32 %v3813, %v3879
      %v3896 = vsub.f32 %v3814, %v3880
      %v3897 = vsub.f32 %v3815, %v3881
      %v3898 = vsub.f32 %v3816, %v3882
      %v3899 = vmul.f32 %v3883, %v3883
      %v3900 = vmul.f32 %v3884, %v3884
      %v3901 = vmul.f32 %v3885, %v3885
      %v3902 = vmul.f32 %v3886, %v3886
      %v3903 = vmul.f32 %v3887, %v3887
      %v3904 = vmul.f32 %v3888, %v3888
      %v3905 = vmul.f32 %v3889, %v3889
      %v3906 = vmul.f32 %v3890, %v3890
      %v3907 = vmul.f32 %v3891, %v3891
      %v3908 = vmul.f32 %v3892, %v3892
      %v3909 = vmul.f32 %v3893, %v3893
      %v3910 = vmul.f32 %v3894, %v3894
      %v3911 = vmul.f32 %v3895, %v3895
      %v3912 = vmul.f32 %v3896, %v3896
      %v3913 = vmul.f32 %v3897, %v3897
      %v3914 = vmul.f32 %v3898, %v3898
      %v3915 = vsel %vm1151, %v3899, 0.0
      %3916 = vadd.xlane.f32.xlu0 %v3915
      %v3917 = vpop.xlane.xlu0 %3916
      %v3918 = vsel %vm1151, %v3900, 0.0
      %3919 = vadd.xlane.f32.xlu0 %v3918
      %v3920 = vpop.xlane.xlu0 %3919
      %v3921 = vsel %vm1151, %v3901, 0.0
      %3922 = vadd.xlane.f32.xlu0 %v3921
      %v3923 = vpop.xlane.xlu0 %3922
      %v3924 = vsel %vm1151, %v3902, 0.0
      %3925 = vadd.xlane.f32.xlu0 %v3924
      %v3926 = vpop.xlane.xlu0 %3925
      %v3927 = vsel %vm1151, %v3903, 0.0
      %3928 = vadd.xlane.f32.xlu0 %v3927
      %v3929 = vpop.xlane.xlu0 %3928
      %v3930 = vsel %vm1151, %v3904, 0.0
      %3931 = vadd.xlane.f32.xlu0 %v3930
      %v3932 = vpop.xlane.xlu0 %3931
      %v3933 = vsel %vm1151, %v3905, 0.0
      %3934 = vadd.xlane.f32.xlu0 %v3933
      %v3935 = vpop.xlane.xlu0 %3934
      %v3936 = vsel %vm1151, %v3906, 0.0
      %3937 = vadd.xlane.f32.xlu0 %v3936
      %v3938 = vpop.xlane.xlu0 %3937
      %v3939 = vsel %vm1151, %v3907, 0.0
      %3940 = vadd.xlane.f32.xlu0 %v3939
      %v3941 = vpop.xlane.xlu0 %3940
      %v3942 = vsel %vm1151, %v3908, 0.0
      %3943 = vadd.xlane.f32.xlu0 %v3942
      %v3944 = vpop.xlane.xlu0 %3943
      %v3945 = vsel %vm1151, %v3909, 0.0
      %3946 = vadd.xlane.f32.xlu0 %v3945
      %v3947 = vpop.xlane.xlu0 %3946
      %v3948 = vsel %vm1151, %v3910, 0.0
      %3949 = vadd.xlane.f32.xlu0 %v3948
      %v3950 = vpop.xlane.xlu0 %3949
      %v3951 = vsel %vm1151, %v3911, 0.0
      %3952 = vadd.xlane.f32.xlu0 %v3951
      %v3953 = vpop.xlane.xlu0 %3952
      %v3954 = vsel %vm1151, %v3912, 0.0
      %3955 = vadd.xlane.f32.xlu0 %v3954
      %v3956 = vpop.xlane.xlu0 %3955
      %v3957 = vsel %vm1151, %v3913, 0.0
      %3958 = vadd.xlane.f32.xlu0 %v3957
      %v3959 = vpop.xlane.xlu0 %3958
      %v3960 = vsel %vm1151, %v3914, 0.0
      %3961 = vadd.xlane.f32.xlu0 %v3960
      %v3962 = vpop.xlane.xlu0 %3961
      %v3963 = vmul.f32 %v3917, %v1206
      %v3964 = vmul.f32 %v3920, %v1206
      %v3965 = vmul.f32 %v3923, %v1206
      %v3966 = vmul.f32 %v3926, %v1206
      %v3967 = vmul.f32 %v3929, %v1206
      %v3968 = vmul.f32 %v3932, %v1206
      %v3969 = vmul.f32 %v3935, %v1206
      %v3970 = vmul.f32 %v3938, %v1206
      %v3971 = vmul.f32 %v3941, %v1206
      %v3972 = vmul.f32 %v3944, %v1206
      %v3973 = vmul.f32 %v3947, %v1206
      %v3974 = vmul.f32 %v3950, %v1206
      %v3975 = vmul.f32 %v3953, %v1206
      %v3976 = vmul.f32 %v3956, %v1206
      %v3977 = vmul.f32 %v3959, %v1206
      %v3978 = vmul.f32 %v3962, %v1206
      %v3979 = vadd.f32 %v3963, 1e-05
      %v3980 = vadd.f32 %v3964, 1e-05
      %v3981 = vadd.f32 %v3965, 1e-05
      %v3982 = vadd.f32 %v3966, 1e-05
      %v3983 = vadd.f32 %v3967, 1e-05
      %v3984 = vadd.f32 %v3968, 1e-05
      %v3985 = vadd.f32 %v3969, 1e-05
      %v3986 = vadd.f32 %v3970, 1e-05
      %v3987 = vadd.f32 %v3971, 1e-05
      %v3988 = vadd.f32 %v3972, 1e-05
      %v3989 = vadd.f32 %v3973, 1e-05
      %v3990 = vadd.f32 %v3974, 1e-05
      %v3991 = vadd.f32 %v3975, 1e-05
      %v3992 = vadd.f32 %v3976, 1e-05
      %v3993 = vadd.f32 %v3977, 1e-05
      %v3994 = vadd.f32 %v3978, 1e-05
      %v3995 = vrsqrt.pop %v3979
      %v3996 = vmul.f32 %v3995, %v3979
      %v3997 = vmul.f32 %v3996, %v3995
      %v3998 = vmul.f32 0.5, %v3997
      %v3999 = vsub.f32 1.5, %v3998
      %v4000 = vmul.f32 %v3995, %v3999
      %vm4001 = vweird.f32 %v3979
      %vm4002 = vweird.f32 %v3995
      %vm4003 = vmor %vm4001, %vm4002
      %v4004 = vsel %vm4003, %v3995, %v4000
      %v4005 = vrsqrt.pop %v3980
      %v4006 = vmul.f32 %v4005, %v3980
      %v4007 = vmul.f32 %v4006, %v4005
      %v4008 = vmul.f32 0.5, %v4007
      %v4009 = vsub.f32 1.5, %v4008
      %v4010 = vmul.f32 %v4005, %v4009
      %vm4011 = vweird.f32 %v3980
      %vm4012 = vweird.f32 %v4005
      %vm4013 = vmor %vm4011, %vm4012
      %v4014 = vsel %vm4013, %v4005, %v4010
      %v4015 = vrsqrt.pop %v3981
      %v4016 = vmul.f32 %v4015, %v3981
      %v4017 = vmul.f32 %v4016, %v4015
      %v4018 = vmul.f32 0.5, %v4017
      %v4019 = vsub.f32 1.5, %v4018
      %v4020 = vmul.f32 %v4015, %v4019
      %vm4021 = vweird.f32 %v3981
      %vm4022 = vweird.f32 %v4015
      %vm4023 = vmor %vm4021, %vm4022
      %v4024 = vsel %vm4023, %v4015, %v4020
      %v4025 = vrsqrt.pop %v3982
      %v4026 = vmul.f32 %v4025, %v3982
      %v4027 = vmul.f32 %v4026, %v4025
      %v4028 = vmul.f32 0.5, %v4027
      %v4029 = vsub.f32 1.5, %v4028
      %v4030 = vmul.f32 %v4025, %v4029
      %vm4031 = vweird.f32 %v3982
      %vm4032 = vweird.f32 %v4025
      %vm4033 = vmor %vm4031, %vm4032
      %v4034 = vsel %vm4033, %v4025, %v4030
      %v4035 = vrsqrt.pop %v3983
      %v4036 = vmul.f32 %v4035, %v3983
      %v4037 = vmul.f32 %v4036, %v4035
      %v4038 = vmul.f32 0.5, %v4037
      %v4039 = vsub.f32 1.5, %v4038
      %v4040 = vmul.f32 %v4035, %v4039
      %vm4041 = vweird.f32 %v3983
      %vm4042 = vweird.f32 %v4035
      %vm4043 = vmor %vm4041, %vm4042
      %v4044 = vsel %vm4043, %v4035, %v4040
      %v4045 = vrsqrt.pop %v3984
      %v4046 = vmul.f32 %v4045, %v3984
      %v4047 = vmul.f32 %v4046, %v4045
      %v4048 = vmul.f32 0.5, %v4047
      %v4049 = vsub.f32 1.5, %v4048
      %v4050 = vmul.f32 %v4045, %v4049
      %vm4051 = vweird.f32 %v3984
      %vm4052 = vweird.f32 %v4045
      %vm4053 = vmor %vm4051, %vm4052
      %v4054 = vsel %vm4053, %v4045, %v4050
      %v4055 = vrsqrt.pop %v3985
      %v4056 = vmul.f32 %v4055, %v3985
      %v4057 = vmul.f32 %v4056, %v4055
      %v4058 = vmul.f32 0.5, %v4057
      %v4059 = vsub.f32 1.5, %v4058
      %v4060 = vmul.f32 %v4055, %v4059
      %vm4061 = vweird.f32 %v3985
      %vm4062 = vweird.f32 %v4055
      %vm4063 = vmor %vm4061, %vm4062
      %v4064 = vsel %vm4063, %v4055, %v4060
      %v4065 = vrsqrt.pop %v3986
      %v4066 = vmul.f32 %v4065, %v3986
      %v4067 = vmul.f32 %v4066, %v4065
      %v4068 = vmul.f32 0.5, %v4067
      %v4069 = vsub.f32 1.5, %v4068
      %v4070 = vmul.f32 %v4065, %v4069
      %vm4071 = vweird.f32 %v3986
      %vm4072 = vweird.f32 %v4065
      %vm4073 = vmor %vm4071, %vm4072
      %v4074 = vsel %vm4073, %v4065, %v4070
      %v4075 = vrsqrt.pop %v3987
      %v4076 = vmul.f32 %v4075, %v3987
      %v4077 = vmul.f32 %v4076, %v4075
      %v4078 = vmul.f32 0.5, %v4077
      %v4079 = vsub.f32 1.5, %v4078
      %v4080 = vmul.f32 %v4075, %v4079
      %vm4081 = vweird.f32 %v3987
      %vm4082 = vweird.f32 %v4075
      %vm4083 = vmor %vm4081, %vm4082
      %v4084 = vsel %vm4083, %v4075, %v4080
      %v4085 = vrsqrt.pop %v3988
      %v4086 = vmul.f32 %v4085, %v3988
      %v4087 = vmul.f32 %v4086, %v4085
      %v4088 = vmul.f32 0.5, %v4087
      %v4089 = vsub.f32 1.5, %v4088
      %v4090 = vmul.f32 %v4085, %v4089
      %vm4091 = vweird.f32 %v3988
      %vm4092 = vweird.f32 %v4085
      %vm4093 = vmor %vm4091, %vm4092
      %v4094 = vsel %vm4093, %v4085, %v4090
      %v4095 = vrsqrt.pop %v3989
      %v4096 = vmul.f32 %v4095, %v3989
      %v4097 = vmul.f32 %v4096, %v4095
      %v4098 = vmul.f32 0.5, %v4097
      %v4099 = vsub.f32 1.5, %v4098
      %v4100 = vmul.f32 %v4095, %v4099
      %vm4101 = vweird.f32 %v3989
      %vm4102 = vweird.f32 %v4095
      %vm4103 = vmor %vm4101, %vm4102
      %v4104 = vsel %vm4103, %v4095, %v4100
      %v4105 = vrsqrt.pop %v3990
      %v4106 = vmul.f32 %v4105, %v3990
      %v4107 = vmul.f32 %v4106, %v4105
      %v4108 = vmul.f32 0.5, %v4107
      %v4109 = vsub.f32 1.5, %v4108
      %v4110 = vmul.f32 %v4105, %v4109
      %vm4111 = vweird.f32 %v3990
      %vm4112 = vweird.f32 %v4105
      %vm4113 = vmor %vm4111, %vm4112
      %v4114 = vsel %vm4113, %v4105, %v4110
      %v4115 = vrsqrt.pop %v3991
      %v4116 = vmul.f32 %v4115, %v3991
      %v4117 = vmul.f32 %v4116, %v4115
      %v4118 = vmul.f32 0.5, %v4117
      %v4119 = vsub.f32 1.5, %v4118
      %v4120 = vmul.f32 %v4115, %v4119
      %vm4121 = vweird.f32 %v3991
      %vm4122 = vweird.f32 %v4115
      %vm4123 = vmor %vm4121, %vm4122
      %v4124 = vsel %vm4123, %v4115, %v4120
      %v4125 = vrsqrt.pop %v3992
      %v4126 = vmul.f32 %v4125, %v3992
      %v4127 = vmul.f32 %v4126, %v4125
      %v4128 = vmul.f32 0.5, %v4127
      %v4129 = vsub.f32 1.5, %v4128
      %v4130 = vmul.f32 %v4125, %v4129
      %vm4131 = vweird.f32 %v3992
      %vm4132 = vweird.f32 %v4125
      %vm4133 = vmor %vm4131, %vm4132
      %v4134 = vsel %vm4133, %v4125, %v4130
      %v4135 = vrsqrt.pop %v3993
      %v4136 = vmul.f32 %v4135, %v3993
      %v4137 = vmul.f32 %v4136, %v4135
      %v4138 = vmul.f32 0.5, %v4137
      %v4139 = vsub.f32 1.5, %v4138
      %v4140 = vmul.f32 %v4135, %v4139
      %vm4141 = vweird.f32 %v3993
      %vm4142 = vweird.f32 %v4135
      %vm4143 = vmor %vm4141, %vm4142
      %v4144 = vsel %vm4143, %v4135, %v4140
      %v4145 = vrsqrt.pop %v3994
      %v4146 = vmul.f32 %v4145, %v3994
      %v4147 = vmul.f32 %v4146, %v4145
      %v4148 = vmul.f32 0.5, %v4147
      %v4149 = vsub.f32 1.5, %v4148
      %v4150 = vmul.f32 %v4145, %v4149
      %vm4151 = vweird.f32 %v3994
      %vm4152 = vweird.f32 %v4145
      %vm4153 = vmor %vm4151, %vm4152
      %v4154 = vsel %vm4153, %v4145, %v4150
      %v4155 = vmul.f32 %v3883, %v4004
      %v4156 = vmul.f32 %v3884, %v4014
      %v4157 = vmul.f32 %v3885, %v4024
      %v4158 = vmul.f32 %v3886, %v4034
      %v4159 = vmul.f32 %v3887, %v4044
      %v4160 = vmul.f32 %v3888, %v4054
      %v4161 = vmul.f32 %v3889, %v4064
      %v4162 = vmul.f32 %v3890, %v4074
      %v4163 = vmul.f32 %v3891, %v4084
      %v4164 = vmul.f32 %v3892, %v4094
      %v4165 = vmul.f32 %v3893, %v4104
      %v4166 = vmul.f32 %v3894, %v4114
      %v4167 = vmul.f32 %v3895, %v4124
      %v4168 = vmul.f32 %v3896, %v4134
      %v4169 = vmul.f32 %v3897, %v4144
      %v4170 = vmul.f32 %v3898, %v4154
      %v4172 = vperm.slane %v3817, 0
      %v4174 = vmul.f32 %v4155, %v4172
      %v4175 = vmul.f32 %v4156, %v4172
      %v4176 = vmul.f32 %v4157, %v4172
      %v4177 = vmul.f32 %v4158, %v4172
      %v4178 = vmul.f32 %v4159, %v4172
      %v4179 = vmul.f32 %v4160, %v4172
      %v4180 = vmul.f32 %v4161, %v4172
      %v4181 = vmul.f32 %v4162, %v4172
      %v4182 = vmul.f32 %v4163, %v4172
      %v4183 = vmul.f32 %v4164, %v4172
      %v4184 = vmul.f32 %v4165, %v4172
      %v4185 = vmul.f32 %v4166, %v4172
      %v4186 = vmul.f32 %v4167, %v4172
      %v4187 = vmul.f32 %v4168, %v4172
      %v4188 = vmul.f32 %v4169, %v4172
      %v4189 = vmul.f32 %v4170, %v4172
      %v4191 = vperm.slane %v3818, 0
      %v4193 = vadd.f32 %v4174, %v4191
      %v4194 = vadd.f32 %v4175, %v4191
      %v4195 = vadd.f32 %v4176, %v4191
      %v4196 = vadd.f32 %v4177, %v4191
      %v4197 = vadd.f32 %v4178, %v4191
      %v4198 = vadd.f32 %v4179, %v4191
      %v4199 = vadd.f32 %v4180, %v4191
      %v4200 = vadd.f32 %v4181, %v4191
      %v4201 = vadd.f32 %v4182, %v4191
      %v4202 = vadd.f32 %v4183, %v4191
      %v4203 = vadd.f32 %v4184, %v4191
      %v4204 = vadd.f32 %v4185, %v4191
      %v4205 = vadd.f32 %v4186, %v4191
      %v4206 = vadd.f32 %v4187, %v4191
      %v4207 = vadd.f32 %v4188, %v4191
      %v4208 = vadd.f32 %v4189, %v4191
      %v4209 = vpack.c.bf16 %v4194, %v4193
      %v4210 = vpack.c.bf16 %v4196, %v4195
      %v4211 = vpack.c.bf16 %v4198, %v4197
      %v4212 = vpack.c.bf16 %v4200, %v4199
      %v4213 = vpack.c.bf16 %v4202, %v4201
      %v4214 = vpack.c.bf16 %v4204, %v4203
      %v4215 = vpack.c.bf16 %v4206, %v4205
      %v4216 = vpack.c.bf16 %v4208, %v4207
      %v4217 = vld [vmem:[%s23] sm:$0xff]
      %v4218 = vld [vmem:[%s23 + $0x8] sm:$0xff]
      %v4219 = vld [vmem:[%s23 + $0x10] sm:$0xff]
      %v4220 = vld [vmem:[%s23 + $0x18] sm:$0xff]
      %v4221 = vld [vmem:[%s23 + $0x20] sm:$0xff]
      %v4222 = vld [vmem:[%s23 + $0x28] sm:$0xff]
      %v4223 = vld [vmem:[%s23 + $0x30] sm:$0xff]
      %v4224 = vld [vmem:[%s23 + $0x38] sm:$0xff]
      %v4225 = vld [vmem:[%s25] sm:$0x3]
      %v4227 = vperm.slane %v4225, 0
      %v4228 = vperm.slane %v4225, 1
      %v4239 = vunpack.c.l.b16 %v4217
      %v4240 = vunpack.c.h.b16 %v4217
      %v4241 = vunpack.c.l.b16 %v4218
      %v4242 = vunpack.c.h.b16 %v4218
      %v4243 = vunpack.c.l.b16 %v4219
      %v4244 = vunpack.c.h.b16 %v4219
      %v4245 = vunpack.c.l.b16 %v4220
      %v4246 = vunpack.c.h.b16 %v4220
      %v4247 = vunpack.c.l.b16 %v4221
      %v4248 = vunpack.c.h.b16 %v4221
      %v4249 = vunpack.c.l.b16 %v4222
      %v4250 = vunpack.c.h.b16 %v4222
      %v4251 = vunpack.c.l.b16 %v4223
      %v4252 = vunpack.c.h.b16 %v4223
      %v4253 = vunpack.c.l.b16 %v4224
      %v4254 = vunpack.c.h.b16 %v4224
      %v4255 = vpack.c.b16 %v4241, %v4239
      %v4256 = vpack.c.b16 %v4242, %v4240
      %v4257 = vpack.c.b16 %v4245, %v4243
      %v4258 = vpack.c.b16 %v4246, %v4244
      %v4259 = vpack.c.b16 %v4249, %v4247
      %v4260 = vpack.c.b16 %v4250, %v4248
      %v4261 = vpack.c.b16 %v4253, %v4251
      %v4262 = vpack.c.b16 %v4254, %v4252
      %v4272 = vsel %vm1151, %v4209, 0
      %v4275 = vsel %vm1151, %v4210, 0
      %v4278 = vsel %vm1151, %v4211, 0
      %v4281 = vsel %vm1151, %v4212, 0
      %v4284 = vsel %vm1151, %v4213, 0
      %v4287 = vsel %vm1151, %v4214, 0
      %v4290 = vsel %vm1151, %v4215, 0
      %v4293 = vsel %vm1151, %v4216, 0
      %4295 = vmatpush.bf16.msra.mxu0 0
      %4296 = vmatpush.bf16.msra.mxu0 0
      %4297 = vmatpush.bf16.msra.mxu0 0
      %4298 = vmatpush.bf16.msra.mxu0 0
      %4299 = vmatpush.bf16.msra.mxu0 %v4261
      %4300 = vmatpush.bf16.msra.mxu0 %v4259
      %4301 = vmatpush.bf16.msra.mxu0 %v4257
      %4302 = vmatpush.bf16.msra.mxu0 %v4255
      %4303 = vmatmul.bf16.gmra.mxu0 %v4272
      %v4304 = vpop.f32.mrf.mxu0
      %v4305 = vadd.f32 %v4227, %v4304
      %v4306 = vpop.f32.mrf.mxu0
      %v4307 = vadd.f32 %v4227, %v4306
      %4308 = vmatmul.bf16.gmra.mxu0 %v4275
      %v4309 = vpop.f32.mrf.mxu0
      %v4310 = vadd.f32 %v4227, %v4309
      %v4311 = vpop.f32.mrf.mxu0
      %v4312 = vadd.f32 %v4227, %v4311
      %4313 = vmatmul.bf16.gmra.mxu0 %v4278
      %v4314 = vpop.f32.mrf.mxu0
      %v4315 = vadd.f32 %v4227, %v4314
      %v4316 = vpop.f32.mrf.mxu0
      %v4317 = vadd.f32 %v4227, %v4316
      %4318 = vmatmul.bf16.gmra.mxu0 %v4281
      %v4319 = vpop.f32.mrf.mxu0
      %v4320 = vadd.f32 %v4227, %v4319
      %v4321 = vpop.f32.mrf.mxu0
      %v4322 = vadd.f32 %v4227, %v4321
      %4323 = vmatmul.bf16.gmra.mxu0 %v4284
      %v4324 = vpop.f32.mrf.mxu0
      %v4325 = vadd.f32 %v4227, %v4324
      %v4326 = vpop.f32.mrf.mxu0
      %v4327 = vadd.f32 %v4227, %v4326
      %4328 = vmatmul.bf16.gmra.mxu0 %v4287
      %v4329 = vpop.f32.mrf.mxu0
      %v4330 = vadd.f32 %v4227, %v4329
      %v4331 = vpop.f32.mrf.mxu0
      %v4332 = vadd.f32 %v4227, %v4331
      %4333 = vmatmul.bf16.gmra.mxu0 %v4290
      %v4334 = vpop.f32.mrf.mxu0
      %v4335 = vadd.f32 %v4227, %v4334
      %v4336 = vpop.f32.mrf.mxu0
      %v4337 = vadd.f32 %v4227, %v4336
      %4338 = vmatmul.bf16.gmra.mxu0 %v4293
      %v4339 = vpop.f32.mrf.mxu0
      %v4340 = vadd.f32 %v4227, %v4339
      %v4341 = vpop.f32.mrf.mxu0
      %v4342 = vadd.f32 %v4227, %v4341
      %4343 = vdwg.mxu0
      %4344 = vmatpush.bf16.msra.mxu0 0
      %4345 = vmatpush.bf16.msra.mxu0 0
      %4346 = vmatpush.bf16.msra.mxu0 0
      %4347 = vmatpush.bf16.msra.mxu0 0
      %4348 = vmatpush.bf16.msra.mxu0 %v4262
      %4349 = vmatpush.bf16.msra.mxu0 %v4260
      %4350 = vmatpush.bf16.msra.mxu0 %v4258
      %4351 = vmatpush.bf16.msra.mxu0 %v4256
      %4352 = vmatmul.bf16.gmra.mxu0 %v4272
      %v4353 = vpop.f32.mrf.mxu0
      %v4354 = vadd.f32 %v4228, %v4353
      %v4355 = vpop.f32.mrf.mxu0
      %v4356 = vadd.f32 %v4228, %v4355
      %4357 = vmatmul.bf16.gmra.mxu0 %v4275
      %v4358 = vpop.f32.mrf.mxu0
      %v4359 = vadd.f32 %v4228, %v4358
      %v4360 = vpop.f32.mrf.mxu0
      %v4361 = vadd.f32 %v4228, %v4360
      %4362 = vmatmul.bf16.gmra.mxu0 %v4278
      %v4363 = vpop.f32.mrf.mxu0
      %v4364 = vadd.f32 %v4228, %v4363
      %v4365 = vpop.f32.mrf.mxu0
      %v4366 = vadd.f32 %v4228, %v4365
      %4367 = vmatmul.bf16.gmra.mxu0 %v4281
      %v4368 = vpop.f32.mrf.mxu0
      %v4369 = vadd.f32 %v4228, %v4368
      %v4370 = vpop.f32.mrf.mxu0
      %v4371 = vadd.f32 %v4228, %v4370
      %4372 = vmatmul.bf16.gmra.mxu0 %v4284
      %v4373 = vpop.f32.mrf.mxu0
      %v4374 = vadd.f32 %v4228, %v4373
      %v4375 = vpop.f32.mrf.mxu0
      %v4376 = vadd.f32 %v4228, %v4375
      %4377 = vmatmul.bf16.gmra.mxu0 %v4287
      %v4378 = vpop.f32.mrf.mxu0
      %v4379 = vadd.f32 %v4228, %v4378
      %v4380 = vpop.f32.mrf.mxu0
      %v4381 = vadd.f32 %v4228, %v4380
      %4382 = vmatmul.bf16.gmra.mxu0 %v4290
      %v4383 = vpop.f32.mrf.mxu0
      %v4384 = vadd.f32 %v4228, %v4383
      %v4385 = vpop.f32.mrf.mxu0
      %v4386 = vadd.f32 %v4228, %v4385
      %4387 = vmatmul.bf16.gmra.mxu0 %v4293
      %v4388 = vpop.f32.mrf.mxu0
      %v4389 = vadd.f32 %v4228, %v4388
      %v4390 = vpop.f32.mrf.mxu0
      %v4391 = vadd.f32 %v4228, %v4390
      %4392 = vdwg.mxu0
      %v4393 = vmul.f32 %v4305, 0.5
      %v4394 = vmul.f32 %v4354, 0.5
      %v4395 = vmul.f32 %v4307, 0.5
      %v4396 = vmul.f32 %v4356, 0.5
      %v4397 = vmul.f32 %v4310, 0.5
      %v4398 = vmul.f32 %v4359, 0.5
      %v4399 = vmul.f32 %v4312, 0.5
      %v4400 = vmul.f32 %v4361, 0.5
      %v4401 = vmul.f32 %v4315, 0.5
      %v4402 = vmul.f32 %v4364, 0.5
      %v4403 = vmul.f32 %v4317, 0.5
      %v4404 = vmul.f32 %v4366, 0.5
      %v4405 = vmul.f32 %v4320, 0.5
      %v4406 = vmul.f32 %v4369, 0.5
      %v4407 = vmul.f32 %v4322, 0.5
      %v4408 = vmul.f32 %v4371, 0.5
      %v4409 = vmul.f32 %v4325, 0.5
      %v4410 = vmul.f32 %v4374, 0.5
      %v4411 = vmul.f32 %v4327, 0.5
      %v4412 = vmul.f32 %v4376, 0.5
      %v4413 = vmul.f32 %v4330, 0.5
      %v4414 = vmul.f32 %v4379, 0.5
      %v4415 = vmul.f32 %v4332, 0.5
      %v4416 = vmul.f32 %v4381, 0.5
      %v4417 = vmul.f32 %v4335, 0.5
      %v4418 = vmul.f32 %v4384, 0.5
      %v4419 = vmul.f32 %v4337, 0.5
      %v4420 = vmul.f32 %v4386, 0.5
      %v4421 = vmul.f32 %v4340, 0.5
      %v4422 = vmul.f32 %v4389, 0.5
      %v4423 = vmul.f32 %v4342, 0.5
      %v4424 = vmul.f32 %v4391, 0.5
      %v4425 = vmul.f32 %v4305, 0.044715
      %v4426 = vmul.f32 %v4354, 0.044715
      %v4427 = vmul.f32 %v4307, 0.044715
      %v4428 = vmul.f32 %v4356, 0.044715
      %v4429 = vmul.f32 %v4310, 0.044715
      %v4430 = vmul.f32 %v4359, 0.044715
      %v4431 = vmul.f32 %v4312, 0.044715
      %v4432 = vmul.f32 %v4361, 0.044715
      %v4433 = vmul.f32 %v4315, 0.044715
      %v4434 = vmul.f32 %v4364, 0.044715
      %v4435 = vmul.f32 %v4317, 0.044715
      %v4436 = vmul.f32 %v4366, 0.044715
      %v4437 = vmul.f32 %v4320, 0.044715
      %v4438 = vmul.f32 %v4369, 0.044715
      %v4439 = vmul.f32 %v4322, 0.044715
      %v4440 = vmul.f32 %v4371, 0.044715
      %v4441 = vmul.f32 %v4325, 0.044715
      %v4442 = vmul.f32 %v4374, 0.044715
      %v4443 = vmul.f32 %v4327, 0.044715
      %v4444 = vmul.f32 %v4376, 0.044715
      %v4445 = vmul.f32 %v4330, 0.044715
      %v4446 = vmul.f32 %v4379, 0.044715
      %v4447 = vmul.f32 %v4332, 0.044715
      %v4448 = vmul.f32 %v4381, 0.044715
      %v4449 = vmul.f32 %v4335, 0.044715
      %v4450 = vmul.f32 %v4384, 0.044715
      %v4451 = vmul.f32 %v4337, 0.044715
      %v4452 = vmul.f32 %v4386, 0.044715
      %v4453 = vmul.f32 %v4340, 0.044715
      %v4454 = vmul.f32 %v4389, 0.044715
      %v4455 = vmul.f32 %v4342, 0.044715
      %v4456 = vmul.f32 %v4391, 0.044715
      %v4457 = vmul.f32 %v4425, %v4305
      %v4458 = vmul.f32 %v4426, %v4354
      %v4459 = vmul.f32 %v4427, %v4307
      %v4460 = vmul.f32 %v4428, %v4356
      %v4461 = vmul.f32 %v4429, %v4310
      %v4462 = vmul.f32 %v4430, %v4359
      %v4463 = vmul.f32 %v4431, %v4312
      %v4464 = vmul.f32 %v4432, %v4361
      %v4465 = vmul.f32 %v4433, %v4315
      %v4466 = vmul.f32 %v4434, %v4364
      %v4467 = vmul.f32 %v4435, %v4317
      %v4468 = vmul.f32 %v4436, %v4366
      %v4469 = vmul.f32 %v4437, %v4320
      %v4470 = vmul.f32 %v4438, %v4369
      %v4471 = vmul.f32 %v4439, %v4322
      %v4472 = vmul.f32 %v4440, %v4371
      %v4473 = vmul.f32 %v4441, %v4325
      %v4474 = vmul.f32 %v4442, %v4374
      %v4475 = vmul.f32 %v4443, %v4327
      %v4476 = vmul.f32 %v4444, %v4376
      %v4477 = vmul.f32 %v4445, %v4330
      %v4478 = vmul.f32 %v4446, %v4379
      %v4479 = vmul.f32 %v4447, %v4332
      %v4480 = vmul.f32 %v4448, %v4381
      %v4481 = vmul.f32 %v4449, %v4335
      %v4482 = vmul.f32 %v4450, %v4384
      %v4483 = vmul.f32 %v4451, %v4337
      %v4484 = vmul.f32 %v4452, %v4386
      %v4485 = vmul.f32 %v4453, %v4340
      %v4486 = vmul.f32 %v4454, %v4389
      %v4487 = vmul.f32 %v4455, %v4342
      %v4488 = vmul.f32 %v4456, %v4391
      %v4489 = vmul.f32 %v4457, %v4305
      %v4490 = vmul.f32 %v4458, %v4354
      %v4491 = vmul.f32 %v4459, %v4307
      %v4492 = vmul.f32 %v4460, %v4356
      %v4493 = vmul.f32 %v4461, %v4310
      %v4494 = vmul.f32 %v4462, %v4359
      %v4495 = vmul.f32 %v4463, %v4312
      %v4496 = vmul.f32 %v4464, %v4361
      %v4497 = vmul.f32 %v4465, %v4315
      %v4498 = vmul.f32 %v4466, %v4364
      %v4499 = vmul.f32 %v4467, %v4317
      %v4500 = vmul.f32 %v4468, %v4366
      %v4501 = vmul.f32 %v4469, %v4320
      %v4502 = vmul.f32 %v4470, %v4369
      %v4503 = vmul.f32 %v4471, %v4322
      %v4504 = vmul.f32 %v4472, %v4371
      %v4505 = vmul.f32 %v4473, %v4325
      %v4506 = vmul.f32 %v4474, %v4374
      %v4507 = vmul.f32 %v4475, %v4327
      %v4508 = vmul.f32 %v4476, %v4376
      %v4509 = vmul.f32 %v4477, %v4330
      %v4510 = vmul.f32 %v4478, %v4379
      %v4511 = vmul.f32 %v4479, %v4332
      %v4512 = vmul.f32 %v4480, %v4381
      %v4513 = vmul.f32 %v4481, %v4335
      %v4514 = vmul.f32 %v4482, %v4384
      %v4515 = vmul.f32 %v4483, %v4337
      %v4516 = vmul.f32 %v4484, %v4386
      %v4517 = vmul.f32 %v4485, %v4340
      %v4518 = vmul.f32 %v4486, %v4389
      %v4519 = vmul.f32 %v4487, %v4342
      %v4520 = vmul.f32 %v4488, %v4391
      %v4521 = vadd.f32 %v4305, %v4489
      %v4522 = vadd.f32 %v4354, %v4490
      %v4523 = vadd.f32 %v4307, %v4491
      %v4524 = vadd.f32 %v4356, %v4492
      %v4525 = vadd.f32 %v4310, %v4493
      %v4526 = vadd.f32 %v4359, %v4494
      %v4527 = vadd.f32 %v4312, %v4495
      %v4528 = vadd.f32 %v4361, %v4496
      %v4529 = vadd.f32 %v4315, %v4497
      %v4530 = vadd.f32 %v4364, %v4498
      %v4531 = vadd.f32 %v4317, %v4499
      %v4532 = vadd.f32 %v4366, %v4500
      %v4533 = vadd.f32 %v4320, %v4501
      %v4534 = vadd.f32 %v4369, %v4502
      %v4535 = vadd.f32 %v4322, %v4503
      %v4536 = vadd.f32 %v4371, %v4504
      %v4537 = vadd.f32 %v4325, %v4505
      %v4538 = vadd.f32 %v4374, %v4506
      %v4539 = vadd.f32 %v4327, %v4507
      %v4540 = vadd.f32 %v4376, %v4508
      %v4541 = vadd.f32 %v4330, %v4509
      %v4542 = vadd.f32 %v4379, %v4510
      %v4543 = vadd.f32 %v4332, %v4511
      %v4544 = vadd.f32 %v4381, %v4512
      %v4545 = vadd.f32 %v4335, %v4513
      %v4546 = vadd.f32 %v4384, %v4514
      %v4547 = vadd.f32 %v4337, %v4515
      %v4548 = vadd.f32 %v4386, %v4516
      %v4549 = vadd.f32 %v4340, %v4517
      %v4550 = vadd.f32 %v4389, %v4518
      %v4551 = vadd.f32 %v4342, %v4519
      %v4552 = vadd.f32 %v4391, %v4520
      %v4553 = vmul.f32 %v4521, 0.7978846
      %v4554 = vmul.f32 %v4522, 0.7978846
      %v4555 = vmul.f32 %v4523, 0.7978846
      %v4556 = vmul.f32 %v4524, 0.7978846
      %v4557 = vmul.f32 %v4525, 0.7978846
      %v4558 = vmul.f32 %v4526, 0.7978846
      %v4559 = vmul.f32 %v4527, 0.7978846
      %v4560 = vmul.f32 %v4528, 0.7978846
      %v4561 = vmul.f32 %v4529, 0.7978846
      %v4562 = vmul.f32 %v4530, 0.7978846
      %v4563 = vmul.f32 %v4531, 0.7978846
      %v4564 = vmul.f32 %v4532, 0.7978846
      %v4565 = vmul.f32 %v4533, 0.7978846
      %v4566 = vmul.f32 %v4534, 0.7978846
      %v4567 = vmul.f32 %v4535, 0.7978846
      %v4568 = vmul.f32 %v4536, 0.7978846
      %v4569 = vmul.f32 %v4537, 0.7978846
      %v4570 = vmul.f32 %v4538, 0.7978846
      %v4571 = vmul.f32 %v4539, 0.7978846
      %v4572 = vmul.f32 %v4540, 0.7978846
      %v4573 = vmul.f32 %v4541, 0.7978846
      %v4574 = vmul.f32 %v4542, 0.7978846
      %v4575 = vmul.f32 %v4543, 0.7978846
      %v4576 = vmul.f32 %v4544, 0.7978846
      %v4577 = vmul.f32 %v4545, 0.7978846
      %v4578 = vmul.f32 %v4546, 0.7978846
      %v4579 = vmul.f32 %v4547, 0.7978846
      %v4580 = vmul.f32 %v4548, 0.7978846
      %v4581 = vmul.f32 %v4549, 0.7978846
      %v4582 = vmul.f32 %v4550, 0.7978846
      %v4583 = vmul.f32 %v4551, 0.7978846
      %v4584 = vmul.f32 %v4552, 0.7978846
      %v4585 = vtanh.pop %v4553
      %v4586 = vtanh.pop %v4554
      %v4587 = vtanh.pop %v4555
      %v4588 = vtanh.pop %v4556
      %v4589 = vtanh.pop %v4557
      %v4590 = vtanh.pop %v4558
      %v4591 = vtanh.pop %v4559
      %v4592 = vtanh.pop %v4560
      %v4593 = vtanh.pop %v4561
      %v4594 = vtanh.pop %v4562
      %v4595 = vtanh.pop %v4563
      %v4596 = vtanh.pop %v4564
      %v4597 = vtanh.pop %v4565
      %v4598 = vtanh.pop %v4566
      %v4599 = vtanh.pop %v4567
      %v4600 = vtanh.pop %v4568
      %v4601 = vtanh.pop %v4569
      %v4602 = vtanh.pop %v4570
      %v4603 = vtanh.pop %v4571
      %v4604 = vtanh.pop %v4572
      %v4605 = vtanh.pop %v4573
      %v4606 = vtanh.pop %v4574
      %v4607 = vtanh.pop %v4575
      %v4608 = vtanh.pop %v4576
      %v4609 = vtanh.pop %v4577
      %v4610 = vtanh.pop %v4578
      %v4611 = vtanh.pop %v4579
      %v4612 = vtanh.pop %v4580
      %v4613 = vtanh.pop %v4581
      %v4614 = vtanh.pop %v4582
      %v4615 = vtanh.pop %v4583
      %v4616 = vtanh.pop %v4584
      %v4617 = vadd.f32 %v4585, 1.0
      %v4618 = vadd.f32 %v4586, 1.0
      %v4619 = vadd.f32 %v4587, 1.0
      %v4620 = vadd.f32 %v4588, 1.0
      %v4621 = vadd.f32 %v4589, 1.0
      %v4622 = vadd.f32 %v4590, 1.0
      %v4623 = vadd.f32 %v4591, 1.0
      %v4624 = vadd.f32 %v4592, 1.0
      %v4625 = vadd.f32 %v4593, 1.0
      %v4626 = vadd.f32 %v4594, 1.0
      %v4627 = vadd.f32 %v4595, 1.0
      %v4628 = vadd.f32 %v4596, 1.0
      %v4629 = vadd.f32 %v4597, 1.0
      %v4630 = vadd.f32 %v4598, 1.0
      %v4631 = vadd.f32 %v4599, 1.0
      %v4632 = vadd.f32 %v4600, 1.0
      %v4633 = vadd.f32 %v4601, 1.0
      %v4634 = vadd.f32 %v4602, 1.0
      %v4635 = vadd.f32 %v4603, 1.0
      %v4636 = vadd.f32 %v4604, 1.0
      %v4637 = vadd.f32 %v4605, 1.0
      %v4638 = vadd.f32 %v4606, 1.0
      %v4639 = vadd.f32 %v4607, 1.0
      %v4640 = vadd.f32 %v4608, 1.0
      %v4641 = vadd.f32 %v4609, 1.0
      %v4642 = vadd.f32 %v4610, 1.0
      %v4643 = vadd.f32 %v4611, 1.0
      %v4644 = vadd.f32 %v4612, 1.0
      %v4645 = vadd.f32 %v4613, 1.0
      %v4646 = vadd.f32 %v4614, 1.0
      %v4647 = vadd.f32 %v4615, 1.0
      %v4648 = vadd.f32 %v4616, 1.0
      %v4649 = vmul.f32 %v4393, %v4617
      %v4650 = vmul.f32 %v4394, %v4618
      %v4651 = vmul.f32 %v4395, %v4619
      %v4652 = vmul.f32 %v4396, %v4620
      %v4653 = vmul.f32 %v4397, %v4621
      %v4654 = vmul.f32 %v4398, %v4622
      %v4655 = vmul.f32 %v4399, %v4623
      %v4656 = vmul.f32 %v4400, %v4624
      %v4657 = vmul.f32 %v4401, %v4625
      %v4658 = vmul.f32 %v4402, %v4626
      %v4659 = vmul.f32 %v4403, %v4627
      %v4660 = vmul.f32 %v4404, %v4628
      %v4661 = vmul.f32 %v4405, %v4629
      %v4662 = vmul.f32 %v4406, %v4630
      %v4663 = vmul.f32 %v4407, %v4631
      %v4664 = vmul.f32 %v4408, %v4632
      %v4665 = vmul.f32 %v4409, %v4633
      %v4666 = vmul.f32 %v4410, %v4634
      %v4667 = vmul.f32 %v4411, %v4635
      %v4668 = vmul.f32 %v4412, %v4636
      %v4669 = vmul.f32 %v4413, %v4637
      %v4670 = vmul.f32 %v4414, %v4638
      %v4671 = vmul.f32 %v4415, %v4639
      %v4672 = vmul.f32 %v4416, %v4640
      %v4673 = vmul.f32 %v4417, %v4641
      %v4674 = vmul.f32 %v4418, %v4642
      %v4675 = vmul.f32 %v4419, %v4643
      %v4676 = vmul.f32 %v4420, %v4644
      %v4677 = vmul.f32 %v4421, %v4645
      %v4678 = vmul.f32 %v4422, %v4646
      %v4679 = vmul.f32 %v4423, %v4647
      %v4680 = vmul.f32 %v4424, %v4648
      %v4681 = vpack.c.bf16 %v4651, %v4649
      %v4682 = vpack.c.bf16 %v4652, %v4650
      %v4683 = vpack.c.bf16 %v4655, %v4653
      %v4684 = vpack.c.bf16 %v4656, %v4654
      %v4685 = vpack.c.bf16 %v4659, %v4657
      %v4686 = vpack.c.bf16 %v4660, %v4658
      %v4687 = vpack.c.bf16 %v4663, %v4661
      %v4688 = vpack.c.bf16 %v4664, %v4662
      %v4689 = vpack.c.bf16 %v4667, %v4665
      %v4690 = vpack.c.bf16 %v4668, %v4666
      %v4691 = vpack.c.bf16 %v4671, %v4669
      %v4692 = vpack.c.bf16 %v4672, %v4670
      %v4693 = vpack.c.bf16 %v4675, %v4673
      %v4694 = vpack.c.bf16 %v4676, %v4674
      %v4695 = vpack.c.bf16 %v4679, %v4677
      %v4696 = vpack.c.bf16 %v4680, %v4678
      %v4697 = vld [vmem:[%s27] sm:$0xf]
      %v4698 = vld [vmem:[%s27 + $0x4] sm:$0xf]
      %v4699 = vld [vmem:[%s27 + $0x8] sm:$0xf]
      %v4700 = vld [vmem:[%s27 + $0xc] sm:$0xf]
      %v4701 = vld [vmem:[%s27 + $0x10] sm:$0xf]
      %v4702 = vld [vmem:[%s27 + $0x14] sm:$0xf]
      %v4703 = vld [vmem:[%s27 + $0x18] sm:$0xf]
      %v4704 = vld [vmem:[%s27 + $0x1c] sm:$0xf]
      %v4705 = vld [vmem:[%s27 + $0x20] sm:$0xf]
      %v4706 = vld [vmem:[%s27 + $0x24] sm:$0xf]
      %v4707 = vld [vmem:[%s27 + $0x28] sm:$0xf]
      %v4708 = vld [vmem:[%s27 + $0x2c] sm:$0xf]
      %v4709 = vld [vmem:[%s27 + $0x30] sm:$0xf]
      %v4710 = vld [vmem:[%s27 + $0x34] sm:$0xf]
      %v4711 = vld [vmem:[%s27 + $0x38] sm:$0xf]
      %v4712 = vld [vmem:[%s27 + $0x3c] sm:$0xf]
      %v4713 = vld [vmem:[%s27 + $0x40] sm:$0xf]
      %v4714 = vld [vmem:[%s27 + $0x44] sm:$0xf]
      %v4715 = vld [vmem:[%s27 + $0x48] sm:$0xf]
      %v4716 = vld [vmem:[%s27 + $0x4c] sm:$0xf]
      %v4717 = vld [vmem:[%s27 + $0x50] sm:$0xf]
      %v4718 = vld [vmem:[%s27 + $0x54] sm:$0xf]
      %v4719 = vld [vmem:[%s27 + $0x58] sm:$0xf]
      %v4720 = vld [vmem:[%s27 + $0x5c] sm:$0xf]
      %v4721 = vld [vmem:[%s27 + $0x60] sm:$0xf]
      %v4722 = vld [vmem:[%s27 + $0x64] sm:$0xf]
      %v4723 = vld [vmem:[%s27 + $0x68] sm:$0xf]
      %v4724 = vld [vmem:[%s27 + $0x6c] sm:$0xf]
      %v4725 = vld [vmem:[%s27 + $0x70] sm:$0xf]
      %v4726 = vld [vmem:[%s27 + $0x74] sm:$0xf]
      %v4727 = vld [vmem:[%s27 + $0x78] sm:$0xf]
      %v4728 = vld [vmem:[%s27 + $0x7c] sm:$0xf]
      %v4761 = vunpack.c.l.b16 %v4697
      %v4762 = vunpack.c.l.b16 %v4698
      %v4763 = vunpack.c.l.b16 %v4699
      %v4764 = vunpack.c.l.b16 %v4700
      %v4765 = vunpack.c.l.b16 %v4701
      %v4766 = vunpack.c.l.b16 %v4702
      %v4767 = vunpack.c.l.b16 %v4703
      %v4768 = vunpack.c.l.b16 %v4704
      %v4769 = vunpack.c.l.b16 %v4705
      %v4770 = vunpack.c.l.b16 %v4706
      %v4771 = vunpack.c.l.b16 %v4707
      %v4772 = vunpack.c.l.b16 %v4708
      %v4773 = vunpack.c.l.b16 %v4709
      %v4774 = vunpack.c.l.b16 %v4710
      %v4775 = vunpack.c.l.b16 %v4711
      %v4776 = vunpack.c.l.b16 %v4712
      %v4777 = vunpack.c.l.b16 %v4713
      %v4778 = vunpack.c.l.b16 %v4714
      %v4779 = vunpack.c.l.b16 %v4715
      %v4780 = vunpack.c.l.b16 %v4716
      %v4781 = vunpack.c.l.b16 %v4717
      %v4782 = vunpack.c.l.b16 %v4718
      %v4783 = vunpack.c.l.b16 %v4719
      %v4784 = vunpack.c.l.b16 %v4720
      %v4785 = vunpack.c.l.b16 %v4721
      %v4786 = vunpack.c.l.b16 %v4722
      %v4787 = vunpack.c.l.b16 %v4723
      %v4788 = vunpack.c.l.b16 %v4724
      %v4789 = vunpack.c.l.b16 %v4725
      %v4790 = vunpack.c.l.b16 %v4726
      %v4791 = vunpack.c.l.b16 %v4727
      %v4792 = vunpack.c.l.b16 %v4728
      %v4793 = vpack.c.b16 %v4762, %v4761
      %v4794 = vpack.c.b16 %v4764, %v4763
      %v4795 = vpack.c.b16 %v4766, %v4765
      %v4796 = vpack.c.b16 %v4768, %v4767
      %v4797 = vpack.c.b16 %v4770, %v4769
      %v4798 = vpack.c.b16 %v4772, %v4771
      %v4799 = vpack.c.b16 %v4774, %v4773
      %v4800 = vpack.c.b16 %v4776, %v4775
      %v4801 = vpack.c.b16 %v4778, %v4777
      %v4802 = vpack.c.b16 %v4780, %v4779
      %v4803 = vpack.c.b16 %v4782, %v4781
      %v4804 = vpack.c.b16 %v4784, %v4783
      %v4805 = vpack.c.b16 %v4786, %v4785
      %v4806 = vpack.c.b16 %v4788, %v4787
      %v4807 = vpack.c.b16 %v4790, %v4789
      %v4808 = vpack.c.b16 %v4792, %v4791
      %4825 = vmatpush.bf16.msra.mxu0 %v4800
      %4826 = vmatpush.bf16.msra.mxu0 %v4799
      %4827 = vmatpush.bf16.msra.mxu0 %v4798
      %4828 = vmatpush.bf16.msra.mxu0 %v4797
      %4829 = vmatpush.bf16.msra.mxu0 %v4796
      %4830 = vmatpush.bf16.msra.mxu0 %v4795
      %4831 = vmatpush.bf16.msra.mxu0 %v4794
      %4832 = vmatpush.bf16.msra.mxu0 %v4793
      %4833 = vmatmul.bf16.gmra.mxu0 %v4681
      %v4834 = vpop.f32.mrf.mxu0
      %v4835 = vadd.f32 0.0, %v4834
      %v4836 = vpop.f32.mrf.mxu0
      %v4837 = vadd.f32 0.0, %v4836
      %4838 = vmatmul.bf16.gmra.mxu0 %v4683
      %v4839 = vpop.f32.mrf.mxu0
      %v4840 = vadd.f32 0.0, %v4839
      %v4841 = vpop.f32.mrf.mxu0
      %v4842 = vadd.f32 0.0, %v4841
      %4843 = vmatmul.bf16.gmra.mxu0 %v4685
      %v4844 = vpop.f32.mrf.mxu0
      %v4845 = vadd.f32 0.0, %v4844
      %v4846 = vpop.f32.mrf.mxu0
      %v4847 = vadd.f32 0.0, %v4846
      %4848 = vmatmul.bf16.gmra.mxu0 %v4687
      %v4849 = vpop.f32.mrf.mxu0
      %v4850 = vadd.f32 0.0, %v4849
      %v4851 = vpop.f32.mrf.mxu0
      %v4852 = vadd.f32 0.0, %v4851
      %4853 = vmatmul.bf16.gmra.mxu0 %v4689
      %v4854 = vpop.f32.mrf.mxu0
      %v4855 = vadd.f32 0.0, %v4854
      %v4856 = vpop.f32.mrf.mxu0
      %v4857 = vadd.f32 0.0, %v4856
      %4858 = vmatmul.bf16.gmra.mxu0 %v4691
      %v4859 = vpop.f32.mrf.mxu0
      %v4860 = vadd.f32 0.0, %v4859
      %v4861 = vpop.f32.mrf.mxu0
      %v4862 = vadd.f32 0.0, %v4861
      %4863 = vmatmul.bf16.gmra.mxu0 %v4693
      %v4864 = vpop.f32.mrf.mxu0
      %v4865 = vadd.f32 0.0, %v4864
      %v4866 = vpop.f32.mrf.mxu0
      %v4867 = vadd.f32 0.0, %v4866
      %4868 = vmatmul.bf16.gmra.mxu0 %v4695
      %v4869 = vpop.f32.mrf.mxu0
      %v4870 = vadd.f32 0.0, %v4869
      %v4871 = vpop.f32.mrf.mxu0
      %v4872 = vadd.f32 0.0, %v4871
      %4873 = vdwg.mxu0
      %4874 = vmatpush.bf16.msra.mxu0 %v4808
      %4875 = vmatpush.bf16.msra.mxu0 %v4807
      %4876 = vmatpush.bf16.msra.mxu0 %v4806
      %4877 = vmatpush.bf16.msra.mxu0 %v4805
      %4878 = vmatpush.bf16.msra.mxu0 %v4804
      %4879 = vmatpush.bf16.msra.mxu0 %v4803
      %4880 = vmatpush.bf16.msra.mxu0 %v4802
      %4881 = vmatpush.bf16.msra.mxu0 %v4801
      %4882 = vmatmul.bf16.gmra.mxu0 %v4682
      %v4883 = vpop.f32.mrf.mxu0
      %v4884 = vadd.f32 %v4835, %v4883
      %v4885 = vpop.f32.mrf.mxu0
      %v4886 = vadd.f32 %v4837, %v4885
      %4887 = vmatmul.bf16.gmra.mxu0 %v4684
      %v4888 = vpop.f32.mrf.mxu0
      %v4889 = vadd.f32 %v4840, %v4888
      %v4890 = vpop.f32.mrf.mxu0
      %v4891 = vadd.f32 %v4842, %v4890
      %4892 = vmatmul.bf16.gmra.mxu0 %v4686
      %v4893 = vpop.f32.mrf.mxu0
      %v4894 = vadd.f32 %v4845, %v4893
      %v4895 = vpop.f32.mrf.mxu0
      %v4896 = vadd.f32 %v4847, %v4895
      %4897 = vmatmul.bf16.gmra.mxu0 %v4688
      %v4898 = vpop.f32.mrf.mxu0
      %v4899 = vadd.f32 %v4850, %v4898
      %v4900 = vpop.f32.mrf.mxu0
      %v4901 = vadd.f32 %v4852, %v4900
      %4902 = vmatmul.bf16.gmra.mxu0 %v4690
      %v4903 = vpop.f32.mrf.mxu0
      %v4904 = vadd.f32 %v4855, %v4903
      %v4905 = vpop.f32.mrf.mxu0
      %v4906 = vadd.f32 %v4857, %v4905
      %4907 = vmatmul.bf16.gmra.mxu0 %v4692
      %v4908 = vpop.f32.mrf.mxu0
      %v4909 = vadd.f32 %v4860, %v4908
      %v4910 = vpop.f32.mrf.mxu0
      %v4911 = vadd.f32 %v4862, %v4910
      %4912 = vmatmul.bf16.gmra.mxu0 %v4694
      %v4913 = vpop.f32.mrf.mxu0
      %v4914 = vadd.f32 %v4865, %v4913
      %v4915 = vpop.f32.mrf.mxu0
      %v4916 = vadd.f32 %v4867, %v4915
      %4917 = vmatmul.bf16.gmra.mxu0 %v4696
      %v4918 = vpop.f32.mrf.mxu0
      %v4919 = vadd.f32 %v4870, %v4918
      %v4920 = vpop.f32.mrf.mxu0
      %v4921 = vadd.f32 %v4872, %v4920
      %4922 = vdwg.mxu0
      %v4923 = vadd.f32 %v3801, %v4884
      %v4924 = vadd.f32 %v3802, %v4886
      %v4925 = vadd.f32 %v3803, %v4889
      %v4926 = vadd.f32 %v3804, %v4891
      %v4927 = vadd.f32 %v3805, %v4894
      %v4928 = vadd.f32 %v3806, %v4896
      %v4929 = vadd.f32 %v3807, %v4899
      %v4930 = vadd.f32 %v3808, %v4901
      %v4931 = vadd.f32 %v3809, %v4904
      %v4932 = vadd.f32 %v3810, %v4906
      %v4933 = vadd.f32 %v3811, %v4909
      %v4934 = vadd.f32 %v3812, %v4911
      %v4935 = vadd.f32 %v3813, %v4914
      %v4936 = vadd.f32 %v3814, %v4916
      %v4937 = vadd.f32 %v3815, %v4919
      %v4938 = vadd.f32 %v3816, %v4921
      %v4939 = vld [vmem:[%s29] sm:$0x1]
      %v4941 = vperm.slane %v4939, 0
      %v4943 = vadd.f32 %v4923, %v4941
      %v4944 = vadd.f32 %v4924, %v4941
      %v4945 = vadd.f32 %v4925, %v4941
      %v4946 = vadd.f32 %v4926, %v4941
      %v4947 = vadd.f32 %v4927, %v4941
      %v4948 = vadd.f32 %v4928, %v4941
      %v4949 = vadd.f32 %v4929, %v4941
      %v4950 = vadd.f32 %v4930, %v4941
      %v4951 = vadd.f32 %v4931, %v4941
      %v4952 = vadd.f32 %v4932, %v4941
      %v4953 = vadd.f32 %v4933, %v4941
      %v4954 = vadd.f32 %v4934, %v4941
      %v4955 = vadd.f32 %v4935, %v4941
      %v4956 = vadd.f32 %v4936, %v4941
      %v4957 = vadd.f32 %v4937, %v4941
      %v4958 = vadd.f32 %v4938, %v4941
      %v4959 = vsel %vm1151, %v4943, -inf
      %v4960 = vsel %vm1151, %v4944, -inf
      %v4961 = vsel %vm1151, %v4945, -inf
      %v4962 = vsel %vm1151, %v4946, -inf
      %v4963 = vsel %vm1151, %v4947, -inf
      %v4964 = vmax.f32 %v4959, %v4963
      %v4965 = vsel %vm1151, %v4948, -inf
      %v4966 = vmax.f32 %v4960, %v4965
      %v4967 = vsel %vm1151, %v4949, -inf
      %v4968 = vmax.f32 %v4961, %v4967
      %v4969 = vsel %vm1151, %v4950, -inf
      %v4970 = vmax.f32 %v4962, %v4969
      %v4971 = vsel %vm1151, %v4951, -inf
      %v4972 = vmax.f32 %v4964, %v4971
      %v4973 = vsel %vm1151, %v4952, -inf
      %v4974 = vmax.f32 %v4966, %v4973
      %v4975 = vsel %vm1151, %v4953, -inf
      %v4976 = vmax.f32 %v4968, %v4975
      %v4977 = vsel %vm1151, %v4954, -inf
      %v4978 = vmax.f32 %v4970, %v4977
      %v4979 = vsel %vm1151, %v4955, -inf
      %v4980 = vmax.f32 %v4972, %v4979
      %v4981 = vsel %vm1151, %v4956, -inf
      %v4982 = vmax.f32 %v4974, %v4981
      %v4983 = vsel %vm1151, %v4957, -inf
      %v4984 = vmax.f32 %v4976, %v4983
      %v4985 = vsel %vm1151, %v4958, -inf
      %v4986 = vmax.f32 %v4978, %v4985
      %v4987 = vmax.f32 %v4980, %v4982
      %v4988 = vmax.f32 %v4984, %v4986
      %v4989 = vmax.f32 %v4987, %v4988
      %v4990 = vrot.slane %v4989, 4
      %v4991 = vmax.f32 %v4989, %v4990
      %v4992 = vrot.slane %v4991, 2
      %v4993 = vmax.f32 %v4991, %v4992
      %v4994 = vrot.slane %v4993, 1
      %v4995 = vmax.f32 %v4993, %v4994
      %v4996 = vsub.f32 %v4995, %v4943
      %v4997 = vsub.f32 %v4995, %v4944
      %v4998 = vsub.f32 %v4995, %v4945
      %v4999 = vsub.f32 %v4995, %v4946
      %v5000 = vsub.f32 %v4995, %v4947
      %v5001 = vsub.f32 %v4995, %v4948
      %v5002 = vsub.f32 %v4995, %v4949
      %v5003 = vsub.f32 %v4995, %v4950
      %v5004 = vsub.f32 %v4995, %v4951
      %v5005 = vsub.f32 %v4995, %v4952
      %v5006 = vsub.f32 %v4995, %v4953
      %v5007 = vsub.f32 %v4995, %v4954
      %v5008 = vsub.f32 %v4995, %v4955
      %v5009 = vsub.f32 %v4995, %v4956
      %v5010 = vsub.f32 %v4995, %v4957
      %v5011 = vsub.f32 %v4995, %v4958
      %v5012 = vpack.c.bf16 %v4997, %v4996
      %v5013 = vpack.c.bf16 %v4999, %v4998
      %v5014 = vpack.c.bf16 %v5001, %v5000
      %v5015 = vpack.c.bf16 %v5003, %v5002
      %v5016 = vpack.c.bf16 %v5005, %v5004
      %v5017 = vpack.c.bf16 %v5007, %v5006
      %v5018 = vpack.c.bf16 %v5009, %v5008
      %v5019 = vpack.c.bf16 %v5011, %v5010
      %v5020 = vld [vmem:[%s31] sm:$0xf]
      %v5021 = vld [vmem:[%s31 + $0x4] sm:$0xf]
      %v5022 = vld [vmem:[%s31 + $0x8] sm:$0xf]
      %v5023 = vld [vmem:[%s31 + $0xc] sm:$0xf]
      %v5024 = vld [vmem:[%s31 + $0x10] sm:$0xf]
      %v5025 = vld [vmem:[%s31 + $0x14] sm:$0xf]
      %v5026 = vld [vmem:[%s31 + $0x18] sm:$0xf]
      %v5027 = vld [vmem:[%s31 + $0x1c] sm:$0xf]
      %v5028 = vld [vmem:[%s31 + $0x20] sm:$0xf]
      %v5029 = vld [vmem:[%s31 + $0x24] sm:$0xf]
      %v5030 = vld [vmem:[%s31 + $0x28] sm:$0xf]
      %v5031 = vld [vmem:[%s31 + $0x2c] sm:$0xf]
      %v5032 = vld [vmem:[%s31 + $0x30] sm:$0xf]
      %v5033 = vld [vmem:[%s31 + $0x34] sm:$0xf]
      %v5034 = vld [vmem:[%s31 + $0x38] sm:$0xf]
      %v5035 = vld [vmem:[%s31 + $0x3c] sm:$0xf]
      %v5036 = vld [vmem:[%s31 + $0x40] sm:$0xf]
      %v5037 = vld [vmem:[%s31 + $0x44] sm:$0xf]
      %v5038 = vld [vmem:[%s31 + $0x48] sm:$0xf]
      %v5039 = vld [vmem:[%s31 + $0x4c] sm:$0xf]
      %v5040 = vld [vmem:[%s31 + $0x50] sm:$0xf]
      %v5041 = vld [vmem:[%s31 + $0x54] sm:$0xf]
      %v5042 = vld [vmem:[%s31 + $0x58] sm:$0xf]
      %v5043 = vld [vmem:[%s31 + $0x5c] sm:$0xf]
      %v5044 = vld [vmem:[%s31 + $0x60] sm:$0xf]
      %v5045 = vld [vmem:[%s31 + $0x64] sm:$0xf]
      %v5046 = vld [vmem:[%s31 + $0x68] sm:$0xf]
      %v5047 = vld [vmem:[%s31 + $0x6c] sm:$0xf]
      %v5048 = vld [vmem:[%s31 + $0x70] sm:$0xf]
      %v5049 = vld [vmem:[%s31 + $0x74] sm:$0xf]
      %v5050 = vld [vmem:[%s31 + $0x78] sm:$0xf]
      %v5051 = vld [vmem:[%s31 + $0x7c] sm:$0xf]
      %v5052 = vld [vmem:[%s33] sm:$0xff]
      %v5053 = vld [vmem:[%s33 + $0x8] sm:$0xff]
      %v5054 = vld [vmem:[%s33 + $0x10] sm:$0xff]
      %v5055 = vld [vmem:[%s33 + $0x18] sm:$0xff]
      %v5056 = vld [vmem:[%s33 + $0x20] sm:$0xff]
      %v5057 = vld [vmem:[%s33 + $0x28] sm:$0xff]
      %v5058 = vld [vmem:[%s33 + $0x30] sm:$0xff]
      %v5059 = vld [vmem:[%s33 + $0x38] sm:$0xff]
      %v5060 = vld [vmem:[%s33 + $0x40] sm:$0xff]
      %v5061 = vld [vmem:[%s33 + $0x48] sm:$0xff]
      %v5062 = vld [vmem:[%s33 + $0x50] sm:$0xff]
      %v5063 = vld [vmem:[%s33 + $0x58] sm:$0xff]
      %v5064 = vld [vmem:[%s33 + $0x60] sm:$0xff]
      %v5065 = vld [vmem:[%s33 + $0x68] sm:$0xff]
      %v5066 = vld [vmem:[%s33 + $0x70] sm:$0xff]
      %v5067 = vld [vmem:[%s33 + $0x78] sm:$0xff]
      %v5068 = vld [vmem:[%s33 + $0x80] sm:$0xff]
      %v5069 = vld [vmem:[%s33 + $0x88] sm:$0xff]
      %v5070 = vld [vmem:[%s33 + $0x90] sm:$0xff]
      %v5071 = vld [vmem:[%s33 + $0x98] sm:$0xff]
      %v5072 = vld [vmem:[%s33 + $0xa0] sm:$0xff]
      %v5073 = vld [vmem:[%s33 + $0xa8] sm:$0xff]
      %v5074 = vld [vmem:[%s33 + $0xb0] sm:$0xff]
      %v5075 = vld [vmem:[%s33 + $0xb8] sm:$0xff]
      %v5076 = vld [vmem:[%s33 + $0xc0] sm:$0xff]
      %v5077 = vld [vmem:[%s33 + $0xc8] sm:$0xff]
      %v5078 = vld [vmem:[%s33 + $0xd0] sm:$0xff]
      %v5079 = vld [vmem:[%s33 + $0xd8] sm:$0xff]
      %v5080 = vld [vmem:[%s33 + $0xe0] sm:$0xff]
      %v5081 = vld [vmem:[%s33 + $0xe8] sm:$0xff]
      %v5082 = vld [vmem:[%s33 + $0xf0] sm:$0xff]
      %v5083 = vld [vmem:[%s33 + $0xf8] sm:$0xff]
      %5085 = vset.pattern.permute.xlu0 0
      %5086 = vperm.xlu0 %5085, %v5052
      %v5087 = vpop.permute.xlu0 %5086
      %5090 = vset.pattern.permute.xlu0 0
      %5091 = vperm.xlu0 %5090, %v5053
      %v5092 = vpop.permute.xlu0 %5091
      %5095 = vset.pattern.permute.xlu0 0
      %5096 = vperm.xlu0 %5095, %v5054
      %v5097 = vpop.permute.xlu0 %5096
      %5100 = vset.pattern.permute.xlu0 0
      %5101 = vperm.xlu0 %5100, %v5055
      %v5102 = vpop.permute.xlu0 %5101
      %5105 = vset.pattern.permute.xlu0 0
      %5106 = vperm.xlu0 %5105, %v5056
      %v5107 = vpop.permute.xlu0 %5106
      %5110 = vset.pattern.permute.xlu0 0
      %5111 = vperm.xlu0 %5110, %v5057
      %v5112 = vpop.permute.xlu0 %5111
      %5115 = vset.pattern.permute.xlu0 0
      %5116 = vperm.xlu0 %5115, %v5058
      %v5117 = vpop.permute.xlu0 %5116
      %5120 = vset.pattern.permute.xlu0 0
      %5121 = vperm.xlu0 %5120, %v5059
      %v5122 = vpop.permute.xlu0 %5121
      %5125 = vset.pattern.permute.xlu0 0
      %5126 = vperm.xlu0 %5125, %v5060
      %v5127 = vpop.permute.xlu0 %5126
      %5130 = vset.pattern.permute.xlu0 0
      %5131 = vperm.xlu0 %5130, %v5061
      %v5132 = vpop.permute.xlu0 %5131
      %5135 = vset.pattern.permute.xlu0 0
      %5136 = vperm.xlu0 %5135, %v5062
      %v5137 = vpop.permute.xlu0 %5136
      %5140 = vset.pattern.permute.xlu0 0
      %5141 = vperm.xlu0 %5140, %v5063
      %v5142 = vpop.permute.xlu0 %5141
      %5145 = vset.pattern.permute.xlu0 0
      %5146 = vperm.xlu0 %5145, %v5064
      %v5147 = vpop.permute.xlu0 %5146
      %5150 = vset.pattern.permute.xlu0 0
      %5151 = vperm.xlu0 %5150, %v5065
      %v5152 = vpop.permute.xlu0 %5151
      %5155 = vset.pattern.permute.xlu0 0
      %5156 = vperm.xlu0 %5155, %v5066
      %v5157 = vpop.permute.xlu0 %5156
      %5160 = vset.pattern.permute.xlu0 0
      %5161 = vperm.xlu0 %5160, %v5067
      %v5162 = vpop.permute.xlu0 %5161
      %5165 = vset.pattern.permute.xlu0 0
      %5166 = vperm.xlu0 %5165, %v5068
      %v5167 = vpop.permute.xlu0 %5166
      %5170 = vset.pattern.permute.xlu0 0
      %5171 = vperm.xlu0 %5170, %v5069
      %v5172 = vpop.permute.xlu0 %5171
      %5175 = vset.pattern.permute.xlu0 0
      %5176 = vperm.xlu0 %5175, %v5070
      %v5177 = vpop.permute.xlu0 %5176
      %5180 = vset.pattern.permute.xlu0 0
      %5181 = vperm.xlu0 %5180, %v5071
      %v5182 = vpop.permute.xlu0 %5181
      %5185 = vset.pattern.permute.xlu0 0
      %5186 = vperm.xlu0 %5185, %v5072
      %v5187 = vpop.permute.xlu0 %5186
      %5190 = vset.pattern.permute.xlu0 0
      %5191 = vperm.xlu0 %5190, %v5073
      %v5192 = vpop.permute.xlu0 %5191
      %5195 = vset.pattern.permute.xlu0 0
      %5196 = vperm.xlu0 %5195, %v5074
      %v5197 = vpop.permute.xlu0 %5196
      %5200 = vset.pattern.permute.xlu0 0
      %5201 = vperm.xlu0 %5200, %v5075
      %v5202 = vpop.permute.xlu0 %5201
      %5205 = vset.pattern.permute.xlu0 0
      %5206 = vperm.xlu0 %5205, %v5076
      %v5207 = vpop.permute.xlu0 %5206
      %5210 = vset.pattern.permute.xlu0 0
      %5211 = vperm.xlu0 %5210, %v5077
      %v5212 = vpop.permute.xlu0 %5211
      %5215 = vset.pattern.permute.xlu0 0
      %5216 = vperm.xlu0 %5215, %v5078
      %v5217 = vpop.permute.xlu0 %5216
      %5220 = vset.pattern.permute.xlu0 0
      %5221 = vperm.xlu0 %5220, %v5079
      %v5222 = vpop.permute.xlu0 %5221
      %5225 = vset.pattern.permute.xlu0 0
      %5226 = vperm.xlu0 %5225, %v5080
      %v5227 = vpop.permute.xlu0 %5226
      %5230 = vset.pattern.permute.xlu0 0
      %5231 = vperm.xlu0 %5230, %v5081
      %v5232 = vpop.permute.xlu0 %5231
      %5235 = vset.pattern.permute.xlu0 0
      %5236 = vperm.xlu0 %5235, %v5082
      %v5237 = vpop.permute.xlu0 %5236
      %5240 = vset.pattern.permute.xlu0 0
      %5241 = vperm.xlu0 %5240, %v5083
      %v5242 = vpop.permute.xlu0 %5241
      %v5276 = vunpack.c.l.b16 %v5020
      %v5277 = vunpack.c.l.b16 %v5021
      %v5278 = vunpack.c.l.b16 %v5022
      %v5279 = vunpack.c.l.b16 %v5023
      %v5280 = vunpack.c.l.b16 %v5024
      %v5281 = vunpack.c.l.b16 %v5025
      %v5282 = vunpack.c.l.b16 %v5026
      %v5283 = vunpack.c.l.b16 %v5027
      %v5284 = vunpack.c.l.b16 %v5028
      %v5285 = vunpack.c.l.b16 %v5029
      %v5286 = vunpack.c.l.b16 %v5030
      %v5287 = vunpack.c.l.b16 %v5031
      %v5288 = vunpack.c.l.b16 %v5032
      %v5289 = vunpack.c.l.b16 %v5033
      %v5290 = vunpack.c.l.b16 %v5034
      %v5291 = vunpack.c.l.b16 %v5035
      %v5292 = vunpack.c.l.b16 %v5036
      %v5293 = vunpack.c.l.b16 %v5037
      %v5294 = vunpack.c.l.b16 %v5038
      %v5295 = vunpack.c.l.b16 %v5039
      %v5296 = vunpack.c.l.b16 %v5040
      %v5297 = vunpack.c.l.b16 %v5041
      %v5298 = vunpack.c.l.b16 %v5042
      %v5299 = vunpack.c.l.b16 %v5043
      %v5300 = vunpack.c.l.b16 %v5044
      %v5301 = vunpack.c.l.b16 %v5045
      %v5302 = vunpack.c.l.b16 %v5046
      %v5303 = vunpack.c.l.b16 %v5047
      %v5304 = vunpack.c.l.b16 %v5048
      %v5305 = vunpack.c.l.b16 %v5049
      %v5306 = vunpack.c.l.b16 %v5050
      %v5307 = vunpack.c.l.b16 %v5051
      %v5308 = vpack.c.b16 %v5277, %v5276
      %v5309 = vpack.c.b16 %v5279, %v5278
      %v5310 = vpack.c.b16 %v5281, %v5280
      %v5311 = vpack.c.b16 %v5283, %v5282
      %v5312 = vpack.c.b16 %v5285, %v5284
      %v5313 = vpack.c.b16 %v5287, %v5286
      %v5314 = vpack.c.b16 %v5289, %v5288
      %v5315 = vpack.c.b16 %v5291, %v5290
      %v5316 = vpack.c.b16 %v5293, %v5292
      %v5317 = vpack.c.b16 %v5295, %v5294
      %v5318 = vpack.c.b16 %v5297, %v5296
      %v5319 = vpack.c.b16 %v5299, %v5298
      %v5320 = vpack.c.b16 %v5301, %v5300
      %v5321 = vpack.c.b16 %v5303, %v5302
      %v5322 = vpack.c.b16 %v5305, %v5304
      %v5323 = vpack.c.b16 %v5307, %v5306
      %5340 = vmatpush.bf16.msra.mxu0 %v5019
      %5341 = vmatpush.bf16.msra.mxu0 %v5018
      %5342 = vmatpush.bf16.msra.mxu0 %v5017
      %5343 = vmatpush.bf16.msra.mxu0 %v5016
      %5344 = vmatpush.bf16.msra.mxu0 %v5015
      %5345 = vmatpush.bf16.msra.mxu0 %v5014
      %5346 = vmatpush.bf16.msra.mxu0 %v5013
      %5347 = vmatpush.bf16.msra.mxu0 %v5012
      %5348 = vmatmul.bf16.gmra.mxu0 %v5308
      %v5349 = vpop.f32.mrf.mxu0
      %v5350 = vadd.f32 %v5087, %v5349
      %v5351 = vpop.f32.mrf.mxu0
      %v5352 = vadd.f32 %v5092, %v5351
      %5353 = vmatmul.bf16.gmra.mxu0 %v5309
      %v5354 = vpop.f32.mrf.mxu0
      %v5355 = vadd.f32 %v5097, %v5354
      %v5356 = vpop.f32.mrf.mxu0
      %v5357 = vadd.f32 %v5102, %v5356
      %5358 = vmatmul.bf16.gmra.mxu0 %v5310
      %v5359 = vpop.f32.mrf.mxu0
      %v5360 = vadd.f32 %v5107, %v5359
      %v5361 = vpop.f32.mrf.mxu0
      %v5362 = vadd.f32 %v5112, %v5361
      %5363 = vmatmul.bf16.gmra.mxu0 %v5311
      %v5364 = vpop.f32.mrf.mxu0
      %v5365 = vadd.f32 %v5117, %v5364
      %v5366 = vpop.f32.mrf.mxu0
      %v5367 = vadd.f32 %v5122, %v5366
      %5368 = vmatmul.bf16.gmra.mxu0 %v5312
      %v5369 = vpop.f32.mrf.mxu0
      %v5370 = vadd.f32 %v5127, %v5369
      %v5371 = vpop.f32.mrf.mxu0
      %v5372 = vadd.f32 %v5132, %v5371
      %5373 = vmatmul.bf16.gmra.mxu0 %v5313
      %v5374 = vpop.f32.mrf.mxu0
      %v5375 = vadd.f32 %v5137, %v5374
      %v5376 = vpop.f32.mrf.mxu0
      %v5377 = vadd.f32 %v5142, %v5376
      %5378 = vmatmul.bf16.gmra.mxu0 %v5314
      %v5379 = vpop.f32.mrf.mxu0
      %v5380 = vadd.f32 %v5147, %v5379
      %v5381 = vpop.f32.mrf.mxu0
      %v5382 = vadd.f32 %v5152, %v5381
      %5383 = vmatmul.bf16.gmra.mxu0 %v5315
      %v5384 = vpop.f32.mrf.mxu0
      %v5385 = vadd.f32 %v5157, %v5384
      %v5386 = vpop.f32.mrf.mxu0
      %v5387 = vadd.f32 %v5162, %v5386
      %5388 = vmatmul.bf16.gmra.mxu0 %v5316
      %v5389 = vpop.f32.mrf.mxu0
      %v5390 = vadd.f32 %v5167, %v5389
      %v5391 = vpop.f32.mrf.mxu0
      %v5392 = vadd.f32 %v5172, %v5391
      %5393 = vmatmul.bf16.gmra.mxu0 %v5317
      %v5394 = vpop.f32.mrf.mxu0
      %v5395 = vadd.f32 %v5177, %v5394
      %v5396 = vpop.f32.mrf.mxu0
      %v5397 = vadd.f32 %v5182, %v5396
      %5398 = vmatmul.bf16.gmra.mxu0 %v5318
      %v5399 = vpop.f32.mrf.mxu0
      %v5400 = vadd.f32 %v5187, %v5399
      %v5401 = vpop.f32.mrf.mxu0
      %v5402 = vadd.f32 %v5192, %v5401
      %5403 = vmatmul.bf16.gmra.mxu0 %v5319
      %v5404 = vpop.f32.mrf.mxu0
      %v5405 = vadd.f32 %v5197, %v5404
      %v5406 = vpop.f32.mrf.mxu0
      %v5407 = vadd.f32 %v5202, %v5406
      %5408 = vmatmul.bf16.gmra.mxu0 %v5320
      %v5409 = vpop.f32.mrf.mxu0
      %v5410 = vadd.f32 %v5207, %v5409
      %v5411 = vpop.f32.mrf.mxu0
      %v5412 = vadd.f32 %v5212, %v5411
      %5413 = vmatmul.bf16.gmra.mxu0 %v5321
      %v5414 = vpop.f32.mrf.mxu0
      %v5415 = vadd.f32 %v5217, %v5414
      %v5416 = vpop.f32.mrf.mxu0
      %v5417 = vadd.f32 %v5222, %v5416
      %5418 = vmatmul.bf16.gmra.mxu0 %v5322
      %v5419 = vpop.f32.mrf.mxu0
      %v5420 = vadd.f32 %v5227, %v5419
      %v5421 = vpop.f32.mrf.mxu0
      %v5422 = vadd.f32 %v5232, %v5421
      %5423 = vmatmul.bf16.gmra.mxu0 %v5323
      %v5424 = vpop.f32.mrf.mxu0
      %v5425 = vadd.f32 %v5237, %v5424
      %v5426 = vpop.f32.mrf.mxu0
      %v5427 = vadd.f32 %v5242, %v5426
      %5428 = vdwg.mxu0
      %v5429 = vmul.f32 %v5350, 0.2
      %v5430 = vmul.f32 %v5352, 0.2
      %v5431 = vmul.f32 %v5355, 0.2
      %v5432 = vmul.f32 %v5357, 0.2
      %v5433 = vmul.f32 %v5360, 0.2
      %v5434 = vmul.f32 %v5362, 0.2
      %v5435 = vmul.f32 %v5365, 0.2
      %v5436 = vmul.f32 %v5367, 0.2
      %v5437 = vmul.f32 %v5370, 0.2
      %v5438 = vmul.f32 %v5372, 0.2
      %v5439 = vmul.f32 %v5375, 0.2
      %v5440 = vmul.f32 %v5377, 0.2
      %v5441 = vmul.f32 %v5380, 0.2
      %v5442 = vmul.f32 %v5382, 0.2
      %v5443 = vmul.f32 %v5385, 0.2
      %v5444 = vmul.f32 %v5387, 0.2
      %v5445 = vmul.f32 %v5390, 0.2
      %v5446 = vmul.f32 %v5392, 0.2
      %v5447 = vmul.f32 %v5395, 0.2
      %v5448 = vmul.f32 %v5397, 0.2
      %v5449 = vmul.f32 %v5400, 0.2
      %v5450 = vmul.f32 %v5402, 0.2
      %v5451 = vmul.f32 %v5405, 0.2
      %v5452 = vmul.f32 %v5407, 0.2
      %v5453 = vmul.f32 %v5410, 0.2
      %v5454 = vmul.f32 %v5412, 0.2
      %v5455 = vmul.f32 %v5415, 0.2
      %v5456 = vmul.f32 %v5417, 0.2
      %v5457 = vmul.f32 %v5420, 0.2
      %v5458 = vmul.f32 %v5422, 0.2
      %v5459 = vmul.f32 %v5425, 0.2
      %v5460 = vmul.f32 %v5427, 0.2
      %v5461 = vmax.f32 %v5350, %v5429
      %v5462 = vmax.f32 %v5352, %v5430
      %v5463 = vmax.f32 %v5355, %v5431
      %v5464 = vmax.f32 %v5357, %v5432
      %v5465 = vmax.f32 %v5360, %v5433
      %v5466 = vmax.f32 %v5362, %v5434
      %v5467 = vmax.f32 %v5365, %v5435
      %v5468 = vmax.f32 %v5367, %v5436
      %v5469 = vmax.f32 %v5370, %v5437
      %v5470 = vmax.f32 %v5372, %v5438
      %v5471 = vmax.f32 %v5375, %v5439
      %v5472 = vmax.f32 %v5377, %v5440
      %v5473 = vmax.f32 %v5380, %v5441
      %v5474 = vmax.f32 %v5382, %v5442
      %v5475 = vmax.f32 %v5385, %v5443
      %v5476 = vmax.f32 %v5387, %v5444
      %v5477 = vmax.f32 %v5390, %v5445
      %v5478 = vmax.f32 %v5392, %v5446
      %v5479 = vmax.f32 %v5395, %v5447
      %v5480 = vmax.f32 %v5397, %v5448
      %v5481 = vmax.f32 %v5400, %v5449
      %v5482 = vmax.f32 %v5402, %v5450
      %v5483 = vmax.f32 %v5405, %v5451
      %v5484 = vmax.f32 %v5407, %v5452
      %v5485 = vmax.f32 %v5410, %v5453
      %v5486 = vmax.f32 %v5412, %v5454
      %v5487 = vmax.f32 %v5415, %v5455
      %v5488 = vmax.f32 %v5417, %v5456
      %v5489 = vmax.f32 %v5420, %v5457
      %v5490 = vmax.f32 %v5422, %v5458
      %v5491 = vmax.f32 %v5425, %v5459
      %v5492 = vmax.f32 %v5427, %v5460
      %v5493 = vld [vmem:[%s35] sm:$0xff]
      %v5494 = vld [vmem:[%s35 + $0x8] sm:$0xff]
      %v5495 = vld [vmem:[%s35 + $0x10] sm:$0xff]
      %v5496 = vld [vmem:[%s35 + $0x18] sm:$0xff]
      %v5497 = vld [vmem:[%s35 + $0x20] sm:$0xff]
      %v5498 = vld [vmem:[%s35 + $0x28] sm:$0xff]
      %v5499 = vld [vmem:[%s35 + $0x30] sm:$0xff]
      %v5500 = vld [vmem:[%s35 + $0x38] sm:$0xff]
      %v5501 = vpack.c.bf16 %v5462, %v5461
      %v5502 = vpack.c.bf16 %v5464, %v5463
      %v5503 = vpack.c.bf16 %v5466, %v5465
      %v5504 = vpack.c.bf16 %v5468, %v5467
      %v5505 = vpack.c.bf16 %v5470, %v5469
      %v5506 = vpack.c.bf16 %v5472, %v5471
      %v5507 = vpack.c.bf16 %v5474, %v5473
      %v5508 = vpack.c.bf16 %v5476, %v5475
      %v5509 = vpack.c.bf16 %v5478, %v5477
      %v5510 = vpack.c.bf16 %v5480, %v5479
      %v5511 = vpack.c.bf16 %v5482, %v5481
      %v5512 = vpack.c.bf16 %v5484, %v5483
      %v5513 = vpack.c.bf16 %v5486, %v5485
      %v5514 = vpack.c.bf16 %v5488, %v5487
      %v5515 = vpack.c.bf16 %v5490, %v5489
      %v5516 = vpack.c.bf16 %v5492, %v5491
      %v5517 = vld [vmem:[%s37] sm:$0xff]
      %v5518 = vld [vmem:[%s37 + $0x8] sm:$0xff]
      %v5519 = vld [vmem:[%s37 + $0x10] sm:$0xff]
      %v5520 = vld [vmem:[%s37 + $0x18] sm:$0xff]
      %v5521 = vld [vmem:[%s37 + $0x20] sm:$0xff]
      %v5522 = vld [vmem:[%s37 + $0x28] sm:$0xff]
      %v5523 = vld [vmem:[%s37 + $0x30] sm:$0xff]
      %v5524 = vld [vmem:[%s37 + $0x38] sm:$0xff]
      %5526 = vset.pattern.permute.xlu0 0
      %5527 = vperm.xlu0 %5526, %v5517
      %v5528 = vpop.permute.xlu0 %5527
      %5531 = vset.pattern.permute.xlu0 0
      %5532 = vperm.xlu0 %5531, %v5518
      %v5533 = vpop.permute.xlu0 %5532
      %5536 = vset.pattern.permute.xlu0 0
      %5537 = vperm.xlu0 %5536, %v5519
      %v5538 = vpop.permute.xlu0 %5537
      %5541 = vset.pattern.permute.xlu0 0
      %5542 = vperm.xlu0 %5541, %v5520
      %v5543 = vpop.permute.xlu0 %5542
      %5546 = vset.pattern.permute.xlu0 0
      %5547 = vperm.xlu0 %5546, %v5521
      %v5548 = vpop.permute.xlu0 %5547
      %5551 = vset.pattern.permute.xlu0 0
      %5552 = vperm.xlu0 %5551, %v5522
      %v5553 = vpop.permute.xlu0 %5552
      %5556 = vset.pattern.permute.xlu0 0
      %5557 = vperm.xlu0 %5556, %v5523
      %v5558 = vpop.permute.xlu0 %5557
      %5561 = vset.pattern.permute.xlu0 0
      %5562 = vperm.xlu0 %5561, %v5524
      %v5563 = vpop.permute.xlu0 %5562
      %v5573 = vunpack.c.l.b16 %v5493
      %v5574 = vunpack.c.h.b16 %v5493
      %v5575 = vunpack.c.l.b16 %v5494
      %v5576 = vunpack.c.h.b16 %v5494
      %v5577 = vunpack.c.l.b16 %v5495
      %v5578 = vunpack.c.h.b16 %v5495
      %v5579 = vunpack.c.l.b16 %v5496
      %v5580 = vunpack.c.h.b16 %v5496
      %v5581 = vunpack.c.l.b16 %v5497
      %v5582 = vunpack.c.h.b16 %v5497
      %v5583 = vunpack.c.l.b16 %v5498
      %v5584 = vunpack.c.h.b16 %v5498
      %v5585 = vunpack.c.l.b16 %v5499
      %v5586 = vunpack.c.h.b16 %v5499
      %v5587 = vunpack.c.l.b16 %v5500
      %v5588 = vunpack.c.h.b16 %v5500
      %v5589 = vpack.c.b16 %v5575, %v5573
      %v5590 = vpack.c.b16 %v5576, %v5574
      %v5591 = vpack.c.b16 %v5579, %v5577
      %v5592 = vpack.c.b16 %v5580, %v5578
      %v5593 = vpack.c.b16 %v5583, %v5581
      %v5594 = vpack.c.b16 %v5584, %v5582
      %v5595 = vpack.c.b16 %v5587, %v5585
      %v5596 = vpack.c.b16 %v5588, %v5586
      %5605 = vmatpush.bf16.msra.mxu0 %v5508
      %5606 = vmatpush.bf16.msra.mxu0 %v5507
      %5607 = vmatpush.bf16.msra.mxu0 %v5506
      %5608 = vmatpush.bf16.msra.mxu0 %v5505
      %5609 = vmatpush.bf16.msra.mxu0 %v5504
      %5610 = vmatpush.bf16.msra.mxu0 %v5503
      %5611 = vmatpush.bf16.msra.mxu0 %v5502
      %5612 = vmatpush.bf16.msra.mxu0 %v5501
      %5613 = vmatmul.bf16.gmra.mxu0 %v5589
      %v5614 = vpop.f32.mrf.mxu0
      %v5615 = vadd.f32 %v5528, %v5614
      %v5616 = vpop.f32.mrf.mxu0
      %v5617 = vadd.f32 %v5533, %v5616
      %5618 = vmatmul.bf16.gmra.mxu0 %v5591
      %v5619 = vpop.f32.mrf.mxu0
      %v5620 = vadd.f32 %v5538, %v5619
      %v5621 = vpop.f32.mrf.mxu0
      %v5622 = vadd.f32 %v5543, %v5621
      %5623 = vmatmul.bf16.gmra.mxu0 %v5593
      %v5624 = vpop.f32.mrf.mxu0
      %v5625 = vadd.f32 %v5548, %v5624
      %v5626 = vpop.f32.mrf.mxu0
      %v5627 = vadd.f32 %v5553, %v5626
      %5628 = vmatmul.bf16.gmra.mxu0 %v5595
      %v5629 = vpop.f32.mrf.mxu0
      %v5630 = vadd.f32 %v5558, %v5629
      %v5631 = vpop.f32.mrf.mxu0
      %v5632 = vadd.f32 %v5563, %v5631
      %5633 = vdwg.mxu0
      %5634 = vmatpush.bf16.msra.mxu0 %v5516
      %5635 = vmatpush.bf16.msra.mxu0 %v5515
      %5636 = vmatpush.bf16.msra.mxu0 %v5514
      %5637 = vmatpush.bf16.msra.mxu0 %v5513
      %5638 = vmatpush.bf16.msra.mxu0 %v5512
      %5639 = vmatpush.bf16.msra.mxu0 %v5511
      %5640 = vmatpush.bf16.msra.mxu0 %v5510
      %5641 = vmatpush.bf16.msra.mxu0 %v5509
      %5642 = vmatmul.bf16.gmra.mxu0 %v5590
      %v5643 = vpop.f32.mrf.mxu0
      %v5644 = vadd.f32 %v5615, %v5643
      %v5645 = vpop.f32.mrf.mxu0
      %v5646 = vadd.f32 %v5617, %v5645
      %5647 = vmatmul.bf16.gmra.mxu0 %v5592
      %v5648 = vpop.f32.mrf.mxu0
      %v5649 = vadd.f32 %v5620, %v5648
      %v5650 = vpop.f32.mrf.mxu0
      %v5651 = vadd.f32 %v5622, %v5650
      %5652 = vmatmul.bf16.gmra.mxu0 %v5594
      %v5653 = vpop.f32.mrf.mxu0
      %v5654 = vadd.f32 %v5625, %v5653
      %v5655 = vpop.f32.mrf.mxu0
      %v5656 = vadd.f32 %v5627, %v5655
      %5657 = vmatmul.bf16.gmra.mxu0 %v5596
      %v5658 = vpop.f32.mrf.mxu0
      %v5659 = vadd.f32 %v5630, %v5658
      %v5660 = vpop.f32.mrf.mxu0
      %v5661 = vadd.f32 %v5632, %v5660
      %5662 = vdwg.mxu0
      %v5663 = vmul.f32 %v5644, 0.2
      %v5664 = vmul.f32 %v5646, 0.2
      %v5665 = vmul.f32 %v5649, 0.2
      %v5666 = vmul.f32 %v5651, 0.2
      %v5667 = vmul.f32 %v5654, 0.2
      %v5668 = vmul.f32 %v5656, 0.2
      %v5669 = vmul.f32 %v5659, 0.2
      %v5670 = vmul.f32 %v5661, 0.2
      %v5671 = vmax.f32 %v5644, %v5663
      %v5672 = vmax.f32 %v5646, %v5664
      %v5673 = vmax.f32 %v5649, %v5665
      %v5674 = vmax.f32 %v5651, %v5666
      %v5675 = vmax.f32 %v5654, %v5667
      %v5676 = vmax.f32 %v5656, %v5668
      %v5677 = vmax.f32 %v5659, %v5669
      %v5678 = vmax.f32 %v5661, %v5670
      %v5679 = vld [vmem:[%s39] sm:$0xf]
      %v5680 = vld [vmem:[%s39 + $0x4] sm:$0xf]
      %v5681 = vpack.c.bf16 %v5672, %v5671
      %v5682 = vpack.c.bf16 %v5674, %v5673
      %v5683 = vpack.c.bf16 %v5676, %v5675
      %v5684 = vpack.c.bf16 %v5678, %v5677
      %v5685 = vld [vmem:[%s41] sm:$0xff]
      %v5686 = vld [vmem:[%s41 + $0x8] sm:$0xff]
      %5688 = vset.pattern.permute.xlu0 0
      %5689 = vperm.xlu0 %5688, %v5685
      %v5690 = vpop.permute.xlu0 %5689
      %5693 = vset.pattern.permute.xlu0 0
      %5694 = vperm.xlu0 %5693, %v5686
      %v5695 = vpop.permute.xlu0 %5694
      %v5699 = vunpack.c.l.b16 %v5679
      %v5700 = vunpack.c.l.b16 %v5680
      %v5701 = vpack.c.b16 %v5700, %v5699
      %v5703 = vsel %vm1151, %v5701, 0
      %5705 = vmatpush.bf16.msra.mxu0 0
      %5706 = vmatpush.bf16.msra.mxu0 0
      %5707 = vmatpush.bf16.msra.mxu0 0
      %5708 = vmatpush.bf16.msra.mxu0 0
      %5709 = vmatpush.bf16.msra.mxu0 %v5684
      %5710 = vmatpush.bf16.msra.mxu0 %v5683
      %5711 = vmatpush.bf16.msra.mxu0 %v5682
      %5712 = vmatpush.bf16.msra.mxu0 %v5681
      %5713 = vmatmul.bf16.gmra.mxu0 %v5703
      %v5714 = vpop.f32.mrf.mxu0
      %v5715 = vadd.f32 %v5690, %v5714
      %v5716 = vpop.f32.mrf.mxu0
      %v5717 = vadd.f32 %v5695, %v5716
      %5718 = vdwg.mxu0
      %v5719 = vpack.c.bf16 %v5717, %v5715
      %v5720 = vpack.c.bf16 %v4944, %v4943
      %v5721 = vpack.c.bf16 %v4946, %v4945
      %v5722 = vpack.c.bf16 %v4948, %v4947
      %v5723 = vpack.c.bf16 %v4950, %v4949
      %v5724 = vpack.c.bf16 %v4952, %v4951
      %v5725 = vpack.c.bf16 %v4954, %v4953
      %v5726 = vpack.c.bf16 %v4956, %v4955
      %v5727 = vpack.c.bf16 %v4958, %v4957
      %v5729 = vsel %vm1151, %v5719, 0
      %v5732 = vsel %vm1151, %v5720, 0
      %v5735 = vsel %vm1151, %v5721, 0
      %v5738 = vsel %vm1151, %v5722, 0
      %v5741 = vsel %vm1151, %v5723, 0
      %v5744 = vsel %vm1151, %v5724, 0
      %v5747 = vsel %vm1151, %v5725, 0
      %v5750 = vsel %vm1151, %v5726, 0
      %v5753 = vsel %vm1151, %v5727, 0
      %5755 = vmatpush.bf16.xpose.msra.mxu0 %v5753
      %5756 = vmatpush.bf16.xpose.msra.mxu0 %v5750
      %5757 = vmatpush.bf16.xpose.msra.mxu0 %v5747
      %5758 = vmatpush.bf16.xpose.msra.mxu0 %v5744
      %5759 = vmatpush.bf16.xpose.msra.mxu0 %v5741
      %5760 = vmatpush.bf16.xpose.msra.mxu0 %v5738
      %5761 = vmatpush.bf16.xpose.msra.mxu0 %v5735
      %5762 = vmatpush.bf16.xpose.msra.mxu0 %v5732
      %5763 = vmatmul.bf16.gmra.mxu0 %v5729
      %v5764 = vpop.f32.mrf.mxu0
      %v5765 = vadd.f32 0.0, %v5764
      %v5766 = vpop.f32.mrf.mxu0
      %v5767 = vadd.f32 0.0, %v5766
      %5768 = vdwg.mxu0
      %v5769 = vmul.f32 %v5765, 0.125
      %v5770 = vmul.f32 %v5767, 0.125
      %5771 = vmax.xlane.f32.xlu0 %v5769
      %v5772 = vpop.xlane.xlu0 %5771
      %5773 = vmax.xlane.f32.xlu0 %v5770
      %v5774 = vpop.xlane.xlu0 %5773
      %v5775 = vsub.f32 %v5769, %v5772
      %v5776 = vsub.f32 %v5770, %v5774
      %v5777 = vmul.f32 %v5775, 1.442695
      %v5778 = vpow.pop %v5777
      %v5779 = vmul.f32 %v5776, 1.442695
      %v5780 = vpow.pop %v5779
      %5781 = vadd.xlane.f32.xlu0 %v5778
      %v5782 = vpop.xlane.xlu0 %5781
      %5783 = vadd.xlane.f32.xlu0 %v5780
      %v5784 = vpop.xlane.xlu0 %5783
      %v5785 = vrcp.pop %v5782
      %v5786 = vrcp.pop %v5784
      %v5787 = vmul.f32 %v5778, %v5785
      %v5788 = vmul.f32 %v5780, %v5786
      %v5789 = vld [vmem:[%s1121] sm:$0xff]
      %v5790 = vld [vmem:[%s1121 + $0x8] sm:$0xff]
      %v5791 = vld [vmem:[%s1121 + $0x10] sm:$0xff]
      %v5792 = vld [vmem:[%s1121 + $0x18] sm:$0xff]
      %v5793 = vld [vmem:[%s1121 + $0x20] sm:$0xff]
      %v5794 = vld [vmem:[%s1121 + $0x28] sm:$0xff]
      %v5795 = vld [vmem:[%s1121 + $0x30] sm:$0xff]
      %v5796 = vld [vmem:[%s1121 + $0x38] sm:$0xff]
      %v5797 = vld [vmem:[%s1121 + $0x40] sm:$0xff]
      %v5798 = vld [vmem:[%s1121 + $0x48] sm:$0xff]
      %v5799 = vld [vmem:[%s1121 + $0x50] sm:$0xff]
      %v5800 = vld [vmem:[%s1121 + $0x58] sm:$0xff]
      %v5801 = vld [vmem:[%s1121 + $0x60] sm:$0xff]
      %v5802 = vld [vmem:[%s1121 + $0x68] sm:$0xff]
      %v5803 = vld [vmem:[%s1121 + $0x70] sm:$0xff]
      %v5804 = vld [vmem:[%s1121 + $0x78] sm:$0xff]
      %5805 = vmatpush.msra.mxu0 %v5804
      %5806 = vmatpush.msra.mxu0 %v5803
      %5807 = vmatpush.msra.mxu0 %v5802
      %5808 = vmatpush.msra.mxu0 %v5801
      %5809 = vmatpush.msra.mxu0 %v5800
      %5810 = vmatpush.msra.mxu0 %v5799
      %5811 = vmatpush.msra.mxu0 %v5798
      %5812 = vmatpush.msra.mxu0 %v5797
      %5813 = vmatpush.msra.mxu0 %v5796
      %5814 = vmatpush.msra.mxu0 %v5795
      %5815 = vmatpush.msra.mxu0 %v5794
      %5816 = vmatpush.msra.mxu0 %v5793
      %5817 = vmatpush.msra.mxu0 %v5792
      %5818 = vmatpush.msra.mxu0 %v5791
      %5819 = vmatpush.msra.mxu0 %v5790
      %5820 = vmatpush.msra.mxu0 %v5789
      %5821 = vmatmul.f32.gmra.mxu0 %v5787
      %v5822 = vpop.f32.mrf.mxu0
      %v5823 = vadd.f32 0.0, %v5822
      %5824 = vmatmul.f32.gmra.mxu0 %v5788
      %v5825 = vpop.f32.mrf.mxu0
      %v5826 = vadd.f32 0.0, %v5825
      %5827 = vdwg.mxu0
      %v5828 = vld [vmem:[%s45] sm:$0xff]
      %v5829 = vld [vmem:[%s45 + $0x8] sm:$0xff]
      %v5830 = vld [vmem:[%s45 + $0x10] sm:$0xff]
      %v5831 = vld [vmem:[%s45 + $0x18] sm:$0xff]
      %v5832 = vld [vmem:[%s45 + $0x20] sm:$0xff]
      %v5833 = vld [vmem:[%s45 + $0x28] sm:$0xff]
      %v5834 = vld [vmem:[%s45 + $0x30] sm:$0xff]
      %v5835 = vld [vmem:[%s45 + $0x38] sm:$0xff]
      %v5836 = vld [vmem:[%s47] sm:$0x1]
      %v5838 = vsel %vm1151, %v4995, 0
      %5840 = vmatpush.msra.mxu0 0.0
      %5841 = vmatpush.msra.mxu0 0.0
      %5842 = vmatpush.msra.mxu0 0.0
      %5843 = vmatpush.msra.mxu0 0.0
      %5844 = vmatpush.msra.mxu0 0.0
      %5845 = vmatpush.msra.mxu0 0.0
      %5846 = vmatpush.msra.mxu0 0.0
      %5847 = vmatpush.msra.mxu0 0.0
      %5848 = vmatpush.msra.mxu0 %v5835
      %5849 = vmatpush.msra.mxu0 %v5834
      %5850 = vmatpush.msra.mxu0 %v5833
      %5851 = vmatpush.msra.mxu0 %v5832
      %5852 = vmatpush.msra.mxu0 %v5831
      %5853 = vmatpush.msra.mxu0 %v5830
      %5854 = vmatpush.msra.mxu0 %v5829
      %5855 = vmatpush.msra.mxu0 %v5828
      %5856 = vmatmul.f32.gmra.mxu0 %v5838
      %v5857 = vpop.f32.mrf.mxu0
      %v5858 = vadd.f32 %v5836, %v5857
      %5859 = vdwg.mxu0
      %v5860 = vld [vmem:[%s43] sm:$0x7]
      %v5861 = vperm.slane %v5858, 0
      %vm5862 = vcmask 23552
      %v5864 = vsel %vm5862, %v5823, 0
      %v5867 = vsel %vm5862, %v5826, 0
      %vm5869 = vcmask 1042432
      %v5871 = vsel %vm5869, %v5860, 0
      %5873 = vmatpush.msra.mxu0 0.0
      %5874 = vmatpush.msra.mxu0 0.0
      %5875 = vmatpush.msra.mxu0 0.0
      %5876 = vmatpush.msra.mxu0 0.0
      %5877 = vmatpush.msra.mxu0 0.0
      %5878 = vmatpush.msra.mxu0 0.0
      %5879 = vmatpush.msra.mxu0 0.0
      %5880 = vmatpush.msra.mxu0 0.0
      %5881 = vmatpush.msra.mxu0 0.0
      %5882 = vmatpush.msra.mxu0 0.0
      %5883 = vmatpush.msra.mxu0 0.0
      %5884 = vmatpush.msra.mxu0 0.0
      %5885 = vmatpush.msra.mxu0 0.0
      %5886 = vmatpush.msra.mxu0 0.0
      %5887 = vmatpush.msra.mxu0 0.0
      %5888 = vmatpush.msra.mxu0 %v5871
      %5889 = vmatmul.f32.gmra.mxu0 %v5864
      %v5890 = vpop.f32.mrf.mxu0
      %v5891 = vadd.f32 %v5861, %v5890
      %5892 = vmatmul.f32.gmra.mxu0 %v5867
      %v5893 = vpop.f32.mrf.mxu0
      %v5894 = vadd.f32 %v5861, %v5893
      %5895 = vdwg.mxu0
      %v5896 = vmax.f32 %v5891, 0.0
      %v5897 = vmax.f32 %v5894, 0.0
      %v5898 = vld [vmem:[%s49] sm:$0xff]
      %v5899 = vld [vmem:[%s49 + $0x8] sm:$0xff]
      %v5900 = vld [vmem:[%s49 + $0x10] sm:$0xff]
      %v5901 = vld [vmem:[%s49 + $0x18] sm:$0xff]
      %v5902 = vld [vmem:[%s51] sm:$0x1]
      %v5904 = vperm.slane %v5902, 0
      %vm5906 = vcmask 261120
      %v5908 = vsel %vm5906, %v5896, 0
      %v5911 = vsel %vm5906, %v5897, 0
      %5913 = vmatpush.msra.mxu0 0.0
      %5914 = vmatpush.msra.mxu0 0.0
      %5915 = vmatpush.msra.mxu0 0.0
      %5916 = vmatpush.msra.mxu0 0.0
      %5917 = vmatpush.msra.mxu0 0.0
      %5918 = vmatpush.msra.mxu0 0.0
      %5919 = vmatpush.msra.mxu0 0.0
      %5920 = vmatpush.msra.mxu0 0.0
      %5921 = vmatpush.msra.mxu0 0.0
      %5922 = vmatpush.msra.mxu0 0.0
      %5923 = vmatpush.msra.mxu0 0.0
      %5924 = vmatpush.msra.mxu0 0.0
      %5925 = vmatpush.msra.mxu0 %v5901
      %5926 = vmatpush.msra.mxu0 %v5900
      %5927 = vmatpush.msra.mxu0 %v5899
      %5928 = vmatpush.msra.mxu0 %v5898
      %5929 = vmatmul.f32.gmra.mxu0 %v5908
      %v5930 = vpop.f32.mrf.mxu0
      %v5931 = vadd.f32 %v5904, %v5930
      %5932 = vmatmul.f32.gmra.mxu0 %v5911
      %v5933 = vpop.f32.mrf.mxu0
      %v5934 = vadd.f32 %v5904, %v5933
      %5935 = vdwg.mxu0
      %v5936 = vmax.f32 %v5931, 0.0
      %v5937 = vmax.f32 %v5934, 0.0
      %v5938 = vld [vmem:[%s53] sm:$0xff]
      %v5939 = vld [vmem:[%s53 + $0x8] sm:$0xff]
      %v5940 = vld [vmem:[%s55] sm:$0x1]
      %v5942 = vperm.slane %v5940, 0
      %v5945 = vsel %vm1920, %v5936, 0
      %v5948 = vsel %vm1920, %v5937, 0
      %5950 = vmatpush.msra.mxu0 0.0
      %5951 = vmatpush.msra.mxu0 0.0
      %5952 = vmatpush.msra.mxu0 0.0
      %5953 = vmatpush.msra.mxu0 0.0
      %5954 = vmatpush.msra.mxu0 0.0
      %5955 = vmatpush.msra.mxu0 0.0
      %5956 = vmatpush.msra.mxu0 0.0
      %5957 = vmatpush.msra.mxu0 0.0
      %5958 = vmatpush.msra.mxu0 0.0
      %5959 = vmatpush.msra.mxu0 0.0
      %5960 = vmatpush.msra.mxu0 0.0
      %5961 = vmatpush.msra.mxu0 0.0
      %5962 = vmatpush.msra.mxu0 0.0
      %5963 = vmatpush.msra.mxu0 0.0
      %5964 = vmatpush.msra.mxu0 %v5939
      %5965 = vmatpush.msra.mxu0 %v5938
      %5966 = vmatmul.f32.gmra.mxu0 %v5945
      %v5967 = vpop.f32.mrf.mxu0
      %v5968 = vadd.f32 %v5942, %v5967
      %5969 = vmatmul.f32.gmra.mxu0 %v5948
      %v5970 = vpop.f32.mrf.mxu0
      %v5971 = vadd.f32 %v5942, %v5970
      %5972 = vdwg.mxu0
      %v5973 = vld [vmem:[%s59] sm:$0xff]
      %v5974 = vld [vmem:[%s59 + $0x8] sm:$0xff]
      %v5975 = vld [vmem:[%s59 + $0x10] sm:$0xff]
      %v5976 = vld [vmem:[%s59 + $0x18] sm:$0xff]
      %v5977 = vld [vmem:[%s59 + $0x20] sm:$0xff]
      %v5978 = vld [vmem:[%s59 + $0x28] sm:$0xff]
      %v5979 = vld [vmem:[%s59 + $0x30] sm:$0xff]
      %v5980 = vld [vmem:[%s59 + $0x38] sm:$0xff]
      %v5981 = vld [vmem:[%s61] sm:$0x1]
      %5982 = vmatpush.msra.mxu0 0.0
      %5983 = vmatpush.msra.mxu0 0.0
      %5984 = vmatpush.msra.mxu0 0.0
      %5985 = vmatpush.msra.mxu0 0.0
      %5986 = vmatpush.msra.mxu0 0.0
      %5987 = vmatpush.msra.mxu0 0.0
      %5988 = vmatpush.msra.mxu0 0.0
      %5989 = vmatpush.msra.mxu0 0.0
      %5990 = vmatpush.msra.mxu0 %v5980
      %5991 = vmatpush.msra.mxu0 %v5979
      %5992 = vmatpush.msra.mxu0 %v5978
      %5993 = vmatpush.msra.mxu0 %v5977
      %5994 = vmatpush.msra.mxu0 %v5976
      %5995 = vmatpush.msra.mxu0 %v5975
      %5996 = vmatpush.msra.mxu0 %v5974
      %5997 = vmatpush.msra.mxu0 %v5973
      %5998 = vmatmul.f32.gmra.mxu0 %v5838
      %v5999 = vpop.f32.mrf.mxu0
      %v6000 = vadd.f32 %v5981, %v5999
      %6001 = vdwg.mxu0
      %v6002 = vld [vmem:[%s57] sm:$0x7]
      %v6003 = vperm.slane %v6000, 0
      %v6005 = vsel %vm5862, %v5968, 0
      %v6008 = vsel %vm5862, %v5971, 0
      %v6011 = vsel %vm5869, %v6002, 0
      %6013 = vmatpush.msra.mxu0 0.0
      %6014 = vmatpush.msra.mxu0 0.0
      %6015 = vmatpush.msra.mxu0 0.0
      %6016 = vmatpush.msra.mxu0 0.0
      %6017 = vmatpush.msra.mxu0 0.0
      %6018 = vmatpush.msra.mxu0 0.0
      %6019 = vmatpush.msra.mxu0 0.0
      %6020 = vmatpush.msra.mxu0 0.0
      %6021 = vmatpush.msra.mxu0 0.0
      %6022 = vmatpush.msra.mxu0 0.0
      %6023 = vmatpush.msra.mxu0 0.0
      %6024 = vmatpush.msra.mxu0 0.0
      %6025 = vmatpush.msra.mxu0 0.0
      %6026 = vmatpush.msra.mxu0 0.0
      %6027 = vmatpush.msra.mxu0 0.0
      %6028 = vmatpush.msra.mxu0 %v6011
      %6029 = vmatmul.f32.gmra.mxu0 %v6005
      %v6030 = vpop.f32.mrf.mxu0
      %v6031 = vadd.f32 %v6003, %v6030
      %6032 = vmatmul.f32.gmra.mxu0 %v6008
      %v6033 = vpop.f32.mrf.mxu0
      %v6034 = vadd.f32 %v6003, %v6033
      %6035 = vdwg.mxu0
      %v6036 = vmax.f32 %v6031, 0.0
      %v6037 = vmax.f32 %v6034, 0.0
      %v6038 = vld [vmem:[%s63] sm:$0xff]
      %v6039 = vld [vmem:[%s63 + $0x8] sm:$0xff]
      %v6040 = vld [vmem:[%s63 + $0x10] sm:$0xff]
      %v6041 = vld [vmem:[%s63 + $0x18] sm:$0xff]
      %v6042 = vld [vmem:[%s65] sm:$0x1]
      %v6044 = vperm.slane %v6042, 0
      %v6047 = vsel %vm5906, %v6036, 0
      %v6050 = vsel %vm5906, %v6037, 0
      %6052 = vmatpush.msra.mxu0 0.0
      %6053 = vmatpush.msra.mxu0 0.0
      %6054 = vmatpush.msra.mxu0 0.0
      %6055 = vmatpush.msra.mxu0 0.0
      %6056 = vmatpush.msra.mxu0 0.0
      %6057 = vmatpush.msra.mxu0 0.0
      %6058 = vmatpush.msra.mxu0 0.0
      %6059 = vmatpush.msra.mxu0 0.0
      %6060 = vmatpush.msra.mxu0 0.0
      %6061 = vmatpush.msra.mxu0 0.0
      %6062 = vmatpush.msra.mxu0 0.0
      %6063 = vmatpush.msra.mxu0 0.0
      %6064 = vmatpush.msra.mxu0 %v6041
      %6065 = vmatpush.msra.mxu0 %v6040
      %6066 = vmatpush.msra.mxu0 %v6039
      %6067 = vmatpush.msra.mxu0 %v6038
      %6068 = vmatmul.f32.gmra.mxu0 %v6047
      %v6069 = vpop.f32.mrf.mxu0
      %v6070 = vadd.f32 %v6044, %v6069
      %6071 = vmatmul.f32.gmra.mxu0 %v6050
      %v6072 = vpop.f32.mrf.mxu0
      %v6073 = vadd.f32 %v6044, %v6072
      %6074 = vdwg.mxu0
      %v6075 = vmax.f32 %v6070, 0.0
      %v6076 = vmax.f32 %v6073, 0.0
      %v6077 = vld [vmem:[%s67] sm:$0xff]
      %v6078 = vld [vmem:[%s67 + $0x8] sm:$0xff]
      %v6079 = vld [vmem:[%s69] sm:$0x1]
      %v6081 = vperm.slane %v6079, 0
      %v6084 = vsel %vm1920, %v6075, 0
      %v6087 = vsel %vm1920, %v6076, 0
      %6089 = vmatpush.msra.mxu0 0.0
      %6090 = vmatpush.msra.mxu0 0.0
      %6091 = vmatpush.msra.mxu0 0.0
      %6092 = vmatpush.msra.mxu0 0.0
      %6093 = vmatpush.msra.mxu0 0.0
      %6094 = vmatpush.msra.mxu0 0.0
      %6095 = vmatpush.msra.mxu0 0.0
      %6096 = vmatpush.msra.mxu0 0.0
      %6097 = vmatpush.msra.mxu0 0.0
      %6098 = vmatpush.msra.mxu0 0.0
      %6099 = vmatpush.msra.mxu0 0.0
      %6100 = vmatpush.msra.mxu0 0.0
      %6101 = vmatpush.msra.mxu0 0.0
      %6102 = vmatpush.msra.mxu0 0.0
      %6103 = vmatpush.msra.mxu0 %v6078
      %6104 = vmatpush.msra.mxu0 %v6077
      %6105 = vmatmul.f32.gmra.mxu0 %v6084
      %v6106 = vpop.f32.mrf.mxu0
      %v6107 = vadd.f32 %v6081, %v6106
      %6108 = vmatmul.f32.gmra.mxu0 %v6087
      %v6109 = vpop.f32.mrf.mxu0
      %v6110 = vadd.f32 %v6081, %v6109
      %6111 = vdwg.mxu0
      %6112 = vst.msk [vmem:[%s1126] sm:$0xff] %vm1151, %v4943
      %6113 = vst.msk [vmem:[%s1126 + $0x8] sm:$0xff] %vm1151, %v4944
      %6114 = vst.msk [vmem:[%s1126 + $0x10] sm:$0xff] %vm1151, %v4945
      %6115 = vst.msk [vmem:[%s1126 + $0x18] sm:$0xff] %vm1151, %v4946
      %6116 = vst.msk [vmem:[%s1126 + $0x20] sm:$0xff] %vm1151, %v4947
      %6117 = vst.msk [vmem:[%s1126 + $0x28] sm:$0xff] %vm1151, %v4948
      %6118 = vst.msk [vmem:[%s1126 + $0x30] sm:$0xff] %vm1151, %v4949
      %6119 = vst.msk [vmem:[%s1126 + $0x38] sm:$0xff] %vm1151, %v4950
      %6120 = vst.msk [vmem:[%s1126 + $0x40] sm:$0xff] %vm1151, %v4951
      %6121 = vst.msk [vmem:[%s1126 + $0x48] sm:$0xff] %vm1151, %v4952
      %6122 = vst.msk [vmem:[%s1126 + $0x50] sm:$0xff] %vm1151, %v4953
      %6123 = vst.msk [vmem:[%s1126 + $0x58] sm:$0xff] %vm1151, %v4954
      %6124 = vst.msk [vmem:[%s1126 + $0x60] sm:$0xff] %vm1151, %v4955
      %6125 = vst.msk [vmem:[%s1126 + $0x68] sm:$0xff] %vm1151, %v4956
      %6126 = vst.msk [vmem:[%s1126 + $0x70] sm:$0xff] %vm1151, %v4957
      %6127 = vst.msk [vmem:[%s1126 + $0x78] sm:$0xff] %vm1151, %v4958
      %6128 = vst.msk [vmem:[%s1126 + $0x80] sm:$0xff] %vm1151, %v5715
      %6129 = vst.msk [vmem:[%s1126 + $0x88] sm:$0xff] %vm1151, %v5717
      %6130 = vst.msk [vmem:[%s1131] sm:$0xff] %vm5862, %v5789
      %6131 = vst.msk [vmem:[%s1131 + $0x8] sm:$0xff] %vm5862, %v5790
      %6132 = vst.msk [vmem:[%s1131 + $0x10] sm:$0xff] %vm5862, %v5791
      %6133 = vst.msk [vmem:[%s1131 + $0x18] sm:$0xff] %vm5862, %v5792
      %6134 = vst.msk [vmem:[%s1131 + $0x20] sm:$0xff] %vm5862, %v5793
      %6135 = vst.msk [vmem:[%s1131 + $0x28] sm:$0xff] %vm5862, %v5794
      %6136 = vst.msk [vmem:[%s1131 + $0x30] sm:$0xff] %vm5862, %v5795
      %6137 = vst.msk [vmem:[%s1131 + $0x38] sm:$0xff] %vm5862, %v5796
      %6138 = vst.msk [vmem:[%s1131 + $0x40] sm:$0xff] %vm5862, %v5797
      %6139 = vst.msk [vmem:[%s1131 + $0x48] sm:$0xff] %vm5862, %v5798
      %6140 = vst.msk [vmem:[%s1131 + $0x50] sm:$0xff] %vm5862, %v5799
      %6141 = vst.msk [vmem:[%s1131 + $0x58] sm:$0xff] %vm5862, %v5800
      %6142 = vst.msk [vmem:[%s1131 + $0x60] sm:$0xff] %vm5862, %v5801
      %6143 = vst.msk [vmem:[%s1131 + $0x68] sm:$0xff] %vm5862, %v5802
      %6144 = vst.msk [vmem:[%s1131 + $0x70] sm:$0xff] %vm5862, %v5803
      %6145 = vst.msk [vmem:[%s1131 + $0x78] sm:$0xff] %vm5862, %v5804
      %6146 = vst.msk [vmem:[%s1131 + $0x80] sm:$0xff] %vm5862, %v6107
      %6147 = vst.msk [vmem:[%s1131 + $0x88] sm:$0xff] %vm5862, %v6110
      %p6148 = scmp.lt.s32.totalorder %s85, 1
      %s6149 = scalar_select %p6148, %s85, 1
      %s6150 = smul.addr %s6149, 18
      %s6151 = smul.addr %s6150, 8
      %s6152 = scalar_lea.vmem %s71, %s6151
      %p6153 = scmp.lt.s32.totalorder %s85, 1
      %s6154 = scalar_select %p6153, %s85, 1
      %s6155 = smul.addr %s6154, 18
      %s6156 = smul.addr %s6155, 8
      %s6157 = scalar_lea.vmem %s73, %s6156
      // Predicated region
      $region161: #{encoder_block_forward.1} parent=159 // pred_check
        %p6158 = pneg %p848
      $region162: #{encoder_block_forward.1} parent=159 // pred_check_branch
        %6160 = sbr.rel (%p6158) target = $region164
      $region163: #{encoder_block_forward.1} parent=159 // pred_region
        _
      $region164: #{encoder_block_forward.1} parent=159 // pred_fallthru
        _
      // Predicated region
      $region165: #{encoder_block_forward.1} parent=159 // pred_check
        %p6161 = pneg %p874
      $region166: #{encoder_block_forward.1} parent=159 // pred_check_branch
        %6163 = sbr.rel (%p6161) target = $region168
      $region167: #{encoder_block_forward.1} parent=159 // pred_region
        _
      $region168: #{encoder_block_forward.1} parent=159 // pred_fallthru
        _
    $region160: #{encoder_block_forward.1} parent=5 // pred_fallthru
      _
    %p6164 = scmp.le.s32.totalorder 2, %s80
    // Predicated region
    $region169: #{encoder_block_forward.1} parent=5 // pred_check
      %p6165 = pneg %p6164
    $region170: #{encoder_block_forward.1} parent=5 // pred_check_branch
      %6167 = sbr.rel (%p6165) target = $region172
    $region171: #{encoder_block_forward.1} parent=5 // pred_region
      %s6168 = ssub.s32 %s80, 2
      // Predicated region
      $region173: #{encoder_block_forward.1} parent=171 // pred_check
        %p6169 = pneg %p854
      $region174: #{encoder_block_forward.1} parent=171 // pred_check_branch
        %6171 = sbr.rel (%p6169) target = $region176
      $region175: #{encoder_block_forward.1} parent=171 // pred_region
        %p6172 = scmp.lt.s32.totalorder %s86, 1
        %s6173 = scalar_select %p6172, %s86, 1
        %s6174 = smul.addr %s6173, 18
        %s6175 = smul.addr %s6174, 8
        %s6176 = scalar_lea.vmem %s71, %s6175
      $region176: #{encoder_block_forward.1} parent=171 // pred_fallthru
        _
      // Predicated region
      $region177: #{encoder_block_forward.1} parent=171 // pred_check
        %p6177 = pneg %p880
      $region178: #{encoder_block_forward.1} parent=171 // pred_check_branch
        %6179 = sbr.rel (%p6177) target = $region180
      $region179: #{encoder_block_forward.1} parent=171 // pred_region
        %p6180 = scmp.lt.s32.totalorder %s86, 1
        %s6181 = scalar_select %p6180, %s86, 1
        %s6182 = smul.addr %s6181, 18
        %s6183 = smul.addr %s6182, 8
        %s6184 = scalar_lea.vmem %s73, %s6183
      $region180: #{encoder_block_forward.1} parent=171 // pred_fallthru
        _
    $region172: #{encoder_block_forward.1} parent=5 // pred_fallthru
      _
  $region6: #{encoder_block_forward.1} parent=0 // loop_footer
    %s84 = sadd.s32 1, %s80
  $region7: #{encoder_block_forward.1} parent=0 // loop_footer_branch
    %79 = sbr.rel target = $region3
  $region8: #{encoder_block_forward.1} parent=0 // loop_exit
    _

</llo_original>
